<compile_context>
chip_gen: v7x
topology: tpu7x:2x2x1
jax: 0.10.0
libtpu: 0.0.40
codegen_flags: <defaults>
</compile_context>

<pallas_src>
import functools

import jax
import jax.numpy as jnp
from jax import lax
from jax.experimental import pallas as pl
from jax.experimental.pallas import tpu as pltpu

# ----------------------------- config ---------------------------------------
VOCAB = 32            # cfg.DATASET.VOCABULARY_SIZE
EMB = 16              # cfg.AEJEPS.EMBEDDING_DIM
HID = 32              # cfg.AEJEPS.HIDDEN_DIM
NDIR = 2              # bidirectional encoder LSTM
DEC_HID = NDIR * HID  # decoder_hidden_dim = 64
CNN_FC_DIM = EMB      # cfg.AEJEPS.CNN_FC_DIM (must equal EMB for concat)
SOS = 1               # cfg.DATASET.SOS
FEAT_C, FEAT_HW = 2048, 7   # ResNet50 bottleneck feature map: 2048 x 7 x 7
FEAT_FLAT = FEAT_C * FEAT_HW * FEAT_HW   # 100352


# ------------------------ generic linear / matmul kernel --------------------
def _linear_kernel(x_ref, w_ref, b_ref, o_ref, acc_ref, *, act):
    k = pl.program_id(1)

    @pl.when(k == 0)
    def _():
        acc_ref[...] = jnp.zeros_like(acc_ref)

    acc_ref[...] += jnp.dot(x_ref[...], w_ref[...],
                            preferred_element_type=jnp.float32)

    @pl.when(k == pl.num_programs(1) - 1)
    def _():
        y = acc_ref[...] + b_ref[...]            # f32 epilogue (v5e: no bf16 VPU)
        if act == "relu":
            y = jnp.maximum(y, 0.0)
        elif act == "tanh":
            y = jnp.tanh(y)
        o_ref[...] = y.astype(o_ref.dtype)


def _pick_tile(d, max_tile):
    if d <= max_tile:
        return d
    for v in range(max_tile, 127, -128):     # multiples of 128
        if d % v == 0:
            return v
    return d


def pallas_linear(x, w, b, act="none", max_tile_k=2048, max_tile_n=2048,
                  out_dtype=jnp.float32):
    """y = act(x @ w + b), x:(M,K), w:(K,N) [f32 or bf16], b:(N,) or (1,N)."""
    M, K = x.shape
    _, N = w.shape
    tk = _pick_tile(K, max_tile_k)
    tn = _pick_tile(N, max_tile_n)
    grid = (N // tn, K // tk)                 # reduction (K) innermost
    # bf16 weight streaming: cast activations to the weight dtype at MXU input,
    # keep f32 accumulation / bias / epilogue.
    cdt = jnp.bfloat16 if w.dtype == jnp.bfloat16 else jnp.float32
    b2 = b.reshape(1, N).astype(jnp.float32)
    return pl.pallas_call(
        functools.partial(_linear_kernel, act=act),
        out_shape=jax.ShapeDtypeStruct((M, N), out_dtype),
        grid=grid,
        in_specs=[
            pl.BlockSpec((M, tk), lambda j, k: (0, k)),
            pl.BlockSpec((tk, tn), lambda j, k: (k, j)),
            pl.BlockSpec((1, tn), lambda j, k: (0, j)),
        ],
        out_specs=pl.BlockSpec((M, tn), lambda j, k: (0, j)),
        scratch_shapes=[pltpu.VMEM((M, tn), jnp.float32)],
        compiler_params=pltpu.CompilerParams(
            # N axis "parallel": on v7x a 2-step N grid (proj2) shards the
            # weight stream across both TensorCores.
            dimension_semantics=("parallel", "arbitrary"),
            # Safe on all generations; the tile plans below stay under ~8 MB
            # double-buffered, well inside v7x's 64 MiB physical VMEM.
            vmem_limit_bytes=32 * 1024 * 1024),
    )(x.astype(cdt), w, b2)


# -------------------- gate-interleave helpers (block-diag fusion) -----------
def _interleave_dir_cols(w, h, which):
    """Place a per-direction/per-branch (K, 4h) gate weight into the combined
    (K, 8h) gate-interleaved column layout [i0 i1 | f0 f1 | g0 g1 | o0 o1],
    zeros in the other branch's columns, so two recurrences share ONE
    block-diagonal matmul."""
    K = w.shape[0]
    w4 = w.reshape(K, 4, h)
    z = jnp.zeros_like(w4)
    pair = (w4, z) if which == 0 else (z, w4)
    return jnp.stack(pair, axis=2).reshape(K, 8 * h)


def _interleave_dir_bias(b0, b1, h):
    return jnp.stack([b0.reshape(4, h), b1.reshape(4, h)], axis=1).reshape(1, 8 * h)


# --------------------- fused bidirectional encoder LSTM ----------------------
def _bilstm_kernel(x_ref, len_ref, wxf_ref, wxb_ref, whh_ref, b_ref,
                   hid_ref, car_ref, *, max_len):
    B, H2 = hid_ref.shape        # H2 = 2*HID, combined state layout [fwd | bwd]
    G = whh_ref.shape[1]         # 8*HID combined (gate-interleaved) gates
    q = G // 4
    H = H2 // 2

    lens = len_ref[...]                                            # (B, 1)
    fwd_mask = lax.broadcasted_iota(jnp.int32, (B, H2), 1) < H     # hoisted

    def step(s, hc):
        h, c = hc
        t_f = s                      # forward-direction timestep
        t_b = max_len - 1 - s        # backward-direction timestep
        # ONE dependent MXU op per serial step (h @ block-diag Whh); the two
        # x-input projections do not depend on the recurrent state so the
        # scheduler overlaps them across unrolled iterations.
        gates = (jnp.dot(x_ref[t_f], wxf_ref[...],
                         preferred_element_type=jnp.float32)
                 + jnp.dot(x_ref[t_b], wxb_ref[...],
                           preferred_element_type=jnp.float32)
                 + jnp.dot(h, whh_ref[...],
                           preferred_element_type=jnp.float32)
                 + b_ref[...])
        i_g = jax.nn.sigmoid(gates[:, 0 * q:1 * q])
        f_g = jax.nn.sigmoid(gates[:, 1 * q:2 * q])
        g_g = jnp.tanh(gates[:, 2 * q:3 * q])
        o_g = jax.nn.sigmoid(gates[:, 3 * q:4 * q])
        c_new = f_g * c + i_g * g_g
        h_new = o_g * jnp.tanh(c_new)
        # pack_padded_sequence semantics: each direction's state advances only
        # while its timestep is < length (per batch element).
        t_cur = jnp.where(fwd_mask, t_f, t_b)
        valid = t_cur < lens
        return (jnp.where(valid, h_new, h), jnp.where(valid, c_new, c))

    init = (jnp.zeros((B, H2), jnp.float32), jnp.zeros((B, H2), jnp.float32))
    # Serial loop bounded by the runtime max length (<= L), not the 4L
    # concatenated length: the skipped steps are exact no-ops.
    h, c = lax.fori_loop(0, max_len, step, init, unroll=2)
    hid_ref[...] = h
    car_ref[...] = c


def pallas_bilstm(p, x_tbe, lengths, max_len):
    T, B, E = x_tbe.shape
    H = HID
    # Gate-interleaved per-direction weights; Whh is block-diagonal over
    # [h_fwd | h_bwd] so both directions run in one dependent matmul per step.
    wxf = _interleave_dir_cols(p["lstm_f_wih"], H, 0)          # (E, 8H)
    wxb = _interleave_dir_cols(p["lstm_b_wih"], H, 1)          # (E, 8H)
    whh = jnp.concatenate([_interleave_dir_cols(p["lstm_f_whh"], H, 0),
                           _interleave_dir_cols(p["lstm_b_whh"], H, 1)],
                          axis=0)                              # (2H, 8H)
    b_comb = _interleave_dir_bias(p["lstm_f_b"], p["lstm_b_b"], H)

    return pl.pallas_call(
        functools.partial(_bilstm_kernel, max_len=max_len),
        out_shape=(jax.ShapeDtypeStruct((B, 2 * H), jnp.float32),
                   jax.ShapeDtypeStruct((B, 2 * H), jnp.float32)),
        grid=(1,),
        in_specs=[
            pl.BlockSpec((T, B, E), lambda i: (0, 0, 0)),
            pl.BlockSpec((B, 1), lambda i: (0, 0)),
            pl.BlockSpec((E, 8 * H), lambda i: (0, 0)),
            pl.BlockSpec((E, 8 * H), lambda i: (0, 0)),
            pl.BlockSpec((2 * H, 8 * H), lambda i: (0, 0)),
            pl.BlockSpec((1, 8 * H), lambda i: (0, 0)),
        ],
        out_specs=(pl.BlockSpec((B, 2 * H), lambda i: (0, 0)),
                   pl.BlockSpec((B, 2 * H), lambda i: (0, 0))),
    )(x_tbe.astype(jnp.float32), lengths, wxf, wxb, whh, b_comb)


# ---------- fused autoregressive LSTMCell decoders (lang + motor) -----------
def _dual_decode_kernel(whh_ref, b_ref, head_ref, hb_ref, eg_ref, gx0_ref,
                        h0_ref, c0_ref, out_ref, *, T, V, act):
    B, HC = h0_ref.shape          # HC = 2*DEC_HID, state layout [lang | motor]
    G = whh_ref.shape[1]          # 8*DEC_HID combined gates
    q = G // 4

    iota2v = lax.broadcasted_iota(jnp.int32, (B, 2 * V), 1)     # hoisted
    branch_mask = iota2v < V                                    # lang columns

    def step(t, carry):
        h, c, gx = carry
        # MXU op 1/3: both LSTMCells via one block-diagonal matmul.
        gates = (gx
                 + jnp.dot(h, whh_ref[...], preferred_element_type=jnp.float32)
                 + b_ref[...])
        i_g = jax.nn.sigmoid(gates[:, 0 * q:1 * q])
        f_g = jax.nn.sigmoid(gates[:, 1 * q:2 * q])
        g_g = jnp.tanh(gates[:, 2 * q:3 * q])
        o_g = jax.nn.sigmoid(gates[:, 3 * q:4 * q])
        c_new = f_g * c + i_g * g_g
        h_new = o_g * jnp.tanh(c_new)

        # MXU op 2/3: both output heads via one block-diagonal matmul.
        logits = (jnp.dot(h_new, head_ref[...],
                          preferred_element_type=jnp.float32) + hb_ref[...])
        if act == "tanh":
            scores = jnp.tanh(logits)
        elif act == "relu":
            scores = jnp.maximum(logits, 0.0)
        else:
            scores = logits
        out_ref[pl.ds(t, 1), :, :] = scores[jnp.newaxis]        # (1, B, 2V)

        # Greedy argmax feedback per branch (lowest-index tie-break), built
        # with full-width masked selects (no in-kernel concatenate).
        # TODO(synk): teacher-forcing path for train mode not implemented.
        m_l = jnp.max(jnp.where(branch_mask, scores, -jnp.inf),
                      axis=1, keepdims=True)
        m_m = jnp.max(jnp.where(branch_mask, -jnp.inf, scores),
                      axis=1, keepdims=True)
        m_b = jnp.where(branch_mask, m_l, m_m)
        cand = jnp.where(scores == m_b, iota2v, 2 * V)
        id_l = jnp.min(jnp.where(branch_mask, cand, 2 * V),
                       axis=1, keepdims=True)
        id_m = jnp.min(jnp.where(branch_mask, 2 * V, cand),
                       axis=1, keepdims=True)
        ids = jnp.where(branch_mask, id_l, id_m)
        onehot = (iota2v == ids).astype(jnp.float32)            # (B, 2V)
        # MXU op 3/3: (argmax -> one-hot -> embedding -> Wih) for BOTH branches
        # folded into one matmul against the block-diagonal emb@Wih table.
        gx_new = jnp.dot(onehot, eg_ref[...],
                         preferred_element_type=jnp.float32)
        return (h_new, c_new, gx_new)

    init = (h0_ref[...], c0_ref[...],
            jnp.broadcast_to(gx0_ref[...], (B, G)))             # SOS feedback
    # unroll=2 interleaves the lang/motor chains without the vreg pressure of
    # a fully (T<=11)-unrolled static Python loop.
    lax.fori_loop(0, T, step, init, unroll=2)


def pallas_dual_decode(p, h0, c0, max_len, act):
    B, H2 = h0.shape
    V = VOCAB
    # Block-diagonal / gate-interleaved combined parameters: each decoded token
    # costs 3 dependent MXU ops instead of 6.
    whh_comb = jnp.concatenate([
        _interleave_dir_cols(p["lang_whh"], H2, 0),
        _interleave_dir_cols(p["motor_whh"], H2, 1)], axis=0)       # (2H2, 8H2)
    b_comb = _interleave_dir_bias(p["lang_b"], p["motor_b"], H2)    # (1, 8H2)
    zhead = jnp.zeros((H2, V), jnp.float32)
    head_comb = jnp.concatenate([
        jnp.concatenate([p["lang_head_w"], zhead], axis=1),
        jnp.concatenate([zhead, p["motor_head_w"]], axis=1)], axis=0)  # (2H2, 2V)
    head_b_comb = jnp.concatenate([p["lang_head_b"], p["motor_head_b"]], axis=1)
    eg_l = jnp.dot(p["emb"], p["lang_wih"])       # (V, 4H2)  emb @ Wih tables
    eg_m = jnp.dot(p["emb"], p["motor_wih"])
    eg_comb = jnp.concatenate([_interleave_dir_cols(eg_l, H2, 0),
                               _interleave_dir_cols(eg_m, H2, 1)],
                              axis=0)                               # (2V, 8H2)
    gx0 = (eg_comb[SOS] + eg_comb[V + SOS]).reshape(1, 8 * H2)      # SOS, both
    h0c = jnp.concatenate([h0, h0], axis=-1)                        # [lang|motor]
    c0c = jnp.concatenate([c0, c0], axis=-1)

    def full(shape):
        return pl.BlockSpec(shape, lambda i, _s=shape: (0,) * len(_s))

    out = pl.pallas_call(
        functools.partial(_dual_decode_kernel, T=max_len, V=V, act=act),
        out_shape=jax.ShapeDtypeStruct((max_len, B, 2 * V), jnp.float32),
        grid=(1,),
        in_specs=[
            full((2 * H2, 8 * H2)), full((1, 8 * H2)),
            full((2 * H2, 2 * V)), full((1, 2 * V)),
            full((2 * V, 8 * H2)), full((1, 8 * H2)),
            full((B, 2 * H2)), full((B, 2 * H2)),
        ],
        out_specs=full((max_len, B, 2 * V)),
    )(whh_comb, b_comb, head_comb, head_b_comb, eg_comb, gx0, h0c, c0c)
    out = jnp.transpose(out, (1, 0, 2))               # (B, T, 2V)
    return out[:, :, :V], out[:, :, V:]


# -------------------- image feature extractor / image decoder ---------------
def image_feature_extractor(p, imgs):
    """ResNetEncoder -> Flatten -> Linear(2048*7*7, CNN_FC_DIM), batched."""
    # TODO(synk): full ResNet50 encoder block stack not reproduced; a single
    #             2x2/stride-2 conv (as im2col Pallas matmul) produces 2048x7x7.
    N, C, H, W = imgs.shape
    xr = imgs.reshape(N, C, H // 2, 2, W // 2, 2)
    patches = xr.transpose(0, 2, 4, 1, 3, 5).reshape(
        N * (H // 2) * (W // 2), C * 4)                           # (N*49, 12)
    wconv = p["enc_conv_w"].reshape(FEAT_C, C * 4).T              # (12, 2048)
    y = pallas_linear(patches, wconv, p["enc_conv_b"], act="relu",
                      out_dtype=jnp.bfloat16)                     # bf16 feed
    # TODO(synk): fuse this conv with enc_fc in one kernel to also remove the
    #             ~1.6 MB bf16 HBM round trip of the intermediate feature map.
    # Flatten in NHWC order; enc_fc_w rows were pre-permuted (c,h,w)->(h,w,c)
    # at init, so no runtime transpose of the 2048x7x7 feature map is needed.
    flat = y.reshape(N, (H // 2) * (W // 2) * FEAT_C)             # (N, 100352)
    # Full-K single grid step: the 3.2 MB bf16 weight stream is the whole cost;
    # avoid 7x ~0.35 us per-grid-step overhead (fits v5e's 16 MiB scoped VMEM).
    return pallas_linear(flat, p["enc_fc_w"], p["enc_fc_b"], act="none",
                         max_tile_k=FEAT_FLAT)                    # 1 K-step


def image_decoder(p, x_hwc):
    """Stand-in ResNetDecoder: 1x1 conv 2048->3 at 7x7 as a Pallas matmul."""
    # TODO(synk): full transpose-conv ResNetDecoder (up to 3x224x224) not reproduced.
    B = x_hwc.shape[0] // (FEAT_HW * FEAT_HW)
    y = pallas_linear(x_hwc, p["imgdec_w"], p["imgdec_b"], act="none")
    return y.reshape(B, FEAT_HW, FEAT_HW, 3).transpose(0, 3, 1, 2)


def reconstruct_image(p, hidden):
    # img_projection: Linear(dec_hid, CNN_FC_DIM) -> ReLU -> Linear(CNN_FC_DIM, 2048*7*7)
    h1 = pallas_linear(hidden, p["proj1_w"], p["proj1_b"], act="relu")
    # proj2: 2 N-steps (tn=50176) on a parallel N axis -> v7x's two TensorCores
    # stream disjoint halves of the 3.2 MB bf16 weight; v5e/v6e pay only one
    # extra ~0.35 us grid step.  bf16 output + bf16 imgdec weight halve the
    # proj2->imgdec intermediate bytes and avoid any wrapper upcast.
    # proj2_w columns were pre-permuted (c,h,w)->(h,w,c) at init, so the output
    # feeds the 1x1-conv decoder in NHWC order with no runtime transpose.
    conv_in = pallas_linear(h1, p["proj2_w"], p["proj2_b"], act="none",
                            max_tile_n=50176, out_dtype=jnp.bfloat16)
    # TODO(synk): fold the 1x1 imgdec matmul into the proj2 epilogue to remove
    #             this remaining bf16 intermediate round trip entirely.
    B = conv_in.shape[0]
    x_hwc = conv_in.reshape(B * FEAT_HW * FEAT_HW, FEAT_C)
    return image_decoder(p, x_hwc)


# ------------------------------ JEPSAM forward -------------------------------
def jepsam_forward(p, in_state, goal_state, ad, cmd, ad_lens, cmd_lens,
                   mode="train"):
    B, _, L = ad.shape

    # ---- JEPSAMEncoder ----
    ad_emb = jnp.take(p["emb"], ad, axis=0)                          # (B,1,L,E)
    if mode == "train":
        # Batch both images through ONE extractor call: the 100352x16 enc_fc
        # weight (dominant HBM stream) is read once instead of twice.
        feats = image_feature_extractor(
            p, jnp.concatenate([in_state, goal_state], axis=0))      # (2B, 16)
        feats_per, feats_goal = feats[:B], feats[B:]
        cmd_emb = jnp.take(p["emb"], cmd, axis=0)
        lengths_max = [max(a, c) for a, c in zip(ad_lens, cmd_lens)]
    else:
        feats_per = image_feature_extractor(p, in_state)
        feats_goal = jnp.zeros_like(feats_per)
        cmd_emb = jnp.zeros_like(ad_emb)
        lengths_max = list(ad_lens)

    feats_per_seq = jnp.tile(feats_per, (1, L)).reshape(B, L, -1)
    feats_goal_seq = jnp.tile(feats_goal, (1, L)).reshape(B, L, -1)

    concat = jnp.concatenate(
        [feats_per_seq, feats_goal_seq, ad_emb[:, 0], cmd_emb[:, 0]], axis=-2)
    x_tbe = jnp.transpose(concat, (1, 0, 2))                         # (T=4L, B, E)
    len_arr = jnp.asarray(lengths_max, jnp.int32).reshape(B, 1)
    max_len = int(max(lengths_max))

    # pack_padded_sequence semantics, matching the reference model: only the
    # first lengths_max[b] (<= L) timesteps of the concatenated 4L sequence
    # update the state; the fused bidirectional Pallas LSTM masks per batch
    # element and bounds its serial loop at max_len.
    hidden, carousel = pallas_bilstm(p, x_tbe, len_arr, max_len)
    # hidden / carousel are already the JEPSAMDecoder._rearrange_states layout
    # [h_fwd | h_bwd] (B, 2*HID).

    dec_max_len = max_len if mode == "train" else 11

    lang_out, motor_out = pallas_dual_decode(p, hidden, carousel,
                                             dec_max_len, act="tanh")

    # _generate_goal_image == _reconstruct_image on identical inputs: compute
    # the heavy proj2 / image-decoder path once and reuse it (assumes shared
    # projection weights, as in the reference).
    per_image_rec = reconstruct_image(p, hidden)
    goal_image = per_image_rec
    return per_image_rec, goal_image, lang_out, motor_out


# ------------------------------ parameters -----------------------------------
def _chw_rows_to_hwc(w):
    """Permute weight ROWS from (c,h,w)-flatten order to (h,w,c) order."""
    K, N = w.shape
    return (w.reshape(FEAT_C, FEAT_HW, FEAT_HW, N)
             .transpose(1, 2, 0, 3).reshape(K, N))


def _chw_cols_to_hwc(w):
    """Permute weight COLS from (c,h,w)-flatten order to (h,w,c) order."""
    M, K = w.shape
    return (w.reshape(M, FEAT_C, FEAT_HW, FEAT_HW)
             .transpose(0, 2, 3, 1).reshape(M, K))


def init_params(key):
    ks = iter(jax.random.split(key, 40))

    def nrm(shape, fan_in):
        return jax.random.normal(next(ks), shape, jnp.float32) / jnp.sqrt(float(fan_in))

    p = {}
    p["emb"] = nrm((VOCAB, EMB), 1.0)                  # shared encoder/decoder embedding
    p["enc_conv_w"] = nrm((FEAT_C, 3, 2, 2), 12)
    p["enc_conv_b"] = jnp.zeros((FEAT_C,), jnp.float32)
    # big weight streams: rows/cols pre-permuted for NHWC consumption, bf16 storage
    p["enc_fc_w"] = _chw_rows_to_hwc(
        nrm((FEAT_FLAT, CNN_FC_DIM), FEAT_C * 49)).astype(jnp.bfloat16)
    p["enc_fc_b"] = jnp.zeros((CNN_FC_DIM,), jnp.float32)
    for d in ("f", "b"):                               # bidirectional encoder LSTM
        p[f"lstm_{d}_wih"] = nrm((EMB, 4 * HID), EMB)
        p[f"lstm_{d}_whh"] = nrm((HID, 4 * HID), HID)
        p[f"lstm_{d}_b"] = jnp.zeros((1, 4 * HID), jnp.float32)
    for nm in ("lang", "motor"):                       # decoder LSTMCells + heads
        p[f"{nm}_wih"] = nrm((EMB, 4 * DEC_HID), EMB)
        p[f"{nm}_whh"] = nrm((DEC_HID, 4 * DEC_HID), DEC_HID)
        p[f"{nm}_b"] = jnp.zeros((1, 4 * DEC_HID), jnp.float32)
        p[f"{nm}_head_w"] = nrm((DEC_HID, VOCAB), DEC_HID)
        p[f"{nm}_head_b"] = jnp.zeros((1, VOCAB), jnp.float32)
    p["proj1_w"] = nrm((DEC_HID, CNN_FC_DIM), DEC_HID)
    p["proj1_b"] = jnp.zeros((1, CNN_FC_DIM), jnp.float32)
    p["proj2_w"] = _chw_cols_to_hwc(
        nrm((CNN_FC_DIM, FEAT_FLAT), CNN_FC_DIM)).astype(jnp.bfloat16)
    p["proj2_b"] = jnp.zeros((1, FEAT_FLAT), jnp.float32)  # zeros: perm irrelevant
    p["imgdec_w"] = nrm((FEAT_C, 3), FEAT_C).astype(jnp.bfloat16)   # bf16: no upcast
    p["imgdec_b"] = jnp.zeros((1, 3), jnp.float32)
    return p


# --------------------------------- main ---------------------------------------
if __name__ == "__main__":
    key = jax.random.PRNGKey(0)
    k_par, k_img1, k_img2, k_ad, k_cmd = jax.random.split(key, 5)
    params = init_params(k_par)

    B, L = 2, 8
    in_state = jax.random.normal(k_img1, (B, 3, 14, 14), jnp.float32)
    goal_state = jax.random.normal(k_img2, (B, 3, 14, 14), jnp.float32)
    ad = jax.random.randint(k_ad, (B, 1, L), 0, VOCAB)
    cmd = jax.random.randint(k_cmd, (B, 1, L), 0, VOCAB)
    ad_lens = [8, 5]
    cmd_lens = [6, 7]

    outs = jepsam_forward(params, in_state, goal_state, ad, cmd, ad_lens, cmd_lens)
    outs = jax.block_until_ready(outs)
    rec, goal, lang, motor = outs

    dec_len = max(max(a, c) for a, c in zip(ad_lens, cmd_lens))
    assert rec.shape == (B, 3, FEAT_HW, FEAT_HW)
    assert goal.shape == (B, 3, FEAT_HW, FEAT_HW)
    assert lang.shape == (B, dec_len, VOCAB)
    assert motor.shape == (B, dec_len, VOCAB)
    assert bool(jnp.all(jnp.isfinite(rec))) and bool(jnp.all(jnp.isfinite(lang)))
    print("KERNEL_OK")
</pallas_src>

<mosaic_0001>
module attributes {stable_mosaic.version = 11 : i64} {
  func.func @_linear_kernel(%arg0: i32, %arg1: i32, %arg2: memref<196x12xf32, #tpu.memory_space<vmem>>, %arg3: memref<12x2048xf32, #tpu.memory_space<vmem>>, %arg4: memref<1x2048xf32, #tpu.memory_space<vmem>>, %arg5: memref<196x2048xbf16, #tpu.memory_space<vmem>>, %arg6: memref<196x2048xf32, #tpu.memory_space<vmem>>) attributes {dimension_semantics = [#tpu.dimension_semantics<parallel>, #tpu.dimension_semantics<arbitrary>], iteration_bounds = array<i64: 1, 1>, scalar_prefetch = 0 : i64, scratch_operands = 1 : i64, tpu.core_type = #tpu.core_type<tc>, window_params = [{transform_indices = @transform_0, window_bounds = array<i64: 196, 12>}, {transform_indices = @transform_1, window_bounds = array<i64: 12, 2048>}, {transform_indices = @transform_2, window_bounds = array<i64: 1, 2048>}, {transform_indices = @transform_3, window_bounds = array<i64: 196, 2048>}]} {
    %c0_i32 = arith.constant 0 : i32
    %0 = arith.cmpi eq, %arg1, %c0_i32 : i32
    %1 = arith.extui %0 : i1 to i32
    %c0_i32_0 = arith.constant 0 : i32
    %2 = arith.cmpi ne, %1, %c0_i32_0 : i32
    scf.if %2 {
      %cst_10 = arith.constant 0.000000e+00 : f32
      %12 = vector.broadcast %cst_10 : f32 to vector<196x2048xf32>
      %c0_11 = arith.constant 0 : index
      %c0_12 = arith.constant 0 : index
      %13 = vector.load %arg6[%c0_11, %c0_12] : memref<196x2048xf32, #tpu.memory_space<vmem>>, vector<196x2048xf32>
      tpu.vector_store %arg6[%c0_11, %c0_12], %12 {strides = array<i32>} : memref<196x2048xf32, #tpu.memory_space<vmem>>, vector<196x2048xf32>,
    } else {
    }
    %c0 = arith.constant 0 : index
    %c0_1 = arith.constant 0 : index
    %3 = vector.load %arg6[%c0, %c0_1] : memref<196x2048xf32, #tpu.memory_space<vmem>>, vector<196x2048xf32>
    %c0_2 = arith.constant 0 : index
    %c0_3 = arith.constant 0 : index
    %4 = vector.load %arg2[%c0_2, %c0_3] : memref<196x12xf32, #tpu.memory_space<vmem>>, vector<196x12xf32>
    %c0_4 = arith.constant 0 : index
    %c0_5 = arith.constant 0 : index
    %5 = vector.load %arg3[%c0_4, %c0_5] : memref<12x2048xf32, #tpu.memory_space<vmem>>, vector<12x2048xf32>
    %cst = arith.constant dense<0.000000e+00> : vector<196x2048xf32>
    %6 = tpu.matmul %4, %5, %cst {dimension_numbers = #tpu.dot_dimension_numbers<[1], [0], [0], [1], [0, 0, 1, 1], [], []>} : vector<196x12xf32>, vector<12x2048xf32>, vector<196x2048xf32> -> vector<196x2048xf32>
    %7 = arith.addf %3, %6 : vector<196x2048xf32>
    %c0_6 = arith.constant 0 : index
    %c0_7 = arith.constant 0 : index
    %8 = vector.load %arg6[%c0_6, %c0_7] : memref<196x2048xf32, #tpu.memory_space<vmem>>, vector<196x2048xf32>
    tpu.vector_store %arg6[%c0_6, %c0_7], %7 {strides = array<i32>} : memref<196x2048xf32, #tpu.memory_space<vmem>>, vector<196x2048xf32>,
    %c0_i32_8 = arith.constant 0 : i32
    %9 = arith.cmpi eq, %arg1, %c0_i32_8 : i32
    %10 = arith.extui %9 : i1 to i32
    %c0_i32_9 = arith.constant 0 : i32
    %11 = arith.cmpi ne, %10, %c0_i32_9 : i32
    scf.if %11 {
      %c0_10 = arith.constant 0 : index
      %c0_11 = arith.constant 0 : index
      %12 = vector.load %arg6[%c0_10, %c0_11] : memref<196x2048xf32, #tpu.memory_space<vmem>>, vector<196x2048xf32>
      %c0_12 = arith.constant 0 : index
      %c0_13 = arith.constant 0 : index
      %13 = vector.load %arg4[%c0_12, %c0_13] : memref<1x2048xf32, #tpu.memory_space<vmem>>, vector<1x2048xf32>
      %14 = vector.broadcast %13 : vector<1x2048xf32> to vector<196x2048xf32>
      %15 = arith.addf %12, %14 : vector<196x2048xf32>
      %cst_14 = arith.constant 0.000000e+00 : f32
      %16 = vector.broadcast %cst_14 : f32 to vector<196x2048xf32>
      %17 = arith.maximumf %15, %16 : vector<196x2048xf32>
      %18 = arith.truncf %17 : vector<196x2048xf32> to vector<196x2048xbf16>
      %c0_15 = arith.constant 0 : index
      %c0_16 = arith.constant 0 : index
      %19 = vector.load %arg5[%c0_15, %c0_16] : memref<196x2048xbf16, #tpu.memory_space<vmem>>, vector<196x2048xbf16>
      tpu.vector_store %arg5[%c0_15, %c0_16], %18 {strides = array<i32>} : memref<196x2048xbf16, #tpu.memory_space<vmem>>, vector<196x2048xbf16>,
    } else {
    }
    return
  }
  func.func @transform_0(%arg0: i32, %arg1: i32) -> (i32, i32) {
    %c0_i32 = arith.constant 0 : i32
    %c0_i32_0 = arith.constant 0 : i32
    return %c0_i32, %arg1 : i32, i32
  }
  func.func @transform_1(%arg0: i32, %arg1: i32) -> (i32, i32) {
    %c0_i32 = arith.constant 0 : i32
    return %arg1, %arg0 : i32, i32
  }
  func.func @transform_2(%arg0: i32, %arg1: i32) -> (i32, i32) {
    %c0_i32 = arith.constant 0 : i32
    %c0_i32_0 = arith.constant 0 : i32
    return %c0_i32, %arg0 : i32, i32
  }
  func.func @transform_3(%arg0: i32, %arg1: i32) -> (i32, i32) {
    %c0_i32 = arith.constant 0 : i32
    %c0_i32_0 = arith.constant 0 : i32
    return %c0_i32, %arg0 : i32, i32
  }
}

</mosaic_0001>

<llo_original>
// kernel: tpu_custom_call.1
$region0: #{tpu_custom_call.1}
  #allocation0 [shape = 'u32[]', space=smem, size = 0x4, offset = 0x4, fixed_abs, tag = 'smem constant byte address 0x4 - core index']
  #allocation1 [shape = 'u32[144,128]{1,0:T(1,128)}', space=vmem, size = 0x12000, scoped, tag = 'internal scratch']
  #allocation2 [shape = 'f32[196,2048]{1,0:T(8,128)}', space=vmem, size = 0x190000, scoped, tag = 'scratch operand']
  %s0 = inlined_call_operand.vmem [shape: f32[196,12], index: 0, kind: input, shape index: {}]
  %s1 = inlined_call_operand.hbm [shape: f32[12,2048], index: 1, kind: input, shape index: {}]
  %s2 = inlined_call_operand.vmem [shape: f32[1,2048], index: 2, kind: input, shape index: {}]
  %s3 = inlined_call_operand.hbm [shape: bf16[196,2048], index: 3, kind: output, shape index: {}]
  %s4 = sld [smem:[#allocation0]]
  $region34: #{tpu_custom_call.1} parent=0
    _
  %s6 = ssub.s32 1, %s4
  %s7 = scalar_select 0, %s6, %s4
  $region1: #{tpu_custom_call.1} parent=0
    #allocation3 [shape = 'u8[131072]{0}', space=vmem, size = 0x20000, scoped, tag = 'input window, operand 1, single buffered']
    #allocation4 [shape = 's32[1]{0}', space=sflag, size = 0x4, scoped, tag = 'scoped memory for tpu_custom_call.1']
    #allocation5 [shape = 's32[1]{0}', space=sflag, size = 0x4, scoped, tag = 'scoped memory for tpu_custom_call.1']
    #allocation6 [shape = 'u8[819200]{0}', space=vmem, size = 0xc8000, scoped, tag = 'output window, operand 0, single buffered']
    %8 = vsyncpa [#allocation4], 0
    %9 = vsyncpa [#allocation5], 0
    // Predicated region
    $region2: #{tpu_custom_call.1} parent=1 // pred_check
      _
    $region3: #{tpu_custom_call.1} parent=1 // pred_check_branch
      %11 = sbr.rel (0) target = $region5
    $region4: #{tpu_custom_call.1} parent=1 // pred_region
      _
    $region5: #{tpu_custom_call.1} parent=1 // pred_fallthru
      _
    // Predicated region
    $region6: #{tpu_custom_call.1} parent=1 // pred_check
      _
    $region7: #{tpu_custom_call.1} parent=1 // pred_check_branch
      %13 = sbr.rel (0) target = $region9
    $region8: #{tpu_custom_call.1} parent=1 // pred_region
      %s15 = ssub.s32 4096, 4096
      %16 = vsyncadd [#allocation4], %s15
      %s17 = sshll.u32 [#allocation3], 4
      %s18 = int_to_ptr.vmem [resolvable:$true] %s17
      %23 = dma.hbm_to_vmem [thread:$0]  %s1, 4096, %s18, [#allocation4], 2048, 2048, 128
    $region9: #{tpu_custom_call.1} parent=1 // pred_fallthru
      _
    // Predicated region
    $region10: #{tpu_custom_call.1} parent=1 // pred_check
      _
    $region11: #{tpu_custom_call.1} parent=1 // pred_check_branch
      %25 = sbr.rel (0) target = $region13
    $region12: #{tpu_custom_call.1} parent=1 // pred_region
      _
    $region13: #{tpu_custom_call.1} parent=1 // pred_fallthru
      _
    // Predicated region
    $region14: #{tpu_custom_call.1} parent=1 // pred_check
      _
    $region15: #{tpu_custom_call.1} parent=1 // pred_check_branch
      %27 = sbr.rel (0) target = $region17
    $region16: #{tpu_custom_call.1} parent=1 // pred_region
      %28 = dma.done [#allocation4], 4096
    $region17: #{tpu_custom_call.1} parent=1 // pred_fallthru
      _
    %p29 = scmp.eq.s32.totalorder 0, 0
    // Predicated region
    $region18: #{tpu_custom_call.1} parent=1 // pred_check
      %p30 = pneg %p29
    $region19: #{tpu_custom_call.1} parent=1 // pred_check_branch
      %32 = sbr.rel (%p30) target = $region21
    $region20: #{tpu_custom_call.1} parent=1 // pred_region
      %33 = vst [vmem:[#allocation2] sm:$0xff] 0.0
      %34 = vst [vmem:[#allocation2 + $0x8] sm:$0xff] 0.0
      %35 = vst [vmem:[#allocation2 + $0x10] sm:$0xff] 0.0
      %36 = vst [vmem:[#allocation2 + $0x18] sm:$0xff] 0.0
      %37 = vst [vmem:[#allocation2 + $0x20] sm:$0xff] 0.0
      %38 = vst [vmem:[#allocation2 + $0x28] sm:$0xff] 0.0
      %39 = vst [vmem:[#allocation2 + $0x30] sm:$0xff] 0.0
      %40 = vst [vmem:[#allocation2 + $0x38] sm:$0xff] 0.0
      %41 = vst [vmem:[#allocation2 + $0x40] sm:$0xff] 0.0
      %42 = vst [vmem:[#allocation2 + $0x48] sm:$0xff] 0.0
      %43 = vst [vmem:[#allocation2 + $0x50] sm:$0xff] 0.0
      %44 = vst [vmem:[#allocation2 + $0x58] sm:$0xff] 0.0
      %45 = vst [vmem:[#allocation2 + $0x60] sm:$0xff] 0.0
      %46 = vst [vmem:[#allocation2 + $0x68] sm:$0xff] 0.0
      %47 = vst [vmem:[#allocation2 + $0x70] sm:$0xff] 0.0
      %48 = vst [vmem:[#allocation2 + $0x78] sm:$0xff] 0.0
      %49 = vst [vmem:[#allocation2 + $0x80] sm:$0xff] 0.0
      %50 = vst [vmem:[#allocation2 + $0x88] sm:$0xff] 0.0
      %51 = vst [vmem:[#allocation2 + $0x90] sm:$0xff] 0.0
      %52 = vst [vmem:[#allocation2 + $0x98] sm:$0xff] 0.0
      %53 = vst [vmem:[#allocation2 + $0xa0] sm:$0xff] 0.0
      %54 = vst [vmem:[#allocation2 + $0xa8] sm:$0xff] 0.0
      %55 = vst [vmem:[#allocation2 + $0xb0] sm:$0xff] 0.0
      %56 = vst [vmem:[#allocation2 + $0xb8] sm:$0xff] 0.0
      %57 = vst [vmem:[#allocation2 + $0xc0] sm:$0xff] 0.0
      %58 = vst [vmem:[#allocation2 + $0xc8] sm:$0xff] 0.0
      %59 = vst [vmem:[#allocation2 + $0xd0] sm:$0xff] 0.0
      %60 = vst [vmem:[#allocation2 + $0xd8] sm:$0xff] 0.0
      %61 = vst [vmem:[#allocation2 + $0xe0] sm:$0xff] 0.0
      %62 = vst [vmem:[#allocation2 + $0xe8] sm:$0xff] 0.0
      %63 = vst [vmem:[#allocation2 + $0xf0] sm:$0xff] 0.0
      %64 = vst [vmem:[#allocation2 + $0xf8] sm:$0xff] 0.0
      %65 = vst [vmem:[#allocation2 + $0x100] sm:$0xff] 0.0
      %66 = vst [vmem:[#allocation2 + $0x108] sm:$0xff] 0.0
      %67 = vst [vmem:[#allocation2 + $0x110] sm:$0xff] 0.0
      %68 = vst [vmem:[#allocation2 + $0x118] sm:$0xff] 0.0
      %69 = vst [vmem:[#allocation2 + $0x120] sm:$0xff] 0.0
      %70 = vst [vmem:[#allocation2 + $0x128] sm:$0xff] 0.0
      %71 = vst [vmem:[#allocation2 + $0x130] sm:$0xff] 0.0
      %72 = vst [vmem:[#allocation2 + $0x138] sm:$0xff] 0.0
      %73 = vst [vmem:[#allocation2 + $0x140] sm:$0xff] 0.0
      %74 = vst [vmem:[#allocation2 + $0x148] sm:$0xff] 0.0
      %75 = vst [vmem:[#allocation2 + $0x150] sm:$0xff] 0.0
      %76 = vst [vmem:[#allocation2 + $0x158] sm:$0xff] 0.0
      %77 = vst [vmem:[#allocation2 + $0x160] sm:$0xff] 0.0
      %78 = vst [vmem:[#allocation2 + $0x168] sm:$0xff] 0.0
      %79 = vst [vmem:[#allocation2 + $0x170] sm:$0xff] 0.0
      %80 = vst [vmem:[#allocation2 + $0x178] sm:$0xff] 0.0
      %81 = vst [vmem:[#allocation2 + $0x180] sm:$0xff] 0.0
      %82 = vst [vmem:[#allocation2 + $0x188] sm:$0xff] 0.0
      %83 = vst [vmem:[#allocation2 + $0x190] sm:$0xff] 0.0
      %84 = vst [vmem:[#allocation2 + $0x198] sm:$0xff] 0.0
      %85 = vst [vmem:[#allocation2 + $0x1a0] sm:$0xff] 0.0
      %86 = vst [vmem:[#allocation2 + $0x1a8] sm:$0xff] 0.0
      %87 = vst [vmem:[#allocation2 + $0x1b0] sm:$0xff] 0.0
      %88 = vst [vmem:[#allocation2 + $0x1b8] sm:$0xff] 0.0
      %89 = vst [vmem:[#allocation2 + $0x1c0] sm:$0xff] 0.0
      %90 = vst [vmem:[#allocation2 + $0x1c8] sm:$0xff] 0.0
      %91 = vst [vmem:[#allocation2 + $0x1d0] sm:$0xff] 0.0
      %92 = vst [vmem:[#allocation2 + $0x1d8] sm:$0xff] 0.0
      %93 = vst [vmem:[#allocation2 + $0x1e0] sm:$0xff] 0.0
      %94 = vst [vmem:[#allocation2 + $0x1e8] sm:$0xff] 0.0
      %95 = vst [vmem:[#allocation2 + $0x1f0] sm:$0xff] 0.0
      %96 = vst [vmem:[#allocation2 + $0x1f8] sm:$0xff] 0.0
      %97 = vst [vmem:[#allocation2 + $0x200] sm:$0xff] 0.0
      %98 = vst [vmem:[#allocation2 + $0x208] sm:$0xff] 0.0
      %99 = vst [vmem:[#allocation2 + $0x210] sm:$0xff] 0.0
      %100 = vst [vmem:[#allocation2 + $0x218] sm:$0xff] 0.0
      %101 = vst [vmem:[#allocation2 + $0x220] sm:$0xff] 0.0
      %102 = vst [vmem:[#allocation2 + $0x228] sm:$0xff] 0.0
      %103 = vst [vmem:[#allocation2 + $0x230] sm:$0xff] 0.0
      %104 = vst [vmem:[#allocation2 + $0x238] sm:$0xff] 0.0
      %105 = vst [vmem:[#allocation2 + $0x240] sm:$0xff] 0.0
      %106 = vst [vmem:[#allocation2 + $0x248] sm:$0xff] 0.0
      %107 = vst [vmem:[#allocation2 + $0x250] sm:$0xff] 0.0
      %108 = vst [vmem:[#allocation2 + $0x258] sm:$0xff] 0.0
      %109 = vst [vmem:[#allocation2 + $0x260] sm:$0xff] 0.0
      %110 = vst [vmem:[#allocation2 + $0x268] sm:$0xff] 0.0
      %111 = vst [vmem:[#allocation2 + $0x270] sm:$0xff] 0.0
      %112 = vst [vmem:[#allocation2 + $0x278] sm:$0xff] 0.0
      %113 = vst [vmem:[#allocation2 + $0x280] sm:$0xff] 0.0
      %114 = vst [vmem:[#allocation2 + $0x288] sm:$0xff] 0.0
      %115 = vst [vmem:[#allocation2 + $0x290] sm:$0xff] 0.0
      %116 = vst [vmem:[#allocation2 + $0x298] sm:$0xff] 0.0
      %117 = vst [vmem:[#allocation2 + $0x2a0] sm:$0xff] 0.0
      %118 = vst [vmem:[#allocation2 + $0x2a8] sm:$0xff] 0.0
      %119 = vst [vmem:[#allocation2 + $0x2b0] sm:$0xff] 0.0
      %120 = vst [vmem:[#allocation2 + $0x2b8] sm:$0xff] 0.0
      %121 = vst [vmem:[#allocation2 + $0x2c0] sm:$0xff] 0.0
      %122 = vst [vmem:[#allocation2 + $0x2c8] sm:$0xff] 0.0
      %123 = vst [vmem:[#allocation2 + $0x2d0] sm:$0xff] 0.0
      %124 = vst [vmem:[#allocation2 + $0x2d8] sm:$0xff] 0.0
      %125 = vst [vmem:[#allocation2 + $0x2e0] sm:$0xff] 0.0
      %126 = vst [vmem:[#allocation2 + $0x2e8] sm:$0xff] 0.0
      %127 = vst [vmem:[#allocation2 + $0x2f0] sm:$0xff] 0.0
      %128 = vst [vmem:[#allocation2 + $0x2f8] sm:$0xff] 0.0
      %129 = vst [vmem:[#allocation2 + $0x300] sm:$0xff] 0.0
      %130 = vst [vmem:[#allocation2 + $0x308] sm:$0xff] 0.0
      %131 = vst [vmem:[#allocation2 + $0x310] sm:$0xff] 0.0
      %132 = vst [vmem:[#allocation2 + $0x318] sm:$0xff] 0.0
      %133 = vst [vmem:[#allocation2 + $0x320] sm:$0xff] 0.0
      %134 = vst [vmem:[#allocation2 + $0x328] sm:$0xff] 0.0
      %135 = vst [vmem:[#allocation2 + $0x330] sm:$0xff] 0.0
      %136 = vst [vmem:[#allocation2 + $0x338] sm:$0xff] 0.0
      %137 = vst [vmem:[#allocation2 + $0x340] sm:$0xff] 0.0
      %138 = vst [vmem:[#allocation2 + $0x348] sm:$0xff] 0.0
      %139 = vst [vmem:[#allocation2 + $0x350] sm:$0xff] 0.0
      %140 = vst [vmem:[#allocation2 + $0x358] sm:$0xff] 0.0
      %141 = vst [vmem:[#allocation2 + $0x360] sm:$0xff] 0.0
      %142 = vst [vmem:[#allocation2 + $0x368] sm:$0xff] 0.0
      %143 = vst [vmem:[#allocation2 + $0x370] sm:$0xff] 0.0
      %144 = vst [vmem:[#allocation2 + $0x378] sm:$0xff] 0.0
      %145 = vst [vmem:[#allocation2 + $0x380] sm:$0xff] 0.0
      %146 = vst [vmem:[#allocation2 + $0x388] sm:$0xff] 0.0
      %147 = vst [vmem:[#allocation2 + $0x390] sm:$0xff] 0.0
      %148 = vst [vmem:[#allocation2 + $0x398] sm:$0xff] 0.0
      %149 = vst [vmem:[#allocation2 + $0x3a0] sm:$0xff] 0.0
      %150 = vst [vmem:[#allocation2 + $0x3a8] sm:$0xff] 0.0
      %151 = vst [vmem:[#allocation2 + $0x3b0] sm:$0xff] 0.0
      %152 = vst [vmem:[#allocation2 + $0x3b8] sm:$0xff] 0.0
      %153 = vst [vmem:[#allocation2 + $0x3c0] sm:$0xff] 0.0
      %154 = vst [vmem:[#allocation2 + $0x3c8] sm:$0xff] 0.0
      %155 = vst [vmem:[#allocation2 + $0x3d0] sm:$0xff] 0.0
      %156 = vst [vmem:[#allocation2 + $0x3d8] sm:$0xff] 0.0
      %157 = vst [vmem:[#allocation2 + $0x3e0] sm:$0xff] 0.0
      %158 = vst [vmem:[#allocation2 + $0x3e8] sm:$0xff] 0.0
      %159 = vst [vmem:[#allocation2 + $0x3f0] sm:$0xff] 0.0
      %160 = vst [vmem:[#allocation2 + $0x3f8] sm:$0xff] 0.0
      %161 = vst [vmem:[#allocation2 + $0x400] sm:$0xff] 0.0
      %162 = vst [vmem:[#allocation2 + $0x408] sm:$0xff] 0.0
      %163 = vst [vmem:[#allocation2 + $0x410] sm:$0xff] 0.0
      %164 = vst [vmem:[#allocation2 + $0x418] sm:$0xff] 0.0
      %165 = vst [vmem:[#allocation2 + $0x420] sm:$0xff] 0.0
      %166 = vst [vmem:[#allocation2 + $0x428] sm:$0xff] 0.0
      %167 = vst [vmem:[#allocation2 + $0x430] sm:$0xff] 0.0
      %168 = vst [vmem:[#allocation2 + $0x438] sm:$0xff] 0.0
      %169 = vst [vmem:[#allocation2 + $0x440] sm:$0xff] 0.0
      %170 = vst [vmem:[#allocation2 + $0x448] sm:$0xff] 0.0
      %171 = vst [vmem:[#allocation2 + $0x450] sm:$0xff] 0.0
      %172 = vst [vmem:[#allocation2 + $0x458] sm:$0xff] 0.0
      %173 = vst [vmem:[#allocation2 + $0x460] sm:$0xff] 0.0
      %174 = vst [vmem:[#allocation2 + $0x468] sm:$0xff] 0.0
      %175 = vst [vmem:[#allocation2 + $0x470] sm:$0xff] 0.0
      %176 = vst [vmem:[#allocation2 + $0x478] sm:$0xff] 0.0
      %177 = vst [vmem:[#allocation2 + $0x480] sm:$0xff] 0.0
      %178 = vst [vmem:[#allocation2 + $0x488] sm:$0xff] 0.0
      %179 = vst [vmem:[#allocation2 + $0x490] sm:$0xff] 0.0
      %180 = vst [vmem:[#allocation2 + $0x498] sm:$0xff] 0.0
      %181 = vst [vmem:[#allocation2 + $0x4a0] sm:$0xff] 0.0
      %182 = vst [vmem:[#allocation2 + $0x4a8] sm:$0xff] 0.0
      %183 = vst [vmem:[#allocation2 + $0x4b0] sm:$0xff] 0.0
      %184 = vst [vmem:[#allocation2 + $0x4b8] sm:$0xff] 0.0
      %185 = vst [vmem:[#allocation2 + $0x4c0] sm:$0xff] 0.0
      %186 = vst [vmem:[#allocation2 + $0x4c8] sm:$0xff] 0.0
      %187 = vst [vmem:[#allocation2 + $0x4d0] sm:$0xff] 0.0
      %188 = vst [vmem:[#allocation2 + $0x4d8] sm:$0xff] 0.0
      %189 = vst [vmem:[#allocation2 + $0x4e0] sm:$0xff] 0.0
      %190 = vst [vmem:[#allocation2 + $0x4e8] sm:$0xff] 0.0
      %191 = vst [vmem:[#allocation2 + $0x4f0] sm:$0xff] 0.0
      %192 = vst [vmem:[#allocation2 + $0x4f8] sm:$0xff] 0.0
      %193 = vst [vmem:[#allocation2 + $0x500] sm:$0xff] 0.0
      %194 = vst [vmem:[#allocation2 + $0x508] sm:$0xff] 0.0
      %195 = vst [vmem:[#allocation2 + $0x510] sm:$0xff] 0.0
      %196 = vst [vmem:[#allocation2 + $0x518] sm:$0xff] 0.0
      %197 = vst [vmem:[#allocation2 + $0x520] sm:$0xff] 0.0
      %198 = vst [vmem:[#allocation2 + $0x528] sm:$0xff] 0.0
      %199 = vst [vmem:[#allocation2 + $0x530] sm:$0xff] 0.0
      %200 = vst [vmem:[#allocation2 + $0x538] sm:$0xff] 0.0
      %201 = vst [vmem:[#allocation2 + $0x540] sm:$0xff] 0.0
      %202 = vst [vmem:[#allocation2 + $0x548] sm:$0xff] 0.0
      %203 = vst [vmem:[#allocation2 + $0x550] sm:$0xff] 0.0
      %204 = vst [vmem:[#allocation2 + $0x558] sm:$0xff] 0.0
      %205 = vst [vmem:[#allocation2 + $0x560] sm:$0xff] 0.0
      %206 = vst [vmem:[#allocation2 + $0x568] sm:$0xff] 0.0
      %207 = vst [vmem:[#allocation2 + $0x570] sm:$0xff] 0.0
      %208 = vst [vmem:[#allocation2 + $0x578] sm:$0xff] 0.0
      %209 = vst [vmem:[#allocation2 + $0x580] sm:$0xff] 0.0
      %210 = vst [vmem:[#allocation2 + $0x588] sm:$0xff] 0.0
      %211 = vst [vmem:[#allocation2 + $0x590] sm:$0xff] 0.0
      %212 = vst [vmem:[#allocation2 + $0x598] sm:$0xff] 0.0
      %213 = vst [vmem:[#allocation2 + $0x5a0] sm:$0xff] 0.0
      %214 = vst [vmem:[#allocation2 + $0x5a8] sm:$0xff] 0.0
      %215 = vst [vmem:[#allocation2 + $0x5b0] sm:$0xff] 0.0
      %216 = vst [vmem:[#allocation2 + $0x5b8] sm:$0xff] 0.0
      %217 = vst [vmem:[#allocation2 + $0x5c0] sm:$0xff] 0.0
      %218 = vst [vmem:[#allocation2 + $0x5c8] sm:$0xff] 0.0
      %219 = vst [vmem:[#allocation2 + $0x5d0] sm:$0xff] 0.0
      %220 = vst [vmem:[#allocation2 + $0x5d8] sm:$0xff] 0.0
      %221 = vst [vmem:[#allocation2 + $0x5e0] sm:$0xff] 0.0
      %222 = vst [vmem:[#allocation2 + $0x5e8] sm:$0xff] 0.0
      %223 = vst [vmem:[#allocation2 + $0x5f0] sm:$0xff] 0.0
      %224 = vst [vmem:[#allocation2 + $0x5f8] sm:$0xff] 0.0
      %225 = vst [vmem:[#allocation2 + $0x600] sm:$0xff] 0.0
      %226 = vst [vmem:[#allocation2 + $0x608] sm:$0xff] 0.0
      %227 = vst [vmem:[#allocation2 + $0x610] sm:$0xff] 0.0
      %228 = vst [vmem:[#allocation2 + $0x618] sm:$0xff] 0.0
      %229 = vst [vmem:[#allocation2 + $0x620] sm:$0xff] 0.0
      %230 = vst [vmem:[#allocation2 + $0x628] sm:$0xff] 0.0
      %231 = vst [vmem:[#allocation2 + $0x630] sm:$0xff] 0.0
      %232 = vst [vmem:[#allocation2 + $0x638] sm:$0xff] 0.0
      %233 = vst [vmem:[#allocation2 + $0x640] sm:$0xff] 0.0
      %234 = vst [vmem:[#allocation2 + $0x648] sm:$0xff] 0.0
      %235 = vst [vmem:[#allocation2 + $0x650] sm:$0xff] 0.0
      %236 = vst [vmem:[#allocation2 + $0x658] sm:$0xff] 0.0
      %237 = vst [vmem:[#allocation2 + $0x660] sm:$0xff] 0.0
      %238 = vst [vmem:[#allocation2 + $0x668] sm:$0xff] 0.0
      %239 = vst [vmem:[#allocation2 + $0x670] sm:$0xff] 0.0
      %240 = vst [vmem:[#allocation2 + $0x678] sm:$0xff] 0.0
      %241 = vst [vmem:[#allocation2 + $0x680] sm:$0xff] 0.0
      %242 = vst [vmem:[#allocation2 + $0x688] sm:$0xff] 0.0
      %243 = vst [vmem:[#allocation2 + $0x690] sm:$0xff] 0.0
      %244 = vst [vmem:[#allocation2 + $0x698] sm:$0xff] 0.0
      %245 = vst [vmem:[#allocation2 + $0x6a0] sm:$0xff] 0.0
      %246 = vst [vmem:[#allocation2 + $0x6a8] sm:$0xff] 0.0
      %247 = vst [vmem:[#allocation2 + $0x6b0] sm:$0xff] 0.0
      %248 = vst [vmem:[#allocation2 + $0x6b8] sm:$0xff] 0.0
      %249 = vst [vmem:[#allocation2 + $0x6c0] sm:$0xff] 0.0
      %250 = vst [vmem:[#allocation2 + $0x6c8] sm:$0xff] 0.0
      %251 = vst [vmem:[#allocation2 + $0x6d0] sm:$0xff] 0.0
      %252 = vst [vmem:[#allocation2 + $0x6d8] sm:$0xff] 0.0
      %253 = vst [vmem:[#allocation2 + $0x6e0] sm:$0xff] 0.0
      %254 = vst [vmem:[#allocation2 + $0x6e8] sm:$0xff] 0.0
      %255 = vst [vmem:[#allocation2 + $0x6f0] sm:$0xff] 0.0
      %256 = vst [vmem:[#allocation2 + $0x6f8] sm:$0xff] 0.0
      %257 = vst [vmem:[#allocation2 + $0x700] sm:$0xff] 0.0
      %258 = vst [vmem:[#allocation2 + $0x708] sm:$0xff] 0.0
      %259 = vst [vmem:[#allocation2 + $0x710] sm:$0xff] 0.0
      %260 = vst [vmem:[#allocation2 + $0x718] sm:$0xff] 0.0
      %261 = vst [vmem:[#allocation2 + $0x720] sm:$0xff] 0.0
      %262 = vst [vmem:[#allocation2 + $0x728] sm:$0xff] 0.0
      %263 = vst [vmem:[#allocation2 + $0x730] sm:$0xff] 0.0
      %264 = vst [vmem:[#allocation2 + $0x738] sm:$0xff] 0.0
      %265 = vst [vmem:[#allocation2 + $0x740] sm:$0xff] 0.0
      %266 = vst [vmem:[#allocation2 + $0x748] sm:$0xff] 0.0
      %267 = vst [vmem:[#allocation2 + $0x750] sm:$0xff] 0.0
      %268 = vst [vmem:[#allocation2 + $0x758] sm:$0xff] 0.0
      %269 = vst [vmem:[#allocation2 + $0x760] sm:$0xff] 0.0
      %270 = vst [vmem:[#allocation2 + $0x768] sm:$0xff] 0.0
      %271 = vst [vmem:[#allocation2 + $0x770] sm:$0xff] 0.0
      %272 = vst [vmem:[#allocation2 + $0x778] sm:$0xff] 0.0
      %273 = vst [vmem:[#allocation2 + $0x780] sm:$0xff] 0.0
      %274 = vst [vmem:[#allocation2 + $0x788] sm:$0xff] 0.0
      %275 = vst [vmem:[#allocation2 + $0x790] sm:$0xff] 0.0
      %276 = vst [vmem:[#allocation2 + $0x798] sm:$0xff] 0.0
      %277 = vst [vmem:[#allocation2 + $0x7a0] sm:$0xff] 0.0
      %278 = vst [vmem:[#allocation2 + $0x7a8] sm:$0xff] 0.0
      %279 = vst [vmem:[#allocation2 + $0x7b0] sm:$0xff] 0.0
      %280 = vst [vmem:[#allocation2 + $0x7b8] sm:$0xff] 0.0
      %281 = vst [vmem:[#allocation2 + $0x7c0] sm:$0xff] 0.0
      %282 = vst [vmem:[#allocation2 + $0x7c8] sm:$0xff] 0.0
      %283 = vst [vmem:[#allocation2 + $0x7d0] sm:$0xff] 0.0
      %284 = vst [vmem:[#allocation2 + $0x7d8] sm:$0xff] 0.0
      %285 = vst [vmem:[#allocation2 + $0x7e0] sm:$0xff] 0.0
      %286 = vst [vmem:[#allocation2 + $0x7e8] sm:$0xff] 0.0
      %287 = vst [vmem:[#allocation2 + $0x7f0] sm:$0xff] 0.0
      %288 = vst [vmem:[#allocation2 + $0x7f8] sm:$0xff] 0.0
      %289 = vst [vmem:[#allocation2 + $0x800] sm:$0xff] 0.0
      %290 = vst [vmem:[#allocation2 + $0x808] sm:$0xff] 0.0
      %291 = vst [vmem:[#allocation2 + $0x810] sm:$0xff] 0.0
      %292 = vst [vmem:[#allocation2 + $0x818] sm:$0xff] 0.0
      %293 = vst [vmem:[#allocation2 + $0x820] sm:$0xff] 0.0
      %294 = vst [vmem:[#allocation2 + $0x828] sm:$0xff] 0.0
      %295 = vst [vmem:[#allocation2 + $0x830] sm:$0xff] 0.0
      %296 = vst [vmem:[#allocation2 + $0x838] sm:$0xff] 0.0
      %297 = vst [vmem:[#allocation2 + $0x840] sm:$0xff] 0.0
      %298 = vst [vmem:[#allocation2 + $0x848] sm:$0xff] 0.0
      %299 = vst [vmem:[#allocation2 + $0x850] sm:$0xff] 0.0
      %300 = vst [vmem:[#allocation2 + $0x858] sm:$0xff] 0.0
      %301 = vst [vmem:[#allocation2 + $0x860] sm:$0xff] 0.0
      %302 = vst [vmem:[#allocation2 + $0x868] sm:$0xff] 0.0
      %303 = vst [vmem:[#allocation2 + $0x870] sm:$0xff] 0.0
      %304 = vst [vmem:[#allocation2 + $0x878] sm:$0xff] 0.0
      %305 = vst [vmem:[#allocation2 + $0x880] sm:$0xff] 0.0
      %306 = vst [vmem:[#allocation2 + $0x888] sm:$0xff] 0.0
      %307 = vst [vmem:[#allocation2 + $0x890] sm:$0xff] 0.0
      %308 = vst [vmem:[#allocation2 + $0x898] sm:$0xff] 0.0
      %309 = vst [vmem:[#allocation2 + $0x8a0] sm:$0xff] 0.0
      %310 = vst [vmem:[#allocation2 + $0x8a8] sm:$0xff] 0.0
      %311 = vst [vmem:[#allocation2 + $0x8b0] sm:$0xff] 0.0
      %312 = vst [vmem:[#allocation2 + $0x8b8] sm:$0xff] 0.0
      %313 = vst [vmem:[#allocation2 + $0x8c0] sm:$0xff] 0.0
      %314 = vst [vmem:[#allocation2 + $0x8c8] sm:$0xff] 0.0
      %315 = vst [vmem:[#allocation2 + $0x8d0] sm:$0xff] 0.0
      %316 = vst [vmem:[#allocation2 + $0x8d8] sm:$0xff] 0.0
      %317 = vst [vmem:[#allocation2 + $0x8e0] sm:$0xff] 0.0
      %318 = vst [vmem:[#allocation2 + $0x8e8] sm:$0xff] 0.0
      %319 = vst [vmem:[#allocation2 + $0x8f0] sm:$0xff] 0.0
      %320 = vst [vmem:[#allocation2 + $0x8f8] sm:$0xff] 0.0
      %321 = vst [vmem:[#allocation2 + $0x900] sm:$0xff] 0.0
      %322 = vst [vmem:[#allocation2 + $0x908] sm:$0xff] 0.0
      %323 = vst [vmem:[#allocation2 + $0x910] sm:$0xff] 0.0
      %324 = vst [vmem:[#allocation2 + $0x918] sm:$0xff] 0.0
      %325 = vst [vmem:[#allocation2 + $0x920] sm:$0xff] 0.0
      %326 = vst [vmem:[#allocation2 + $0x928] sm:$0xff] 0.0
      %327 = vst [vmem:[#allocation2 + $0x930] sm:$0xff] 0.0
      %328 = vst [vmem:[#allocation2 + $0x938] sm:$0xff] 0.0
      %329 = vst [vmem:[#allocation2 + $0x940] sm:$0xff] 0.0
      %330 = vst [vmem:[#allocation2 + $0x948] sm:$0xff] 0.0
      %331 = vst [vmem:[#allocation2 + $0x950] sm:$0xff] 0.0
      %332 = vst [vmem:[#allocation2 + $0x958] sm:$0xff] 0.0
      %333 = vst [vmem:[#allocation2 + $0x960] sm:$0xff] 0.0
      %334 = vst [vmem:[#allocation2 + $0x968] sm:$0xff] 0.0
      %335 = vst [vmem:[#allocation2 + $0x970] sm:$0xff] 0.0
      %336 = vst [vmem:[#allocation2 + $0x978] sm:$0xff] 0.0
      %337 = vst [vmem:[#allocation2 + $0x980] sm:$0xff] 0.0
      %338 = vst [vmem:[#allocation2 + $0x988] sm:$0xff] 0.0
      %339 = vst [vmem:[#allocation2 + $0x990] sm:$0xff] 0.0
      %340 = vst [vmem:[#allocation2 + $0x998] sm:$0xff] 0.0
      %341 = vst [vmem:[#allocation2 + $0x9a0] sm:$0xff] 0.0
      %342 = vst [vmem:[#allocation2 + $0x9a8] sm:$0xff] 0.0
      %343 = vst [vmem:[#allocation2 + $0x9b0] sm:$0xff] 0.0
      %344 = vst [vmem:[#allocation2 + $0x9b8] sm:$0xff] 0.0
      %345 = vst [vmem:[#allocation2 + $0x9c0] sm:$0xff] 0.0
      %346 = vst [vmem:[#allocation2 + $0x9c8] sm:$0xff] 0.0
      %347 = vst [vmem:[#allocation2 + $0x9d0] sm:$0xff] 0.0
      %348 = vst [vmem:[#allocation2 + $0x9d8] sm:$0xff] 0.0
      %349 = vst [vmem:[#allocation2 + $0x9e0] sm:$0xff] 0.0
      %350 = vst [vmem:[#allocation2 + $0x9e8] sm:$0xff] 0.0
      %351 = vst [vmem:[#allocation2 + $0x9f0] sm:$0xff] 0.0
      %352 = vst [vmem:[#allocation2 + $0x9f8] sm:$0xff] 0.0
      %353 = vst [vmem:[#allocation2 + $0xa00] sm:$0xff] 0.0
      %354 = vst [vmem:[#allocation2 + $0xa08] sm:$0xff] 0.0
      %355 = vst [vmem:[#allocation2 + $0xa10] sm:$0xff] 0.0
      %356 = vst [vmem:[#allocation2 + $0xa18] sm:$0xff] 0.0
      %357 = vst [vmem:[#allocation2 + $0xa20] sm:$0xff] 0.0
      %358 = vst [vmem:[#allocation2 + $0xa28] sm:$0xff] 0.0
      %359 = vst [vmem:[#allocation2 + $0xa30] sm:$0xff] 0.0
      %360 = vst [vmem:[#allocation2 + $0xa38] sm:$0xff] 0.0
      %361 = vst [vmem:[#allocation2 + $0xa40] sm:$0xff] 0.0
      %362 = vst [vmem:[#allocation2 + $0xa48] sm:$0xff] 0.0
      %363 = vst [vmem:[#allocation2 + $0xa50] sm:$0xff] 0.0
      %364 = vst [vmem:[#allocation2 + $0xa58] sm:$0xff] 0.0
      %365 = vst [vmem:[#allocation2 + $0xa60] sm:$0xff] 0.0
      %366 = vst [vmem:[#allocation2 + $0xa68] sm:$0xff] 0.0
      %367 = vst [vmem:[#allocation2 + $0xa70] sm:$0xff] 0.0
      %368 = vst [vmem:[#allocation2 + $0xa78] sm:$0xff] 0.0
      %369 = vst [vmem:[#allocation2 + $0xa80] sm:$0xff] 0.0
      %370 = vst [vmem:[#allocation2 + $0xa88] sm:$0xff] 0.0
      %371 = vst [vmem:[#allocation2 + $0xa90] sm:$0xff] 0.0
      %372 = vst [vmem:[#allocation2 + $0xa98] sm:$0xff] 0.0
      %373 = vst [vmem:[#allocation2 + $0xaa0] sm:$0xff] 0.0
      %374 = vst [vmem:[#allocation2 + $0xaa8] sm:$0xff] 0.0
      %375 = vst [vmem:[#allocation2 + $0xab0] sm:$0xff] 0.0
      %376 = vst [vmem:[#allocation2 + $0xab8] sm:$0xff] 0.0
      %377 = vst [vmem:[#allocation2 + $0xac0] sm:$0xff] 0.0
      %378 = vst [vmem:[#allocation2 + $0xac8] sm:$0xff] 0.0
      %379 = vst [vmem:[#allocation2 + $0xad0] sm:$0xff] 0.0
      %380 = vst [vmem:[#allocation2 + $0xad8] sm:$0xff] 0.0
      %381 = vst [vmem:[#allocation2 + $0xae0] sm:$0xff] 0.0
      %382 = vst [vmem:[#allocation2 + $0xae8] sm:$0xff] 0.0
      %383 = vst [vmem:[#allocation2 + $0xaf0] sm:$0xff] 0.0
      %384 = vst [vmem:[#allocation2 + $0xaf8] sm:$0xff] 0.0
      %385 = vst [vmem:[#allocation2 + $0xb00] sm:$0xff] 0.0
      %386 = vst [vmem:[#allocation2 + $0xb08] sm:$0xff] 0.0
      %387 = vst [vmem:[#allocation2 + $0xb10] sm:$0xff] 0.0
      %388 = vst [vmem:[#allocation2 + $0xb18] sm:$0xff] 0.0
      %389 = vst [vmem:[#allocation2 + $0xb20] sm:$0xff] 0.0
      %390 = vst [vmem:[#allocation2 + $0xb28] sm:$0xff] 0.0
      %391 = vst [vmem:[#allocation2 + $0xb30] sm:$0xff] 0.0
      %392 = vst [vmem:[#allocation2 + $0xb38] sm:$0xff] 0.0
      %393 = vst [vmem:[#allocation2 + $0xb40] sm:$0xff] 0.0
      %394 = vst [vmem:[#allocation2 + $0xb48] sm:$0xff] 0.0
      %395 = vst [vmem:[#allocation2 + $0xb50] sm:$0xff] 0.0
      %396 = vst [vmem:[#allocation2 + $0xb58] sm:$0xff] 0.0
      %397 = vst [vmem:[#allocation2 + $0xb60] sm:$0xff] 0.0
      %398 = vst [vmem:[#allocation2 + $0xb68] sm:$0xff] 0.0
      %399 = vst [vmem:[#allocation2 + $0xb70] sm:$0xff] 0.0
      %400 = vst [vmem:[#allocation2 + $0xb78] sm:$0xff] 0.0
      %401 = vst [vmem:[#allocation2 + $0xb80] sm:$0xff] 0.0
      %402 = vst [vmem:[#allocation2 + $0xb88] sm:$0xff] 0.0
      %403 = vst [vmem:[#allocation2 + $0xb90] sm:$0xff] 0.0
      %404 = vst [vmem:[#allocation2 + $0xb98] sm:$0xff] 0.0
      %405 = vst [vmem:[#allocation2 + $0xba0] sm:$0xff] 0.0
      %406 = vst [vmem:[#allocation2 + $0xba8] sm:$0xff] 0.0
      %407 = vst [vmem:[#allocation2 + $0xbb0] sm:$0xff] 0.0
      %408 = vst [vmem:[#allocation2 + $0xbb8] sm:$0xff] 0.0
      %409 = vst [vmem:[#allocation2 + $0xbc0] sm:$0xff] 0.0
      %410 = vst [vmem:[#allocation2 + $0xbc8] sm:$0xff] 0.0
      %411 = vst [vmem:[#allocation2 + $0xbd0] sm:$0xff] 0.0
      %412 = vst [vmem:[#allocation2 + $0xbd8] sm:$0xff] 0.0
      %413 = vst [vmem:[#allocation2 + $0xbe0] sm:$0xff] 0.0
      %414 = vst [vmem:[#allocation2 + $0xbe8] sm:$0xff] 0.0
      %415 = vst [vmem:[#allocation2 + $0xbf0] sm:$0xff] 0.0
      %416 = vst [vmem:[#allocation2 + $0xbf8] sm:$0xff] 0.0
      %417 = vst [vmem:[#allocation2 + $0xc00] sm:$0xf] 0.0
      %418 = vst [vmem:[#allocation2 + $0xc08] sm:$0xf] 0.0
      %419 = vst [vmem:[#allocation2 + $0xc10] sm:$0xf] 0.0
      %420 = vst [vmem:[#allocation2 + $0xc18] sm:$0xf] 0.0
      %421 = vst [vmem:[#allocation2 + $0xc20] sm:$0xf] 0.0
      %422 = vst [vmem:[#allocation2 + $0xc28] sm:$0xf] 0.0
      %423 = vst [vmem:[#allocation2 + $0xc30] sm:$0xf] 0.0
      %424 = vst [vmem:[#allocation2 + $0xc38] sm:$0xf] 0.0
      %425 = vst [vmem:[#allocation2 + $0xc40] sm:$0xf] 0.0
      %426 = vst [vmem:[#allocation2 + $0xc48] sm:$0xf] 0.0
      %427 = vst [vmem:[#allocation2 + $0xc50] sm:$0xf] 0.0
      %428 = vst [vmem:[#allocation2 + $0xc58] sm:$0xf] 0.0
      %429 = vst [vmem:[#allocation2 + $0xc60] sm:$0xf] 0.0
      %430 = vst [vmem:[#allocation2 + $0xc68] sm:$0xf] 0.0
      %431 = vst [vmem:[#allocation2 + $0xc70] sm:$0xf] 0.0
      %432 = vst [vmem:[#allocation2 + $0xc78] sm:$0xf] 0.0
    $region21: #{tpu_custom_call.1} parent=1 // pred_fallthru
      _
    %v433 = vld [vmem:[#allocation2] sm:$0xff]
    %v434 = vld [vmem:[#allocation2 + $0x8] sm:$0xff]
    %v435 = vld [vmem:[#allocation2 + $0x10] sm:$0xff]
    %v436 = vld [vmem:[#allocation2 + $0x18] sm:$0xff]
    %v437 = vld [vmem:[#allocation2 + $0x20] sm:$0xff]
    %v438 = vld [vmem:[#allocation2 + $0x28] sm:$0xff]
    %v439 = vld [vmem:[#allocation2 + $0x30] sm:$0xff]
    %v440 = vld [vmem:[#allocation2 + $0x38] sm:$0xff]
    %v441 = vld [vmem:[#allocation2 + $0x40] sm:$0xff]
    %v442 = vld [vmem:[#allocation2 + $0x48] sm:$0xff]
    %v443 = vld [vmem:[#allocation2 + $0x50] sm:$0xff]
    %v444 = vld [vmem:[#allocation2 + $0x58] sm:$0xff]
    %v445 = vld [vmem:[#allocation2 + $0x60] sm:$0xff]
    %v446 = vld [vmem:[#allocation2 + $0x68] sm:$0xff]
    %v447 = vld [vmem:[#allocation2 + $0x70] sm:$0xff]
    %v448 = vld [vmem:[#allocation2 + $0x78] sm:$0xff]
    %v449 = vld [vmem:[#allocation2 + $0x80] sm:$0xff]
    %v450 = vld [vmem:[#allocation2 + $0x88] sm:$0xff]
    %v451 = vld [vmem:[#allocation2 + $0x90] sm:$0xff]
    %v452 = vld [vmem:[#allocation2 + $0x98] sm:$0xff]
    %v453 = vld [vmem:[#allocation2 + $0xa0] sm:$0xff]
    %v454 = vld [vmem:[#allocation2 + $0xa8] sm:$0xff]
    %v455 = vld [vmem:[#allocation2 + $0xb0] sm:$0xff]
    %v456 = vld [vmem:[#allocation2 + $0xb8] sm:$0xff]
    %v457 = vld [vmem:[#allocation2 + $0xc0] sm:$0xff]
    %v458 = vld [vmem:[#allocation2 + $0xc8] sm:$0xff]
    %v459 = vld [vmem:[#allocation2 + $0xd0] sm:$0xff]
    %v460 = vld [vmem:[#allocation2 + $0xd8] sm:$0xff]
    %v461 = vld [vmem:[#allocation2 + $0xe0] sm:$0xff]
    %v462 = vld [vmem:[#allocation2 + $0xe8] sm:$0xff]
    %v463 = vld [vmem:[#allocation2 + $0xf0] sm:$0xff]
    %v464 = vld [vmem:[#allocation2 + $0xf8] sm:$0xff]
    %v465 = vld [vmem:[#allocation2 + $0x100] sm:$0xff]
    %v466 = vld [vmem:[#allocation2 + $0x108] sm:$0xff]
    %v467 = vld [vmem:[#allocation2 + $0x110] sm:$0xff]
    %v468 = vld [vmem:[#allocation2 + $0x118] sm:$0xff]
    %v469 = vld [vmem:[#allocation2 + $0x120] sm:$0xff]
    %v470 = vld [vmem:[#allocation2 + $0x128] sm:$0xff]
    %v471 = vld [vmem:[#allocation2 + $0x130] sm:$0xff]
    %v472 = vld [vmem:[#allocation2 + $0x138] sm:$0xff]
    %v473 = vld [vmem:[#allocation2 + $0x140] sm:$0xff]
    %v474 = vld [vmem:[#allocation2 + $0x148] sm:$0xff]
    %v475 = vld [vmem:[#allocation2 + $0x150] sm:$0xff]
    %v476 = vld [vmem:[#allocation2 + $0x158] sm:$0xff]
    %v477 = vld [vmem:[#allocation2 + $0x160] sm:$0xff]
    %v478 = vld [vmem:[#allocation2 + $0x168] sm:$0xff]
    %v479 = vld [vmem:[#allocation2 + $0x170] sm:$0xff]
    %v480 = vld [vmem:[#allocation2 + $0x178] sm:$0xff]
    %v481 = vld [vmem:[#allocation2 + $0x180] sm:$0xff]
    %v482 = vld [vmem:[#allocation2 + $0x188] sm:$0xff]
    %v483 = vld [vmem:[#allocation2 + $0x190] sm:$0xff]
    %v484 = vld [vmem:[#allocation2 + $0x198] sm:$0xff]
    %v485 = vld [vmem:[#allocation2 + $0x1a0] sm:$0xff]
    %v486 = vld [vmem:[#allocation2 + $0x1a8] sm:$0xff]
    %v487 = vld [vmem:[#allocation2 + $0x1b0] sm:$0xff]
    %v488 = vld [vmem:[#allocation2 + $0x1b8] sm:$0xff]
    %v489 = vld [vmem:[#allocation2 + $0x1c0] sm:$0xff]
    %v490 = vld [vmem:[#allocation2 + $0x1c8] sm:$0xff]
    %v491 = vld [vmem:[#allocation2 + $0x1d0] sm:$0xff]
    %v492 = vld [vmem:[#allocation2 + $0x1d8] sm:$0xff]
    %v493 = vld [vmem:[#allocation2 + $0x1e0] sm:$0xff]
    %v494 = vld [vmem:[#allocation2 + $0x1e8] sm:$0xff]
    %v495 = vld [vmem:[#allocation2 + $0x1f0] sm:$0xff]
    %v496 = vld [vmem:[#allocation2 + $0x1f8] sm:$0xff]
    %v497 = vld [vmem:[#allocation2 + $0x200] sm:$0xff]
    %v498 = vld [vmem:[#allocation2 + $0x208] sm:$0xff]
    %v499 = vld [vmem:[#allocation2 + $0x210] sm:$0xff]
    %v500 = vld [vmem:[#allocation2 + $0x218] sm:$0xff]
    %v501 = vld [vmem:[#allocation2 + $0x220] sm:$0xff]
    %v502 = vld [vmem:[#allocation2 + $0x228] sm:$0xff]
    %v503 = vld [vmem:[#allocation2 + $0x230] sm:$0xff]
    %v504 = vld [vmem:[#allocation2 + $0x238] sm:$0xff]
    %v505 = vld [vmem:[#allocation2 + $0x240] sm:$0xff]
    %v506 = vld [vmem:[#allocation2 + $0x248] sm:$0xff]
    %v507 = vld [vmem:[#allocation2 + $0x250] sm:$0xff]
    %v508 = vld [vmem:[#allocation2 + $0x258] sm:$0xff]
    %v509 = vld [vmem:[#allocation2 + $0x260] sm:$0xff]
    %v510 = vld [vmem:[#allocation2 + $0x268] sm:$0xff]
    %v511 = vld [vmem:[#allocation2 + $0x270] sm:$0xff]
    %v512 = vld [vmem:[#allocation2 + $0x278] sm:$0xff]
    %v513 = vld [vmem:[#allocation2 + $0x280] sm:$0xff]
    %v514 = vld [vmem:[#allocation2 + $0x288] sm:$0xff]
    %v515 = vld [vmem:[#allocation2 + $0x290] sm:$0xff]
    %v516 = vld [vmem:[#allocation2 + $0x298] sm:$0xff]
    %v517 = vld [vmem:[#allocation2 + $0x2a0] sm:$0xff]
    %v518 = vld [vmem:[#allocation2 + $0x2a8] sm:$0xff]
    %v519 = vld [vmem:[#allocation2 + $0x2b0] sm:$0xff]
    %v520 = vld [vmem:[#allocation2 + $0x2b8] sm:$0xff]
    %v521 = vld [vmem:[#allocation2 + $0x2c0] sm:$0xff]
    %v522 = vld [vmem:[#allocation2 + $0x2c8] sm:$0xff]
    %v523 = vld [vmem:[#allocation2 + $0x2d0] sm:$0xff]
    %v524 = vld [vmem:[#allocation2 + $0x2d8] sm:$0xff]
    %v525 = vld [vmem:[#allocation2 + $0x2e0] sm:$0xff]
    %v526 = vld [vmem:[#allocation2 + $0x2e8] sm:$0xff]
    %v527 = vld [vmem:[#allocation2 + $0x2f0] sm:$0xff]
    %v528 = vld [vmem:[#allocation2 + $0x2f8] sm:$0xff]
    %v529 = vld [vmem:[#allocation2 + $0x300] sm:$0xff]
    %v530 = vld [vmem:[#allocation2 + $0x308] sm:$0xff]
    %v531 = vld [vmem:[#allocation2 + $0x310] sm:$0xff]
    %v532 = vld [vmem:[#allocation2 + $0x318] sm:$0xff]
    %v533 = vld [vmem:[#allocation2 + $0x320] sm:$0xff]
    %v534 = vld [vmem:[#allocation2 + $0x328] sm:$0xff]
    %v535 = vld [vmem:[#allocation2 + $0x330] sm:$0xff]
    %v536 = vld [vmem:[#allocation2 + $0x338] sm:$0xff]
    %v537 = vld [vmem:[#allocation2 + $0x340] sm:$0xff]
    %v538 = vld [vmem:[#allocation2 + $0x348] sm:$0xff]
    %v539 = vld [vmem:[#allocation2 + $0x350] sm:$0xff]
    %v540 = vld [vmem:[#allocation2 + $0x358] sm:$0xff]
    %v541 = vld [vmem:[#allocation2 + $0x360] sm:$0xff]
    %v542 = vld [vmem:[#allocation2 + $0x368] sm:$0xff]
    %v543 = vld [vmem:[#allocation2 + $0x370] sm:$0xff]
    %v544 = vld [vmem:[#allocation2 + $0x378] sm:$0xff]
    %v545 = vld [vmem:[#allocation2 + $0x380] sm:$0xff]
    %v546 = vld [vmem:[#allocation2 + $0x388] sm:$0xff]
    %v547 = vld [vmem:[#allocation2 + $0x390] sm:$0xff]
    %v548 = vld [vmem:[#allocation2 + $0x398] sm:$0xff]
    %v549 = vld [vmem:[#allocation2 + $0x3a0] sm:$0xff]
    %v550 = vld [vmem:[#allocation2 + $0x3a8] sm:$0xff]
    %v551 = vld [vmem:[#allocation2 + $0x3b0] sm:$0xff]
    %v552 = vld [vmem:[#allocation2 + $0x3b8] sm:$0xff]
    %v553 = vld [vmem:[#allocation2 + $0x3c0] sm:$0xff]
    %v554 = vld [vmem:[#allocation2 + $0x3c8] sm:$0xff]
    %v555 = vld [vmem:[#allocation2 + $0x3d0] sm:$0xff]
    %v556 = vld [vmem:[#allocation2 + $0x3d8] sm:$0xff]
    %v557 = vld [vmem:[#allocation2 + $0x3e0] sm:$0xff]
    %v558 = vld [vmem:[#allocation2 + $0x3e8] sm:$0xff]
    %v559 = vld [vmem:[#allocation2 + $0x3f0] sm:$0xff]
    %v560 = vld [vmem:[#allocation2 + $0x3f8] sm:$0xff]
    %v561 = vld [vmem:[#allocation2 + $0x400] sm:$0xff]
    %v562 = vld [vmem:[#allocation2 + $0x408] sm:$0xff]
    %v563 = vld [vmem:[#allocation2 + $0x410] sm:$0xff]
    %v564 = vld [vmem:[#allocation2 + $0x418] sm:$0xff]
    %v565 = vld [vmem:[#allocation2 + $0x420] sm:$0xff]
    %v566 = vld [vmem:[#allocation2 + $0x428] sm:$0xff]
    %v567 = vld [vmem:[#allocation2 + $0x430] sm:$0xff]
    %v568 = vld [vmem:[#allocation2 + $0x438] sm:$0xff]
    %v569 = vld [vmem:[#allocation2 + $0x440] sm:$0xff]
    %v570 = vld [vmem:[#allocation2 + $0x448] sm:$0xff]
    %v571 = vld [vmem:[#allocation2 + $0x450] sm:$0xff]
    %v572 = vld [vmem:[#allocation2 + $0x458] sm:$0xff]
    %v573 = vld [vmem:[#allocation2 + $0x460] sm:$0xff]
    %v574 = vld [vmem:[#allocation2 + $0x468] sm:$0xff]
    %v575 = vld [vmem:[#allocation2 + $0x470] sm:$0xff]
    %v576 = vld [vmem:[#allocation2 + $0x478] sm:$0xff]
    %v577 = vld [vmem:[#allocation2 + $0x480] sm:$0xff]
    %v578 = vld [vmem:[#allocation2 + $0x488] sm:$0xff]
    %v579 = vld [vmem:[#allocation2 + $0x490] sm:$0xff]
    %v580 = vld [vmem:[#allocation2 + $0x498] sm:$0xff]
    %v581 = vld [vmem:[#allocation2 + $0x4a0] sm:$0xff]
    %v582 = vld [vmem:[#allocation2 + $0x4a8] sm:$0xff]
    %v583 = vld [vmem:[#allocation2 + $0x4b0] sm:$0xff]
    %v584 = vld [vmem:[#allocation2 + $0x4b8] sm:$0xff]
    %v585 = vld [vmem:[#allocation2 + $0x4c0] sm:$0xff]
    %v586 = vld [vmem:[#allocation2 + $0x4c8] sm:$0xff]
    %v587 = vld [vmem:[#allocation2 + $0x4d0] sm:$0xff]
    %v588 = vld [vmem:[#allocation2 + $0x4d8] sm:$0xff]
    %v589 = vld [vmem:[#allocation2 + $0x4e0] sm:$0xff]
    %v590 = vld [vmem:[#allocation2 + $0x4e8] sm:$0xff]
    %v591 = vld [vmem:[#allocation2 + $0x4f0] sm:$0xff]
    %v592 = vld [vmem:[#allocation2 + $0x4f8] sm:$0xff]
    %v593 = vld [vmem:[#allocation2 + $0x500] sm:$0xff]
    %v594 = vld [vmem:[#allocation2 + $0x508] sm:$0xff]
    %v595 = vld [vmem:[#allocation2 + $0x510] sm:$0xff]
    %v596 = vld [vmem:[#allocation2 + $0x518] sm:$0xff]
    %v597 = vld [vmem:[#allocation2 + $0x520] sm:$0xff]
    %v598 = vld [vmem:[#allocation2 + $0x528] sm:$0xff]
    %v599 = vld [vmem:[#allocation2 + $0x530] sm:$0xff]
    %v600 = vld [vmem:[#allocation2 + $0x538] sm:$0xff]
    %v601 = vld [vmem:[#allocation2 + $0x540] sm:$0xff]
    %v602 = vld [vmem:[#allocation2 + $0x548] sm:$0xff]
    %v603 = vld [vmem:[#allocation2 + $0x550] sm:$0xff]
    %v604 = vld [vmem:[#allocation2 + $0x558] sm:$0xff]
    %v605 = vld [vmem:[#allocation2 + $0x560] sm:$0xff]
    %v606 = vld [vmem:[#allocation2 + $0x568] sm:$0xff]
    %v607 = vld [vmem:[#allocation2 + $0x570] sm:$0xff]
    %v608 = vld [vmem:[#allocation2 + $0x578] sm:$0xff]
    %v609 = vld [vmem:[#allocation2 + $0x580] sm:$0xff]
    %v610 = vld [vmem:[#allocation2 + $0x588] sm:$0xff]
    %v611 = vld [vmem:[#allocation2 + $0x590] sm:$0xff]
    %v612 = vld [vmem:[#allocation2 + $0x598] sm:$0xff]
    %v613 = vld [vmem:[#allocation2 + $0x5a0] sm:$0xff]
    %v614 = vld [vmem:[#allocation2 + $0x5a8] sm:$0xff]
    %v615 = vld [vmem:[#allocation2 + $0x5b0] sm:$0xff]
    %v616 = vld [vmem:[#allocation2 + $0x5b8] sm:$0xff]
    %v617 = vld [vmem:[#allocation2 + $0x5c0] sm:$0xff]
    %v618 = vld [vmem:[#allocation2 + $0x5c8] sm:$0xff]
    %v619 = vld [vmem:[#allocation2 + $0x5d0] sm:$0xff]
    %v620 = vld [vmem:[#allocation2 + $0x5d8] sm:$0xff]
    %v621 = vld [vmem:[#allocation2 + $0x5e0] sm:$0xff]
    %v622 = vld [vmem:[#allocation2 + $0x5e8] sm:$0xff]
    %v623 = vld [vmem:[#allocation2 + $0x5f0] sm:$0xff]
    %v624 = vld [vmem:[#allocation2 + $0x5f8] sm:$0xff]
    %v625 = vld [vmem:[#allocation2 + $0x600] sm:$0xff]
    %v626 = vld [vmem:[#allocation2 + $0x608] sm:$0xff]
    %v627 = vld [vmem:[#allocation2 + $0x610] sm:$0xff]
    %v628 = vld [vmem:[#allocation2 + $0x618] sm:$0xff]
    %v629 = vld [vmem:[#allocation2 + $0x620] sm:$0xff]
    %v630 = vld [vmem:[#allocation2 + $0x628] sm:$0xff]
    %v631 = vld [vmem:[#allocation2 + $0x630] sm:$0xff]
    %v632 = vld [vmem:[#allocation2 + $0x638] sm:$0xff]
    %v633 = vld [vmem:[#allocation2 + $0x640] sm:$0xff]
    %v634 = vld [vmem:[#allocation2 + $0x648] sm:$0xff]
    %v635 = vld [vmem:[#allocation2 + $0x650] sm:$0xff]
    %v636 = vld [vmem:[#allocation2 + $0x658] sm:$0xff]
    %v637 = vld [vmem:[#allocation2 + $0x660] sm:$0xff]
    %v638 = vld [vmem:[#allocation2 + $0x668] sm:$0xff]
    %v639 = vld [vmem:[#allocation2 + $0x670] sm:$0xff]
    %v640 = vld [vmem:[#allocation2 + $0x678] sm:$0xff]
    %v641 = vld [vmem:[#allocation2 + $0x680] sm:$0xff]
    %v642 = vld [vmem:[#allocation2 + $0x688] sm:$0xff]
    %v643 = vld [vmem:[#allocation2 + $0x690] sm:$0xff]
    %v644 = vld [vmem:[#allocation2 + $0x698] sm:$0xff]
    %v645 = vld [vmem:[#allocation2 + $0x6a0] sm:$0xff]
    %v646 = vld [vmem:[#allocation2 + $0x6a8] sm:$0xff]
    %v647 = vld [vmem:[#allocation2 + $0x6b0] sm:$0xff]
    %v648 = vld [vmem:[#allocation2 + $0x6b8] sm:$0xff]
    %v649 = vld [vmem:[#allocation2 + $0x6c0] sm:$0xff]
    %v650 = vld [vmem:[#allocation2 + $0x6c8] sm:$0xff]
    %v651 = vld [vmem:[#allocation2 + $0x6d0] sm:$0xff]
    %v652 = vld [vmem:[#allocation2 + $0x6d8] sm:$0xff]
    %v653 = vld [vmem:[#allocation2 + $0x6e0] sm:$0xff]
    %v654 = vld [vmem:[#allocation2 + $0x6e8] sm:$0xff]
    %v655 = vld [vmem:[#allocation2 + $0x6f0] sm:$0xff]
    %v656 = vld [vmem:[#allocation2 + $0x6f8] sm:$0xff]
    %v657 = vld [vmem:[#allocation2 + $0x700] sm:$0xff]
    %v658 = vld [vmem:[#allocation2 + $0x708] sm:$0xff]
    %v659 = vld [vmem:[#allocation2 + $0x710] sm:$0xff]
    %v660 = vld [vmem:[#allocation2 + $0x718] sm:$0xff]
    %v661 = vld [vmem:[#allocation2 + $0x720] sm:$0xff]
    %v662 = vld [vmem:[#allocation2 + $0x728] sm:$0xff]
    %v663 = vld [vmem:[#allocation2 + $0x730] sm:$0xff]
    %v664 = vld [vmem:[#allocation2 + $0x738] sm:$0xff]
    %v665 = vld [vmem:[#allocation2 + $0x740] sm:$0xff]
    %v666 = vld [vmem:[#allocation2 + $0x748] sm:$0xff]
    %v667 = vld [vmem:[#allocation2 + $0x750] sm:$0xff]
    %v668 = vld [vmem:[#allocation2 + $0x758] sm:$0xff]
    %v669 = vld [vmem:[#allocation2 + $0x760] sm:$0xff]
    %v670 = vld [vmem:[#allocation2 + $0x768] sm:$0xff]
    %v671 = vld [vmem:[#allocation2 + $0x770] sm:$0xff]
    %v672 = vld [vmem:[#allocation2 + $0x778] sm:$0xff]
    %v673 = vld [vmem:[#allocation2 + $0x780] sm:$0xff]
    %v674 = vld [vmem:[#allocation2 + $0x788] sm:$0xff]
    %v675 = vld [vmem:[#allocation2 + $0x790] sm:$0xff]
    %v676 = vld [vmem:[#allocation2 + $0x798] sm:$0xff]
    %v677 = vld [vmem:[#allocation2 + $0x7a0] sm:$0xff]
    %v678 = vld [vmem:[#allocation2 + $0x7a8] sm:$0xff]
    %v679 = vld [vmem:[#allocation2 + $0x7b0] sm:$0xff]
    %v680 = vld [vmem:[#allocation2 + $0x7b8] sm:$0xff]
    %v681 = vld [vmem:[#allocation2 + $0x7c0] sm:$0xff]
    %v682 = vld [vmem:[#allocation2 + $0x7c8] sm:$0xff]
    %v683 = vld [vmem:[#allocation2 + $0x7d0] sm:$0xff]
    %v684 = vld [vmem:[#allocation2 + $0x7d8] sm:$0xff]
    %v685 = vld [vmem:[#allocation2 + $0x7e0] sm:$0xff]
    %v686 = vld [vmem:[#allocation2 + $0x7e8] sm:$0xff]
    %v687 = vld [vmem:[#allocation2 + $0x7f0] sm:$0xff]
    %v688 = vld [vmem:[#allocation2 + $0x7f8] sm:$0xff]
    %v689 = vld [vmem:[#allocation2 + $0x800] sm:$0xff]
    %v690 = vld [vmem:[#allocation2 + $0x808] sm:$0xff]
    %v691 = vld [vmem:[#allocation2 + $0x810] sm:$0xff]
    %v692 = vld [vmem:[#allocation2 + $0x818] sm:$0xff]
    %v693 = vld [vmem:[#allocation2 + $0x820] sm:$0xff]
    %v694 = vld [vmem:[#allocation2 + $0x828] sm:$0xff]
    %v695 = vld [vmem:[#allocation2 + $0x830] sm:$0xff]
    %v696 = vld [vmem:[#allocation2 + $0x838] sm:$0xff]
    %v697 = vld [vmem:[#allocation2 + $0x840] sm:$0xff]
    %v698 = vld [vmem:[#allocation2 + $0x848] sm:$0xff]
    %v699 = vld [vmem:[#allocation2 + $0x850] sm:$0xff]
    %v700 = vld [vmem:[#allocation2 + $0x858] sm:$0xff]
    %v701 = vld [vmem:[#allocation2 + $0x860] sm:$0xff]
    %v702 = vld [vmem:[#allocation2 + $0x868] sm:$0xff]
    %v703 = vld [vmem:[#allocation2 + $0x870] sm:$0xff]
    %v704 = vld [vmem:[#allocation2 + $0x878] sm:$0xff]
    %v705 = vld [vmem:[#allocation2 + $0x880] sm:$0xff]
    %v706 = vld [vmem:[#allocation2 + $0x888] sm:$0xff]
    %v707 = vld [vmem:[#allocation2 + $0x890] sm:$0xff]
    %v708 = vld [vmem:[#allocation2 + $0x898] sm:$0xff]
    %v709 = vld [vmem:[#allocation2 + $0x8a0] sm:$0xff]
    %v710 = vld [vmem:[#allocation2 + $0x8a8] sm:$0xff]
    %v711 = vld [vmem:[#allocation2 + $0x8b0] sm:$0xff]
    %v712 = vld [vmem:[#allocation2 + $0x8b8] sm:$0xff]
    %v713 = vld [vmem:[#allocation2 + $0x8c0] sm:$0xff]
    %v714 = vld [vmem:[#allocation2 + $0x8c8] sm:$0xff]
    %v715 = vld [vmem:[#allocation2 + $0x8d0] sm:$0xff]
    %v716 = vld [vmem:[#allocation2 + $0x8d8] sm:$0xff]
    %v717 = vld [vmem:[#allocation2 + $0x8e0] sm:$0xff]
    %v718 = vld [vmem:[#allocation2 + $0x8e8] sm:$0xff]
    %v719 = vld [vmem:[#allocation2 + $0x8f0] sm:$0xff]
    %v720 = vld [vmem:[#allocation2 + $0x8f8] sm:$0xff]
    %v721 = vld [vmem:[#allocation2 + $0x900] sm:$0xff]
    %v722 = vld [vmem:[#allocation2 + $0x908] sm:$0xff]
    %v723 = vld [vmem:[#allocation2 + $0x910] sm:$0xff]
    %v724 = vld [vmem:[#allocation2 + $0x918] sm:$0xff]
    %v725 = vld [vmem:[#allocation2 + $0x920] sm:$0xff]
    %v726 = vld [vmem:[#allocation2 + $0x928] sm:$0xff]
    %v727 = vld [vmem:[#allocation2 + $0x930] sm:$0xff]
    %v728 = vld [vmem:[#allocation2 + $0x938] sm:$0xff]
    %v729 = vld [vmem:[#allocation2 + $0x940] sm:$0xff]
    %v730 = vld [vmem:[#allocation2 + $0x948] sm:$0xff]
    %v731 = vld [vmem:[#allocation2 + $0x950] sm:$0xff]
    %v732 = vld [vmem:[#allocation2 + $0x958] sm:$0xff]
    %v733 = vld [vmem:[#allocation2 + $0x960] sm:$0xff]
    %v734 = vld [vmem:[#allocation2 + $0x968] sm:$0xff]
    %v735 = vld [vmem:[#allocation2 + $0x970] sm:$0xff]
    %v736 = vld [vmem:[#allocation2 + $0x978] sm:$0xff]
    %v737 = vld [vmem:[#allocation2 + $0x980] sm:$0xff]
    %v738 = vld [vmem:[#allocation2 + $0x988] sm:$0xff]
    %v739 = vld [vmem:[#allocation2 + $0x990] sm:$0xff]
    %v740 = vld [vmem:[#allocation2 + $0x998] sm:$0xff]
    %v741 = vld [vmem:[#allocation2 + $0x9a0] sm:$0xff]
    %v742 = vld [vmem:[#allocation2 + $0x9a8] sm:$0xff]
    %v743 = vld [vmem:[#allocation2 + $0x9b0] sm:$0xff]
    %v744 = vld [vmem:[#allocation2 + $0x9b8] sm:$0xff]
    %v745 = vld [vmem:[#allocation2 + $0x9c0] sm:$0xff]
    %v746 = vld [vmem:[#allocation2 + $0x9c8] sm:$0xff]
    %v747 = vld [vmem:[#allocation2 + $0x9d0] sm:$0xff]
    %v748 = vld [vmem:[#allocation2 + $0x9d8] sm:$0xff]
    %v749 = vld [vmem:[#allocation2 + $0x9e0] sm:$0xff]
    %v750 = vld [vmem:[#allocation2 + $0x9e8] sm:$0xff]
    %v751 = vld [vmem:[#allocation2 + $0x9f0] sm:$0xff]
    %v752 = vld [vmem:[#allocation2 + $0x9f8] sm:$0xff]
    %v753 = vld [vmem:[#allocation2 + $0xa00] sm:$0xff]
    %v754 = vld [vmem:[#allocation2 + $0xa08] sm:$0xff]
    %v755 = vld [vmem:[#allocation2 + $0xa10] sm:$0xff]
    %v756 = vld [vmem:[#allocation2 + $0xa18] sm:$0xff]
    %v757 = vld [vmem:[#allocation2 + $0xa20] sm:$0xff]
    %v758 = vld [vmem:[#allocation2 + $0xa28] sm:$0xff]
    %v759 = vld [vmem:[#allocation2 + $0xa30] sm:$0xff]
    %v760 = vld [vmem:[#allocation2 + $0xa38] sm:$0xff]
    %v761 = vld [vmem:[#allocation2 + $0xa40] sm:$0xff]
    %v762 = vld [vmem:[#allocation2 + $0xa48] sm:$0xff]
    %v763 = vld [vmem:[#allocation2 + $0xa50] sm:$0xff]
    %v764 = vld [vmem:[#allocation2 + $0xa58] sm:$0xff]
    %v765 = vld [vmem:[#allocation2 + $0xa60] sm:$0xff]
    %v766 = vld [vmem:[#allocation2 + $0xa68] sm:$0xff]
    %v767 = vld [vmem:[#allocation2 + $0xa70] sm:$0xff]
    %v768 = vld [vmem:[#allocation2 + $0xa78] sm:$0xff]
    %v769 = vld [vmem:[#allocation2 + $0xa80] sm:$0xff]
    %v770 = vld [vmem:[#allocation2 + $0xa88] sm:$0xff]
    %v771 = vld [vmem:[#allocation2 + $0xa90] sm:$0xff]
    %v772 = vld [vmem:[#allocation2 + $0xa98] sm:$0xff]
    %v773 = vld [vmem:[#allocation2 + $0xaa0] sm:$0xff]
    %v774 = vld [vmem:[#allocation2 + $0xaa8] sm:$0xff]
    %v775 = vld [vmem:[#allocation2 + $0xab0] sm:$0xff]
    %v776 = vld [vmem:[#allocation2 + $0xab8] sm:$0xff]
    %v777 = vld [vmem:[#allocation2 + $0xac0] sm:$0xff]
    %v778 = vld [vmem:[#allocation2 + $0xac8] sm:$0xff]
    %v779 = vld [vmem:[#allocation2 + $0xad0] sm:$0xff]
    %v780 = vld [vmem:[#allocation2 + $0xad8] sm:$0xff]
    %v781 = vld [vmem:[#allocation2 + $0xae0] sm:$0xff]
    %v782 = vld [vmem:[#allocation2 + $0xae8] sm:$0xff]
    %v783 = vld [vmem:[#allocation2 + $0xaf0] sm:$0xff]
    %v784 = vld [vmem:[#allocation2 + $0xaf8] sm:$0xff]
    %v785 = vld [vmem:[#allocation2 + $0xb00] sm:$0xff]
    %v786 = vld [vmem:[#allocation2 + $0xb08] sm:$0xff]
    %v787 = vld [vmem:[#allocation2 + $0xb10] sm:$0xff]
    %v788 = vld [vmem:[#allocation2 + $0xb18] sm:$0xff]
    %v789 = vld [vmem:[#allocation2 + $0xb20] sm:$0xff]
    %v790 = vld [vmem:[#allocation2 + $0xb28] sm:$0xff]
    %v791 = vld [vmem:[#allocation2 + $0xb30] sm:$0xff]
    %v792 = vld [vmem:[#allocation2 + $0xb38] sm:$0xff]
    %v793 = vld [vmem:[#allocation2 + $0xb40] sm:$0xff]
    %v794 = vld [vmem:[#allocation2 + $0xb48] sm:$0xff]
    %v795 = vld [vmem:[#allocation2 + $0xb50] sm:$0xff]
    %v796 = vld [vmem:[#allocation2 + $0xb58] sm:$0xff]
    %v797 = vld [vmem:[#allocation2 + $0xb60] sm:$0xff]
    %v798 = vld [vmem:[#allocation2 + $0xb68] sm:$0xff]
    %v799 = vld [vmem:[#allocation2 + $0xb70] sm:$0xff]
    %v800 = vld [vmem:[#allocation2 + $0xb78] sm:$0xff]
    %v801 = vld [vmem:[#allocation2 + $0xb80] sm:$0xff]
    %v802 = vld [vmem:[#allocation2 + $0xb88] sm:$0xff]
    %v803 = vld [vmem:[#allocation2 + $0xb90] sm:$0xff]
    %v804 = vld [vmem:[#allocation2 + $0xb98] sm:$0xff]
    %v805 = vld [vmem:[#allocation2 + $0xba0] sm:$0xff]
    %v806 = vld [vmem:[#allocation2 + $0xba8] sm:$0xff]
    %v807 = vld [vmem:[#allocation2 + $0xbb0] sm:$0xff]
    %v808 = vld [vmem:[#allocation2 + $0xbb8] sm:$0xff]
    %v809 = vld [vmem:[#allocation2 + $0xbc0] sm:$0xff]
    %v810 = vld [vmem:[#allocation2 + $0xbc8] sm:$0xff]
    %v811 = vld [vmem:[#allocation2 + $0xbd0] sm:$0xff]
    %v812 = vld [vmem:[#allocation2 + $0xbd8] sm:$0xff]
    %v813 = vld [vmem:[#allocation2 + $0xbe0] sm:$0xff]
    %v814 = vld [vmem:[#allocation2 + $0xbe8] sm:$0xff]
    %v815 = vld [vmem:[#allocation2 + $0xbf0] sm:$0xff]
    %v816 = vld [vmem:[#allocation2 + $0xbf8] sm:$0xff]
    %v817 = vld [vmem:[#allocation2 + $0xc00] sm:$0xf]
    %v818 = vld [vmem:[#allocation2 + $0xc08] sm:$0xf]
    %v819 = vld [vmem:[#allocation2 + $0xc10] sm:$0xf]
    %v820 = vld [vmem:[#allocation2 + $0xc18] sm:$0xf]
    %v821 = vld [vmem:[#allocation2 + $0xc20] sm:$0xf]
    %v822 = vld [vmem:[#allocation2 + $0xc28] sm:$0xf]
    %v823 = vld [vmem:[#allocation2 + $0xc30] sm:$0xf]
    %v824 = vld [vmem:[#allocation2 + $0xc38] sm:$0xf]
    %v825 = vld [vmem:[#allocation2 + $0xc40] sm:$0xf]
    %v826 = vld [vmem:[#allocation2 + $0xc48] sm:$0xf]
    %v827 = vld [vmem:[#allocation2 + $0xc50] sm:$0xf]
    %v828 = vld [vmem:[#allocation2 + $0xc58] sm:$0xf]
    %v829 = vld [vmem:[#allocation2 + $0xc60] sm:$0xf]
    %v830 = vld [vmem:[#allocation2 + $0xc68] sm:$0xf]
    %v831 = vld [vmem:[#allocation2 + $0xc70] sm:$0xf]
    %v832 = vld [vmem:[#allocation2 + $0xc78] sm:$0xf]
    %v833 = vld [vmem:[%s0] sm:$0xff]
    %v834 = vld [vmem:[%s0 + $0x8] sm:$0xff]
    %v835 = vld [vmem:[%s0 + $0x10] sm:$0xff]
    %v836 = vld [vmem:[%s0 + $0x18] sm:$0xff]
    %v837 = vld [vmem:[%s0 + $0x20] sm:$0xff]
    %v838 = vld [vmem:[%s0 + $0x28] sm:$0xff]
    %v839 = vld [vmem:[%s0 + $0x30] sm:$0xff]
    %v840 = vld [vmem:[%s0 + $0x38] sm:$0xff]
    %v841 = vld [vmem:[%s0 + $0x40] sm:$0xff]
    %v842 = vld [vmem:[%s0 + $0x48] sm:$0xff]
    %v843 = vld [vmem:[%s0 + $0x50] sm:$0xff]
    %v844 = vld [vmem:[%s0 + $0x58] sm:$0xff]
    %v845 = vld [vmem:[%s0 + $0x60] sm:$0xff]
    %v846 = vld [vmem:[%s0 + $0x68] sm:$0xff]
    %v847 = vld [vmem:[%s0 + $0x70] sm:$0xff]
    %v848 = vld [vmem:[%s0 + $0x78] sm:$0xff]
    %v849 = vld [vmem:[%s0 + $0x80] sm:$0xff]
    %v850 = vld [vmem:[%s0 + $0x88] sm:$0xff]
    %v851 = vld [vmem:[%s0 + $0x90] sm:$0xff]
    %v852 = vld [vmem:[%s0 + $0x98] sm:$0xff]
    %v853 = vld [vmem:[%s0 + $0xa0] sm:$0xff]
    %v854 = vld [vmem:[%s0 + $0xa8] sm:$0xff]
    %v855 = vld [vmem:[%s0 + $0xb0] sm:$0xff]
    %v856 = vld [vmem:[%s0 + $0xb8] sm:$0xff]
    %v857 = vld [vmem:[%s0 + $0xc0] sm:$0xf]
    %v858 = vld [vmem:[#allocation3] sm:$0xff]
    %v859 = vld [vmem:[#allocation3 + $0x8] sm:$0xff]
    %v860 = vld [vmem:[#allocation3 + $0x10] sm:$0xff]
    %v861 = vld [vmem:[#allocation3 + $0x18] sm:$0xff]
    %v862 = vld [vmem:[#allocation3 + $0x20] sm:$0xff]
    %v863 = vld [vmem:[#allocation3 + $0x28] sm:$0xff]
    %v864 = vld [vmem:[#allocation3 + $0x30] sm:$0xff]
    %v865 = vld [vmem:[#allocation3 + $0x38] sm:$0xff]
    %v866 = vld [vmem:[#allocation3 + $0x40] sm:$0xff]
    %v867 = vld [vmem:[#allocation3 + $0x48] sm:$0xff]
    %v868 = vld [vmem:[#allocation3 + $0x50] sm:$0xff]
    %v869 = vld [vmem:[#allocation3 + $0x58] sm:$0xff]
    %v870 = vld [vmem:[#allocation3 + $0x60] sm:$0xff]
    %v871 = vld [vmem:[#allocation3 + $0x68] sm:$0xff]
    %v872 = vld [vmem:[#allocation3 + $0x70] sm:$0xff]
    %v873 = vld [vmem:[#allocation3 + $0x78] sm:$0xff]
    %v874 = vld [vmem:[#allocation3 + $0x80] sm:$0xf]
    %v875 = vld [vmem:[#allocation3 + $0x88] sm:$0xf]
    %v876 = vld [vmem:[#allocation3 + $0x90] sm:$0xf]
    %v877 = vld [vmem:[#allocation3 + $0x98] sm:$0xf]
    %v878 = vld [vmem:[#allocation3 + $0xa0] sm:$0xf]
    %v879 = vld [vmem:[#allocation3 + $0xa8] sm:$0xf]
    %v880 = vld [vmem:[#allocation3 + $0xb0] sm:$0xf]
    %v881 = vld [vmem:[#allocation3 + $0xb8] sm:$0xf]
    %v882 = vld [vmem:[#allocation3 + $0xc0] sm:$0xf]
    %v883 = vld [vmem:[#allocation3 + $0xc8] sm:$0xf]
    %v884 = vld [vmem:[#allocation3 + $0xd0] sm:$0xf]
    %v885 = vld [vmem:[#allocation3 + $0xd8] sm:$0xf]
    %v886 = vld [vmem:[#allocation3 + $0xe0] sm:$0xf]
    %v887 = vld [vmem:[#allocation3 + $0xe8] sm:$0xf]
    %v888 = vld [vmem:[#allocation3 + $0xf0] sm:$0xf]
    %v889 = vld [vmem:[#allocation3 + $0xf8] sm:$0xf]
    %vm890 = vcmask 97280
    %v892 = vsel %vm890, %v833, 0
    %v895 = vsel %vm890, %v834, 0
    %v898 = vsel %vm890, %v835, 0
    %v901 = vsel %vm890, %v836, 0
    %v904 = vsel %vm890, %v837, 0
    %v907 = vsel %vm890, %v838, 0
    %v910 = vsel %vm890, %v839, 0
    %v913 = vsel %vm890, %v840, 0
    %v916 = vsel %vm890, %v841, 0
    %v919 = vsel %vm890, %v842, 0
    %v922 = vsel %vm890, %v843, 0
    %v925 = vsel %vm890, %v844, 0
    %v928 = vsel %vm890, %v845, 0
    %v931 = vsel %vm890, %v846, 0
    %v934 = vsel %vm890, %v847, 0
    %v937 = vsel %vm890, %v848, 0
    %v940 = vsel %vm890, %v849, 0
    %v943 = vsel %vm890, %v850, 0
    %v946 = vsel %vm890, %v851, 0
    %v949 = vsel %vm890, %v852, 0
    %v952 = vsel %vm890, %v853, 0
    %v955 = vsel %vm890, %v854, 0
    %v958 = vsel %vm890, %v855, 0
    %v961 = vsel %vm890, %v856, 0
    %v964 = vsel %vm890, %v857, 0
    %vm966 = vcmask 1043456
    %v968 = vsel %vm966, %v874, 0
    %v971 = vsel %vm966, %v875, 0
    %v974 = vsel %vm966, %v876, 0
    %v977 = vsel %vm966, %v877, 0
    %v980 = vsel %vm966, %v878, 0
    %v983 = vsel %vm966, %v879, 0
    %v986 = vsel %vm966, %v880, 0
    %v989 = vsel %vm966, %v881, 0
    %v992 = vsel %vm966, %v882, 0
    %v995 = vsel %vm966, %v883, 0
    %v998 = vsel %vm966, %v884, 0
    %v1001 = vsel %vm966, %v885, 0
    %v1004 = vsel %vm966, %v886, 0
    %v1007 = vsel %vm966, %v887, 0
    %v1010 = vsel %vm966, %v888, 0
    %v1013 = vsel %vm966, %v889, 0
    %1015 = vmatprep.subr.mxu0 %v859
    %1016 = vmatpush1.msra.mxu0 %v858
    %1017 = vmatprep.subr.mxu0 %v971
    %1018 = vmatpush1.msra.mxu0 %v968
    %1019 = vmatprep.subr.mxu0 0.0
    %1020 = vmatpush1.msra.mxu0 0.0
    %1021 = vmatprep.subr.mxu0 0.0
    %1022 = vmatpush1.msra.mxu0 0.0
    %1023 = vmatprep.subr.mxu0 0.0
    %1024 = vmatpush1.msra.mxu0 0.0
    %1025 = vmatprep.subr.mxu0 0.0
    %1026 = vmatpush1.msra.mxu0 0.0
    %1027 = vmatprep.subr.mxu0 0.0
    %1028 = vmatpush1.msra.mxu0 0.0
    %1029 = vmatprep.subr.mxu0 0.0
    %1030 = vmatpush1.msra.mxu0 0.0
    %1031 = vmatprep.subr.mxu0 0.0
    %1032 = vmatpush1.msra.mxu0 0.0
    %1033 = vmatprep.subr.mxu0 0.0
    %1034 = vmatpush1.msra.mxu0 0.0
    %1035 = vmatprep.subr.mxu0 0.0
    %1036 = vmatpush1.msra.mxu0 0.0
    %1037 = vmatprep.subr.mxu0 0.0
    %1038 = vmatpush1.msra.mxu0 0.0
    %1039 = vmatprep.subr.mxu0 0.0
    %1040 = vmatpush1.msra.mxu0 0.0
    %1041 = vmatprep.subr.mxu0 0.0
    %1042 = vmatpush1.msra.mxu0 0.0
    %1043 = vmatprep.subr.mxu0 0.0
    %1044 = vmatpush1.msra.mxu0 0.0
    %1045 = vmatprep.subr.mxu0 0.0
    %1046 = vmatpush1.msra.mxu0 0.0
    %1047 = vmatprep.subr.mxu0 0.0
    %1048 = vmatpush1.msra.mxu0 0.0
    %1049 = vmatprep.subr.mxu0 0.0
    %1050 = vmatpush1.msra.mxu0 0.0
    %1051 = vmatprep.subr.mxu0 0.0
    %1052 = vmatpush1.msra.mxu0 0.0
    %1053 = vmatprep.subr.mxu0 0.0
    %1054 = vmatpush1.msra.mxu0 0.0
    %1055 = vmatprep.subr.mxu0 0.0
    %1056 = vmatpush1.msra.mxu0 0.0
    %1057 = vmatprep.subr.mxu0 0.0
    %1058 = vmatpush1.msra.mxu0 0.0
    %1059 = vmatprep.subr.mxu0 0.0
    %1060 = vmatpush1.msra.mxu0 0.0
    %1061 = vmatprep.subr.mxu0 0.0
    %1062 = vmatpush1.msra.mxu0 0.0
    %1063 = vmatprep.subr.mxu0 0.0
    %1064 = vmatpush1.msra.mxu0 0.0
    %1065 = vmatprep.subr.mxu0 0.0
    %1066 = vmatpush1.msra.mxu0 0.0
    %1067 = vmatprep.subr.mxu0 0.0
    %1068 = vmatpush1.msra.mxu0 0.0
    %1069 = vmatprep.subr.mxu0 0.0
    %1070 = vmatpush1.msra.mxu0 0.0
    %1071 = vmatprep.subr.mxu0 0.0
    %1072 = vmatpush1.msra.mxu0 0.0
    %1073 = vmatprep.subr.mxu0 0.0
    %1074 = vmatpush1.msra.mxu0 0.0
    %1075 = vmatprep.subr.mxu0 0.0
    %1076 = vmatpush1.msra.mxu0 0.0
    %1077 = vmatprep.subr.mxu0 0.0
    %1078 = vmatpush1.msra.mxu0 0.0
    %1079 = vmatprep.mubr.f32.mxu0 0.0
    %1080 = vmatmul.mubr.f32.gmra.mrb[0].mxu0 %v892
    %v1081 = vpop.f32.mrb[0].mxu0
    %v1082 = vadd.f32 0.0, %v1081
    %v1083 = vpop.f32.mrb[0].mxu0
    %v1084 = vadd.f32 0.0, %v1083
    %1085 = vmatprep.mubr.f32.mxu0 0.0
    %1086 = vmatmul.mubr.f32.gmra.mrb[0].mxu0 %v895
    %v1087 = vpop.f32.mrb[0].mxu0
    %v1088 = vadd.f32 0.0, %v1087
    %v1089 = vpop.f32.mrb[0].mxu0
    %v1090 = vadd.f32 0.0, %v1089
    %1091 = vmatprep.mubr.f32.mxu0 0.0
    %1092 = vmatmul.mubr.f32.gmra.mrb[0].mxu0 %v898
    %v1093 = vpop.f32.mrb[0].mxu0
    %v1094 = vadd.f32 0.0, %v1093
    %v1095 = vpop.f32.mrb[0].mxu0
    %v1096 = vadd.f32 0.0, %v1095
    %1097 = vmatprep.mubr.f32.mxu0 0.0
    %1098 = vmatmul.mubr.f32.gmra.mrb[0].mxu0 %v901
    %v1099 = vpop.f32.mrb[0].mxu0
    %v1100 = vadd.f32 0.0, %v1099
    %v1101 = vpop.f32.mrb[0].mxu0
    %v1102 = vadd.f32 0.0, %v1101
    %1103 = vmatprep.mubr.f32.mxu0 0.0
    %1104 = vmatmul.mubr.f32.gmra.mrb[0].mxu0 %v904
    %v1105 = vpop.f32.mrb[0].mxu0
    %v1106 = vadd.f32 0.0, %v1105
    %v1107 = vpop.f32.mrb[0].mxu0
    %v1108 = vadd.f32 0.0, %v1107
    %1109 = vmatprep.mubr.f32.mxu0 0.0
    %1110 = vmatmul.mubr.f32.gmra.mrb[0].mxu0 %v907
    %v1111 = vpop.f32.mrb[0].mxu0
    %v1112 = vadd.f32 0.0, %v1111
    %v1113 = vpop.f32.mrb[0].mxu0
    %v1114 = vadd.f32 0.0, %v1113
    %1115 = vmatprep.mubr.f32.mxu0 0.0
    %1116 = vmatmul.mubr.f32.gmra.mrb[0].mxu0 %v910
    %v1117 = vpop.f32.mrb[0].mxu0
    %v1118 = vadd.f32 0.0, %v1117
    %v1119 = vpop.f32.mrb[0].mxu0
    %v1120 = vadd.f32 0.0, %v1119
    %1121 = vmatprep.mubr.f32.mxu0 0.0
    %1122 = vmatmul.mubr.f32.gmra.mrb[0].mxu0 %v913
    %v1123 = vpop.f32.mrb[0].mxu0
    %v1124 = vadd.f32 0.0, %v1123
    %v1125 = vpop.f32.mrb[0].mxu0
    %v1126 = vadd.f32 0.0, %v1125
    %1127 = vmatprep.mubr.f32.mxu0 0.0
    %1128 = vmatmul.mubr.f32.gmra.mrb[0].mxu0 %v916
    %v1129 = vpop.f32.mrb[0].mxu0
    %v1130 = vadd.f32 0.0, %v1129
    %v1131 = vpop.f32.mrb[0].mxu0
    %v1132 = vadd.f32 0.0, %v1131
    %1133 = vmatprep.mubr.f32.mxu0 0.0
    %1134 = vmatmul.mubr.f32.gmra.mrb[0].mxu0 %v919
    %v1135 = vpop.f32.mrb[0].mxu0
    %v1136 = vadd.f32 0.0, %v1135
    %v1137 = vpop.f32.mrb[0].mxu0
    %v1138 = vadd.f32 0.0, %v1137
    %1139 = vmatprep.mubr.f32.mxu0 0.0
    %1140 = vmatmul.mubr.f32.gmra.mrb[0].mxu0 %v922
    %v1141 = vpop.f32.mrb[0].mxu0
    %v1142 = vadd.f32 0.0, %v1141
    %v1143 = vpop.f32.mrb[0].mxu0
    %v1144 = vadd.f32 0.0, %v1143
    %1145 = vmatprep.mubr.f32.mxu0 0.0
    %1146 = vmatmul.mubr.f32.gmra.mrb[0].mxu0 %v925
    %v1147 = vpop.f32.mrb[0].mxu0
    %v1148 = vadd.f32 0.0, %v1147
    %v1149 = vpop.f32.mrb[0].mxu0
    %v1150 = vadd.f32 0.0, %v1149
    %1151 = vmatprep.mubr.f32.mxu0 0.0
    %1152 = vmatmul.mubr.f32.gmra.mrb[0].mxu0 %v928
    %v1153 = vpop.f32.mrb[0].mxu0
    %v1154 = vadd.f32 0.0, %v1153
    %v1155 = vpop.f32.mrb[0].mxu0
    %v1156 = vadd.f32 0.0, %v1155
    %1157 = vmatprep.mubr.f32.mxu0 0.0
    %1158 = vmatmul.mubr.f32.gmra.mrb[0].mxu0 %v931
    %v1159 = vpop.f32.mrb[0].mxu0
    %v1160 = vadd.f32 0.0, %v1159
    %v1161 = vpop.f32.mrb[0].mxu0
    %v1162 = vadd.f32 0.0, %v1161
    %1163 = vmatprep.mubr.f32.mxu0 0.0
    %1164 = vmatmul.mubr.f32.gmra.mrb[0].mxu0 %v934
    %v1165 = vpop.f32.mrb[0].mxu0
    %v1166 = vadd.f32 0.0, %v1165
    %v1167 = vpop.f32.mrb[0].mxu0
    %v1168 = vadd.f32 0.0, %v1167
    %1169 = vmatprep.mubr.f32.mxu0 0.0
    %1170 = vmatmul.mubr.f32.gmra.mrb[0].mxu0 %v937
    %v1171 = vpop.f32.mrb[0].mxu0
    %v1172 = vadd.f32 0.0, %v1171
    %v1173 = vpop.f32.mrb[0].mxu0
    %v1174 = vadd.f32 0.0, %v1173
    %1175 = vmatprep.mubr.f32.mxu0 0.0
    %1176 = vmatmul.mubr.f32.gmra.mrb[0].mxu0 %v940
    %v1177 = vpop.f32.mrb[0].mxu0
    %v1178 = vadd.f32 0.0, %v1177
    %v1179 = vpop.f32.mrb[0].mxu0
    %v1180 = vadd.f32 0.0, %v1179
    %1181 = vmatprep.mubr.f32.mxu0 0.0
    %1182 = vmatmul.mubr.f32.gmra.mrb[0].mxu0 %v943
    %v1183 = vpop.f32.mrb[0].mxu0
    %v1184 = vadd.f32 0.0, %v1183
    %v1185 = vpop.f32.mrb[0].mxu0
    %v1186 = vadd.f32 0.0, %v1185
    %1187 = vmatprep.mubr.f32.mxu0 0.0
    %1188 = vmatmul.mubr.f32.gmra.mrb[0].mxu0 %v946
    %v1189 = vpop.f32.mrb[0].mxu0
    %v1190 = vadd.f32 0.0, %v1189
    %v1191 = vpop.f32.mrb[0].mxu0
    %v1192 = vadd.f32 0.0, %v1191
    %1193 = vmatprep.mubr.f32.mxu0 0.0
    %1194 = vmatmul.mubr.f32.gmra.mrb[0].mxu0 %v949
    %v1195 = vpop.f32.mrb[0].mxu0
    %v1196 = vadd.f32 0.0, %v1195
    %v1197 = vpop.f32.mrb[0].mxu0
    %v1198 = vadd.f32 0.0, %v1197
    %1199 = vmatprep.mubr.f32.mxu0 0.0
    %1200 = vmatmul.mubr.f32.gmra.mrb[0].mxu0 %v952
    %v1201 = vpop.f32.mrb[0].mxu0
    %v1202 = vadd.f32 0.0, %v1201
    %v1203 = vpop.f32.mrb[0].mxu0
    %v1204 = vadd.f32 0.0, %v1203
    %1205 = vmatprep.mubr.f32.mxu0 0.0
    %1206 = vmatmul.mubr.f32.gmra.mrb[0].mxu0 %v955
    %v1207 = vpop.f32.mrb[0].mxu0
    %v1208 = vadd.f32 0.0, %v1207
    %v1209 = vpop.f32.mrb[0].mxu0
    %v1210 = vadd.f32 0.0, %v1209
    %1211 = vmatprep.mubr.f32.mxu0 0.0
    %1212 = vmatmul.mubr.f32.gmra.mrb[0].mxu0 %v958
    %v1213 = vpop.f32.mrb[0].mxu0
    %v1214 = vadd.f32 0.0, %v1213
    %v1215 = vpop.f32.mrb[0].mxu0
    %v1216 = vadd.f32 0.0, %v1215
    %1217 = vmatprep.mubr.f32.mxu0 0.0
    %1218 = vmatmul.mubr.f32.gmra.mrb[0].mxu0 %v961
    %v1219 = vpop.f32.mrb[0].mxu0
    %v1220 = vadd.f32 0.0, %v1219
    %v1221 = vpop.f32.mrb[0].mxu0
    %v1222 = vadd.f32 0.0, %v1221
    %1223 = vmatprep.mubr.f32.mxu0 0.0
    %1224 = vmatmul.mubr.f32.gmra.mrb[0].mxu0 %v964
    %v1225 = vpop.f32.mrb[0].mxu0
    %v1226 = vadd.f32 0.0, %v1225
    %v1227 = vpop.f32.mrb[0].mxu0
    %v1228 = vadd.f32 0.0, %v1227
    %1229 = vdwg.mxu0
    %1230 = vmatprep.subr.mxu0 %v861
    %1231 = vmatpush1.msra.mxu0 %v860
    %1232 = vmatprep.subr.mxu0 %v977
    %1233 = vmatpush1.msra.mxu0 %v974
    %1234 = vmatprep.subr.mxu0 0.0
    %1235 = vmatpush1.msra.mxu0 0.0
    %1236 = vmatprep.subr.mxu0 0.0
    %1237 = vmatpush1.msra.mxu0 0.0
    %1238 = vmatprep.subr.mxu0 0.0
    %1239 = vmatpush1.msra.mxu0 0.0
    %1240 = vmatprep.subr.mxu0 0.0
    %1241 = vmatpush1.msra.mxu0 0.0
    %1242 = vmatprep.subr.mxu0 0.0
    %1243 = vmatpush1.msra.mxu0 0.0
    %1244 = vmatprep.subr.mxu0 0.0
    %1245 = vmatpush1.msra.mxu0 0.0
    %1246 = vmatprep.subr.mxu0 0.0
    %1247 = vmatpush1.msra.mxu0 0.0
    %1248 = vmatprep.subr.mxu0 0.0
    %1249 = vmatpush1.msra.mxu0 0.0
    %1250 = vmatprep.subr.mxu0 0.0
    %1251 = vmatpush1.msra.mxu0 0.0
    %1252 = vmatprep.subr.mxu0 0.0
    %1253 = vmatpush1.msra.mxu0 0.0
    %1254 = vmatprep.subr.mxu0 0.0
    %1255 = vmatpush1.msra.mxu0 0.0
    %1256 = vmatprep.subr.mxu0 0.0
    %1257 = vmatpush1.msra.mxu0 0.0
    %1258 = vmatprep.subr.mxu0 0.0
    %1259 = vmatpush1.msra.mxu0 0.0
    %1260 = vmatprep.subr.mxu0 0.0
    %1261 = vmatpush1.msra.mxu0 0.0
    %1262 = vmatprep.subr.mxu0 0.0
    %1263 = vmatpush1.msra.mxu0 0.0
    %1264 = vmatprep.subr.mxu0 0.0
    %1265 = vmatpush1.msra.mxu0 0.0
    %1266 = vmatprep.subr.mxu0 0.0
    %1267 = vmatpush1.msra.mxu0 0.0
    %1268 = vmatprep.subr.mxu0 0.0
    %1269 = vmatpush1.msra.mxu0 0.0
    %1270 = vmatprep.subr.mxu0 0.0
    %1271 = vmatpush1.msra.mxu0 0.0
    %1272 = vmatprep.subr.mxu0 0.0
    %1273 = vmatpush1.msra.mxu0 0.0
    %1274 = vmatprep.subr.mxu0 0.0
    %1275 = vmatpush1.msra.mxu0 0.0
    %1276 = vmatprep.subr.mxu0 0.0
    %1277 = vmatpush1.msra.mxu0 0.0
    %1278 = vmatprep.subr.mxu0 0.0
    %1279 = vmatpush1.msra.mxu0 0.0
    %1280 = vmatprep.subr.mxu0 0.0
    %1281 = vmatpush1.msra.mxu0 0.0
    %1282 = vmatprep.subr.mxu0 0.0
    %1283 = vmatpush1.msra.mxu0 0.0
    %1284 = vmatprep.subr.mxu0 0.0
    %1285 = vmatpush1.msra.mxu0 0.0
    %1286 = vmatprep.subr.mxu0 0.0
    %1287 = vmatpush1.msra.mxu0 0.0
    %1288 = vmatprep.subr.mxu0 0.0
    %1289 = vmatpush1.msra.mxu0 0.0
    %1290 = vmatprep.subr.mxu0 0.0
    %1291 = vmatpush1.msra.mxu0 0.0
    %1292 = vmatprep.subr.mxu0 0.0
    %1293 = vmatpush1.msra.mxu0 0.0
    %1294 = vmatprep.mubr.f32.mxu0 0.0
    %1295 = vmatmul.mubr.f32.gmra.mrb[0].mxu0 %v892
    %v1296 = vpop.f32.mrb[0].mxu0
    %v1297 = vadd.f32 0.0, %v1296
    %v1298 = vpop.f32.mrb[0].mxu0
    %v1299 = vadd.f32 0.0, %v1298
    %1300 = vmatprep.mubr.f32.mxu0 0.0
    %1301 = vmatmul.mubr.f32.gmra.mrb[0].mxu0 %v895
    %v1302 = vpop.f32.mrb[0].mxu0
    %v1303 = vadd.f32 0.0, %v1302
    %v1304 = vpop.f32.mrb[0].mxu0
    %v1305 = vadd.f32 0.0, %v1304
    %1306 = vmatprep.mubr.f32.mxu0 0.0
    %1307 = vmatmul.mubr.f32.gmra.mrb[0].mxu0 %v898
    %v1308 = vpop.f32.mrb[0].mxu0
    %v1309 = vadd.f32 0.0, %v1308
    %v1310 = vpop.f32.mrb[0].mxu0
    %v1311 = vadd.f32 0.0, %v1310
    %1312 = vmatprep.mubr.f32.mxu0 0.0
    %1313 = vmatmul.mubr.f32.gmra.mrb[0].mxu0 %v901
    %v1314 = vpop.f32.mrb[0].mxu0
    %v1315 = vadd.f32 0.0, %v1314
    %v1316 = vpop.f32.mrb[0].mxu0
    %v1317 = vadd.f32 0.0, %v1316
    %1318 = vmatprep.mubr.f32.mxu0 0.0
    %1319 = vmatmul.mubr.f32.gmra.mrb[0].mxu0 %v904
    %v1320 = vpop.f32.mrb[0].mxu0
    %v1321 = vadd.f32 0.0, %v1320
    %v1322 = vpop.f32.mrb[0].mxu0
    %v1323 = vadd.f32 0.0, %v1322
    %1324 = vmatprep.mubr.f32.mxu0 0.0
    %1325 = vmatmul.mubr.f32.gmra.mrb[0].mxu0 %v907
    %v1326 = vpop.f32.mrb[0].mxu0
    %v1327 = vadd.f32 0.0, %v1326
    %v1328 = vpop.f32.mrb[0].mxu0
    %v1329 = vadd.f32 0.0, %v1328
    %1330 = vmatprep.mubr.f32.mxu0 0.0
    %1331 = vmatmul.mubr.f32.gmra.mrb[0].mxu0 %v910
    %v1332 = vpop.f32.mrb[0].mxu0
    %v1333 = vadd.f32 0.0, %v1332
    %v1334 = vpop.f32.mrb[0].mxu0
    %v1335 = vadd.f32 0.0, %v1334
    %1336 = vmatprep.mubr.f32.mxu0 0.0
    %1337 = vmatmul.mubr.f32.gmra.mrb[0].mxu0 %v913
    %v1338 = vpop.f32.mrb[0].mxu0
    %v1339 = vadd.f32 0.0, %v1338
    %v1340 = vpop.f32.mrb[0].mxu0
    %v1341 = vadd.f32 0.0, %v1340
    %1342 = vmatprep.mubr.f32.mxu0 0.0
    %1343 = vmatmul.mubr.f32.gmra.mrb[0].mxu0 %v916
    %v1344 = vpop.f32.mrb[0].mxu0
    %v1345 = vadd.f32 0.0, %v1344
    %v1346 = vpop.f32.mrb[0].mxu0
    %v1347 = vadd.f32 0.0, %v1346
    %1348 = vmatprep.mubr.f32.mxu0 0.0
    %1349 = vmatmul.mubr.f32.gmra.mrb[0].mxu0 %v919
    %v1350 = vpop.f32.mrb[0].mxu0
    %v1351 = vadd.f32 0.0, %v1350
    %v1352 = vpop.f32.mrb[0].mxu0
    %v1353 = vadd.f32 0.0, %v1352
    %1354 = vmatprep.mubr.f32.mxu0 0.0
    %1355 = vmatmul.mubr.f32.gmra.mrb[0].mxu0 %v922
    %v1356 = vpop.f32.mrb[0].mxu0
    %v1357 = vadd.f32 0.0, %v1356
    %v1358 = vpop.f32.mrb[0].mxu0
    %v1359 = vadd.f32 0.0, %v1358
    %1360 = vmatprep.mubr.f32.mxu0 0.0
    %1361 = vmatmul.mubr.f32.gmra.mrb[0].mxu0 %v925
    %v1362 = vpop.f32.mrb[0].mxu0
    %v1363 = vadd.f32 0.0, %v1362
    %v1364 = vpop.f32.mrb[0].mxu0
    %v1365 = vadd.f32 0.0, %v1364
    %1366 = vmatprep.mubr.f32.mxu0 0.0
    %1367 = vmatmul.mubr.f32.gmra.mrb[0].mxu0 %v928
    %v1368 = vpop.f32.mrb[0].mxu0
    %v1369 = vadd.f32 0.0, %v1368
    %v1370 = vpop.f32.mrb[0].mxu0
    %v1371 = vadd.f32 0.0, %v1370
    %1372 = vmatprep.mubr.f32.mxu0 0.0
    %1373 = vmatmul.mubr.f32.gmra.mrb[0].mxu0 %v931
    %v1374 = vpop.f32.mrb[0].mxu0
    %v1375 = vadd.f32 0.0, %v1374
    %v1376 = vpop.f32.mrb[0].mxu0
    %v1377 = vadd.f32 0.0, %v1376
    %1378 = vmatprep.mubr.f32.mxu0 0.0
    %1379 = vmatmul.mubr.f32.gmra.mrb[0].mxu0 %v934
    %v1380 = vpop.f32.mrb[0].mxu0
    %v1381 = vadd.f32 0.0, %v1380
    %v1382 = vpop.f32.mrb[0].mxu0
    %v1383 = vadd.f32 0.0, %v1382
    %1384 = vmatprep.mubr.f32.mxu0 0.0
    %1385 = vmatmul.mubr.f32.gmra.mrb[0].mxu0 %v937
    %v1386 = vpop.f32.mrb[0].mxu0
    %v1387 = vadd.f32 0.0, %v1386
    %v1388 = vpop.f32.mrb[0].mxu0
    %v1389 = vadd.f32 0.0, %v1388
    %1390 = vmatprep.mubr.f32.mxu0 0.0
    %1391 = vmatmul.mubr.f32.gmra.mrb[0].mxu0 %v940
    %v1392 = vpop.f32.mrb[0].mxu0
    %v1393 = vadd.f32 0.0, %v1392
    %v1394 = vpop.f32.mrb[0].mxu0
    %v1395 = vadd.f32 0.0, %v1394
    %1396 = vmatprep.mubr.f32.mxu0 0.0
    %1397 = vmatmul.mubr.f32.gmra.mrb[0].mxu0 %v943
    %v1398 = vpop.f32.mrb[0].mxu0
    %v1399 = vadd.f32 0.0, %v1398
    %v1400 = vpop.f32.mrb[0].mxu0
    %v1401 = vadd.f32 0.0, %v1400
    %1402 = vmatprep.mubr.f32.mxu0 0.0
    %1403 = vmatmul.mubr.f32.gmra.mrb[0].mxu0 %v946
    %v1404 = vpop.f32.mrb[0].mxu0
    %v1405 = vadd.f32 0.0, %v1404
    %v1406 = vpop.f32.mrb[0].mxu0
    %v1407 = vadd.f32 0.0, %v1406
    %1408 = vmatprep.mubr.f32.mxu0 0.0
    %1409 = vmatmul.mubr.f32.gmra.mrb[0].mxu0 %v949
    %v1410 = vpop.f32.mrb[0].mxu0
    %v1411 = vadd.f32 0.0, %v1410
    %v1412 = vpop.f32.mrb[0].mxu0
    %v1413 = vadd.f32 0.0, %v1412
    %1414 = vmatprep.mubr.f32.mxu0 0.0
    %1415 = vmatmul.mubr.f32.gmra.mrb[0].mxu0 %v952
    %v1416 = vpop.f32.mrb[0].mxu0
    %v1417 = vadd.f32 0.0, %v1416
    %v1418 = vpop.f32.mrb[0].mxu0
    %v1419 = vadd.f32 0.0, %v1418
    %1420 = vmatprep.mubr.f32.mxu0 0.0
    %1421 = vmatmul.mubr.f32.gmra.mrb[0].mxu0 %v955
    %v1422 = vpop.f32.mrb[0].mxu0
    %v1423 = vadd.f32 0.0, %v1422
    %v1424 = vpop.f32.mrb[0].mxu0
    %v1425 = vadd.f32 0.0, %v1424
    %1426 = vmatprep.mubr.f32.mxu0 0.0
    %1427 = vmatmul.mubr.f32.gmra.mrb[0].mxu0 %v958
    %v1428 = vpop.f32.mrb[0].mxu0
    %v1429 = vadd.f32 0.0, %v1428
    %v1430 = vpop.f32.mrb[0].mxu0
    %v1431 = vadd.f32 0.0, %v1430
    %1432 = vmatprep.mubr.f32.mxu0 0.0
    %1433 = vmatmul.mubr.f32.gmra.mrb[0].mxu0 %v961
    %v1434 = vpop.f32.mrb[0].mxu0
    %v1435 = vadd.f32 0.0, %v1434
    %v1436 = vpop.f32.mrb[0].mxu0
    %v1437 = vadd.f32 0.0, %v1436
    %1438 = vmatprep.mubr.f32.mxu0 0.0
    %1439 = vmatmul.mubr.f32.gmra.mrb[0].mxu0 %v964
    %v1440 = vpop.f32.mrb[0].mxu0
    %v1441 = vadd.f32 0.0, %v1440
    %v1442 = vpop.f32.mrb[0].mxu0
    %v1443 = vadd.f32 0.0, %v1442
    %1444 = vdwg.mxu0
    %1445 = vmatprep.subr.mxu0 %v863
    %1446 = vmatpush1.msra.mxu0 %v862
    %1447 = vmatprep.subr.mxu0 %v983
    %1448 = vmatpush1.msra.mxu0 %v980
    %1449 = vmatprep.subr.mxu0 0.0
    %1450 = vmatpush1.msra.mxu0 0.0
    %1451 = vmatprep.subr.mxu0 0.0
    %1452 = vmatpush1.msra.mxu0 0.0
    %1453 = vmatprep.subr.mxu0 0.0
    %1454 = vmatpush1.msra.mxu0 0.0
    %1455 = vmatprep.subr.mxu0 0.0
    %1456 = vmatpush1.msra.mxu0 0.0
    %1457 = vmatprep.subr.mxu0 0.0
    %1458 = vmatpush1.msra.mxu0 0.0
    %1459 = vmatprep.subr.mxu0 0.0
    %1460 = vmatpush1.msra.mxu0 0.0
    %1461 = vmatprep.subr.mxu0 0.0
    %1462 = vmatpush1.msra.mxu0 0.0
    %1463 = vmatprep.subr.mxu0 0.0
    %1464 = vmatpush1.msra.mxu0 0.0
    %1465 = vmatprep.subr.mxu0 0.0
    %1466 = vmatpush1.msra.mxu0 0.0
    %1467 = vmatprep.subr.mxu0 0.0
    %1468 = vmatpush1.msra.mxu0 0.0
    %1469 = vmatprep.subr.mxu0 0.0
    %1470 = vmatpush1.msra.mxu0 0.0
    %1471 = vmatprep.subr.mxu0 0.0
    %1472 = vmatpush1.msra.mxu0 0.0
    %1473 = vmatprep.subr.mxu0 0.0
    %1474 = vmatpush1.msra.mxu0 0.0
    %1475 = vmatprep.subr.mxu0 0.0
    %1476 = vmatpush1.msra.mxu0 0.0
    %1477 = vmatprep.subr.mxu0 0.0
    %1478 = vmatpush1.msra.mxu0 0.0
    %1479 = vmatprep.subr.mxu0 0.0
    %1480 = vmatpush1.msra.mxu0 0.0
    %1481 = vmatprep.subr.mxu0 0.0
    %1482 = vmatpush1.msra.mxu0 0.0
    %1483 = vmatprep.subr.mxu0 0.0
    %1484 = vmatpush1.msra.mxu0 0.0
    %1485 = vmatprep.subr.mxu0 0.0
    %1486 = vmatpush1.msra.mxu0 0.0
    %1487 = vmatprep.subr.mxu0 0.0
    %1488 = vmatpush1.msra.mxu0 0.0
    %1489 = vmatprep.subr.mxu0 0.0
    %1490 = vmatpush1.msra.mxu0 0.0
    %1491 = vmatprep.subr.mxu0 0.0
    %1492 = vmatpush1.msra.mxu0 0.0
    %1493 = vmatprep.subr.mxu0 0.0
    %1494 = vmatpush1.msra.mxu0 0.0
    %1495 = vmatprep.subr.mxu0 0.0
    %1496 = vmatpush1.msra.mxu0 0.0
    %1497 = vmatprep.subr.mxu0 0.0
    %1498 = vmatpush1.msra.mxu0 0.0
    %1499 = vmatprep.subr.mxu0 0.0
    %1500 = vmatpush1.msra.mxu0 0.0
    %1501 = vmatprep.subr.mxu0 0.0
    %1502 = vmatpush1.msra.mxu0 0.0
    %1503 = vmatprep.subr.mxu0 0.0
    %1504 = vmatpush1.msra.mxu0 0.0
    %1505 = vmatprep.subr.mxu0 0.0
    %1506 = vmatpush1.msra.mxu0 0.0
    %1507 = vmatprep.subr.mxu0 0.0
    %1508 = vmatpush1.msra.mxu0 0.0
    %1509 = vmatprep.mubr.f32.mxu0 0.0
    %1510 = vmatmul.mubr.f32.gmra.mrb[0].mxu0 %v892
    %v1511 = vpop.f32.mrb[0].mxu0
    %v1512 = vadd.f32 0.0, %v1511
    %v1513 = vpop.f32.mrb[0].mxu0
    %v1514 = vadd.f32 0.0, %v1513
    %1515 = vmatprep.mubr.f32.mxu0 0.0
    %1516 = vmatmul.mubr.f32.gmra.mrb[0].mxu0 %v895
    %v1517 = vpop.f32.mrb[0].mxu0
    %v1518 = vadd.f32 0.0, %v1517
    %v1519 = vpop.f32.mrb[0].mxu0
    %v1520 = vadd.f32 0.0, %v1519
    %1521 = vmatprep.mubr.f32.mxu0 0.0
    %1522 = vmatmul.mubr.f32.gmra.mrb[0].mxu0 %v898
    %v1523 = vpop.f32.mrb[0].mxu0
    %v1524 = vadd.f32 0.0, %v1523
    %v1525 = vpop.f32.mrb[0].mxu0
    %v1526 = vadd.f32 0.0, %v1525
    %1527 = vmatprep.mubr.f32.mxu0 0.0
    %1528 = vmatmul.mubr.f32.gmra.mrb[0].mxu0 %v901
    %v1529 = vpop.f32.mrb[0].mxu0
    %v1530 = vadd.f32 0.0, %v1529
    %v1531 = vpop.f32.mrb[0].mxu0
    %v1532 = vadd.f32 0.0, %v1531
    %1533 = vmatprep.mubr.f32.mxu0 0.0
    %1534 = vmatmul.mubr.f32.gmra.mrb[0].mxu0 %v904
    %v1535 = vpop.f32.mrb[0].mxu0
    %v1536 = vadd.f32 0.0, %v1535
    %v1537 = vpop.f32.mrb[0].mxu0
    %v1538 = vadd.f32 0.0, %v1537
    %1539 = vmatprep.mubr.f32.mxu0 0.0
    %1540 = vmatmul.mubr.f32.gmra.mrb[0].mxu0 %v907
    %v1541 = vpop.f32.mrb[0].mxu0
    %v1542 = vadd.f32 0.0, %v1541
    %v1543 = vpop.f32.mrb[0].mxu0
    %v1544 = vadd.f32 0.0, %v1543
    %1545 = vmatprep.mubr.f32.mxu0 0.0
    %1546 = vmatmul.mubr.f32.gmra.mrb[0].mxu0 %v910
    %v1547 = vpop.f32.mrb[0].mxu0
    %v1548 = vadd.f32 0.0, %v1547
    %v1549 = vpop.f32.mrb[0].mxu0
    %v1550 = vadd.f32 0.0, %v1549
    %1551 = vmatprep.mubr.f32.mxu0 0.0
    %1552 = vmatmul.mubr.f32.gmra.mrb[0].mxu0 %v913
    %v1553 = vpop.f32.mrb[0].mxu0
    %v1554 = vadd.f32 0.0, %v1553
    %v1555 = vpop.f32.mrb[0].mxu0
    %v1556 = vadd.f32 0.0, %v1555
    %1557 = vmatprep.mubr.f32.mxu0 0.0
    %1558 = vmatmul.mubr.f32.gmra.mrb[0].mxu0 %v916
    %v1559 = vpop.f32.mrb[0].mxu0
    %v1560 = vadd.f32 0.0, %v1559
    %v1561 = vpop.f32.mrb[0].mxu0
    %v1562 = vadd.f32 0.0, %v1561
    %1563 = vmatprep.mubr.f32.mxu0 0.0
    %1564 = vmatmul.mubr.f32.gmra.mrb[0].mxu0 %v919
    %v1565 = vpop.f32.mrb[0].mxu0
    %v1566 = vadd.f32 0.0, %v1565
    %v1567 = vpop.f32.mrb[0].mxu0
    %v1568 = vadd.f32 0.0, %v1567
    %1569 = vmatprep.mubr.f32.mxu0 0.0
    %1570 = vmatmul.mubr.f32.gmra.mrb[0].mxu0 %v922
    %v1571 = vpop.f32.mrb[0].mxu0
    %v1572 = vadd.f32 0.0, %v1571
    %v1573 = vpop.f32.mrb[0].mxu0
    %v1574 = vadd.f32 0.0, %v1573
    %1575 = vmatprep.mubr.f32.mxu0 0.0
    %1576 = vmatmul.mubr.f32.gmra.mrb[0].mxu0 %v925
    %v1577 = vpop.f32.mrb[0].mxu0
    %v1578 = vadd.f32 0.0, %v1577
    %v1579 = vpop.f32.mrb[0].mxu0
    %v1580 = vadd.f32 0.0, %v1579
    %1581 = vmatprep.mubr.f32.mxu0 0.0
    %1582 = vmatmul.mubr.f32.gmra.mrb[0].mxu0 %v928
    %v1583 = vpop.f32.mrb[0].mxu0
    %v1584 = vadd.f32 0.0, %v1583
    %v1585 = vpop.f32.mrb[0].mxu0
    %v1586 = vadd.f32 0.0, %v1585
    %1587 = vmatprep.mubr.f32.mxu0 0.0
    %1588 = vmatmul.mubr.f32.gmra.mrb[0].mxu0 %v931
    %v1589 = vpop.f32.mrb[0].mxu0
    %v1590 = vadd.f32 0.0, %v1589
    %v1591 = vpop.f32.mrb[0].mxu0
    %v1592 = vadd.f32 0.0, %v1591
    %1593 = vmatprep.mubr.f32.mxu0 0.0
    %1594 = vmatmul.mubr.f32.gmra.mrb[0].mxu0 %v934
    %v1595 = vpop.f32.mrb[0].mxu0
    %v1596 = vadd.f32 0.0, %v1595
    %v1597 = vpop.f32.mrb[0].mxu0
    %v1598 = vadd.f32 0.0, %v1597
    %1599 = vmatprep.mubr.f32.mxu0 0.0
    %1600 = vmatmul.mubr.f32.gmra.mrb[0].mxu0 %v937
    %v1601 = vpop.f32.mrb[0].mxu0
    %v1602 = vadd.f32 0.0, %v1601
    %v1603 = vpop.f32.mrb[0].mxu0
    %v1604 = vadd.f32 0.0, %v1603
    %1605 = vmatprep.mubr.f32.mxu0 0.0
    %1606 = vmatmul.mubr.f32.gmra.mrb[0].mxu0 %v940
    %v1607 = vpop.f32.mrb[0].mxu0
    %v1608 = vadd.f32 0.0, %v1607
    %v1609 = vpop.f32.mrb[0].mxu0
    %v1610 = vadd.f32 0.0, %v1609
    %1611 = vmatprep.mubr.f32.mxu0 0.0
    %1612 = vmatmul.mubr.f32.gmra.mrb[0].mxu0 %v943
    %v1613 = vpop.f32.mrb[0].mxu0
    %v1614 = vadd.f32 0.0, %v1613
    %v1615 = vpop.f32.mrb[0].mxu0
    %v1616 = vadd.f32 0.0, %v1615
    %1617 = vmatprep.mubr.f32.mxu0 0.0
    %1618 = vmatmul.mubr.f32.gmra.mrb[0].mxu0 %v946
    %v1619 = vpop.f32.mrb[0].mxu0
    %v1620 = vadd.f32 0.0, %v1619
    %v1621 = vpop.f32.mrb[0].mxu0
    %v1622 = vadd.f32 0.0, %v1621
    %1623 = vmatprep.mubr.f32.mxu0 0.0
    %1624 = vmatmul.mubr.f32.gmra.mrb[0].mxu0 %v949
    %v1625 = vpop.f32.mrb[0].mxu0
    %v1626 = vadd.f32 0.0, %v1625
    %v1627 = vpop.f32.mrb[0].mxu0
    %v1628 = vadd.f32 0.0, %v1627
    %1629 = vmatprep.mubr.f32.mxu0 0.0
    %1630 = vmatmul.mubr.f32.gmra.mrb[0].mxu0 %v952
    %v1631 = vpop.f32.mrb[0].mxu0
    %v1632 = vadd.f32 0.0, %v1631
    %v1633 = vpop.f32.mrb[0].mxu0
    %v1634 = vadd.f32 0.0, %v1633
    %1635 = vmatprep.mubr.f32.mxu0 0.0
    %1636 = vmatmul.mubr.f32.gmra.mrb[0].mxu0 %v955
    %v1637 = vpop.f32.mrb[0].mxu0
    %v1638 = vadd.f32 0.0, %v1637
    %v1639 = vpop.f32.mrb[0].mxu0
    %v1640 = vadd.f32 0.0, %v1639
    %1641 = vmatprep.mubr.f32.mxu0 0.0
    %1642 = vmatmul.mubr.f32.gmra.mrb[0].mxu0 %v958
    %v1643 = vpop.f32.mrb[0].mxu0
    %v1644 = vadd.f32 0.0, %v1643
    %v1645 = vpop.f32.mrb[0].mxu0
    %v1646 = vadd.f32 0.0, %v1645
    %1647 = vmatprep.mubr.f32.mxu0 0.0
    %1648 = vmatmul.mubr.f32.gmra.mrb[0].mxu0 %v961
    %v1649 = vpop.f32.mrb[0].mxu0
    %v1650 = vadd.f32 0.0, %v1649
    %v1651 = vpop.f32.mrb[0].mxu0
    %v1652 = vadd.f32 0.0, %v1651
    %1653 = vmatprep.mubr.f32.mxu0 0.0
    %1654 = vmatmul.mubr.f32.gmra.mrb[0].mxu0 %v964
    %v1655 = vpop.f32.mrb[0].mxu0
    %v1656 = vadd.f32 0.0, %v1655
    %v1657 = vpop.f32.mrb[0].mxu0
    %v1658 = vadd.f32 0.0, %v1657
    %1659 = vdwg.mxu0
    %1660 = vmatprep.subr.mxu0 %v865
    %1661 = vmatpush1.msra.mxu0 %v864
    %1662 = vmatprep.subr.mxu0 %v989
    %1663 = vmatpush1.msra.mxu0 %v986
    %1664 = vmatprep.subr.mxu0 0.0
    %1665 = vmatpush1.msra.mxu0 0.0
    %1666 = vmatprep.subr.mxu0 0.0
    %1667 = vmatpush1.msra.mxu0 0.0
    %1668 = vmatprep.subr.mxu0 0.0
    %1669 = vmatpush1.msra.mxu0 0.0
    %1670 = vmatprep.subr.mxu0 0.0
    %1671 = vmatpush1.msra.mxu0 0.0
    %1672 = vmatprep.subr.mxu0 0.0
    %1673 = vmatpush1.msra.mxu0 0.0
    %1674 = vmatprep.subr.mxu0 0.0
    %1675 = vmatpush1.msra.mxu0 0.0
    %1676 = vmatprep.subr.mxu0 0.0
    %1677 = vmatpush1.msra.mxu0 0.0
    %1678 = vmatprep.subr.mxu0 0.0
    %1679 = vmatpush1.msra.mxu0 0.0
    %1680 = vmatprep.subr.mxu0 0.0
    %1681 = vmatpush1.msra.mxu0 0.0
    %1682 = vmatprep.subr.mxu0 0.0
    %1683 = vmatpush1.msra.mxu0 0.0
    %1684 = vmatprep.subr.mxu0 0.0
    %1685 = vmatpush1.msra.mxu0 0.0
    %1686 = vmatprep.subr.mxu0 0.0
    %1687 = vmatpush1.msra.mxu0 0.0
    %1688 = vmatprep.subr.mxu0 0.0
    %1689 = vmatpush1.msra.mxu0 0.0
    %1690 = vmatprep.subr.mxu0 0.0
    %1691 = vmatpush1.msra.mxu0 0.0
    %1692 = vmatprep.subr.mxu0 0.0
    %1693 = vmatpush1.msra.mxu0 0.0
    %1694 = vmatprep.subr.mxu0 0.0
    %1695 = vmatpush1.msra.mxu0 0.0
    %1696 = vmatprep.subr.mxu0 0.0
    %1697 = vmatpush1.msra.mxu0 0.0
    %1698 = vmatprep.subr.mxu0 0.0
    %1699 = vmatpush1.msra.mxu0 0.0
    %1700 = vmatprep.subr.mxu0 0.0
    %1701 = vmatpush1.msra.mxu0 0.0
    %1702 = vmatprep.subr.mxu0 0.0
    %1703 = vmatpush1.msra.mxu0 0.0
    %1704 = vmatprep.subr.mxu0 0.0
    %1705 = vmatpush1.msra.mxu0 0.0
    %1706 = vmatprep.subr.mxu0 0.0
    %1707 = vmatpush1.msra.mxu0 0.0
    %1708 = vmatprep.subr.mxu0 0.0
    %1709 = vmatpush1.msra.mxu0 0.0
    %1710 = vmatprep.subr.mxu0 0.0
    %1711 = vmatpush1.msra.mxu0 0.0
    %1712 = vmatprep.subr.mxu0 0.0
    %1713 = vmatpush1.msra.mxu0 0.0
    %1714 = vmatprep.subr.mxu0 0.0
    %1715 = vmatpush1.msra.mxu0 0.0
    %1716 = vmatprep.subr.mxu0 0.0
    %1717 = vmatpush1.msra.mxu0 0.0
    %1718 = vmatprep.subr.mxu0 0.0
    %1719 = vmatpush1.msra.mxu0 0.0
    %1720 = vmatprep.subr.mxu0 0.0
    %1721 = vmatpush1.msra.mxu0 0.0
    %1722 = vmatprep.subr.mxu0 0.0
    %1723 = vmatpush1.msra.mxu0 0.0
    %1724 = vmatprep.mubr.f32.mxu0 0.0
    %1725 = vmatmul.mubr.f32.gmra.mrb[0].mxu0 %v892
    %v1726 = vpop.f32.mrb[0].mxu0
    %v1727 = vadd.f32 0.0, %v1726
    %v1728 = vpop.f32.mrb[0].mxu0
    %v1729 = vadd.f32 0.0, %v1728
    %1730 = vmatprep.mubr.f32.mxu0 0.0
    %1731 = vmatmul.mubr.f32.gmra.mrb[0].mxu0 %v895
    %v1732 = vpop.f32.mrb[0].mxu0
    %v1733 = vadd.f32 0.0, %v1732
    %v1734 = vpop.f32.mrb[0].mxu0
    %v1735 = vadd.f32 0.0, %v1734
    %1736 = vmatprep.mubr.f32.mxu0 0.0
    %1737 = vmatmul.mubr.f32.gmra.mrb[0].mxu0 %v898
    %v1738 = vpop.f32.mrb[0].mxu0
    %v1739 = vadd.f32 0.0, %v1738
    %v1740 = vpop.f32.mrb[0].mxu0
    %v1741 = vadd.f32 0.0, %v1740
    %1742 = vmatprep.mubr.f32.mxu0 0.0
    %1743 = vmatmul.mubr.f32.gmra.mrb[0].mxu0 %v901
    %v1744 = vpop.f32.mrb[0].mxu0
    %v1745 = vadd.f32 0.0, %v1744
    %v1746 = vpop.f32.mrb[0].mxu0
    %v1747 = vadd.f32 0.0, %v1746
    %1748 = vmatprep.mubr.f32.mxu0 0.0
    %1749 = vmatmul.mubr.f32.gmra.mrb[0].mxu0 %v904
    %v1750 = vpop.f32.mrb[0].mxu0
    %v1751 = vadd.f32 0.0, %v1750
    %v1752 = vpop.f32.mrb[0].mxu0
    %v1753 = vadd.f32 0.0, %v1752
    %1754 = vmatprep.mubr.f32.mxu0 0.0
    %1755 = vmatmul.mubr.f32.gmra.mrb[0].mxu0 %v907
    %v1756 = vpop.f32.mrb[0].mxu0
    %v1757 = vadd.f32 0.0, %v1756
    %v1758 = vpop.f32.mrb[0].mxu0
    %v1759 = vadd.f32 0.0, %v1758
    %1760 = vmatprep.mubr.f32.mxu0 0.0
    %1761 = vmatmul.mubr.f32.gmra.mrb[0].mxu0 %v910
    %v1762 = vpop.f32.mrb[0].mxu0
    %v1763 = vadd.f32 0.0, %v1762
    %v1764 = vpop.f32.mrb[0].mxu0
    %v1765 = vadd.f32 0.0, %v1764
    %1766 = vmatprep.mubr.f32.mxu0 0.0
    %1767 = vmatmul.mubr.f32.gmra.mrb[0].mxu0 %v913
    %v1768 = vpop.f32.mrb[0].mxu0
    %v1769 = vadd.f32 0.0, %v1768
    %v1770 = vpop.f32.mrb[0].mxu0
    %v1771 = vadd.f32 0.0, %v1770
    %1772 = vmatprep.mubr.f32.mxu0 0.0
    %1773 = vmatmul.mubr.f32.gmra.mrb[0].mxu0 %v916
    %v1774 = vpop.f32.mrb[0].mxu0
    %v1775 = vadd.f32 0.0, %v1774
    %v1776 = vpop.f32.mrb[0].mxu0
    %v1777 = vadd.f32 0.0, %v1776
    %1778 = vmatprep.mubr.f32.mxu0 0.0
    %1779 = vmatmul.mubr.f32.gmra.mrb[0].mxu0 %v919
    %v1780 = vpop.f32.mrb[0].mxu0
    %v1781 = vadd.f32 0.0, %v1780
    %v1782 = vpop.f32.mrb[0].mxu0
    %v1783 = vadd.f32 0.0, %v1782
    %1784 = vmatprep.mubr.f32.mxu0 0.0
    %1785 = vmatmul.mubr.f32.gmra.mrb[0].mxu0 %v922
    %v1786 = vpop.f32.mrb[0].mxu0
    %v1787 = vadd.f32 0.0, %v1786
    %v1788 = vpop.f32.mrb[0].mxu0
    %v1789 = vadd.f32 0.0, %v1788
    %1790 = vmatprep.mubr.f32.mxu0 0.0
    %1791 = vmatmul.mubr.f32.gmra.mrb[0].mxu0 %v925
    %v1792 = vpop.f32.mrb[0].mxu0
    %v1793 = vadd.f32 0.0, %v1792
    %v1794 = vpop.f32.mrb[0].mxu0
    %v1795 = vadd.f32 0.0, %v1794
    %1796 = vmatprep.mubr.f32.mxu0 0.0
    %1797 = vmatmul.mubr.f32.gmra.mrb[0].mxu0 %v928
    %v1798 = vpop.f32.mrb[0].mxu0
    %v1799 = vadd.f32 0.0, %v1798
    %v1800 = vpop.f32.mrb[0].mxu0
    %v1801 = vadd.f32 0.0, %v1800
    %1802 = vmatprep.mubr.f32.mxu0 0.0
    %1803 = vmatmul.mubr.f32.gmra.mrb[0].mxu0 %v931
    %v1804 = vpop.f32.mrb[0].mxu0
    %v1805 = vadd.f32 0.0, %v1804
    %v1806 = vpop.f32.mrb[0].mxu0
    %v1807 = vadd.f32 0.0, %v1806
    %1808 = vmatprep.mubr.f32.mxu0 0.0
    %1809 = vmatmul.mubr.f32.gmra.mrb[0].mxu0 %v934
    %v1810 = vpop.f32.mrb[0].mxu0
    %v1811 = vadd.f32 0.0, %v1810
    %v1812 = vpop.f32.mrb[0].mxu0
    %v1813 = vadd.f32 0.0, %v1812
    %1814 = vmatprep.mubr.f32.mxu0 0.0
    %1815 = vmatmul.mubr.f32.gmra.mrb[0].mxu0 %v937
    %v1816 = vpop.f32.mrb[0].mxu0
    %v1817 = vadd.f32 0.0, %v1816
    %v1818 = vpop.f32.mrb[0].mxu0
    %v1819 = vadd.f32 0.0, %v1818
    %1820 = vmatprep.mubr.f32.mxu0 0.0
    %1821 = vmatmul.mubr.f32.gmra.mrb[0].mxu0 %v940
    %v1822 = vpop.f32.mrb[0].mxu0
    %v1823 = vadd.f32 0.0, %v1822
    %v1824 = vpop.f32.mrb[0].mxu0
    %v1825 = vadd.f32 0.0, %v1824
    %1826 = vmatprep.mubr.f32.mxu0 0.0
    %1827 = vmatmul.mubr.f32.gmra.mrb[0].mxu0 %v943
    %v1828 = vpop.f32.mrb[0].mxu0
    %v1829 = vadd.f32 0.0, %v1828
    %v1830 = vpop.f32.mrb[0].mxu0
    %v1831 = vadd.f32 0.0, %v1830
    %1832 = vmatprep.mubr.f32.mxu0 0.0
    %1833 = vmatmul.mubr.f32.gmra.mrb[0].mxu0 %v946
    %v1834 = vpop.f32.mrb[0].mxu0
    %v1835 = vadd.f32 0.0, %v1834
    %v1836 = vpop.f32.mrb[0].mxu0
    %v1837 = vadd.f32 0.0, %v1836
    %1838 = vmatprep.mubr.f32.mxu0 0.0
    %1839 = vmatmul.mubr.f32.gmra.mrb[0].mxu0 %v949
    %v1840 = vpop.f32.mrb[0].mxu0
    %v1841 = vadd.f32 0.0, %v1840
    %v1842 = vpop.f32.mrb[0].mxu0
    %v1843 = vadd.f32 0.0, %v1842
    %1844 = vmatprep.mubr.f32.mxu0 0.0
    %1845 = vmatmul.mubr.f32.gmra.mrb[0].mxu0 %v952
    %v1846 = vpop.f32.mrb[0].mxu0
    %v1847 = vadd.f32 0.0, %v1846
    %v1848 = vpop.f32.mrb[0].mxu0
    %v1849 = vadd.f32 0.0, %v1848
    %1850 = vmatprep.mubr.f32.mxu0 0.0
    %1851 = vmatmul.mubr.f32.gmra.mrb[0].mxu0 %v955
    %v1852 = vpop.f32.mrb[0].mxu0
    %v1853 = vadd.f32 0.0, %v1852
    %v1854 = vpop.f32.mrb[0].mxu0
    %v1855 = vadd.f32 0.0, %v1854
    %1856 = vmatprep.mubr.f32.mxu0 0.0
    %1857 = vmatmul.mubr.f32.gmra.mrb[0].mxu0 %v958
    %v1858 = vpop.f32.mrb[0].mxu0
    %v1859 = vadd.f32 0.0, %v1858
    %v1860 = vpop.f32.mrb[0].mxu0
    %v1861 = vadd.f32 0.0, %v1860
    %1862 = vmatprep.mubr.f32.mxu0 0.0
    %1863 = vmatmul.mubr.f32.gmra.mrb[0].mxu0 %v961
    %v1864 = vpop.f32.mrb[0].mxu0
    %v1865 = vadd.f32 0.0, %v1864
    %v1866 = vpop.f32.mrb[0].mxu0
    %v1867 = vadd.f32 0.0, %v1866
    %1868 = vmatprep.mubr.f32.mxu0 0.0
    %1869 = vmatmul.mubr.f32.gmra.mrb[0].mxu0 %v964
    %v1870 = vpop.f32.mrb[0].mxu0
    %v1871 = vadd.f32 0.0, %v1870
    %v1872 = vpop.f32.mrb[0].mxu0
    %v1873 = vadd.f32 0.0, %v1872
    %1874 = vdwg.mxu0
    %1875 = vmatprep.subr.mxu0 %v867
    %1876 = vmatpush1.msra.mxu0 %v866
    %1877 = vmatprep.subr.mxu0 %v995
    %1878 = vmatpush1.msra.mxu0 %v992
    %1879 = vmatprep.subr.mxu0 0.0
    %1880 = vmatpush1.msra.mxu0 0.0
    %1881 = vmatprep.subr.mxu0 0.0
    %1882 = vmatpush1.msra.mxu0 0.0
    %1883 = vmatprep.subr.mxu0 0.0
    %1884 = vmatpush1.msra.mxu0 0.0
    %1885 = vmatprep.subr.mxu0 0.0
    %1886 = vmatpush1.msra.mxu0 0.0
    %1887 = vmatprep.subr.mxu0 0.0
    %1888 = vmatpush1.msra.mxu0 0.0
    %1889 = vmatprep.subr.mxu0 0.0
    %1890 = vmatpush1.msra.mxu0 0.0
    %1891 = vmatprep.subr.mxu0 0.0
    %1892 = vmatpush1.msra.mxu0 0.0
    %1893 = vmatprep.subr.mxu0 0.0
    %1894 = vmatpush1.msra.mxu0 0.0
    %1895 = vmatprep.subr.mxu0 0.0
    %1896 = vmatpush1.msra.mxu0 0.0
    %1897 = vmatprep.subr.mxu0 0.0
    %1898 = vmatpush1.msra.mxu0 0.0
    %1899 = vmatprep.subr.mxu0 0.0
    %1900 = vmatpush1.msra.mxu0 0.0
    %1901 = vmatprep.subr.mxu0 0.0
    %1902 = vmatpush1.msra.mxu0 0.0
    %1903 = vmatprep.subr.mxu0 0.0
    %1904 = vmatpush1.msra.mxu0 0.0
    %1905 = vmatprep.subr.mxu0 0.0
    %1906 = vmatpush1.msra.mxu0 0.0
    %1907 = vmatprep.subr.mxu0 0.0
    %1908 = vmatpush1.msra.mxu0 0.0
    %1909 = vmatprep.subr.mxu0 0.0
    %1910 = vmatpush1.msra.mxu0 0.0
    %1911 = vmatprep.subr.mxu0 0.0
    %1912 = vmatpush1.msra.mxu0 0.0
    %1913 = vmatprep.subr.mxu0 0.0
    %1914 = vmatpush1.msra.mxu0 0.0
    %1915 = vmatprep.subr.mxu0 0.0
    %1916 = vmatpush1.msra.mxu0 0.0
    %1917 = vmatprep.subr.mxu0 0.0
    %1918 = vmatpush1.msra.mxu0 0.0
    %1919 = vmatprep.subr.mxu0 0.0
    %1920 = vmatpush1.msra.mxu0 0.0
    %1921 = vmatprep.subr.mxu0 0.0
    %1922 = vmatpush1.msra.mxu0 0.0
    %1923 = vmatprep.subr.mxu0 0.0
    %1924 = vmatpush1.msra.mxu0 0.0
    %1925 = vmatprep.subr.mxu0 0.0
    %1926 = vmatpush1.msra.mxu0 0.0
    %1927 = vmatprep.subr.mxu0 0.0
    %1928 = vmatpush1.msra.mxu0 0.0
    %1929 = vmatprep.subr.mxu0 0.0
    %1930 = vmatpush1.msra.mxu0 0.0
    %1931 = vmatprep.subr.mxu0 0.0
    %1932 = vmatpush1.msra.mxu0 0.0
    %1933 = vmatprep.subr.mxu0 0.0
    %1934 = vmatpush1.msra.mxu0 0.0
    %1935 = vmatprep.subr.mxu0 0.0
    %1936 = vmatpush1.msra.mxu0 0.0
    %1937 = vmatprep.subr.mxu0 0.0
    %1938 = vmatpush1.msra.mxu0 0.0
    %1939 = vmatprep.mubr.f32.mxu0 0.0
    %1940 = vmatmul.mubr.f32.gmra.mrb[0].mxu0 %v892
    %v1941 = vpop.f32.mrb[0].mxu0
    %v1942 = vadd.f32 0.0, %v1941
    %v1943 = vpop.f32.mrb[0].mxu0
    %v1944 = vadd.f32 0.0, %v1943
    %1945 = vmatprep.mubr.f32.mxu0 0.0
    %1946 = vmatmul.mubr.f32.gmra.mrb[0].mxu0 %v895
    %v1947 = vpop.f32.mrb[0].mxu0
    %v1948 = vadd.f32 0.0, %v1947
    %v1949 = vpop.f32.mrb[0].mxu0
    %v1950 = vadd.f32 0.0, %v1949
    %1951 = vmatprep.mubr.f32.mxu0 0.0
    %1952 = vmatmul.mubr.f32.gmra.mrb[0].mxu0 %v898
    %v1953 = vpop.f32.mrb[0].mxu0
    %v1954 = vadd.f32 0.0, %v1953
    %v1955 = vpop.f32.mrb[0].mxu0
    %v1956 = vadd.f32 0.0, %v1955
    %1957 = vmatprep.mubr.f32.mxu0 0.0
    %1958 = vmatmul.mubr.f32.gmra.mrb[0].mxu0 %v901
    %v1959 = vpop.f32.mrb[0].mxu0
    %v1960 = vadd.f32 0.0, %v1959
    %v1961 = vpop.f32.mrb[0].mxu0
    %v1962 = vadd.f32 0.0, %v1961
    %1963 = vmatprep.mubr.f32.mxu0 0.0
    %1964 = vmatmul.mubr.f32.gmra.mrb[0].mxu0 %v904
    %v1965 = vpop.f32.mrb[0].mxu0
    %v1966 = vadd.f32 0.0, %v1965
    %v1967 = vpop.f32.mrb[0].mxu0
    %v1968 = vadd.f32 0.0, %v1967
    %1969 = vmatprep.mubr.f32.mxu0 0.0
    %1970 = vmatmul.mubr.f32.gmra.mrb[0].mxu0 %v907
    %v1971 = vpop.f32.mrb[0].mxu0
    %v1972 = vadd.f32 0.0, %v1971
    %v1973 = vpop.f32.mrb[0].mxu0
    %v1974 = vadd.f32 0.0, %v1973
    %1975 = vmatprep.mubr.f32.mxu0 0.0
    %1976 = vmatmul.mubr.f32.gmra.mrb[0].mxu0 %v910
    %v1977 = vpop.f32.mrb[0].mxu0
    %v1978 = vadd.f32 0.0, %v1977
    %v1979 = vpop.f32.mrb[0].mxu0
    %v1980 = vadd.f32 0.0, %v1979
    %1981 = vmatprep.mubr.f32.mxu0 0.0
    %1982 = vmatmul.mubr.f32.gmra.mrb[0].mxu0 %v913
    %v1983 = vpop.f32.mrb[0].mxu0
    %v1984 = vadd.f32 0.0, %v1983
    %v1985 = vpop.f32.mrb[0].mxu0
    %v1986 = vadd.f32 0.0, %v1985
    %1987 = vmatprep.mubr.f32.mxu0 0.0
    %1988 = vmatmul.mubr.f32.gmra.mrb[0].mxu0 %v916
    %v1989 = vpop.f32.mrb[0].mxu0
    %v1990 = vadd.f32 0.0, %v1989
    %v1991 = vpop.f32.mrb[0].mxu0
    %v1992 = vadd.f32 0.0, %v1991
    %1993 = vmatprep.mubr.f32.mxu0 0.0
    %1994 = vmatmul.mubr.f32.gmra.mrb[0].mxu0 %v919
    %v1995 = vpop.f32.mrb[0].mxu0
    %v1996 = vadd.f32 0.0, %v1995
    %v1997 = vpop.f32.mrb[0].mxu0
    %v1998 = vadd.f32 0.0, %v1997
    %1999 = vmatprep.mubr.f32.mxu0 0.0
    %2000 = vmatmul.mubr.f32.gmra.mrb[0].mxu0 %v922
    %v2001 = vpop.f32.mrb[0].mxu0
    %v2002 = vadd.f32 0.0, %v2001
    %v2003 = vpop.f32.mrb[0].mxu0
    %v2004 = vadd.f32 0.0, %v2003
    %2005 = vmatprep.mubr.f32.mxu0 0.0
    %2006 = vmatmul.mubr.f32.gmra.mrb[0].mxu0 %v925
    %v2007 = vpop.f32.mrb[0].mxu0
    %v2008 = vadd.f32 0.0, %v2007
    %v2009 = vpop.f32.mrb[0].mxu0
    %v2010 = vadd.f32 0.0, %v2009
    %2011 = vmatprep.mubr.f32.mxu0 0.0
    %2012 = vmatmul.mubr.f32.gmra.mrb[0].mxu0 %v928
    %v2013 = vpop.f32.mrb[0].mxu0
    %v2014 = vadd.f32 0.0, %v2013
    %v2015 = vpop.f32.mrb[0].mxu0
    %v2016 = vadd.f32 0.0, %v2015
    %2017 = vmatprep.mubr.f32.mxu0 0.0
    %2018 = vmatmul.mubr.f32.gmra.mrb[0].mxu0 %v931
    %v2019 = vpop.f32.mrb[0].mxu0
    %v2020 = vadd.f32 0.0, %v2019
    %v2021 = vpop.f32.mrb[0].mxu0
    %v2022 = vadd.f32 0.0, %v2021
    %2023 = vmatprep.mubr.f32.mxu0 0.0
    %2024 = vmatmul.mubr.f32.gmra.mrb[0].mxu0 %v934
    %v2025 = vpop.f32.mrb[0].mxu0
    %v2026 = vadd.f32 0.0, %v2025
    %v2027 = vpop.f32.mrb[0].mxu0
    %v2028 = vadd.f32 0.0, %v2027
    %2029 = vmatprep.mubr.f32.mxu0 0.0
    %2030 = vmatmul.mubr.f32.gmra.mrb[0].mxu0 %v937
    %v2031 = vpop.f32.mrb[0].mxu0
    %v2032 = vadd.f32 0.0, %v2031
    %v2033 = vpop.f32.mrb[0].mxu0
    %v2034 = vadd.f32 0.0, %v2033
    %2035 = vmatprep.mubr.f32.mxu0 0.0
    %2036 = vmatmul.mubr.f32.gmra.mrb[0].mxu0 %v940
    %v2037 = vpop.f32.mrb[0].mxu0
    %v2038 = vadd.f32 0.0, %v2037
    %v2039 = vpop.f32.mrb[0].mxu0
    %v2040 = vadd.f32 0.0, %v2039
    %2041 = vmatprep.mubr.f32.mxu0 0.0
    %2042 = vmatmul.mubr.f32.gmra.mrb[0].mxu0 %v943
    %v2043 = vpop.f32.mrb[0].mxu0
    %v2044 = vadd.f32 0.0, %v2043
    %v2045 = vpop.f32.mrb[0].mxu0
    %v2046 = vadd.f32 0.0, %v2045
    %2047 = vmatprep.mubr.f32.mxu0 0.0
    %2048 = vmatmul.mubr.f32.gmra.mrb[0].mxu0 %v946
    %v2049 = vpop.f32.mrb[0].mxu0
    %v2050 = vadd.f32 0.0, %v2049
    %v2051 = vpop.f32.mrb[0].mxu0
    %v2052 = vadd.f32 0.0, %v2051
    %2053 = vmatprep.mubr.f32.mxu0 0.0
    %2054 = vmatmul.mubr.f32.gmra.mrb[0].mxu0 %v949
    %v2055 = vpop.f32.mrb[0].mxu0
    %v2056 = vadd.f32 0.0, %v2055
    %v2057 = vpop.f32.mrb[0].mxu0
    %v2058 = vadd.f32 0.0, %v2057
    %2059 = vmatprep.mubr.f32.mxu0 0.0
    %2060 = vmatmul.mubr.f32.gmra.mrb[0].mxu0 %v952
    %v2061 = vpop.f32.mrb[0].mxu0
    %v2062 = vadd.f32 0.0, %v2061
    %v2063 = vpop.f32.mrb[0].mxu0
    %v2064 = vadd.f32 0.0, %v2063
    %2065 = vmatprep.mubr.f32.mxu0 0.0
    %2066 = vmatmul.mubr.f32.gmra.mrb[0].mxu0 %v955
    %v2067 = vpop.f32.mrb[0].mxu0
    %v2068 = vadd.f32 0.0, %v2067
    %v2069 = vpop.f32.mrb[0].mxu0
    %v2070 = vadd.f32 0.0, %v2069
    %2071 = vmatprep.mubr.f32.mxu0 0.0
    %2072 = vmatmul.mubr.f32.gmra.mrb[0].mxu0 %v958
    %v2073 = vpop.f32.mrb[0].mxu0
    %v2074 = vadd.f32 0.0, %v2073
    %v2075 = vpop.f32.mrb[0].mxu0
    %v2076 = vadd.f32 0.0, %v2075
    %2077 = vmatprep.mubr.f32.mxu0 0.0
    %2078 = vmatmul.mubr.f32.gmra.mrb[0].mxu0 %v961
    %v2079 = vpop.f32.mrb[0].mxu0
    %v2080 = vadd.f32 0.0, %v2079
    %v2081 = vpop.f32.mrb[0].mxu0
    %v2082 = vadd.f32 0.0, %v2081
    %2083 = vmatprep.mubr.f32.mxu0 0.0
    %2084 = vmatmul.mubr.f32.gmra.mrb[0].mxu0 %v964
    %v2085 = vpop.f32.mrb[0].mxu0
    %v2086 = vadd.f32 0.0, %v2085
    %v2087 = vpop.f32.mrb[0].mxu0
    %v2088 = vadd.f32 0.0, %v2087
    %2089 = vdwg.mxu0
    %2090 = vmatprep.subr.mxu0 %v869
    %2091 = vmatpush1.msra.mxu0 %v868
    %2092 = vmatprep.subr.mxu0 %v1001
    %2093 = vmatpush1.msra.mxu0 %v998
    %2094 = vmatprep.subr.mxu0 0.0
    %2095 = vmatpush1.msra.mxu0 0.0
    %2096 = vmatprep.subr.mxu0 0.0
    %2097 = vmatpush1.msra.mxu0 0.0
    %2098 = vmatprep.subr.mxu0 0.0
    %2099 = vmatpush1.msra.mxu0 0.0
    %2100 = vmatprep.subr.mxu0 0.0
    %2101 = vmatpush1.msra.mxu0 0.0
    %2102 = vmatprep.subr.mxu0 0.0
    %2103 = vmatpush1.msra.mxu0 0.0
    %2104 = vmatprep.subr.mxu0 0.0
    %2105 = vmatpush1.msra.mxu0 0.0
    %2106 = vmatprep.subr.mxu0 0.0
    %2107 = vmatpush1.msra.mxu0 0.0
    %2108 = vmatprep.subr.mxu0 0.0
    %2109 = vmatpush1.msra.mxu0 0.0
    %2110 = vmatprep.subr.mxu0 0.0
    %2111 = vmatpush1.msra.mxu0 0.0
    %2112 = vmatprep.subr.mxu0 0.0
    %2113 = vmatpush1.msra.mxu0 0.0
    %2114 = vmatprep.subr.mxu0 0.0
    %2115 = vmatpush1.msra.mxu0 0.0
    %2116 = vmatprep.subr.mxu0 0.0
    %2117 = vmatpush1.msra.mxu0 0.0
    %2118 = vmatprep.subr.mxu0 0.0
    %2119 = vmatpush1.msra.mxu0 0.0
    %2120 = vmatprep.subr.mxu0 0.0
    %2121 = vmatpush1.msra.mxu0 0.0
    %2122 = vmatprep.subr.mxu0 0.0
    %2123 = vmatpush1.msra.mxu0 0.0
    %2124 = vmatprep.subr.mxu0 0.0
    %2125 = vmatpush1.msra.mxu0 0.0
    %2126 = vmatprep.subr.mxu0 0.0
    %2127 = vmatpush1.msra.mxu0 0.0
    %2128 = vmatprep.subr.mxu0 0.0
    %2129 = vmatpush1.msra.mxu0 0.0
    %2130 = vmatprep.subr.mxu0 0.0
    %2131 = vmatpush1.msra.mxu0 0.0
    %2132 = vmatprep.subr.mxu0 0.0
    %2133 = vmatpush1.msra.mxu0 0.0
    %2134 = vmatprep.subr.mxu0 0.0
    %2135 = vmatpush1.msra.mxu0 0.0
    %2136 = vmatprep.subr.mxu0 0.0
    %2137 = vmatpush1.msra.mxu0 0.0
    %2138 = vmatprep.subr.mxu0 0.0
    %2139 = vmatpush1.msra.mxu0 0.0
    %2140 = vmatprep.subr.mxu0 0.0
    %2141 = vmatpush1.msra.mxu0 0.0
    %2142 = vmatprep.subr.mxu0 0.0
    %2143 = vmatpush1.msra.mxu0 0.0
    %2144 = vmatprep.subr.mxu0 0.0
    %2145 = vmatpush1.msra.mxu0 0.0
    %2146 = vmatprep.subr.mxu0 0.0
    %2147 = vmatpush1.msra.mxu0 0.0
    %2148 = vmatprep.subr.mxu0 0.0
    %2149 = vmatpush1.msra.mxu0 0.0
    %2150 = vmatprep.subr.mxu0 0.0
    %2151 = vmatpush1.msra.mxu0 0.0
    %2152 = vmatprep.subr.mxu0 0.0
    %2153 = vmatpush1.msra.mxu0 0.0
    %2154 = vmatprep.mubr.f32.mxu0 0.0
    %2155 = vmatmul.mubr.f32.gmra.mrb[0].mxu0 %v892
    %v2156 = vpop.f32.mrb[0].mxu0
    %v2157 = vadd.f32 0.0, %v2156
    %v2158 = vpop.f32.mrb[0].mxu0
    %v2159 = vadd.f32 0.0, %v2158
    %2160 = vmatprep.mubr.f32.mxu0 0.0
    %2161 = vmatmul.mubr.f32.gmra.mrb[0].mxu0 %v895
    %v2162 = vpop.f32.mrb[0].mxu0
    %v2163 = vadd.f32 0.0, %v2162
    %v2164 = vpop.f32.mrb[0].mxu0
    %v2165 = vadd.f32 0.0, %v2164
    %2166 = vmatprep.mubr.f32.mxu0 0.0
    %2167 = vmatmul.mubr.f32.gmra.mrb[0].mxu0 %v898
    %v2168 = vpop.f32.mrb[0].mxu0
    %v2169 = vadd.f32 0.0, %v2168
    %v2170 = vpop.f32.mrb[0].mxu0
    %v2171 = vadd.f32 0.0, %v2170
    %2172 = vmatprep.mubr.f32.mxu0 0.0
    %2173 = vmatmul.mubr.f32.gmra.mrb[0].mxu0 %v901
    %v2174 = vpop.f32.mrb[0].mxu0
    %v2175 = vadd.f32 0.0, %v2174
    %v2176 = vpop.f32.mrb[0].mxu0
    %v2177 = vadd.f32 0.0, %v2176
    %2178 = vmatprep.mubr.f32.mxu0 0.0
    %2179 = vmatmul.mubr.f32.gmra.mrb[0].mxu0 %v904
    %v2180 = vpop.f32.mrb[0].mxu0
    %v2181 = vadd.f32 0.0, %v2180
    %v2182 = vpop.f32.mrb[0].mxu0
    %v2183 = vadd.f32 0.0, %v2182
    %2184 = vmatprep.mubr.f32.mxu0 0.0
    %2185 = vmatmul.mubr.f32.gmra.mrb[0].mxu0 %v907
    %v2186 = vpop.f32.mrb[0].mxu0
    %v2187 = vadd.f32 0.0, %v2186
    %v2188 = vpop.f32.mrb[0].mxu0
    %v2189 = vadd.f32 0.0, %v2188
    %2190 = vmatprep.mubr.f32.mxu0 0.0
    %2191 = vmatmul.mubr.f32.gmra.mrb[0].mxu0 %v910
    %v2192 = vpop.f32.mrb[0].mxu0
    %v2193 = vadd.f32 0.0, %v2192
    %v2194 = vpop.f32.mrb[0].mxu0
    %v2195 = vadd.f32 0.0, %v2194
    %2196 = vmatprep.mubr.f32.mxu0 0.0
    %2197 = vmatmul.mubr.f32.gmra.mrb[0].mxu0 %v913
    %v2198 = vpop.f32.mrb[0].mxu0
    %v2199 = vadd.f32 0.0, %v2198
    %v2200 = vpop.f32.mrb[0].mxu0
    %v2201 = vadd.f32 0.0, %v2200
    %2202 = vmatprep.mubr.f32.mxu0 0.0
    %2203 = vmatmul.mubr.f32.gmra.mrb[0].mxu0 %v916
    %v2204 = vpop.f32.mrb[0].mxu0
    %v2205 = vadd.f32 0.0, %v2204
    %v2206 = vpop.f32.mrb[0].mxu0
    %v2207 = vadd.f32 0.0, %v2206
    %2208 = vmatprep.mubr.f32.mxu0 0.0
    %2209 = vmatmul.mubr.f32.gmra.mrb[0].mxu0 %v919
    %v2210 = vpop.f32.mrb[0].mxu0
    %v2211 = vadd.f32 0.0, %v2210
    %v2212 = vpop.f32.mrb[0].mxu0
    %v2213 = vadd.f32 0.0, %v2212
    %2214 = vmatprep.mubr.f32.mxu0 0.0
    %2215 = vmatmul.mubr.f32.gmra.mrb[0].mxu0 %v922
    %v2216 = vpop.f32.mrb[0].mxu0
    %v2217 = vadd.f32 0.0, %v2216
    %v2218 = vpop.f32.mrb[0].mxu0
    %v2219 = vadd.f32 0.0, %v2218
    %2220 = vmatprep.mubr.f32.mxu0 0.0
    %2221 = vmatmul.mubr.f32.gmra.mrb[0].mxu0 %v925
    %v2222 = vpop.f32.mrb[0].mxu0
    %v2223 = vadd.f32 0.0, %v2222
    %v2224 = vpop.f32.mrb[0].mxu0
    %v2225 = vadd.f32 0.0, %v2224
    %2226 = vmatprep.mubr.f32.mxu0 0.0
    %2227 = vmatmul.mubr.f32.gmra.mrb[0].mxu0 %v928
    %v2228 = vpop.f32.mrb[0].mxu0
    %v2229 = vadd.f32 0.0, %v2228
    %v2230 = vpop.f32.mrb[0].mxu0
    %v2231 = vadd.f32 0.0, %v2230
    %2232 = vmatprep.mubr.f32.mxu0 0.0
    %2233 = vmatmul.mubr.f32.gmra.mrb[0].mxu0 %v931
    %v2234 = vpop.f32.mrb[0].mxu0
    %v2235 = vadd.f32 0.0, %v2234
    %v2236 = vpop.f32.mrb[0].mxu0
    %v2237 = vadd.f32 0.0, %v2236
    %2238 = vmatprep.mubr.f32.mxu0 0.0
    %2239 = vmatmul.mubr.f32.gmra.mrb[0].mxu0 %v934
    %v2240 = vpop.f32.mrb[0].mxu0
    %v2241 = vadd.f32 0.0, %v2240
    %v2242 = vpop.f32.mrb[0].mxu0
    %v2243 = vadd.f32 0.0, %v2242
    %2244 = vmatprep.mubr.f32.mxu0 0.0
    %2245 = vmatmul.mubr.f32.gmra.mrb[0].mxu0 %v937
    %v2246 = vpop.f32.mrb[0].mxu0
    %v2247 = vadd.f32 0.0, %v2246
    %v2248 = vpop.f32.mrb[0].mxu0
    %v2249 = vadd.f32 0.0, %v2248
    %2250 = vmatprep.mubr.f32.mxu0 0.0
    %2251 = vmatmul.mubr.f32.gmra.mrb[0].mxu0 %v940
    %v2252 = vpop.f32.mrb[0].mxu0
    %v2253 = vadd.f32 0.0, %v2252
    %v2254 = vpop.f32.mrb[0].mxu0
    %v2255 = vadd.f32 0.0, %v2254
    %2256 = vmatprep.mubr.f32.mxu0 0.0
    %2257 = vmatmul.mubr.f32.gmra.mrb[0].mxu0 %v943
    %v2258 = vpop.f32.mrb[0].mxu0
    %v2259 = vadd.f32 0.0, %v2258
    %v2260 = vpop.f32.mrb[0].mxu0
    %v2261 = vadd.f32 0.0, %v2260
    %2262 = vmatprep.mubr.f32.mxu0 0.0
    %2263 = vmatmul.mubr.f32.gmra.mrb[0].mxu0 %v946
    %v2264 = vpop.f32.mrb[0].mxu0
    %v2265 = vadd.f32 0.0, %v2264
    %v2266 = vpop.f32.mrb[0].mxu0
    %v2267 = vadd.f32 0.0, %v2266
    %2268 = vmatprep.mubr.f32.mxu0 0.0
    %2269 = vmatmul.mubr.f32.gmra.mrb[0].mxu0 %v949
    %v2270 = vpop.f32.mrb[0].mxu0
    %v2271 = vadd.f32 0.0, %v2270
    %v2272 = vpop.f32.mrb[0].mxu0
    %v2273 = vadd.f32 0.0, %v2272
    %2274 = vmatprep.mubr.f32.mxu0 0.0
    %2275 = vmatmul.mubr.f32.gmra.mrb[0].mxu0 %v952
    %v2276 = vpop.f32.mrb[0].mxu0
    %v2277 = vadd.f32 0.0, %v2276
    %v2278 = vpop.f32.mrb[0].mxu0
    %v2279 = vadd.f32 0.0, %v2278
    %2280 = vmatprep.mubr.f32.mxu0 0.0
    %2281 = vmatmul.mubr.f32.gmra.mrb[0].mxu0 %v955
    %v2282 = vpop.f32.mrb[0].mxu0
    %v2283 = vadd.f32 0.0, %v2282
    %v2284 = vpop.f32.mrb[0].mxu0
    %v2285 = vadd.f32 0.0, %v2284
    %2286 = vmatprep.mubr.f32.mxu0 0.0
    %2287 = vmatmul.mubr.f32.gmra.mrb[0].mxu0 %v958
    %v2288 = vpop.f32.mrb[0].mxu0
    %v2289 = vadd.f32 0.0, %v2288
    %v2290 = vpop.f32.mrb[0].mxu0
    %v2291 = vadd.f32 0.0, %v2290
    %2292 = vmatprep.mubr.f32.mxu0 0.0
    %2293 = vmatmul.mubr.f32.gmra.mrb[0].mxu0 %v961
    %v2294 = vpop.f32.mrb[0].mxu0
    %v2295 = vadd.f32 0.0, %v2294
    %v2296 = vpop.f32.mrb[0].mxu0
    %v2297 = vadd.f32 0.0, %v2296
    %2298 = vmatprep.mubr.f32.mxu0 0.0
    %2299 = vmatmul.mubr.f32.gmra.mrb[0].mxu0 %v964
    %v2300 = vpop.f32.mrb[0].mxu0
    %v2301 = vadd.f32 0.0, %v2300
    %v2302 = vpop.f32.mrb[0].mxu0
    %v2303 = vadd.f32 0.0, %v2302
    %2304 = vdwg.mxu0
    %2305 = vmatprep.subr.mxu0 %v871
    %2306 = vmatpush1.msra.mxu0 %v870
    %2307 = vmatprep.subr.mxu0 %v1007
    %2308 = vmatpush1.msra.mxu0 %v1004
    %2309 = vmatprep.subr.mxu0 0.0
    %2310 = vmatpush1.msra.mxu0 0.0
    %2311 = vmatprep.subr.mxu0 0.0
    %2312 = vmatpush1.msra.mxu0 0.0
    %2313 = vmatprep.subr.mxu0 0.0
    %2314 = vmatpush1.msra.mxu0 0.0
    %2315 = vmatprep.subr.mxu0 0.0
    %2316 = vmatpush1.msra.mxu0 0.0
    %2317 = vmatprep.subr.mxu0 0.0
    %2318 = vmatpush1.msra.mxu0 0.0
    %2319 = vmatprep.subr.mxu0 0.0
    %2320 = vmatpush1.msra.mxu0 0.0
    %2321 = vmatprep.subr.mxu0 0.0
    %2322 = vmatpush1.msra.mxu0 0.0
    %2323 = vmatprep.subr.mxu0 0.0
    %2324 = vmatpush1.msra.mxu0 0.0
    %2325 = vmatprep.subr.mxu0 0.0
    %2326 = vmatpush1.msra.mxu0 0.0
    %2327 = vmatprep.subr.mxu0 0.0
    %2328 = vmatpush1.msra.mxu0 0.0
    %2329 = vmatprep.subr.mxu0 0.0
    %2330 = vmatpush1.msra.mxu0 0.0
    %2331 = vmatprep.subr.mxu0 0.0
    %2332 = vmatpush1.msra.mxu0 0.0
    %2333 = vmatprep.subr.mxu0 0.0
    %2334 = vmatpush1.msra.mxu0 0.0
    %2335 = vmatprep.subr.mxu0 0.0
    %2336 = vmatpush1.msra.mxu0 0.0
    %2337 = vmatprep.subr.mxu0 0.0
    %2338 = vmatpush1.msra.mxu0 0.0
    %2339 = vmatprep.subr.mxu0 0.0
    %2340 = vmatpush1.msra.mxu0 0.0
    %2341 = vmatprep.subr.mxu0 0.0
    %2342 = vmatpush1.msra.mxu0 0.0
    %2343 = vmatprep.subr.mxu0 0.0
    %2344 = vmatpush1.msra.mxu0 0.0
    %2345 = vmatprep.subr.mxu0 0.0
    %2346 = vmatpush1.msra.mxu0 0.0
    %2347 = vmatprep.subr.mxu0 0.0
    %2348 = vmatpush1.msra.mxu0 0.0
    %2349 = vmatprep.subr.mxu0 0.0
    %2350 = vmatpush1.msra.mxu0 0.0
    %2351 = vmatprep.subr.mxu0 0.0
    %2352 = vmatpush1.msra.mxu0 0.0
    %2353 = vmatprep.subr.mxu0 0.0
    %2354 = vmatpush1.msra.mxu0 0.0
    %2355 = vmatprep.subr.mxu0 0.0
    %2356 = vmatpush1.msra.mxu0 0.0
    %2357 = vmatprep.subr.mxu0 0.0
    %2358 = vmatpush1.msra.mxu0 0.0
    %2359 = vmatprep.subr.mxu0 0.0
    %2360 = vmatpush1.msra.mxu0 0.0
    %2361 = vmatprep.subr.mxu0 0.0
    %2362 = vmatpush1.msra.mxu0 0.0
    %2363 = vmatprep.subr.mxu0 0.0
    %2364 = vmatpush1.msra.mxu0 0.0
    %2365 = vmatprep.subr.mxu0 0.0
    %2366 = vmatpush1.msra.mxu0 0.0
    %2367 = vmatprep.subr.mxu0 0.0
    %2368 = vmatpush1.msra.mxu0 0.0
    %2369 = vmatprep.mubr.f32.mxu0 0.0
    %2370 = vmatmul.mubr.f32.gmra.mrb[0].mxu0 %v892
    %v2371 = vpop.f32.mrb[0].mxu0
    %v2372 = vadd.f32 0.0, %v2371
    %v2373 = vpop.f32.mrb[0].mxu0
    %v2374 = vadd.f32 0.0, %v2373
    %2375 = vmatprep.mubr.f32.mxu0 0.0
    %2376 = vmatmul.mubr.f32.gmra.mrb[0].mxu0 %v895
    %v2377 = vpop.f32.mrb[0].mxu0
    %v2378 = vadd.f32 0.0, %v2377
    %v2379 = vpop.f32.mrb[0].mxu0
    %v2380 = vadd.f32 0.0, %v2379
    %2381 = vmatprep.mubr.f32.mxu0 0.0
    %2382 = vmatmul.mubr.f32.gmra.mrb[0].mxu0 %v898
    %v2383 = vpop.f32.mrb[0].mxu0
    %v2384 = vadd.f32 0.0, %v2383
    %v2385 = vpop.f32.mrb[0].mxu0
    %v2386 = vadd.f32 0.0, %v2385
    %2387 = vmatprep.mubr.f32.mxu0 0.0
    %2388 = vmatmul.mubr.f32.gmra.mrb[0].mxu0 %v901
    %v2389 = vpop.f32.mrb[0].mxu0
    %v2390 = vadd.f32 0.0, %v2389
    %v2391 = vpop.f32.mrb[0].mxu0
    %v2392 = vadd.f32 0.0, %v2391
    %2393 = vmatprep.mubr.f32.mxu0 0.0
    %2394 = vmatmul.mubr.f32.gmra.mrb[0].mxu0 %v904
    %v2395 = vpop.f32.mrb[0].mxu0
    %v2396 = vadd.f32 0.0, %v2395
    %v2397 = vpop.f32.mrb[0].mxu0
    %v2398 = vadd.f32 0.0, %v2397
    %2399 = vmatprep.mubr.f32.mxu0 0.0
    %2400 = vmatmul.mubr.f32.gmra.mrb[0].mxu0 %v907
    %v2401 = vpop.f32.mrb[0].mxu0
    %v2402 = vadd.f32 0.0, %v2401
    %v2403 = vpop.f32.mrb[0].mxu0
    %v2404 = vadd.f32 0.0, %v2403
    %2405 = vmatprep.mubr.f32.mxu0 0.0
    %2406 = vmatmul.mubr.f32.gmra.mrb[0].mxu0 %v910
    %v2407 = vpop.f32.mrb[0].mxu0
    %v2408 = vadd.f32 0.0, %v2407
    %v2409 = vpop.f32.mrb[0].mxu0
    %v2410 = vadd.f32 0.0, %v2409
    %2411 = vmatprep.mubr.f32.mxu0 0.0
    %2412 = vmatmul.mubr.f32.gmra.mrb[0].mxu0 %v913
    %v2413 = vpop.f32.mrb[0].mxu0
    %v2414 = vadd.f32 0.0, %v2413
    %v2415 = vpop.f32.mrb[0].mxu0
    %v2416 = vadd.f32 0.0, %v2415
    %2417 = vmatprep.mubr.f32.mxu0 0.0
    %2418 = vmatmul.mubr.f32.gmra.mrb[0].mxu0 %v916
    %v2419 = vpop.f32.mrb[0].mxu0
    %v2420 = vadd.f32 0.0, %v2419
    %v2421 = vpop.f32.mrb[0].mxu0
    %v2422 = vadd.f32 0.0, %v2421
    %2423 = vmatprep.mubr.f32.mxu0 0.0
    %2424 = vmatmul.mubr.f32.gmra.mrb[0].mxu0 %v919
    %v2425 = vpop.f32.mrb[0].mxu0
    %v2426 = vadd.f32 0.0, %v2425
    %v2427 = vpop.f32.mrb[0].mxu0
    %v2428 = vadd.f32 0.0, %v2427
    %2429 = vmatprep.mubr.f32.mxu0 0.0
    %2430 = vmatmul.mubr.f32.gmra.mrb[0].mxu0 %v922
    %v2431 = vpop.f32.mrb[0].mxu0
    %v2432 = vadd.f32 0.0, %v2431
    %v2433 = vpop.f32.mrb[0].mxu0
    %v2434 = vadd.f32 0.0, %v2433
    %2435 = vmatprep.mubr.f32.mxu0 0.0
    %2436 = vmatmul.mubr.f32.gmra.mrb[0].mxu0 %v925
    %v2437 = vpop.f32.mrb[0].mxu0
    %v2438 = vadd.f32 0.0, %v2437
    %v2439 = vpop.f32.mrb[0].mxu0
    %v2440 = vadd.f32 0.0, %v2439
    %2441 = vmatprep.mubr.f32.mxu0 0.0
    %2442 = vmatmul.mubr.f32.gmra.mrb[0].mxu0 %v928
    %v2443 = vpop.f32.mrb[0].mxu0
    %v2444 = vadd.f32 0.0, %v2443
    %v2445 = vpop.f32.mrb[0].mxu0
    %v2446 = vadd.f32 0.0, %v2445
    %2447 = vmatprep.mubr.f32.mxu0 0.0
    %2448 = vmatmul.mubr.f32.gmra.mrb[0].mxu0 %v931
    %v2449 = vpop.f32.mrb[0].mxu0
    %v2450 = vadd.f32 0.0, %v2449
    %v2451 = vpop.f32.mrb[0].mxu0
    %v2452 = vadd.f32 0.0, %v2451
    %2453 = vmatprep.mubr.f32.mxu0 0.0
    %2454 = vmatmul.mubr.f32.gmra.mrb[0].mxu0 %v934
    %v2455 = vpop.f32.mrb[0].mxu0
    %v2456 = vadd.f32 0.0, %v2455
    %v2457 = vpop.f32.mrb[0].mxu0
    %v2458 = vadd.f32 0.0, %v2457
    %2459 = vmatprep.mubr.f32.mxu0 0.0
    %2460 = vmatmul.mubr.f32.gmra.mrb[0].mxu0 %v937
    %v2461 = vpop.f32.mrb[0].mxu0
    %v2462 = vadd.f32 0.0, %v2461
    %v2463 = vpop.f32.mrb[0].mxu0
    %v2464 = vadd.f32 0.0, %v2463
    %2465 = vmatprep.mubr.f32.mxu0 0.0
    %2466 = vmatmul.mubr.f32.gmra.mrb[0].mxu0 %v940
    %v2467 = vpop.f32.mrb[0].mxu0
    %v2468 = vadd.f32 0.0, %v2467
    %v2469 = vpop.f32.mrb[0].mxu0
    %v2470 = vadd.f32 0.0, %v2469
    %2471 = vmatprep.mubr.f32.mxu0 0.0
    %2472 = vmatmul.mubr.f32.gmra.mrb[0].mxu0 %v943
    %v2473 = vpop.f32.mrb[0].mxu0
    %v2474 = vadd.f32 0.0, %v2473
    %v2475 = vpop.f32.mrb[0].mxu0
    %v2476 = vadd.f32 0.0, %v2475
    %2477 = vmatprep.mubr.f32.mxu0 0.0
    %2478 = vmatmul.mubr.f32.gmra.mrb[0].mxu0 %v946
    %v2479 = vpop.f32.mrb[0].mxu0
    %v2480 = vadd.f32 0.0, %v2479
    %v2481 = vpop.f32.mrb[0].mxu0
    %v2482 = vadd.f32 0.0, %v2481
    %2483 = vmatprep.mubr.f32.mxu0 0.0
    %2484 = vmatmul.mubr.f32.gmra.mrb[0].mxu0 %v949
    %v2485 = vpop.f32.mrb[0].mxu0
    %v2486 = vadd.f32 0.0, %v2485
    %v2487 = vpop.f32.mrb[0].mxu0
    %v2488 = vadd.f32 0.0, %v2487
    %2489 = vmatprep.mubr.f32.mxu0 0.0
    %2490 = vmatmul.mubr.f32.gmra.mrb[0].mxu0 %v952
    %v2491 = vpop.f32.mrb[0].mxu0
    %v2492 = vadd.f32 0.0, %v2491
    %v2493 = vpop.f32.mrb[0].mxu0
    %v2494 = vadd.f32 0.0, %v2493
    %2495 = vmatprep.mubr.f32.mxu0 0.0
    %2496 = vmatmul.mubr.f32.gmra.mrb[0].mxu0 %v955
    %v2497 = vpop.f32.mrb[0].mxu0
    %v2498 = vadd.f32 0.0, %v2497
    %v2499 = vpop.f32.mrb[0].mxu0
    %v2500 = vadd.f32 0.0, %v2499
    %2501 = vmatprep.mubr.f32.mxu0 0.0
    %2502 = vmatmul.mubr.f32.gmra.mrb[0].mxu0 %v958
    %v2503 = vpop.f32.mrb[0].mxu0
    %v2504 = vadd.f32 0.0, %v2503
    %v2505 = vpop.f32.mrb[0].mxu0
    %v2506 = vadd.f32 0.0, %v2505
    %2507 = vmatprep.mubr.f32.mxu0 0.0
    %2508 = vmatmul.mubr.f32.gmra.mrb[0].mxu0 %v961
    %v2509 = vpop.f32.mrb[0].mxu0
    %v2510 = vadd.f32 0.0, %v2509
    %v2511 = vpop.f32.mrb[0].mxu0
    %v2512 = vadd.f32 0.0, %v2511
    %2513 = vmatprep.mubr.f32.mxu0 0.0
    %2514 = vmatmul.mubr.f32.gmra.mrb[0].mxu0 %v964
    %v2515 = vpop.f32.mrb[0].mxu0
    %v2516 = vadd.f32 0.0, %v2515
    %v2517 = vpop.f32.mrb[0].mxu0
    %v2518 = vadd.f32 0.0, %v2517
    %2519 = vdwg.mxu0
    %2520 = vmatprep.subr.mxu0 %v873
    %2521 = vmatpush1.msra.mxu0 %v872
    %2522 = vmatprep.subr.mxu0 %v1013
    %2523 = vmatpush1.msra.mxu0 %v1010
    %2524 = vmatprep.subr.mxu0 0.0
    %2525 = vmatpush1.msra.mxu0 0.0
    %2526 = vmatprep.subr.mxu0 0.0
    %2527 = vmatpush1.msra.mxu0 0.0
    %2528 = vmatprep.subr.mxu0 0.0
    %2529 = vmatpush1.msra.mxu0 0.0
    %2530 = vmatprep.subr.mxu0 0.0
    %2531 = vmatpush1.msra.mxu0 0.0
    %2532 = vmatprep.subr.mxu0 0.0
    %2533 = vmatpush1.msra.mxu0 0.0
    %2534 = vmatprep.subr.mxu0 0.0
    %2535 = vmatpush1.msra.mxu0 0.0
    %2536 = vmatprep.subr.mxu0 0.0
    %2537 = vmatpush1.msra.mxu0 0.0
    %2538 = vmatprep.subr.mxu0 0.0
    %2539 = vmatpush1.msra.mxu0 0.0
    %2540 = vmatprep.subr.mxu0 0.0
    %2541 = vmatpush1.msra.mxu0 0.0
    %2542 = vmatprep.subr.mxu0 0.0
    %2543 = vmatpush1.msra.mxu0 0.0
    %2544 = vmatprep.subr.mxu0 0.0
    %2545 = vmatpush1.msra.mxu0 0.0
    %2546 = vmatprep.subr.mxu0 0.0
    %2547 = vmatpush1.msra.mxu0 0.0
    %2548 = vmatprep.subr.mxu0 0.0
    %2549 = vmatpush1.msra.mxu0 0.0
    %2550 = vmatprep.subr.mxu0 0.0
    %2551 = vmatpush1.msra.mxu0 0.0
    %2552 = vmatprep.subr.mxu0 0.0
    %2553 = vmatpush1.msra.mxu0 0.0
    %2554 = vmatprep.subr.mxu0 0.0
    %2555 = vmatpush1.msra.mxu0 0.0
    %2556 = vmatprep.subr.mxu0 0.0
    %2557 = vmatpush1.msra.mxu0 0.0
    %2558 = vmatprep.subr.mxu0 0.0
    %2559 = vmatpush1.msra.mxu0 0.0
    %2560 = vmatprep.subr.mxu0 0.0
    %2561 = vmatpush1.msra.mxu0 0.0
    %2562 = vmatprep.subr.mxu0 0.0
    %2563 = vmatpush1.msra.mxu0 0.0
    %2564 = vmatprep.subr.mxu0 0.0
    %2565 = vmatpush1.msra.mxu0 0.0
    %2566 = vmatprep.subr.mxu0 0.0
    %2567 = vmatpush1.msra.mxu0 0.0
    %2568 = vmatprep.subr.mxu0 0.0
    %2569 = vmatpush1.msra.mxu0 0.0
    %2570 = vmatprep.subr.mxu0 0.0
    %2571 = vmatpush1.msra.mxu0 0.0
    %2572 = vmatprep.subr.mxu0 0.0
    %2573 = vmatpush1.msra.mxu0 0.0
    %2574 = vmatprep.subr.mxu0 0.0
    %2575 = vmatpush1.msra.mxu0 0.0
    %2576 = vmatprep.subr.mxu0 0.0
    %2577 = vmatpush1.msra.mxu0 0.0
    %2578 = vmatprep.subr.mxu0 0.0
    %2579 = vmatpush1.msra.mxu0 0.0
    %2580 = vmatprep.subr.mxu0 0.0
    %2581 = vmatpush1.msra.mxu0 0.0
    %2582 = vmatprep.subr.mxu0 0.0
    %2583 = vmatpush1.msra.mxu0 0.0
    %2584 = vmatprep.mubr.f32.mxu0 0.0
    %2585 = vmatmul.mubr.f32.gmra.mrb[0].mxu0 %v892
    %v2586 = vpop.f32.mrb[0].mxu0
    %v2587 = vadd.f32 0.0, %v2586
    %v2588 = vpop.f32.mrb[0].mxu0
    %v2589 = vadd.f32 0.0, %v2588
    %2590 = vmatprep.mubr.f32.mxu0 0.0
    %2591 = vmatmul.mubr.f32.gmra.mrb[0].mxu0 %v895
    %v2592 = vpop.f32.mrb[0].mxu0
    %v2593 = vadd.f32 0.0, %v2592
    %v2594 = vpop.f32.mrb[0].mxu0
    %v2595 = vadd.f32 0.0, %v2594
    %2596 = vmatprep.mubr.f32.mxu0 0.0
    %2597 = vmatmul.mubr.f32.gmra.mrb[0].mxu0 %v898
    %v2598 = vpop.f32.mrb[0].mxu0
    %v2599 = vadd.f32 0.0, %v2598
    %v2600 = vpop.f32.mrb[0].mxu0
    %v2601 = vadd.f32 0.0, %v2600
    %2602 = vmatprep.mubr.f32.mxu0 0.0
    %2603 = vmatmul.mubr.f32.gmra.mrb[0].mxu0 %v901
    %v2604 = vpop.f32.mrb[0].mxu0
    %v2605 = vadd.f32 0.0, %v2604
    %v2606 = vpop.f32.mrb[0].mxu0
    %v2607 = vadd.f32 0.0, %v2606
    %2608 = vmatprep.mubr.f32.mxu0 0.0
    %2609 = vmatmul.mubr.f32.gmra.mrb[0].mxu0 %v904
    %v2610 = vpop.f32.mrb[0].mxu0
    %v2611 = vadd.f32 0.0, %v2610
    %v2612 = vpop.f32.mrb[0].mxu0
    %v2613 = vadd.f32 0.0, %v2612
    %2614 = vmatprep.mubr.f32.mxu0 0.0
    %2615 = vmatmul.mubr.f32.gmra.mrb[0].mxu0 %v907
    %v2616 = vpop.f32.mrb[0].mxu0
    %v2617 = vadd.f32 0.0, %v2616
    %v2618 = vpop.f32.mrb[0].mxu0
    %v2619 = vadd.f32 0.0, %v2618
    %2620 = vmatprep.mubr.f32.mxu0 0.0
    %2621 = vmatmul.mubr.f32.gmra.mrb[0].mxu0 %v910
    %v2622 = vpop.f32.mrb[0].mxu0
    %v2623 = vadd.f32 0.0, %v2622
    %v2624 = vpop.f32.mrb[0].mxu0
    %v2625 = vadd.f32 0.0, %v2624
    %2626 = vmatprep.mubr.f32.mxu0 0.0
    %2627 = vmatmul.mubr.f32.gmra.mrb[0].mxu0 %v913
    %v2628 = vpop.f32.mrb[0].mxu0
    %v2629 = vadd.f32 0.0, %v2628
    %v2630 = vpop.f32.mrb[0].mxu0
    %v2631 = vadd.f32 0.0, %v2630
    %2632 = vmatprep.mubr.f32.mxu0 0.0
    %2633 = vmatmul.mubr.f32.gmra.mrb[0].mxu0 %v916
    %v2634 = vpop.f32.mrb[0].mxu0
    %v2635 = vadd.f32 0.0, %v2634
    %v2636 = vpop.f32.mrb[0].mxu0
    %v2637 = vadd.f32 0.0, %v2636
    %2638 = vmatprep.mubr.f32.mxu0 0.0
    %2639 = vmatmul.mubr.f32.gmra.mrb[0].mxu0 %v919
    %v2640 = vpop.f32.mrb[0].mxu0
    %v2641 = vadd.f32 0.0, %v2640
    %v2642 = vpop.f32.mrb[0].mxu0
    %v2643 = vadd.f32 0.0, %v2642
    %2644 = vmatprep.mubr.f32.mxu0 0.0
    %2645 = vmatmul.mubr.f32.gmra.mrb[0].mxu0 %v922
    %v2646 = vpop.f32.mrb[0].mxu0
    %v2647 = vadd.f32 0.0, %v2646
    %v2648 = vpop.f32.mrb[0].mxu0
    %v2649 = vadd.f32 0.0, %v2648
    %2650 = vmatprep.mubr.f32.mxu0 0.0
    %2651 = vmatmul.mubr.f32.gmra.mrb[0].mxu0 %v925
    %v2652 = vpop.f32.mrb[0].mxu0
    %v2653 = vadd.f32 0.0, %v2652
    %v2654 = vpop.f32.mrb[0].mxu0
    %v2655 = vadd.f32 0.0, %v2654
    %2656 = vmatprep.mubr.f32.mxu0 0.0
    %2657 = vmatmul.mubr.f32.gmra.mrb[0].mxu0 %v928
    %v2658 = vpop.f32.mrb[0].mxu0
    %v2659 = vadd.f32 0.0, %v2658
    %v2660 = vpop.f32.mrb[0].mxu0
    %v2661 = vadd.f32 0.0, %v2660
    %2662 = vmatprep.mubr.f32.mxu0 0.0
    %2663 = vmatmul.mubr.f32.gmra.mrb[0].mxu0 %v931
    %v2664 = vpop.f32.mrb[0].mxu0
    %v2665 = vadd.f32 0.0, %v2664
    %v2666 = vpop.f32.mrb[0].mxu0
    %v2667 = vadd.f32 0.0, %v2666
    %2668 = vmatprep.mubr.f32.mxu0 0.0
    %2669 = vmatmul.mubr.f32.gmra.mrb[0].mxu0 %v934
    %v2670 = vpop.f32.mrb[0].mxu0
    %v2671 = vadd.f32 0.0, %v2670
    %v2672 = vpop.f32.mrb[0].mxu0
    %v2673 = vadd.f32 0.0, %v2672
    %2674 = vmatprep.mubr.f32.mxu0 0.0
    %2675 = vmatmul.mubr.f32.gmra.mrb[0].mxu0 %v937
    %v2676 = vpop.f32.mrb[0].mxu0
    %v2677 = vadd.f32 0.0, %v2676
    %v2678 = vpop.f32.mrb[0].mxu0
    %v2679 = vadd.f32 0.0, %v2678
    %2680 = vmatprep.mubr.f32.mxu0 0.0
    %2681 = vmatmul.mubr.f32.gmra.mrb[0].mxu0 %v940
    %v2682 = vpop.f32.mrb[0].mxu0
    %v2683 = vadd.f32 0.0, %v2682
    %v2684 = vpop.f32.mrb[0].mxu0
    %v2685 = vadd.f32 0.0, %v2684
    %2686 = vmatprep.mubr.f32.mxu0 0.0
    %2687 = vmatmul.mubr.f32.gmra.mrb[0].mxu0 %v943
    %v2688 = vpop.f32.mrb[0].mxu0
    %v2689 = vadd.f32 0.0, %v2688
    %v2690 = vpop.f32.mrb[0].mxu0
    %v2691 = vadd.f32 0.0, %v2690
    %2692 = vmatprep.mubr.f32.mxu0 0.0
    %2693 = vmatmul.mubr.f32.gmra.mrb[0].mxu0 %v946
    %v2694 = vpop.f32.mrb[0].mxu0
    %v2695 = vadd.f32 0.0, %v2694
    %v2696 = vpop.f32.mrb[0].mxu0
    %v2697 = vadd.f32 0.0, %v2696
    %2698 = vmatprep.mubr.f32.mxu0 0.0
    %2699 = vmatmul.mubr.f32.gmra.mrb[0].mxu0 %v949
    %v2700 = vpop.f32.mrb[0].mxu0
    %v2701 = vadd.f32 0.0, %v2700
    %v2702 = vpop.f32.mrb[0].mxu0
    %v2703 = vadd.f32 0.0, %v2702
    %2704 = vmatprep.mubr.f32.mxu0 0.0
    %2705 = vmatmul.mubr.f32.gmra.mrb[0].mxu0 %v952
    %v2706 = vpop.f32.mrb[0].mxu0
    %v2707 = vadd.f32 0.0, %v2706
    %v2708 = vpop.f32.mrb[0].mxu0
    %v2709 = vadd.f32 0.0, %v2708
    %2710 = vmatprep.mubr.f32.mxu0 0.0
    %2711 = vmatmul.mubr.f32.gmra.mrb[0].mxu0 %v955
    %v2712 = vpop.f32.mrb[0].mxu0
    %v2713 = vadd.f32 0.0, %v2712
    %v2714 = vpop.f32.mrb[0].mxu0
    %v2715 = vadd.f32 0.0, %v2714
    %2716 = vmatprep.mubr.f32.mxu0 0.0
    %2717 = vmatmul.mubr.f32.gmra.mrb[0].mxu0 %v958
    %v2718 = vpop.f32.mrb[0].mxu0
    %v2719 = vadd.f32 0.0, %v2718
    %v2720 = vpop.f32.mrb[0].mxu0
    %v2721 = vadd.f32 0.0, %v2720
    %2722 = vmatprep.mubr.f32.mxu0 0.0
    %2723 = vmatmul.mubr.f32.gmra.mrb[0].mxu0 %v961
    %v2724 = vpop.f32.mrb[0].mxu0
    %v2725 = vadd.f32 0.0, %v2724
    %v2726 = vpop.f32.mrb[0].mxu0
    %v2727 = vadd.f32 0.0, %v2726
    %2728 = vmatprep.mubr.f32.mxu0 0.0
    %2729 = vmatmul.mubr.f32.gmra.mrb[0].mxu0 %v964
    %v2730 = vpop.f32.mrb[0].mxu0
    %v2731 = vadd.f32 0.0, %v2730
    %v2732 = vpop.f32.mrb[0].mxu0
    %v2733 = vadd.f32 0.0, %v2732
    %2734 = vdwg.mxu0
    %v2735 = vadd.f32 %v433, %v1082
    %v2736 = vadd.f32 %v434, %v1084
    %v2737 = vadd.f32 %v435, %v1297
    %v2738 = vadd.f32 %v436, %v1299
    %v2739 = vadd.f32 %v437, %v1512
    %v2740 = vadd.f32 %v438, %v1514
    %v2741 = vadd.f32 %v439, %v1727
    %v2742 = vadd.f32 %v440, %v1729
    %v2743 = vadd.f32 %v441, %v1942
    %v2744 = vadd.f32 %v442, %v1944
    %v2745 = vadd.f32 %v443, %v2157
    %v2746 = vadd.f32 %v444, %v2159
    %v2747 = vadd.f32 %v445, %v2372
    %v2748 = vadd.f32 %v446, %v2374
    %v2749 = vadd.f32 %v447, %v2587
    %v2750 = vadd.f32 %v448, %v2589
    %v2751 = vadd.f32 %v449, %v1088
    %v2752 = vadd.f32 %v450, %v1090
    %v2753 = vadd.f32 %v451, %v1303
    %v2754 = vadd.f32 %v452, %v1305
    %v2755 = vadd.f32 %v453, %v1518
    %v2756 = vadd.f32 %v454, %v1520
    %v2757 = vadd.f32 %v455, %v1733
    %v2758 = vadd.f32 %v456, %v1735
    %v2759 = vadd.f32 %v457, %v1948
    %v2760 = vadd.f32 %v458, %v1950
    %v2761 = vadd.f32 %v459, %v2163
    %v2762 = vadd.f32 %v460, %v2165
    %v2763 = vadd.f32 %v461, %v2378
    %v2764 = vadd.f32 %v462, %v2380
    %v2765 = vadd.f32 %v463, %v2593
    %v2766 = vadd.f32 %v464, %v2595
    %v2767 = vadd.f32 %v465, %v1094
    %v2768 = vadd.f32 %v466, %v1096
    %v2769 = vadd.f32 %v467, %v1309
    %v2770 = vadd.f32 %v468, %v1311
    %v2771 = vadd.f32 %v469, %v1524
    %v2772 = vadd.f32 %v470, %v1526
    %v2773 = vadd.f32 %v471, %v1739
    %v2774 = vadd.f32 %v472, %v1741
    %v2775 = vadd.f32 %v473, %v1954
    %v2776 = vadd.f32 %v474, %v1956
    %v2777 = vadd.f32 %v475, %v2169
    %v2778 = vadd.f32 %v476, %v2171
    %v2779 = vadd.f32 %v477, %v2384
    %v2780 = vadd.f32 %v478, %v2386
    %v2781 = vadd.f32 %v479, %v2599
    %v2782 = vadd.f32 %v480, %v2601
    %v2783 = vadd.f32 %v481, %v1100
    %v2784 = vadd.f32 %v482, %v1102
    %v2785 = vadd.f32 %v483, %v1315
    %v2786 = vadd.f32 %v484, %v1317
    %v2787 = vadd.f32 %v485, %v1530
    %v2788 = vadd.f32 %v486, %v1532
    %v2789 = vadd.f32 %v487, %v1745
    %v2790 = vadd.f32 %v488, %v1747
    %v2791 = vadd.f32 %v489, %v1960
    %v2792 = vadd.f32 %v490, %v1962
    %v2793 = vadd.f32 %v491, %v2175
    %v2794 = vadd.f32 %v492, %v2177
    %v2795 = vadd.f32 %v493, %v2390
    %v2796 = vadd.f32 %v494, %v2392
    %v2797 = vadd.f32 %v495, %v2605
    %v2798 = vadd.f32 %v496, %v2607
    %v2799 = vadd.f32 %v497, %v1106
    %v2800 = vadd.f32 %v498, %v1108
    %v2801 = vadd.f32 %v499, %v1321
    %v2802 = vadd.f32 %v500, %v1323
    %v2803 = vadd.f32 %v501, %v1536
    %v2804 = vadd.f32 %v502, %v1538
    %v2805 = vadd.f32 %v503, %v1751
    %v2806 = vadd.f32 %v504, %v1753
    %v2807 = vadd.f32 %v505, %v1966
    %v2808 = vadd.f32 %v506, %v1968
    %v2809 = vadd.f32 %v507, %v2181
    %v2810 = vadd.f32 %v508, %v2183
    %v2811 = vadd.f32 %v509, %v2396
    %v2812 = vadd.f32 %v510, %v2398
    %v2813 = vadd.f32 %v511, %v2611
    %v2814 = vadd.f32 %v512, %v2613
    %v2815 = vadd.f32 %v513, %v1112
    %v2816 = vadd.f32 %v514, %v1114
    %v2817 = vadd.f32 %v515, %v1327
    %v2818 = vadd.f32 %v516, %v1329
    %v2819 = vadd.f32 %v517, %v1542
    %v2820 = vadd.f32 %v518, %v1544
    %v2821 = vadd.f32 %v519, %v1757
    %v2822 = vadd.f32 %v520, %v1759
    %v2823 = vadd.f32 %v521, %v1972
    %v2824 = vadd.f32 %v522, %v1974
    %v2825 = vadd.f32 %v523, %v2187
    %v2826 = vadd.f32 %v524, %v2189
    %v2827 = vadd.f32 %v525, %v2402
    %v2828 = vadd.f32 %v526, %v2404
    %v2829 = vadd.f32 %v527, %v2617
    %v2830 = vadd.f32 %v528, %v2619
    %v2831 = vadd.f32 %v529, %v1118
    %v2832 = vadd.f32 %v530, %v1120
    %v2833 = vadd.f32 %v531, %v1333
    %v2834 = vadd.f32 %v532, %v1335
    %v2835 = vadd.f32 %v533, %v1548
    %v2836 = vadd.f32 %v534, %v1550
    %v2837 = vadd.f32 %v535, %v1763
    %v2838 = vadd.f32 %v536, %v1765
    %v2839 = vadd.f32 %v537, %v1978
    %v2840 = vadd.f32 %v538, %v1980
    %v2841 = vadd.f32 %v539, %v2193
    %v2842 = vadd.f32 %v540, %v2195
    %v2843 = vadd.f32 %v541, %v2408
    %v2844 = vadd.f32 %v542, %v2410
    %v2845 = vadd.f32 %v543, %v2623
    %v2846 = vadd.f32 %v544, %v2625
    %v2847 = vadd.f32 %v545, %v1124
    %v2848 = vadd.f32 %v546, %v1126
    %v2849 = vadd.f32 %v547, %v1339
    %v2850 = vadd.f32 %v548, %v1341
    %v2851 = vadd.f32 %v549, %v1554
    %v2852 = vadd.f32 %v550, %v1556
    %v2853 = vadd.f32 %v551, %v1769
    %v2854 = vadd.f32 %v552, %v1771
    %v2855 = vadd.f32 %v553, %v1984
    %v2856 = vadd.f32 %v554, %v1986
    %v2857 = vadd.f32 %v555, %v2199
    %v2858 = vadd.f32 %v556, %v2201
    %v2859 = vadd.f32 %v557, %v2414
    %v2860 = vadd.f32 %v558, %v2416
    %v2861 = vadd.f32 %v559, %v2629
    %v2862 = vadd.f32 %v560, %v2631
    %v2863 = vadd.f32 %v561, %v1130
    %v2864 = vadd.f32 %v562, %v1132
    %v2865 = vadd.f32 %v563, %v1345
    %v2866 = vadd.f32 %v564, %v1347
    %v2867 = vadd.f32 %v565, %v1560
    %v2868 = vadd.f32 %v566, %v1562
    %v2869 = vadd.f32 %v567, %v1775
    %v2870 = vadd.f32 %v568, %v1777
    %v2871 = vadd.f32 %v569, %v1990
    %v2872 = vadd.f32 %v570, %v1992
    %v2873 = vadd.f32 %v571, %v2205
    %v2874 = vadd.f32 %v572, %v2207
    %v2875 = vadd.f32 %v573, %v2420
    %v2876 = vadd.f32 %v574, %v2422
    %v2877 = vadd.f32 %v575, %v2635
    %v2878 = vadd.f32 %v576, %v2637
    %v2879 = vadd.f32 %v577, %v1136
    %v2880 = vadd.f32 %v578, %v1138
    %v2881 = vadd.f32 %v579, %v1351
    %v2882 = vadd.f32 %v580, %v1353
    %v2883 = vadd.f32 %v581, %v1566
    %v2884 = vadd.f32 %v582, %v1568
    %v2885 = vadd.f32 %v583, %v1781
    %v2886 = vadd.f32 %v584, %v1783
    %v2887 = vadd.f32 %v585, %v1996
    %v2888 = vadd.f32 %v586, %v1998
    %v2889 = vadd.f32 %v587, %v2211
    %v2890 = vadd.f32 %v588, %v2213
    %v2891 = vadd.f32 %v589, %v2426
    %v2892 = vadd.f32 %v590, %v2428
    %v2893 = vadd.f32 %v591, %v2641
    %v2894 = vadd.f32 %v592, %v2643
    %v2895 = vadd.f32 %v593, %v1142
    %v2896 = vadd.f32 %v594, %v1144
    %v2897 = vadd.f32 %v595, %v1357
    %v2898 = vadd.f32 %v596, %v1359
    %v2899 = vadd.f32 %v597, %v1572
    %v2900 = vadd.f32 %v598, %v1574
    %v2901 = vadd.f32 %v599, %v1787
    %v2902 = vadd.f32 %v600, %v1789
    %v2903 = vadd.f32 %v601, %v2002
    %v2904 = vadd.f32 %v602, %v2004
    %v2905 = vadd.f32 %v603, %v2217
    %v2906 = vadd.f32 %v604, %v2219
    %v2907 = vadd.f32 %v605, %v2432
    %v2908 = vadd.f32 %v606, %v2434
    %v2909 = vadd.f32 %v607, %v2647
    %v2910 = vadd.f32 %v608, %v2649
    %v2911 = vadd.f32 %v609, %v1148
    %v2912 = vadd.f32 %v610, %v1150
    %v2913 = vadd.f32 %v611, %v1363
    %v2914 = vadd.f32 %v612, %v1365
    %v2915 = vadd.f32 %v613, %v1578
    %v2916 = vadd.f32 %v614, %v1580
    %v2917 = vadd.f32 %v615, %v1793
    %v2918 = vadd.f32 %v616, %v1795
    %v2919 = vadd.f32 %v617, %v2008
    %v2920 = vadd.f32 %v618, %v2010
    %v2921 = vadd.f32 %v619, %v2223
    %v2922 = vadd.f32 %v620, %v2225
    %v2923 = vadd.f32 %v621, %v2438
    %v2924 = vadd.f32 %v622, %v2440
    %v2925 = vadd.f32 %v623, %v2653
    %v2926 = vadd.f32 %v624, %v2655
    %v2927 = vadd.f32 %v625, %v1154
    %v2928 = vadd.f32 %v626, %v1156
    %v2929 = vadd.f32 %v627, %v1369
    %v2930 = vadd.f32 %v628, %v1371
    %v2931 = vadd.f32 %v629, %v1584
    %v2932 = vadd.f32 %v630, %v1586
    %v2933 = vadd.f32 %v631, %v1799
    %v2934 = vadd.f32 %v632, %v1801
    %v2935 = vadd.f32 %v633, %v2014
    %v2936 = vadd.f32 %v634, %v2016
    %v2937 = vadd.f32 %v635, %v2229
    %v2938 = vadd.f32 %v636, %v2231
    %v2939 = vadd.f32 %v637, %v2444
    %v2940 = vadd.f32 %v638, %v2446
    %v2941 = vadd.f32 %v639, %v2659
    %v2942 = vadd.f32 %v640, %v2661
    %v2943 = vadd.f32 %v641, %v1160
    %v2944 = vadd.f32 %v642, %v1162
    %v2945 = vadd.f32 %v643, %v1375
    %v2946 = vadd.f32 %v644, %v1377
    %v2947 = vadd.f32 %v645, %v1590
    %v2948 = vadd.f32 %v646, %v1592
    %v2949 = vadd.f32 %v647, %v1805
    %v2950 = vadd.f32 %v648, %v1807
    %v2951 = vadd.f32 %v649, %v2020
    %v2952 = vadd.f32 %v650, %v2022
    %v2953 = vadd.f32 %v651, %v2235
    %v2954 = vadd.f32 %v652, %v2237
    %v2955 = vadd.f32 %v653, %v2450
    %v2956 = vadd.f32 %v654, %v2452
    %v2957 = vadd.f32 %v655, %v2665
    %v2958 = vadd.f32 %v656, %v2667
    %v2959 = vadd.f32 %v657, %v1166
    %v2960 = vadd.f32 %v658, %v1168
    %v2961 = vadd.f32 %v659, %v1381
    %v2962 = vadd.f32 %v660, %v1383
    %v2963 = vadd.f32 %v661, %v1596
    %v2964 = vadd.f32 %v662, %v1598
    %v2965 = vadd.f32 %v663, %v1811
    %v2966 = vadd.f32 %v664, %v1813
    %v2967 = vadd.f32 %v665, %v2026
    %v2968 = vadd.f32 %v666, %v2028
    %v2969 = vadd.f32 %v667, %v2241
    %v2970 = vadd.f32 %v668, %v2243
    %v2971 = vadd.f32 %v669, %v2456
    %v2972 = vadd.f32 %v670, %v2458
    %v2973 = vadd.f32 %v671, %v2671
    %v2974 = vadd.f32 %v672, %v2673
    %v2975 = vadd.f32 %v673, %v1172
    %v2976 = vadd.f32 %v674, %v1174
    %v2977 = vadd.f32 %v675, %v1387
    %v2978 = vadd.f32 %v676, %v1389
    %v2979 = vadd.f32 %v677, %v1602
    %v2980 = vadd.f32 %v678, %v1604
    %v2981 = vadd.f32 %v679, %v1817
    %v2982 = vadd.f32 %v680, %v1819
    %v2983 = vadd.f32 %v681, %v2032
    %v2984 = vadd.f32 %v682, %v2034
    %v2985 = vadd.f32 %v683, %v2247
    %v2986 = vadd.f32 %v684, %v2249
    %v2987 = vadd.f32 %v685, %v2462
    %v2988 = vadd.f32 %v686, %v2464
    %v2989 = vadd.f32 %v687, %v2677
    %v2990 = vadd.f32 %v688, %v2679
    %v2991 = vadd.f32 %v689, %v1178
    %v2992 = vadd.f32 %v690, %v1180
    %v2993 = vadd.f32 %v691, %v1393
    %v2994 = vadd.f32 %v692, %v1395
    %v2995 = vadd.f32 %v693, %v1608
    %v2996 = vadd.f32 %v694, %v1610
    %v2997 = vadd.f32 %v695, %v1823
    %v2998 = vadd.f32 %v696, %v1825
    %v2999 = vadd.f32 %v697, %v2038
    %v3000 = vadd.f32 %v698, %v2040
    %v3001 = vadd.f32 %v699, %v2253
    %v3002 = vadd.f32 %v700, %v2255
    %v3003 = vadd.f32 %v701, %v2468
    %v3004 = vadd.f32 %v702, %v2470
    %v3005 = vadd.f32 %v703, %v2683
    %v3006 = vadd.f32 %v704, %v2685
    %v3007 = vadd.f32 %v705, %v1184
    %v3008 = vadd.f32 %v706, %v1186
    %v3009 = vadd.f32 %v707, %v1399
    %v3010 = vadd.f32 %v708, %v1401
    %v3011 = vadd.f32 %v709, %v1614
    %v3012 = vadd.f32 %v710, %v1616
    %v3013 = vadd.f32 %v711, %v1829
    %v3014 = vadd.f32 %v712, %v1831
    %v3015 = vadd.f32 %v713, %v2044
    %v3016 = vadd.f32 %v714, %v2046
    %v3017 = vadd.f32 %v715, %v2259
    %v3018 = vadd.f32 %v716, %v2261
    %v3019 = vadd.f32 %v717, %v2474
    %v3020 = vadd.f32 %v718, %v2476
    %v3021 = vadd.f32 %v719, %v2689
    %v3022 = vadd.f32 %v720, %v2691
    %v3023 = vadd.f32 %v721, %v1190
    %v3024 = vadd.f32 %v722, %v1192
    %v3025 = vadd.f32 %v723, %v1405
    %v3026 = vadd.f32 %v724, %v1407
    %v3027 = vadd.f32 %v725, %v1620
    %v3028 = vadd.f32 %v726, %v1622
    %v3029 = vadd.f32 %v727, %v1835
    %v3030 = vadd.f32 %v728, %v1837
    %v3031 = vadd.f32 %v729, %v2050
    %v3032 = vadd.f32 %v730, %v2052
    %v3033 = vadd.f32 %v731, %v2265
    %v3034 = vadd.f32 %v732, %v2267
    %v3035 = vadd.f32 %v733, %v2480
    %v3036 = vadd.f32 %v734, %v2482
    %v3037 = vadd.f32 %v735, %v2695
    %v3038 = vadd.f32 %v736, %v2697
    %v3039 = vadd.f32 %v737, %v1196
    %v3040 = vadd.f32 %v738, %v1198
    %v3041 = vadd.f32 %v739, %v1411
    %v3042 = vadd.f32 %v740, %v1413
    %v3043 = vadd.f32 %v741, %v1626
    %v3044 = vadd.f32 %v742, %v1628
    %v3045 = vadd.f32 %v743, %v1841
    %v3046 = vadd.f32 %v744, %v1843
    %v3047 = vadd.f32 %v745, %v2056
    %v3048 = vadd.f32 %v746, %v2058
    %v3049 = vadd.f32 %v747, %v2271
    %v3050 = vadd.f32 %v748, %v2273
    %v3051 = vadd.f32 %v749, %v2486
    %v3052 = vadd.f32 %v750, %v2488
    %v3053 = vadd.f32 %v751, %v2701
    %v3054 = vadd.f32 %v752, %v2703
    %v3055 = vadd.f32 %v753, %v1202
    %v3056 = vadd.f32 %v754, %v1204
    %v3057 = vadd.f32 %v755, %v1417
    %v3058 = vadd.f32 %v756, %v1419
    %v3059 = vadd.f32 %v757, %v1632
    %v3060 = vadd.f32 %v758, %v1634
    %v3061 = vadd.f32 %v759, %v1847
    %v3062 = vadd.f32 %v760, %v1849
    %v3063 = vadd.f32 %v761, %v2062
    %v3064 = vadd.f32 %v762, %v2064
    %v3065 = vadd.f32 %v763, %v2277
    %v3066 = vadd.f32 %v764, %v2279
    %v3067 = vadd.f32 %v765, %v2492
    %v3068 = vadd.f32 %v766, %v2494
    %v3069 = vadd.f32 %v767, %v2707
    %v3070 = vadd.f32 %v768, %v2709
    %v3071 = vadd.f32 %v769, %v1208
    %v3072 = vadd.f32 %v770, %v1210
    %v3073 = vadd.f32 %v771, %v1423
    %v3074 = vadd.f32 %v772, %v1425
    %v3075 = vadd.f32 %v773, %v1638
    %v3076 = vadd.f32 %v774, %v1640
    %v3077 = vadd.f32 %v775, %v1853
    %v3078 = vadd.f32 %v776, %v1855
    %v3079 = vadd.f32 %v777, %v2068
    %v3080 = vadd.f32 %v778, %v2070
    %v3081 = vadd.f32 %v779, %v2283
    %v3082 = vadd.f32 %v780, %v2285
    %v3083 = vadd.f32 %v781, %v2498
    %v3084 = vadd.f32 %v782, %v2500
    %v3085 = vadd.f32 %v783, %v2713
    %v3086 = vadd.f32 %v784, %v2715
    %v3087 = vadd.f32 %v785, %v1214
    %v3088 = vadd.f32 %v786, %v1216
    %v3089 = vadd.f32 %v787, %v1429
    %v3090 = vadd.f32 %v788, %v1431
    %v3091 = vadd.f32 %v789, %v1644
    %v3092 = vadd.f32 %v790, %v1646
    %v3093 = vadd.f32 %v791, %v1859
    %v3094 = vadd.f32 %v792, %v1861
    %v3095 = vadd.f32 %v793, %v2074
    %v3096 = vadd.f32 %v794, %v2076
    %v3097 = vadd.f32 %v795, %v2289
    %v3098 = vadd.f32 %v796, %v2291
    %v3099 = vadd.f32 %v797, %v2504
    %v3100 = vadd.f32 %v798, %v2506
    %v3101 = vadd.f32 %v799, %v2719
    %v3102 = vadd.f32 %v800, %v2721
    %v3103 = vadd.f32 %v801, %v1220
    %v3104 = vadd.f32 %v802, %v1222
    %v3105 = vadd.f32 %v803, %v1435
    %v3106 = vadd.f32 %v804, %v1437
    %v3107 = vadd.f32 %v805, %v1650
    %v3108 = vadd.f32 %v806, %v1652
    %v3109 = vadd.f32 %v807, %v1865
    %v3110 = vadd.f32 %v808, %v1867
    %v3111 = vadd.f32 %v809, %v2080
    %v3112 = vadd.f32 %v810, %v2082
    %v3113 = vadd.f32 %v811, %v2295
    %v3114 = vadd.f32 %v812, %v2297
    %v3115 = vadd.f32 %v813, %v2510
    %v3116 = vadd.f32 %v814, %v2512
    %v3117 = vadd.f32 %v815, %v2725
    %v3118 = vadd.f32 %v816, %v2727
    %v3119 = vadd.f32 %v817, %v1226
    %v3120 = vadd.f32 %v818, %v1228
    %v3121 = vadd.f32 %v819, %v1441
    %v3122 = vadd.f32 %v820, %v1443
    %v3123 = vadd.f32 %v821, %v1656
    %v3124 = vadd.f32 %v822, %v1658
    %v3125 = vadd.f32 %v823, %v1871
    %v3126 = vadd.f32 %v824, %v1873
    %v3127 = vadd.f32 %v825, %v2086
    %v3128 = vadd.f32 %v826, %v2088
    %v3129 = vadd.f32 %v827, %v2301
    %v3130 = vadd.f32 %v828, %v2303
    %v3131 = vadd.f32 %v829, %v2516
    %v3132 = vadd.f32 %v830, %v2518
    %v3133 = vadd.f32 %v831, %v2731
    %v3134 = vadd.f32 %v832, %v2733
    %3135 = vst [vmem:[#allocation2] sm:$0xff] %v2735
    %3136 = vst [vmem:[#allocation2 + $0x8] sm:$0xff] %v2736
    %3137 = vst [vmem:[#allocation2 + $0x10] sm:$0xff] %v2737
    %3138 = vst [vmem:[#allocation2 + $0x18] sm:$0xff] %v2738
    %3139 = vst [vmem:[#allocation2 + $0x20] sm:$0xff] %v2739
    %3140 = vst [vmem:[#allocation2 + $0x28] sm:$0xff] %v2740
    %3141 = vst [vmem:[#allocation2 + $0x30] sm:$0xff] %v2741
    %3142 = vst [vmem:[#allocation2 + $0x38] sm:$0xff] %v2742
    %3143 = vst [vmem:[#allocation2 + $0x40] sm:$0xff] %v2743
    %3144 = vst [vmem:[#allocation2 + $0x48] sm:$0xff] %v2744
    %3145 = vst [vmem:[#allocation2 + $0x50] sm:$0xff] %v2745
    %3146 = vst [vmem:[#allocation2 + $0x58] sm:$0xff] %v2746
    %3147 = vst [vmem:[#allocation2 + $0x60] sm:$0xff] %v2747
    %3148 = vst [vmem:[#allocation2 + $0x68] sm:$0xff] %v2748
    %3149 = vst [vmem:[#allocation2 + $0x70] sm:$0xff] %v2749
    %3150 = vst [vmem:[#allocation2 + $0x78] sm:$0xff] %v2750
    %3151 = vst [vmem:[#allocation2 + $0x80] sm:$0xff] %v2751
    %3152 = vst [vmem:[#allocation2 + $0x88] sm:$0xff] %v2752
    %3153 = vst [vmem:[#allocation2 + $0x90] sm:$0xff] %v2753
    %3154 = vst [vmem:[#allocation2 + $0x98] sm:$0xff] %v2754
    %3155 = vst [vmem:[#allocation2 + $0xa0] sm:$0xff] %v2755
    %3156 = vst [vmem:[#allocation2 + $0xa8] sm:$0xff] %v2756
    %3157 = vst [vmem:[#allocation2 + $0xb0] sm:$0xff] %v2757
    %3158 = vst [vmem:[#allocation2 + $0xb8] sm:$0xff] %v2758
    %3159 = vst [vmem:[#allocation2 + $0xc0] sm:$0xff] %v2759
    %3160 = vst [vmem:[#allocation2 + $0xc8] sm:$0xff] %v2760
    %3161 = vst [vmem:[#allocation2 + $0xd0] sm:$0xff] %v2761
    %3162 = vst [vmem:[#allocation2 + $0xd8] sm:$0xff] %v2762
    %3163 = vst [vmem:[#allocation2 + $0xe0] sm:$0xff] %v2763
    %3164 = vst [vmem:[#allocation2 + $0xe8] sm:$0xff] %v2764
    %3165 = vst [vmem:[#allocation2 + $0xf0] sm:$0xff] %v2765
    %3166 = vst [vmem:[#allocation2 + $0xf8] sm:$0xff] %v2766
    %3167 = vst [vmem:[#allocation2 + $0x100] sm:$0xff] %v2767
    %3168 = vst [vmem:[#allocation2 + $0x108] sm:$0xff] %v2768
    %3169 = vst [vmem:[#allocation2 + $0x110] sm:$0xff] %v2769
    %3170 = vst [vmem:[#allocation2 + $0x118] sm:$0xff] %v2770
    %3171 = vst [vmem:[#allocation2 + $0x120] sm:$0xff] %v2771
    %3172 = vst [vmem:[#allocation2 + $0x128] sm:$0xff] %v2772
    %3173 = vst [vmem:[#allocation2 + $0x130] sm:$0xff] %v2773
    %3174 = vst [vmem:[#allocation2 + $0x138] sm:$0xff] %v2774
    %3175 = vst [vmem:[#allocation2 + $0x140] sm:$0xff] %v2775
    %3176 = vst [vmem:[#allocation2 + $0x148] sm:$0xff] %v2776
    %3177 = vst [vmem:[#allocation2 + $0x150] sm:$0xff] %v2777
    %3178 = vst [vmem:[#allocation2 + $0x158] sm:$0xff] %v2778
    %3179 = vst [vmem:[#allocation2 + $0x160] sm:$0xff] %v2779
    %3180 = vst [vmem:[#allocation2 + $0x168] sm:$0xff] %v2780
    %3181 = vst [vmem:[#allocation2 + $0x170] sm:$0xff] %v2781
    %3182 = vst [vmem:[#allocation2 + $0x178] sm:$0xff] %v2782
    %3183 = vst [vmem:[#allocation2 + $0x180] sm:$0xff] %v2783
    %3184 = vst [vmem:[#allocation2 + $0x188] sm:$0xff] %v2784
    %3185 = vst [vmem:[#allocation2 + $0x190] sm:$0xff] %v2785
    %3186 = vst [vmem:[#allocation2 + $0x198] sm:$0xff] %v2786
    %3187 = vst [vmem:[#allocation2 + $0x1a0] sm:$0xff] %v2787
    %3188 = vst [vmem:[#allocation2 + $0x1a8] sm:$0xff] %v2788
    %3189 = vst [vmem:[#allocation2 + $0x1b0] sm:$0xff] %v2789
    %3190 = vst [vmem:[#allocation2 + $0x1b8] sm:$0xff] %v2790
    %3191 = vst [vmem:[#allocation2 + $0x1c0] sm:$0xff] %v2791
    %3192 = vst [vmem:[#allocation2 + $0x1c8] sm:$0xff] %v2792
    %3193 = vst [vmem:[#allocation2 + $0x1d0] sm:$0xff] %v2793
    %3194 = vst [vmem:[#allocation2 + $0x1d8] sm:$0xff] %v2794
    %3195 = vst [vmem:[#allocation2 + $0x1e0] sm:$0xff] %v2795
    %3196 = vst [vmem:[#allocation2 + $0x1e8] sm:$0xff] %v2796
    %3197 = vst [vmem:[#allocation2 + $0x1f0] sm:$0xff] %v2797
    %3198 = vst [vmem:[#allocation2 + $0x1f8] sm:$0xff] %v2798
    %3199 = vst [vmem:[#allocation2 + $0x200] sm:$0xff] %v2799
    %3200 = vst [vmem:[#allocation2 + $0x208] sm:$0xff] %v2800
    %3201 = vst [vmem:[#allocation2 + $0x210] sm:$0xff] %v2801
    %3202 = vst [vmem:[#allocation2 + $0x218] sm:$0xff] %v2802
    %3203 = vst [vmem:[#allocation2 + $0x220] sm:$0xff] %v2803
    %3204 = vst [vmem:[#allocation2 + $0x228] sm:$0xff] %v2804
    %3205 = vst [vmem:[#allocation2 + $0x230] sm:$0xff] %v2805
    %3206 = vst [vmem:[#allocation2 + $0x238] sm:$0xff] %v2806
    %3207 = vst [vmem:[#allocation2 + $0x240] sm:$0xff] %v2807
    %3208 = vst [vmem:[#allocation2 + $0x248] sm:$0xff] %v2808
    %3209 = vst [vmem:[#allocation2 + $0x250] sm:$0xff] %v2809
    %3210 = vst [vmem:[#allocation2 + $0x258] sm:$0xff] %v2810
    %3211 = vst [vmem:[#allocation2 + $0x260] sm:$0xff] %v2811
    %3212 = vst [vmem:[#allocation2 + $0x268] sm:$0xff] %v2812
    %3213 = vst [vmem:[#allocation2 + $0x270] sm:$0xff] %v2813
    %3214 = vst [vmem:[#allocation2 + $0x278] sm:$0xff] %v2814
    %3215 = vst [vmem:[#allocation2 + $0x280] sm:$0xff] %v2815
    %3216 = vst [vmem:[#allocation2 + $0x288] sm:$0xff] %v2816
    %3217 = vst [vmem:[#allocation2 + $0x290] sm:$0xff] %v2817
    %3218 = vst [vmem:[#allocation2 + $0x298] sm:$0xff] %v2818
    %3219 = vst [vmem:[#allocation2 + $0x2a0] sm:$0xff] %v2819
    %3220 = vst [vmem:[#allocation2 + $0x2a8] sm:$0xff] %v2820
    %3221 = vst [vmem:[#allocation2 + $0x2b0] sm:$0xff] %v2821
    %3222 = vst [vmem:[#allocation2 + $0x2b8] sm:$0xff] %v2822
    %3223 = vst [vmem:[#allocation2 + $0x2c0] sm:$0xff] %v2823
    %3224 = vst [vmem:[#allocation2 + $0x2c8] sm:$0xff] %v2824
    %3225 = vst [vmem:[#allocation2 + $0x2d0] sm:$0xff] %v2825
    %3226 = vst [vmem:[#allocation2 + $0x2d8] sm:$0xff] %v2826
    %3227 = vst [vmem:[#allocation2 + $0x2e0] sm:$0xff] %v2827
    %3228 = vst [vmem:[#allocation2 + $0x2e8] sm:$0xff] %v2828
    %3229 = vst [vmem:[#allocation2 + $0x2f0] sm:$0xff] %v2829
    %3230 = vst [vmem:[#allocation2 + $0x2f8] sm:$0xff] %v2830
    %3231 = vst [vmem:[#allocation2 + $0x300] sm:$0xff] %v2831
    %3232 = vst [vmem:[#allocation2 + $0x308] sm:$0xff] %v2832
    %3233 = vst [vmem:[#allocation2 + $0x310] sm:$0xff] %v2833
    %3234 = vst [vmem:[#allocation2 + $0x318] sm:$0xff] %v2834
    %3235 = vst [vmem:[#allocation2 + $0x320] sm:$0xff] %v2835
    %3236 = vst [vmem:[#allocation2 + $0x328] sm:$0xff] %v2836
    %3237 = vst [vmem:[#allocation2 + $0x330] sm:$0xff] %v2837
    %3238 = vst [vmem:[#allocation2 + $0x338] sm:$0xff] %v2838
    %3239 = vst [vmem:[#allocation2 + $0x340] sm:$0xff] %v2839
    %3240 = vst [vmem:[#allocation2 + $0x348] sm:$0xff] %v2840
    %3241 = vst [vmem:[#allocation2 + $0x350] sm:$0xff] %v2841
    %3242 = vst [vmem:[#allocation2 + $0x358] sm:$0xff] %v2842
    %3243 = vst [vmem:[#allocation2 + $0x360] sm:$0xff] %v2843
    %3244 = vst [vmem:[#allocation2 + $0x368] sm:$0xff] %v2844
    %3245 = vst [vmem:[#allocation2 + $0x370] sm:$0xff] %v2845
    %3246 = vst [vmem:[#allocation2 + $0x378] sm:$0xff] %v2846
    %3247 = vst [vmem:[#allocation2 + $0x380] sm:$0xff] %v2847
    %3248 = vst [vmem:[#allocation2 + $0x388] sm:$0xff] %v2848
    %3249 = vst [vmem:[#allocation2 + $0x390] sm:$0xff] %v2849
    %3250 = vst [vmem:[#allocation2 + $0x398] sm:$0xff] %v2850
    %3251 = vst [vmem:[#allocation2 + $0x3a0] sm:$0xff] %v2851
    %3252 = vst [vmem:[#allocation2 + $0x3a8] sm:$0xff] %v2852
    %3253 = vst [vmem:[#allocation2 + $0x3b0] sm:$0xff] %v2853
    %3254 = vst [vmem:[#allocation2 + $0x3b8] sm:$0xff] %v2854
    %3255 = vst [vmem:[#allocation2 + $0x3c0] sm:$0xff] %v2855
    %3256 = vst [vmem:[#allocation2 + $0x3c8] sm:$0xff] %v2856
    %3257 = vst [vmem:[#allocation2 + $0x3d0] sm:$0xff] %v2857
    %3258 = vst [vmem:[#allocation2 + $0x3d8] sm:$0xff] %v2858
    %3259 = vst [vmem:[#allocation2 + $0x3e0] sm:$0xff] %v2859
    %3260 = vst [vmem:[#allocation2 + $0x3e8] sm:$0xff] %v2860
    %3261 = vst [vmem:[#allocation2 + $0x3f0] sm:$0xff] %v2861
    %3262 = vst [vmem:[#allocation2 + $0x3f8] sm:$0xff] %v2862
    %3263 = vst [vmem:[#allocation2 + $0x400] sm:$0xff] %v2863
    %3264 = vst [vmem:[#allocation2 + $0x408] sm:$0xff] %v2864
    %3265 = vst [vmem:[#allocation2 + $0x410] sm:$0xff] %v2865
    %3266 = vst [vmem:[#allocation2 + $0x418] sm:$0xff] %v2866
    %3267 = vst [vmem:[#allocation2 + $0x420] sm:$0xff] %v2867
    %3268 = vst [vmem:[#allocation2 + $0x428] sm:$0xff] %v2868
    %3269 = vst [vmem:[#allocation2 + $0x430] sm:$0xff] %v2869
    %3270 = vst [vmem:[#allocation2 + $0x438] sm:$0xff] %v2870
    %3271 = vst [vmem:[#allocation2 + $0x440] sm:$0xff] %v2871
    %3272 = vst [vmem:[#allocation2 + $0x448] sm:$0xff] %v2872
    %3273 = vst [vmem:[#allocation2 + $0x450] sm:$0xff] %v2873
    %3274 = vst [vmem:[#allocation2 + $0x458] sm:$0xff] %v2874
    %3275 = vst [vmem:[#allocation2 + $0x460] sm:$0xff] %v2875
    %3276 = vst [vmem:[#allocation2 + $0x468] sm:$0xff] %v2876
    %3277 = vst [vmem:[#allocation2 + $0x470] sm:$0xff] %v2877
    %3278 = vst [vmem:[#allocation2 + $0x478] sm:$0xff] %v2878
    %3279 = vst [vmem:[#allocation2 + $0x480] sm:$0xff] %v2879
    %3280 = vst [vmem:[#allocation2 + $0x488] sm:$0xff] %v2880
    %3281 = vst [vmem:[#allocation2 + $0x490] sm:$0xff] %v2881
    %3282 = vst [vmem:[#allocation2 + $0x498] sm:$0xff] %v2882
    %3283 = vst [vmem:[#allocation2 + $0x4a0] sm:$0xff] %v2883
    %3284 = vst [vmem:[#allocation2 + $0x4a8] sm:$0xff] %v2884
    %3285 = vst [vmem:[#allocation2 + $0x4b0] sm:$0xff] %v2885
    %3286 = vst [vmem:[#allocation2 + $0x4b8] sm:$0xff] %v2886
    %3287 = vst [vmem:[#allocation2 + $0x4c0] sm:$0xff] %v2887
    %3288 = vst [vmem:[#allocation2 + $0x4c8] sm:$0xff] %v2888
    %3289 = vst [vmem:[#allocation2 + $0x4d0] sm:$0xff] %v2889
    %3290 = vst [vmem:[#allocation2 + $0x4d8] sm:$0xff] %v2890
    %3291 = vst [vmem:[#allocation2 + $0x4e0] sm:$0xff] %v2891
    %3292 = vst [vmem:[#allocation2 + $0x4e8] sm:$0xff] %v2892
    %3293 = vst [vmem:[#allocation2 + $0x4f0] sm:$0xff] %v2893
    %3294 = vst [vmem:[#allocation2 + $0x4f8] sm:$0xff] %v2894
    %3295 = vst [vmem:[#allocation2 + $0x500] sm:$0xff] %v2895
    %3296 = vst [vmem:[#allocation2 + $0x508] sm:$0xff] %v2896
    %3297 = vst [vmem:[#allocation2 + $0x510] sm:$0xff] %v2897
    %3298 = vst [vmem:[#allocation2 + $0x518] sm:$0xff] %v2898
    %3299 = vst [vmem:[#allocation2 + $0x520] sm:$0xff] %v2899
    %3300 = vst [vmem:[#allocation2 + $0x528] sm:$0xff] %v2900
    %3301 = vst [vmem:[#allocation2 + $0x530] sm:$0xff] %v2901
    %3302 = vst [vmem:[#allocation2 + $0x538] sm:$0xff] %v2902
    %3303 = vst [vmem:[#allocation2 + $0x540] sm:$0xff] %v2903
    %3304 = vst [vmem:[#allocation2 + $0x548] sm:$0xff] %v2904
    %3305 = vst [vmem:[#allocation2 + $0x550] sm:$0xff] %v2905
    %3306 = vst [vmem:[#allocation2 + $0x558] sm:$0xff] %v2906
    %3307 = vst [vmem:[#allocation2 + $0x560] sm:$0xff] %v2907
    %3308 = vst [vmem:[#allocation2 + $0x568] sm:$0xff] %v2908
    %3309 = vst [vmem:[#allocation2 + $0x570] sm:$0xff] %v2909
    %3310 = vst [vmem:[#allocation2 + $0x578] sm:$0xff] %v2910
    %3311 = vst [vmem:[#allocation2 + $0x580] sm:$0xff] %v2911
    %3312 = vst [vmem:[#allocation2 + $0x588] sm:$0xff] %v2912
    %3313 = vst [vmem:[#allocation2 + $0x590] sm:$0xff] %v2913
    %3314 = vst [vmem:[#allocation2 + $0x598] sm:$0xff] %v2914
    %3315 = vst [vmem:[#allocation2 + $0x5a0] sm:$0xff] %v2915
    %3316 = vst [vmem:[#allocation2 + $0x5a8] sm:$0xff] %v2916
    %3317 = vst [vmem:[#allocation2 + $0x5b0] sm:$0xff] %v2917
    %3318 = vst [vmem:[#allocation2 + $0x5b8] sm:$0xff] %v2918
    %3319 = vst [vmem:[#allocation2 + $0x5c0] sm:$0xff] %v2919
    %3320 = vst [vmem:[#allocation2 + $0x5c8] sm:$0xff] %v2920
    %3321 = vst [vmem:[#allocation2 + $0x5d0] sm:$0xff] %v2921
    %3322 = vst [vmem:[#allocation2 + $0x5d8] sm:$0xff] %v2922
    %3323 = vst [vmem:[#allocation2 + $0x5e0] sm:$0xff] %v2923
    %3324 = vst [vmem:[#allocation2 + $0x5e8] sm:$0xff] %v2924
    %3325 = vst [vmem:[#allocation2 + $0x5f0] sm:$0xff] %v2925
    %3326 = vst [vmem:[#allocation2 + $0x5f8] sm:$0xff] %v2926
    %3327 = vst [vmem:[#allocation2 + $0x600] sm:$0xff] %v2927
    %3328 = vst [vmem:[#allocation2 + $0x608] sm:$0xff] %v2928
    %3329 = vst [vmem:[#allocation2 + $0x610] sm:$0xff] %v2929
    %3330 = vst [vmem:[#allocation2 + $0x618] sm:$0xff] %v2930
    %3331 = vst [vmem:[#allocation2 + $0x620] sm:$0xff] %v2931
    %3332 = vst [vmem:[#allocation2 + $0x628] sm:$0xff] %v2932
    %3333 = vst [vmem:[#allocation2 + $0x630] sm:$0xff] %v2933
    %3334 = vst [vmem:[#allocation2 + $0x638] sm:$0xff] %v2934
    %3335 = vst [vmem:[#allocation2 + $0x640] sm:$0xff] %v2935
    %3336 = vst [vmem:[#allocation2 + $0x648] sm:$0xff] %v2936
    %3337 = vst [vmem:[#allocation2 + $0x650] sm:$0xff] %v2937
    %3338 = vst [vmem:[#allocation2 + $0x658] sm:$0xff] %v2938
    %3339 = vst [vmem:[#allocation2 + $0x660] sm:$0xff] %v2939
    %3340 = vst [vmem:[#allocation2 + $0x668] sm:$0xff] %v2940
    %3341 = vst [vmem:[#allocation2 + $0x670] sm:$0xff] %v2941
    %3342 = vst [vmem:[#allocation2 + $0x678] sm:$0xff] %v2942
    %3343 = vst [vmem:[#allocation2 + $0x680] sm:$0xff] %v2943
    %3344 = vst [vmem:[#allocation2 + $0x688] sm:$0xff] %v2944
    %3345 = vst [vmem:[#allocation2 + $0x690] sm:$0xff] %v2945
    %3346 = vst [vmem:[#allocation2 + $0x698] sm:$0xff] %v2946
    %3347 = vst [vmem:[#allocation2 + $0x6a0] sm:$0xff] %v2947
    %3348 = vst [vmem:[#allocation2 + $0x6a8] sm:$0xff] %v2948
    %3349 = vst [vmem:[#allocation2 + $0x6b0] sm:$0xff] %v2949
    %3350 = vst [vmem:[#allocation2 + $0x6b8] sm:$0xff] %v2950
    %3351 = vst [vmem:[#allocation2 + $0x6c0] sm:$0xff] %v2951
    %3352 = vst [vmem:[#allocation2 + $0x6c8] sm:$0xff] %v2952
    %3353 = vst [vmem:[#allocation2 + $0x6d0] sm:$0xff] %v2953
    %3354 = vst [vmem:[#allocation2 + $0x6d8] sm:$0xff] %v2954
    %3355 = vst [vmem:[#allocation2 + $0x6e0] sm:$0xff] %v2955
    %3356 = vst [vmem:[#allocation2 + $0x6e8] sm:$0xff] %v2956
    %3357 = vst [vmem:[#allocation2 + $0x6f0] sm:$0xff] %v2957
    %3358 = vst [vmem:[#allocation2 + $0x6f8] sm:$0xff] %v2958
    %3359 = vst [vmem:[#allocation2 + $0x700] sm:$0xff] %v2959
    %3360 = vst [vmem:[#allocation2 + $0x708] sm:$0xff] %v2960
    %3361 = vst [vmem:[#allocation2 + $0x710] sm:$0xff] %v2961
    %3362 = vst [vmem:[#allocation2 + $0x718] sm:$0xff] %v2962
    %3363 = vst [vmem:[#allocation2 + $0x720] sm:$0xff] %v2963
    %3364 = vst [vmem:[#allocation2 + $0x728] sm:$0xff] %v2964
    %3365 = vst [vmem:[#allocation2 + $0x730] sm:$0xff] %v2965
    %3366 = vst [vmem:[#allocation2 + $0x738] sm:$0xff] %v2966
    %3367 = vst [vmem:[#allocation2 + $0x740] sm:$0xff] %v2967
    %3368 = vst [vmem:[#allocation2 + $0x748] sm:$0xff] %v2968
    %3369 = vst [vmem:[#allocation2 + $0x750] sm:$0xff] %v2969
    %3370 = vst [vmem:[#allocation2 + $0x758] sm:$0xff] %v2970
    %3371 = vst [vmem:[#allocation2 + $0x760] sm:$0xff] %v2971
    %3372 = vst [vmem:[#allocation2 + $0x768] sm:$0xff] %v2972
    %3373 = vst [vmem:[#allocation2 + $0x770] sm:$0xff] %v2973
    %3374 = vst [vmem:[#allocation2 + $0x778] sm:$0xff] %v2974
    %3375 = vst [vmem:[#allocation2 + $0x780] sm:$0xff] %v2975
    %3376 = vst [vmem:[#allocation2 + $0x788] sm:$0xff] %v2976
    %3377 = vst [vmem:[#allocation2 + $0x790] sm:$0xff] %v2977
    %3378 = vst [vmem:[#allocation2 + $0x798] sm:$0xff] %v2978
    %3379 = vst [vmem:[#allocation2 + $0x7a0] sm:$0xff] %v2979
    %3380 = vst [vmem:[#allocation2 + $0x7a8] sm:$0xff] %v2980
    %3381 = vst [vmem:[#allocation2 + $0x7b0] sm:$0xff] %v2981
    %3382 = vst [vmem:[#allocation2 + $0x7b8] sm:$0xff] %v2982
    %3383 = vst [vmem:[#allocation2 + $0x7c0] sm:$0xff] %v2983
    %3384 = vst [vmem:[#allocation2 + $0x7c8] sm:$0xff] %v2984
    %3385 = vst [vmem:[#allocation2 + $0x7d0] sm:$0xff] %v2985
    %3386 = vst [vmem:[#allocation2 + $0x7d8] sm:$0xff] %v2986
    %3387 = vst [vmem:[#allocation2 + $0x7e0] sm:$0xff] %v2987
    %3388 = vst [vmem:[#allocation2 + $0x7e8] sm:$0xff] %v2988
    %3389 = vst [vmem:[#allocation2 + $0x7f0] sm:$0xff] %v2989
    %3390 = vst [vmem:[#allocation2 + $0x7f8] sm:$0xff] %v2990
    %3391 = vst [vmem:[#allocation2 + $0x800] sm:$0xff] %v2991
    %3392 = vst [vmem:[#allocation2 + $0x808] sm:$0xff] %v2992
    %3393 = vst [vmem:[#allocation2 + $0x810] sm:$0xff] %v2993
    %3394 = vst [vmem:[#allocation2 + $0x818] sm:$0xff] %v2994
    %3395 = vst [vmem:[#allocation2 + $0x820] sm:$0xff] %v2995
    %3396 = vst [vmem:[#allocation2 + $0x828] sm:$0xff] %v2996
    %3397 = vst [vmem:[#allocation2 + $0x830] sm:$0xff] %v2997
    %3398 = vst [vmem:[#allocation2 + $0x838] sm:$0xff] %v2998
    %3399 = vst [vmem:[#allocation2 + $0x840] sm:$0xff] %v2999
    %3400 = vst [vmem:[#allocation2 + $0x848] sm:$0xff] %v3000
    %3401 = vst [vmem:[#allocation2 + $0x850] sm:$0xff] %v3001
    %3402 = vst [vmem:[#allocation2 + $0x858] sm:$0xff] %v3002
    %3403 = vst [vmem:[#allocation2 + $0x860] sm:$0xff] %v3003
    %3404 = vst [vmem:[#allocation2 + $0x868] sm:$0xff] %v3004
    %3405 = vst [vmem:[#allocation2 + $0x870] sm:$0xff] %v3005
    %3406 = vst [vmem:[#allocation2 + $0x878] sm:$0xff] %v3006
    %3407 = vst [vmem:[#allocation2 + $0x880] sm:$0xff] %v3007
    %3408 = vst [vmem:[#allocation2 + $0x888] sm:$0xff] %v3008
    %3409 = vst [vmem:[#allocation2 + $0x890] sm:$0xff] %v3009
    %3410 = vst [vmem:[#allocation2 + $0x898] sm:$0xff] %v3010
    %3411 = vst [vmem:[#allocation2 + $0x8a0] sm:$0xff] %v3011
    %3412 = vst [vmem:[#allocation2 + $0x8a8] sm:$0xff] %v3012
    %3413 = vst [vmem:[#allocation2 + $0x8b0] sm:$0xff] %v3013
    %3414 = vst [vmem:[#allocation2 + $0x8b8] sm:$0xff] %v3014
    %3415 = vst [vmem:[#allocation2 + $0x8c0] sm:$0xff] %v3015
    %3416 = vst [vmem:[#allocation2 + $0x8c8] sm:$0xff] %v3016
    %3417 = vst [vmem:[#allocation2 + $0x8d0] sm:$0xff] %v3017
    %3418 = vst [vmem:[#allocation2 + $0x8d8] sm:$0xff] %v3018
    %3419 = vst [vmem:[#allocation2 + $0x8e0] sm:$0xff] %v3019
    %3420 = vst [vmem:[#allocation2 + $0x8e8] sm:$0xff] %v3020
    %3421 = vst [vmem:[#allocation2 + $0x8f0] sm:$0xff] %v3021
    %3422 = vst [vmem:[#allocation2 + $0x8f8] sm:$0xff] %v3022
    %3423 = vst [vmem:[#allocation2 + $0x900] sm:$0xff] %v3023
    %3424 = vst [vmem:[#allocation2 + $0x908] sm:$0xff] %v3024
    %3425 = vst [vmem:[#allocation2 + $0x910] sm:$0xff] %v3025
    %3426 = vst [vmem:[#allocation2 + $0x918] sm:$0xff] %v3026
    %3427 = vst [vmem:[#allocation2 + $0x920] sm:$0xff] %v3027
    %3428 = vst [vmem:[#allocation2 + $0x928] sm:$0xff] %v3028
    %3429 = vst [vmem:[#allocation2 + $0x930] sm:$0xff] %v3029
    %3430 = vst [vmem:[#allocation2 + $0x938] sm:$0xff] %v3030
    %3431 = vst [vmem:[#allocation2 + $0x940] sm:$0xff] %v3031
    %3432 = vst [vmem:[#allocation2 + $0x948] sm:$0xff] %v3032
    %3433 = vst [vmem:[#allocation2 + $0x950] sm:$0xff] %v3033
    %3434 = vst [vmem:[#allocation2 + $0x958] sm:$0xff] %v3034
    %3435 = vst [vmem:[#allocation2 + $0x960] sm:$0xff] %v3035
    %3436 = vst [vmem:[#allocation2 + $0x968] sm:$0xff] %v3036
    %3437 = vst [vmem:[#allocation2 + $0x970] sm:$0xff] %v3037
    %3438 = vst [vmem:[#allocation2 + $0x978] sm:$0xff] %v3038
    %3439 = vst [vmem:[#allocation2 + $0x980] sm:$0xff] %v3039
    %3440 = vst [vmem:[#allocation2 + $0x988] sm:$0xff] %v3040
    %3441 = vst [vmem:[#allocation2 + $0x990] sm:$0xff] %v3041
    %3442 = vst [vmem:[#allocation2 + $0x998] sm:$0xff] %v3042
    %3443 = vst [vmem:[#allocation2 + $0x9a0] sm:$0xff] %v3043
    %3444 = vst [vmem:[#allocation2 + $0x9a8] sm:$0xff] %v3044
    %3445 = vst [vmem:[#allocation2 + $0x9b0] sm:$0xff] %v3045
    %3446 = vst [vmem:[#allocation2 + $0x9b8] sm:$0xff] %v3046
    %3447 = vst [vmem:[#allocation2 + $0x9c0] sm:$0xff] %v3047
    %3448 = vst [vmem:[#allocation2 + $0x9c8] sm:$0xff] %v3048
    %3449 = vst [vmem:[#allocation2 + $0x9d0] sm:$0xff] %v3049
    %3450 = vst [vmem:[#allocation2 + $0x9d8] sm:$0xff] %v3050
    %3451 = vst [vmem:[#allocation2 + $0x9e0] sm:$0xff] %v3051
    %3452 = vst [vmem:[#allocation2 + $0x9e8] sm:$0xff] %v3052
    %3453 = vst [vmem:[#allocation2 + $0x9f0] sm:$0xff] %v3053
    %3454 = vst [vmem:[#allocation2 + $0x9f8] sm:$0xff] %v3054
    %3455 = vst [vmem:[#allocation2 + $0xa00] sm:$0xff] %v3055
    %3456 = vst [vmem:[#allocation2 + $0xa08] sm:$0xff] %v3056
    %3457 = vst [vmem:[#allocation2 + $0xa10] sm:$0xff] %v3057
    %3458 = vst [vmem:[#allocation2 + $0xa18] sm:$0xff] %v3058
    %3459 = vst [vmem:[#allocation2 + $0xa20] sm:$0xff] %v3059
    %3460 = vst [vmem:[#allocation2 + $0xa28] sm:$0xff] %v3060
    %3461 = vst [vmem:[#allocation2 + $0xa30] sm:$0xff] %v3061
    %3462 = vst [vmem:[#allocation2 + $0xa38] sm:$0xff] %v3062
    %3463 = vst [vmem:[#allocation2 + $0xa40] sm:$0xff] %v3063
    %3464 = vst [vmem:[#allocation2 + $0xa48] sm:$0xff] %v3064
    %3465 = vst [vmem:[#allocation2 + $0xa50] sm:$0xff] %v3065
    %3466 = vst [vmem:[#allocation2 + $0xa58] sm:$0xff] %v3066
    %3467 = vst [vmem:[#allocation2 + $0xa60] sm:$0xff] %v3067
    %3468 = vst [vmem:[#allocation2 + $0xa68] sm:$0xff] %v3068
    %3469 = vst [vmem:[#allocation2 + $0xa70] sm:$0xff] %v3069
    %3470 = vst [vmem:[#allocation2 + $0xa78] sm:$0xff] %v3070
    %3471 = vst [vmem:[#allocation2 + $0xa80] sm:$0xff] %v3071
    %3472 = vst [vmem:[#allocation2 + $0xa88] sm:$0xff] %v3072
    %3473 = vst [vmem:[#allocation2 + $0xa90] sm:$0xff] %v3073
    %3474 = vst [vmem:[#allocation2 + $0xa98] sm:$0xff] %v3074
    %3475 = vst [vmem:[#allocation2 + $0xaa0] sm:$0xff] %v3075
    %3476 = vst [vmem:[#allocation2 + $0xaa8] sm:$0xff] %v3076
    %3477 = vst [vmem:[#allocation2 + $0xab0] sm:$0xff] %v3077
    %3478 = vst [vmem:[#allocation2 + $0xab8] sm:$0xff] %v3078
    %3479 = vst [vmem:[#allocation2 + $0xac0] sm:$0xff] %v3079
    %3480 = vst [vmem:[#allocation2 + $0xac8] sm:$0xff] %v3080
    %3481 = vst [vmem:[#allocation2 + $0xad0] sm:$0xff] %v3081
    %3482 = vst [vmem:[#allocation2 + $0xad8] sm:$0xff] %v3082
    %3483 = vst [vmem:[#allocation2 + $0xae0] sm:$0xff] %v3083
    %3484 = vst [vmem:[#allocation2 + $0xae8] sm:$0xff] %v3084
    %3485 = vst [vmem:[#allocation2 + $0xaf0] sm:$0xff] %v3085
    %3486 = vst [vmem:[#allocation2 + $0xaf8] sm:$0xff] %v3086
    %3487 = vst [vmem:[#allocation2 + $0xb00] sm:$0xff] %v3087
    %3488 = vst [vmem:[#allocation2 + $0xb08] sm:$0xff] %v3088
    %3489 = vst [vmem:[#allocation2 + $0xb10] sm:$0xff] %v3089
    %3490 = vst [vmem:[#allocation2 + $0xb18] sm:$0xff] %v3090
    %3491 = vst [vmem:[#allocation2 + $0xb20] sm:$0xff] %v3091
    %3492 = vst [vmem:[#allocation2 + $0xb28] sm:$0xff] %v3092
    %3493 = vst [vmem:[#allocation2 + $0xb30] sm:$0xff] %v3093
    %3494 = vst [vmem:[#allocation2 + $0xb38] sm:$0xff] %v3094
    %3495 = vst [vmem:[#allocation2 + $0xb40] sm:$0xff] %v3095
    %3496 = vst [vmem:[#allocation2 + $0xb48] sm:$0xff] %v3096
    %3497 = vst [vmem:[#allocation2 + $0xb50] sm:$0xff] %v3097
    %3498 = vst [vmem:[#allocation2 + $0xb58] sm:$0xff] %v3098
    %3499 = vst [vmem:[#allocation2 + $0xb60] sm:$0xff] %v3099
    %3500 = vst [vmem:[#allocation2 + $0xb68] sm:$0xff] %v3100
    %3501 = vst [vmem:[#allocation2 + $0xb70] sm:$0xff] %v3101
    %3502 = vst [vmem:[#allocation2 + $0xb78] sm:$0xff] %v3102
    %3503 = vst [vmem:[#allocation2 + $0xb80] sm:$0xff] %v3103
    %3504 = vst [vmem:[#allocation2 + $0xb88] sm:$0xff] %v3104
    %3505 = vst [vmem:[#allocation2 + $0xb90] sm:$0xff] %v3105
    %3506 = vst [vmem:[#allocation2 + $0xb98] sm:$0xff] %v3106
    %3507 = vst [vmem:[#allocation2 + $0xba0] sm:$0xff] %v3107
    %3508 = vst [vmem:[#allocation2 + $0xba8] sm:$0xff] %v3108
    %3509 = vst [vmem:[#allocation2 + $0xbb0] sm:$0xff] %v3109
    %3510 = vst [vmem:[#allocation2 + $0xbb8] sm:$0xff] %v3110
    %3511 = vst [vmem:[#allocation2 + $0xbc0] sm:$0xff] %v3111
    %3512 = vst [vmem:[#allocation2 + $0xbc8] sm:$0xff] %v3112
    %3513 = vst [vmem:[#allocation2 + $0xbd0] sm:$0xff] %v3113
    %3514 = vst [vmem:[#allocation2 + $0xbd8] sm:$0xff] %v3114
    %3515 = vst [vmem:[#allocation2 + $0xbe0] sm:$0xff] %v3115
    %3516 = vst [vmem:[#allocation2 + $0xbe8] sm:$0xff] %v3116
    %3517 = vst [vmem:[#allocation2 + $0xbf0] sm:$0xff] %v3117
    %3518 = vst [vmem:[#allocation2 + $0xbf8] sm:$0xff] %v3118
    %3519 = vst [vmem:[#allocation2 + $0xc00] sm:$0xf] %v3119
    %3520 = vst [vmem:[#allocation2 + $0xc08] sm:$0xf] %v3120
    %3521 = vst [vmem:[#allocation2 + $0xc10] sm:$0xf] %v3121
    %3522 = vst [vmem:[#allocation2 + $0xc18] sm:$0xf] %v3122
    %3523 = vst [vmem:[#allocation2 + $0xc20] sm:$0xf] %v3123
    %3524 = vst [vmem:[#allocation2 + $0xc28] sm:$0xf] %v3124
    %3525 = vst [vmem:[#allocation2 + $0xc30] sm:$0xf] %v3125
    %3526 = vst [vmem:[#allocation2 + $0xc38] sm:$0xf] %v3126
    %3527 = vst [vmem:[#allocation2 + $0xc40] sm:$0xf] %v3127
    %3528 = vst [vmem:[#allocation2 + $0xc48] sm:$0xf] %v3128
    %3529 = vst [vmem:[#allocation2 + $0xc50] sm:$0xf] %v3129
    %3530 = vst [vmem:[#allocation2 + $0xc58] sm:$0xf] %v3130
    %3531 = vst [vmem:[#allocation2 + $0xc60] sm:$0xf] %v3131
    %3532 = vst [vmem:[#allocation2 + $0xc68] sm:$0xf] %v3132
    %3533 = vst [vmem:[#allocation2 + $0xc70] sm:$0xf] %v3133
    %3534 = vst [vmem:[#allocation2 + $0xc78] sm:$0xf] %v3134
    // Predicated region
    $region22: #{tpu_custom_call.1} parent=1 // pred_check
      %p3535 = pneg %p29
    $region23: #{tpu_custom_call.1} parent=1 // pred_check_branch
      %3537 = sbr.rel (%p3535) target = $region25
    $region24: #{tpu_custom_call.1} parent=1 // pred_region
      %v3538 = vld [vmem:[#allocation2] sm:$0xff]
      %v3539 = vld [vmem:[#allocation2 + $0x8] sm:$0xff]
      %v3540 = vld [vmem:[#allocation2 + $0x10] sm:$0xff]
      %v3541 = vld [vmem:[#allocation2 + $0x18] sm:$0xff]
      %v3542 = vld [vmem:[#allocation2 + $0x20] sm:$0xff]
      %v3543 = vld [vmem:[#allocation2 + $0x28] sm:$0xff]
      %v3544 = vld [vmem:[#allocation2 + $0x30] sm:$0xff]
      %v3545 = vld [vmem:[#allocation2 + $0x38] sm:$0xff]
      %v3546 = vld [vmem:[#allocation2 + $0x40] sm:$0xff]
      %v3547 = vld [vmem:[#allocation2 + $0x48] sm:$0xff]
      %v3548 = vld [vmem:[#allocation2 + $0x50] sm:$0xff]
      %v3549 = vld [vmem:[#allocation2 + $0x58] sm:$0xff]
      %v3550 = vld [vmem:[#allocation2 + $0x60] sm:$0xff]
      %v3551 = vld [vmem:[#allocation2 + $0x68] sm:$0xff]
      %v3552 = vld [vmem:[#allocation2 + $0x70] sm:$0xff]
      %v3553 = vld [vmem:[#allocation2 + $0x78] sm:$0xff]
      %v3554 = vld [vmem:[#allocation2 + $0x80] sm:$0xff]
      %v3555 = vld [vmem:[#allocation2 + $0x88] sm:$0xff]
      %v3556 = vld [vmem:[#allocation2 + $0x90] sm:$0xff]
      %v3557 = vld [vmem:[#allocation2 + $0x98] sm:$0xff]
      %v3558 = vld [vmem:[#allocation2 + $0xa0] sm:$0xff]
      %v3559 = vld [vmem:[#allocation2 + $0xa8] sm:$0xff]
      %v3560 = vld [vmem:[#allocation2 + $0xb0] sm:$0xff]
      %v3561 = vld [vmem:[#allocation2 + $0xb8] sm:$0xff]
      %v3562 = vld [vmem:[#allocation2 + $0xc0] sm:$0xff]
      %v3563 = vld [vmem:[#allocation2 + $0xc8] sm:$0xff]
      %v3564 = vld [vmem:[#allocation2 + $0xd0] sm:$0xff]
      %v3565 = vld [vmem:[#allocation2 + $0xd8] sm:$0xff]
      %v3566 = vld [vmem:[#allocation2 + $0xe0] sm:$0xff]
      %v3567 = vld [vmem:[#allocation2 + $0xe8] sm:$0xff]
      %v3568 = vld [vmem:[#allocation2 + $0xf0] sm:$0xff]
      %v3569 = vld [vmem:[#allocation2 + $0xf8] sm:$0xff]
      %v3570 = vld [vmem:[#allocation2 + $0x100] sm:$0xff]
      %v3571 = vld [vmem:[#allocation2 + $0x108] sm:$0xff]
      %v3572 = vld [vmem:[#allocation2 + $0x110] sm:$0xff]
      %v3573 = vld [vmem:[#allocation2 + $0x118] sm:$0xff]
      %v3574 = vld [vmem:[#allocation2 + $0x120] sm:$0xff]
      %v3575 = vld [vmem:[#allocation2 + $0x128] sm:$0xff]
      %v3576 = vld [vmem:[#allocation2 + $0x130] sm:$0xff]
      %v3577 = vld [vmem:[#allocation2 + $0x138] sm:$0xff]
      %v3578 = vld [vmem:[#allocation2 + $0x140] sm:$0xff]
      %v3579 = vld [vmem:[#allocation2 + $0x148] sm:$0xff]
      %v3580 = vld [vmem:[#allocation2 + $0x150] sm:$0xff]
      %v3581 = vld [vmem:[#allocation2 + $0x158] sm:$0xff]
      %v3582 = vld [vmem:[#allocation2 + $0x160] sm:$0xff]
      %v3583 = vld [vmem:[#allocation2 + $0x168] sm:$0xff]
      %v3584 = vld [vmem:[#allocation2 + $0x170] sm:$0xff]
      %v3585 = vld [vmem:[#allocation2 + $0x178] sm:$0xff]
      %v3586 = vld [vmem:[#allocation2 + $0x180] sm:$0xff]
      %v3587 = vld [vmem:[#allocation2 + $0x188] sm:$0xff]
      %v3588 = vld [vmem:[#allocation2 + $0x190] sm:$0xff]
      %v3589 = vld [vmem:[#allocation2 + $0x198] sm:$0xff]
      %v3590 = vld [vmem:[#allocation2 + $0x1a0] sm:$0xff]
      %v3591 = vld [vmem:[#allocation2 + $0x1a8] sm:$0xff]
      %v3592 = vld [vmem:[#allocation2 + $0x1b0] sm:$0xff]
      %v3593 = vld [vmem:[#allocation2 + $0x1b8] sm:$0xff]
      %v3594 = vld [vmem:[#allocation2 + $0x1c0] sm:$0xff]
      %v3595 = vld [vmem:[#allocation2 + $0x1c8] sm:$0xff]
      %v3596 = vld [vmem:[#allocation2 + $0x1d0] sm:$0xff]
      %v3597 = vld [vmem:[#allocation2 + $0x1d8] sm:$0xff]
      %v3598 = vld [vmem:[#allocation2 + $0x1e0] sm:$0xff]
      %v3599 = vld [vmem:[#allocation2 + $0x1e8] sm:$0xff]
      %v3600 = vld [vmem:[#allocation2 + $0x1f0] sm:$0xff]
      %v3601 = vld [vmem:[#allocation2 + $0x1f8] sm:$0xff]
      %v3602 = vld [vmem:[#allocation2 + $0x200] sm:$0xff]
      %v3603 = vld [vmem:[#allocation2 + $0x208] sm:$0xff]
      %v3604 = vld [vmem:[#allocation2 + $0x210] sm:$0xff]
      %v3605 = vld [vmem:[#allocation2 + $0x218] sm:$0xff]
      %v3606 = vld [vmem:[#allocation2 + $0x220] sm:$0xff]
      %v3607 = vld [vmem:[#allocation2 + $0x228] sm:$0xff]
      %v3608 = vld [vmem:[#allocation2 + $0x230] sm:$0xff]
      %v3609 = vld [vmem:[#allocation2 + $0x238] sm:$0xff]
      %v3610 = vld [vmem:[#allocation2 + $0x240] sm:$0xff]
      %v3611 = vld [vmem:[#allocation2 + $0x248] sm:$0xff]
      %v3612 = vld [vmem:[#allocation2 + $0x250] sm:$0xff]
      %v3613 = vld [vmem:[#allocation2 + $0x258] sm:$0xff]
      %v3614 = vld [vmem:[#allocation2 + $0x260] sm:$0xff]
      %v3615 = vld [vmem:[#allocation2 + $0x268] sm:$0xff]
      %v3616 = vld [vmem:[#allocation2 + $0x270] sm:$0xff]
      %v3617 = vld [vmem:[#allocation2 + $0x278] sm:$0xff]
      %v3618 = vld [vmem:[#allocation2 + $0x280] sm:$0xff]
      %v3619 = vld [vmem:[#allocation2 + $0x288] sm:$0xff]
      %v3620 = vld [vmem:[#allocation2 + $0x290] sm:$0xff]
      %v3621 = vld [vmem:[#allocation2 + $0x298] sm:$0xff]
      %v3622 = vld [vmem:[#allocation2 + $0x2a0] sm:$0xff]
      %v3623 = vld [vmem:[#allocation2 + $0x2a8] sm:$0xff]
      %v3624 = vld [vmem:[#allocation2 + $0x2b0] sm:$0xff]
      %v3625 = vld [vmem:[#allocation2 + $0x2b8] sm:$0xff]
      %v3626 = vld [vmem:[#allocation2 + $0x2c0] sm:$0xff]
      %v3627 = vld [vmem:[#allocation2 + $0x2c8] sm:$0xff]
      %v3628 = vld [vmem:[#allocation2 + $0x2d0] sm:$0xff]
      %v3629 = vld [vmem:[#allocation2 + $0x2d8] sm:$0xff]
      %v3630 = vld [vmem:[#allocation2 + $0x2e0] sm:$0xff]
      %v3631 = vld [vmem:[#allocation2 + $0x2e8] sm:$0xff]
      %v3632 = vld [vmem:[#allocation2 + $0x2f0] sm:$0xff]
      %v3633 = vld [vmem:[#allocation2 + $0x2f8] sm:$0xff]
      %v3634 = vld [vmem:[#allocation2 + $0x300] sm:$0xff]
      %v3635 = vld [vmem:[#allocation2 + $0x308] sm:$0xff]
      %v3636 = vld [vmem:[#allocation2 + $0x310] sm:$0xff]
      %v3637 = vld [vmem:[#allocation2 + $0x318] sm:$0xff]
      %v3638 = vld [vmem:[#allocation2 + $0x320] sm:$0xff]
      %v3639 = vld [vmem:[#allocation2 + $0x328] sm:$0xff]
      %v3640 = vld [vmem:[#allocation2 + $0x330] sm:$0xff]
      %v3641 = vld [vmem:[#allocation2 + $0x338] sm:$0xff]
      %v3642 = vld [vmem:[#allocation2 + $0x340] sm:$0xff]
      %v3643 = vld [vmem:[#allocation2 + $0x348] sm:$0xff]
      %v3644 = vld [vmem:[#allocation2 + $0x350] sm:$0xff]
      %v3645 = vld [vmem:[#allocation2 + $0x358] sm:$0xff]
      %v3646 = vld [vmem:[#allocation2 + $0x360] sm:$0xff]
      %v3647 = vld [vmem:[#allocation2 + $0x368] sm:$0xff]
      %v3648 = vld [vmem:[#allocation2 + $0x370] sm:$0xff]
      %v3649 = vld [vmem:[#allocation2 + $0x378] sm:$0xff]
      %v3650 = vld [vmem:[#allocation2 + $0x380] sm:$0xff]
      %v3651 = vld [vmem:[#allocation2 + $0x388] sm:$0xff]
      %v3652 = vld [vmem:[#allocation2 + $0x390] sm:$0xff]
      %v3653 = vld [vmem:[#allocation2 + $0x398] sm:$0xff]
      %v3654 = vld [vmem:[#allocation2 + $0x3a0] sm:$0xff]
      %v3655 = vld [vmem:[#allocation2 + $0x3a8] sm:$0xff]
      %v3656 = vld [vmem:[#allocation2 + $0x3b0] sm:$0xff]
      %v3657 = vld [vmem:[#allocation2 + $0x3b8] sm:$0xff]
      %v3658 = vld [vmem:[#allocation2 + $0x3c0] sm:$0xff]
      %v3659 = vld [vmem:[#allocation2 + $0x3c8] sm:$0xff]
      %v3660 = vld [vmem:[#allocation2 + $0x3d0] sm:$0xff]
      %v3661 = vld [vmem:[#allocation2 + $0x3d8] sm:$0xff]
      %v3662 = vld [vmem:[#allocation2 + $0x3e0] sm:$0xff]
      %v3663 = vld [vmem:[#allocation2 + $0x3e8] sm:$0xff]
      %v3664 = vld [vmem:[#allocation2 + $0x3f0] sm:$0xff]
      %v3665 = vld [vmem:[#allocation2 + $0x3f8] sm:$0xff]
      %v3666 = vld [vmem:[#allocation2 + $0x400] sm:$0xff]
      %v3667 = vld [vmem:[#allocation2 + $0x408] sm:$0xff]
      %v3668 = vld [vmem:[#allocation2 + $0x410] sm:$0xff]
      %v3669 = vld [vmem:[#allocation2 + $0x418] sm:$0xff]
      %v3670 = vld [vmem:[#allocation2 + $0x420] sm:$0xff]
      %v3671 = vld [vmem:[#allocation2 + $0x428] sm:$0xff]
      %v3672 = vld [vmem:[#allocation2 + $0x430] sm:$0xff]
      %v3673 = vld [vmem:[#allocation2 + $0x438] sm:$0xff]
      %v3674 = vld [vmem:[#allocation2 + $0x440] sm:$0xff]
      %v3675 = vld [vmem:[#allocation2 + $0x448] sm:$0xff]
      %v3676 = vld [vmem:[#allocation2 + $0x450] sm:$0xff]
      %v3677 = vld [vmem:[#allocation2 + $0x458] sm:$0xff]
      %v3678 = vld [vmem:[#allocation2 + $0x460] sm:$0xff]
      %v3679 = vld [vmem:[#allocation2 + $0x468] sm:$0xff]
      %v3680 = vld [vmem:[#allocation2 + $0x470] sm:$0xff]
      %v3681 = vld [vmem:[#allocation2 + $0x478] sm:$0xff]
      %v3682 = vld [vmem:[#allocation2 + $0x480] sm:$0xff]
      %v3683 = vld [vmem:[#allocation2 + $0x488] sm:$0xff]
      %v3684 = vld [vmem:[#allocation2 + $0x490] sm:$0xff]
      %v3685 = vld [vmem:[#allocation2 + $0x498] sm:$0xff]
      %v3686 = vld [vmem:[#allocation2 + $0x4a0] sm:$0xff]
      %v3687 = vld [vmem:[#allocation2 + $0x4a8] sm:$0xff]
      %v3688 = vld [vmem:[#allocation2 + $0x4b0] sm:$0xff]
      %v3689 = vld [vmem:[#allocation2 + $0x4b8] sm:$0xff]
      %v3690 = vld [vmem:[#allocation2 + $0x4c0] sm:$0xff]
      %v3691 = vld [vmem:[#allocation2 + $0x4c8] sm:$0xff]
      %v3692 = vld [vmem:[#allocation2 + $0x4d0] sm:$0xff]
      %v3693 = vld [vmem:[#allocation2 + $0x4d8] sm:$0xff]
      %v3694 = vld [vmem:[#allocation2 + $0x4e0] sm:$0xff]
      %v3695 = vld [vmem:[#allocation2 + $0x4e8] sm:$0xff]
      %v3696 = vld [vmem:[#allocation2 + $0x4f0] sm:$0xff]
      %v3697 = vld [vmem:[#allocation2 + $0x4f8] sm:$0xff]
      %v3698 = vld [vmem:[#allocation2 + $0x500] sm:$0xff]
      %v3699 = vld [vmem:[#allocation2 + $0x508] sm:$0xff]
      %v3700 = vld [vmem:[#allocation2 + $0x510] sm:$0xff]
      %v3701 = vld [vmem:[#allocation2 + $0x518] sm:$0xff]
      %v3702 = vld [vmem:[#allocation2 + $0x520] sm:$0xff]
      %v3703 = vld [vmem:[#allocation2 + $0x528] sm:$0xff]
      %v3704 = vld [vmem:[#allocation2 + $0x530] sm:$0xff]
      %v3705 = vld [vmem:[#allocation2 + $0x538] sm:$0xff]
      %v3706 = vld [vmem:[#allocation2 + $0x540] sm:$0xff]
      %v3707 = vld [vmem:[#allocation2 + $0x548] sm:$0xff]
      %v3708 = vld [vmem:[#allocation2 + $0x550] sm:$0xff]
      %v3709 = vld [vmem:[#allocation2 + $0x558] sm:$0xff]
      %v3710 = vld [vmem:[#allocation2 + $0x560] sm:$0xff]
      %v3711 = vld [vmem:[#allocation2 + $0x568] sm:$0xff]
      %v3712 = vld [vmem:[#allocation2 + $0x570] sm:$0xff]
      %v3713 = vld [vmem:[#allocation2 + $0x578] sm:$0xff]
      %v3714 = vld [vmem:[#allocation2 + $0x580] sm:$0xff]
      %v3715 = vld [vmem:[#allocation2 + $0x588] sm:$0xff]
      %v3716 = vld [vmem:[#allocation2 + $0x590] sm:$0xff]
      %v3717 = vld [vmem:[#allocation2 + $0x598] sm:$0xff]
      %v3718 = vld [vmem:[#allocation2 + $0x5a0] sm:$0xff]
      %v3719 = vld [vmem:[#allocation2 + $0x5a8] sm:$0xff]
      %v3720 = vld [vmem:[#allocation2 + $0x5b0] sm:$0xff]
      %v3721 = vld [vmem:[#allocation2 + $0x5b8] sm:$0xff]
      %v3722 = vld [vmem:[#allocation2 + $0x5c0] sm:$0xff]
      %v3723 = vld [vmem:[#allocation2 + $0x5c8] sm:$0xff]
      %v3724 = vld [vmem:[#allocation2 + $0x5d0] sm:$0xff]
      %v3725 = vld [vmem:[#allocation2 + $0x5d8] sm:$0xff]
      %v3726 = vld [vmem:[#allocation2 + $0x5e0] sm:$0xff]
      %v3727 = vld [vmem:[#allocation2 + $0x5e8] sm:$0xff]
      %v3728 = vld [vmem:[#allocation2 + $0x5f0] sm:$0xff]
      %v3729 = vld [vmem:[#allocation2 + $0x5f8] sm:$0xff]
      %v3730 = vld [vmem:[#allocation2 + $0x600] sm:$0xff]
      %v3731 = vld [vmem:[#allocation2 + $0x608] sm:$0xff]
      %v3732 = vld [vmem:[#allocation2 + $0x610] sm:$0xff]
      %v3733 = vld [vmem:[#allocation2 + $0x618] sm:$0xff]
      %v3734 = vld [vmem:[#allocation2 + $0x620] sm:$0xff]
      %v3735 = vld [vmem:[#allocation2 + $0x628] sm:$0xff]
      %v3736 = vld [vmem:[#allocation2 + $0x630] sm:$0xff]
      %v3737 = vld [vmem:[#allocation2 + $0x638] sm:$0xff]
      %v3738 = vld [vmem:[#allocation2 + $0x640] sm:$0xff]
      %v3739 = vld [vmem:[#allocation2 + $0x648] sm:$0xff]
      %v3740 = vld [vmem:[#allocation2 + $0x650] sm:$0xff]
      %v3741 = vld [vmem:[#allocation2 + $0x658] sm:$0xff]
      %v3742 = vld [vmem:[#allocation2 + $0x660] sm:$0xff]
      %v3743 = vld [vmem:[#allocation2 + $0x668] sm:$0xff]
      %v3744 = vld [vmem:[#allocation2 + $0x670] sm:$0xff]
      %v3745 = vld [vmem:[#allocation2 + $0x678] sm:$0xff]
      %v3746 = vld [vmem:[#allocation2 + $0x680] sm:$0xff]
      %v3747 = vld [vmem:[#allocation2 + $0x688] sm:$0xff]
      %v3748 = vld [vmem:[#allocation2 + $0x690] sm:$0xff]
      %v3749 = vld [vmem:[#allocation2 + $0x698] sm:$0xff]
      %v3750 = vld [vmem:[#allocation2 + $0x6a0] sm:$0xff]
      %v3751 = vld [vmem:[#allocation2 + $0x6a8] sm:$0xff]
      %v3752 = vld [vmem:[#allocation2 + $0x6b0] sm:$0xff]
      %v3753 = vld [vmem:[#allocation2 + $0x6b8] sm:$0xff]
      %v3754 = vld [vmem:[#allocation2 + $0x6c0] sm:$0xff]
      %v3755 = vld [vmem:[#allocation2 + $0x6c8] sm:$0xff]
      %v3756 = vld [vmem:[#allocation2 + $0x6d0] sm:$0xff]
      %v3757 = vld [vmem:[#allocation2 + $0x6d8] sm:$0xff]
      %v3758 = vld [vmem:[#allocation2 + $0x6e0] sm:$0xff]
      %v3759 = vld [vmem:[#allocation2 + $0x6e8] sm:$0xff]
      %v3760 = vld [vmem:[#allocation2 + $0x6f0] sm:$0xff]
      %v3761 = vld [vmem:[#allocation2 + $0x6f8] sm:$0xff]
      %v3762 = vld [vmem:[#allocation2 + $0x700] sm:$0xff]
      %v3763 = vld [vmem:[#allocation2 + $0x708] sm:$0xff]
      %v3764 = vld [vmem:[#allocation2 + $0x710] sm:$0xff]
      %v3765 = vld [vmem:[#allocation2 + $0x718] sm:$0xff]
      %v3766 = vld [vmem:[#allocation2 + $0x720] sm:$0xff]
      %v3767 = vld [vmem:[#allocation2 + $0x728] sm:$0xff]
      %v3768 = vld [vmem:[#allocation2 + $0x730] sm:$0xff]
      %v3769 = vld [vmem:[#allocation2 + $0x738] sm:$0xff]
      %v3770 = vld [vmem:[#allocation2 + $0x740] sm:$0xff]
      %v3771 = vld [vmem:[#allocation2 + $0x748] sm:$0xff]
      %v3772 = vld [vmem:[#allocation2 + $0x750] sm:$0xff]
      %v3773 = vld [vmem:[#allocation2 + $0x758] sm:$0xff]
      %v3774 = vld [vmem:[#allocation2 + $0x760] sm:$0xff]
      %v3775 = vld [vmem:[#allocation2 + $0x768] sm:$0xff]
      %v3776 = vld [vmem:[#allocation2 + $0x770] sm:$0xff]
      %v3777 = vld [vmem:[#allocation2 + $0x778] sm:$0xff]
      %v3778 = vld [vmem:[#allocation2 + $0x780] sm:$0xff]
      %v3779 = vld [vmem:[#allocation2 + $0x788] sm:$0xff]
      %v3780 = vld [vmem:[#allocation2 + $0x790] sm:$0xff]
      %v3781 = vld [vmem:[#allocation2 + $0x798] sm:$0xff]
      %v3782 = vld [vmem:[#allocation2 + $0x7a0] sm:$0xff]
      %v3783 = vld [vmem:[#allocation2 + $0x7a8] sm:$0xff]
      %v3784 = vld [vmem:[#allocation2 + $0x7b0] sm:$0xff]
      %v3785 = vld [vmem:[#allocation2 + $0x7b8] sm:$0xff]
      %v3786 = vld [vmem:[#allocation2 + $0x7c0] sm:$0xff]
      %v3787 = vld [vmem:[#allocation2 + $0x7c8] sm:$0xff]
      %v3788 = vld [vmem:[#allocation2 + $0x7d0] sm:$0xff]
      %v3789 = vld [vmem:[#allocation2 + $0x7d8] sm:$0xff]
      %v3790 = vld [vmem:[#allocation2 + $0x7e0] sm:$0xff]
      %v3791 = vld [vmem:[#allocation2 + $0x7e8] sm:$0xff]
      %v3792 = vld [vmem:[#allocation2 + $0x7f0] sm:$0xff]
      %v3793 = vld [vmem:[#allocation2 + $0x7f8] sm:$0xff]
      %v3794 = vld [vmem:[#allocation2 + $0x800] sm:$0xff]
      %v3795 = vld [vmem:[#allocation2 + $0x808] sm:$0xff]
      %v3796 = vld [vmem:[#allocation2 + $0x810] sm:$0xff]
      %v3797 = vld [vmem:[#allocation2 + $0x818] sm:$0xff]
      %v3798 = vld [vmem:[#allocation2 + $0x820] sm:$0xff]
      %v3799 = vld [vmem:[#allocation2 + $0x828] sm:$0xff]
      %v3800 = vld [vmem:[#allocation2 + $0x830] sm:$0xff]
      %v3801 = vld [vmem:[#allocation2 + $0x838] sm:$0xff]
      %v3802 = vld [vmem:[#allocation2 + $0x840] sm:$0xff]
      %v3803 = vld [vmem:[#allocation2 + $0x848] sm:$0xff]
      %v3804 = vld [vmem:[#allocation2 + $0x850] sm:$0xff]
      %v3805 = vld [vmem:[#allocation2 + $0x858] sm:$0xff]
      %v3806 = vld [vmem:[#allocation2 + $0x860] sm:$0xff]
      %v3807 = vld [vmem:[#allocation2 + $0x868] sm:$0xff]
      %v3808 = vld [vmem:[#allocation2 + $0x870] sm:$0xff]
      %v3809 = vld [vmem:[#allocation2 + $0x878] sm:$0xff]
      %v3810 = vld [vmem:[#allocation2 + $0x880] sm:$0xff]
      %v3811 = vld [vmem:[#allocation2 + $0x888] sm:$0xff]
      %v3812 = vld [vmem:[#allocation2 + $0x890] sm:$0xff]
      %v3813 = vld [vmem:[#allocation2 + $0x898] sm:$0xff]
      %v3814 = vld [vmem:[#allocation2 + $0x8a0] sm:$0xff]
      %v3815 = vld [vmem:[#allocation2 + $0x8a8] sm:$0xff]
      %v3816 = vld [vmem:[#allocation2 + $0x8b0] sm:$0xff]
      %v3817 = vld [vmem:[#allocation2 + $0x8b8] sm:$0xff]
      %v3818 = vld [vmem:[#allocation2 + $0x8c0] sm:$0xff]
      %v3819 = vld [vmem:[#allocation2 + $0x8c8] sm:$0xff]
      %v3820 = vld [vmem:[#allocation2 + $0x8d0] sm:$0xff]
      %v3821 = vld [vmem:[#allocation2 + $0x8d8] sm:$0xff]
      %v3822 = vld [vmem:[#allocation2 + $0x8e0] sm:$0xff]
      %v3823 = vld [vmem:[#allocation2 + $0x8e8] sm:$0xff]
      %v3824 = vld [vmem:[#allocation2 + $0x8f0] sm:$0xff]
      %v3825 = vld [vmem:[#allocation2 + $0x8f8] sm:$0xff]
      %v3826 = vld [vmem:[#allocation2 + $0x900] sm:$0xff]
      %v3827 = vld [vmem:[#allocation2 + $0x908] sm:$0xff]
      %v3828 = vld [vmem:[#allocation2 + $0x910] sm:$0xff]
      %v3829 = vld [vmem:[#allocation2 + $0x918] sm:$0xff]
      %v3830 = vld [vmem:[#allocation2 + $0x920] sm:$0xff]
      %v3831 = vld [vmem:[#allocation2 + $0x928] sm:$0xff]
      %v3832 = vld [vmem:[#allocation2 + $0x930] sm:$0xff]
      %v3833 = vld [vmem:[#allocation2 + $0x938] sm:$0xff]
      %v3834 = vld [vmem:[#allocation2 + $0x940] sm:$0xff]
      %v3835 = vld [vmem:[#allocation2 + $0x948] sm:$0xff]
      %v3836 = vld [vmem:[#allocation2 + $0x950] sm:$0xff]
      %v3837 = vld [vmem:[#allocation2 + $0x958] sm:$0xff]
      %v3838 = vld [vmem:[#allocation2 + $0x960] sm:$0xff]
      %v3839 = vld [vmem:[#allocation2 + $0x968] sm:$0xff]
      %v3840 = vld [vmem:[#allocation2 + $0x970] sm:$0xff]
      %v3841 = vld [vmem:[#allocation2 + $0x978] sm:$0xff]
      %v3842 = vld [vmem:[#allocation2 + $0x980] sm:$0xff]
      %v3843 = vld [vmem:[#allocation2 + $0x988] sm:$0xff]
      %v3844 = vld [vmem:[#allocation2 + $0x990] sm:$0xff]
      %v3845 = vld [vmem:[#allocation2 + $0x998] sm:$0xff]
      %v3846 = vld [vmem:[#allocation2 + $0x9a0] sm:$0xff]
      %v3847 = vld [vmem:[#allocation2 + $0x9a8] sm:$0xff]
      %v3848 = vld [vmem:[#allocation2 + $0x9b0] sm:$0xff]
      %v3849 = vld [vmem:[#allocation2 + $0x9b8] sm:$0xff]
      %v3850 = vld [vmem:[#allocation2 + $0x9c0] sm:$0xff]
      %v3851 = vld [vmem:[#allocation2 + $0x9c8] sm:$0xff]
      %v3852 = vld [vmem:[#allocation2 + $0x9d0] sm:$0xff]
      %v3853 = vld [vmem:[#allocation2 + $0x9d8] sm:$0xff]
      %v3854 = vld [vmem:[#allocation2 + $0x9e0] sm:$0xff]
      %v3855 = vld [vmem:[#allocation2 + $0x9e8] sm:$0xff]
      %v3856 = vld [vmem:[#allocation2 + $0x9f0] sm:$0xff]
      %v3857 = vld [vmem:[#allocation2 + $0x9f8] sm:$0xff]
      %v3858 = vld [vmem:[#allocation2 + $0xa00] sm:$0xff]
      %v3859 = vld [vmem:[#allocation2 + $0xa08] sm:$0xff]
      %v3860 = vld [vmem:[#allocation2 + $0xa10] sm:$0xff]
      %v3861 = vld [vmem:[#allocation2 + $0xa18] sm:$0xff]
      %v3862 = vld [vmem:[#allocation2 + $0xa20] sm:$0xff]
      %v3863 = vld [vmem:[#allocation2 + $0xa28] sm:$0xff]
      %v3864 = vld [vmem:[#allocation2 + $0xa30] sm:$0xff]
      %v3865 = vld [vmem:[#allocation2 + $0xa38] sm:$0xff]
      %v3866 = vld [vmem:[#allocation2 + $0xa40] sm:$0xff]
      %v3867 = vld [vmem:[#allocation2 + $0xa48] sm:$0xff]
      %v3868 = vld [vmem:[#allocation2 + $0xa50] sm:$0xff]
      %v3869 = vld [vmem:[#allocation2 + $0xa58] sm:$0xff]
      %v3870 = vld [vmem:[#allocation2 + $0xa60] sm:$0xff]
      %v3871 = vld [vmem:[#allocation2 + $0xa68] sm:$0xff]
      %v3872 = vld [vmem:[#allocation2 + $0xa70] sm:$0xff]
      %v3873 = vld [vmem:[#allocation2 + $0xa78] sm:$0xff]
      %v3874 = vld [vmem:[#allocation2 + $0xa80] sm:$0xff]
      %v3875 = vld [vmem:[#allocation2 + $0xa88] sm:$0xff]
      %v3876 = vld [vmem:[#allocation2 + $0xa90] sm:$0xff]
      %v3877 = vld [vmem:[#allocation2 + $0xa98] sm:$0xff]
      %v3878 = vld [vmem:[#allocation2 + $0xaa0] sm:$0xff]
      %v3879 = vld [vmem:[#allocation2 + $0xaa8] sm:$0xff]
      %v3880 = vld [vmem:[#allocation2 + $0xab0] sm:$0xff]
      %v3881 = vld [vmem:[#allocation2 + $0xab8] sm:$0xff]
      %v3882 = vld [vmem:[#allocation2 + $0xac0] sm:$0xff]
      %v3883 = vld [vmem:[#allocation2 + $0xac8] sm:$0xff]
      %v3884 = vld [vmem:[#allocation2 + $0xad0] sm:$0xff]
      %v3885 = vld [vmem:[#allocation2 + $0xad8] sm:$0xff]
      %v3886 = vld [vmem:[#allocation2 + $0xae0] sm:$0xff]
      %v3887 = vld [vmem:[#allocation2 + $0xae8] sm:$0xff]
      %v3888 = vld [vmem:[#allocation2 + $0xaf0] sm:$0xff]
      %v3889 = vld [vmem:[#allocation2 + $0xaf8] sm:$0xff]
      %v3890 = vld [vmem:[#allocation2 + $0xb00] sm:$0xff]
      %v3891 = vld [vmem:[#allocation2 + $0xb08] sm:$0xff]
      %v3892 = vld [vmem:[#allocation2 + $0xb10] sm:$0xff]
      %v3893 = vld [vmem:[#allocation2 + $0xb18] sm:$0xff]
      %v3894 = vld [vmem:[#allocation2 + $0xb20] sm:$0xff]
      %v3895 = vld [vmem:[#allocation2 + $0xb28] sm:$0xff]
      %v3896 = vld [vmem:[#allocation2 + $0xb30] sm:$0xff]
      %v3897 = vld [vmem:[#allocation2 + $0xb38] sm:$0xff]
      %v3898 = vld [vmem:[#allocation2 + $0xb40] sm:$0xff]
      %v3899 = vld [vmem:[#allocation2 + $0xb48] sm:$0xff]
      %v3900 = vld [vmem:[#allocation2 + $0xb50] sm:$0xff]
      %v3901 = vld [vmem:[#allocation2 + $0xb58] sm:$0xff]
      %v3902 = vld [vmem:[#allocation2 + $0xb60] sm:$0xff]
      %v3903 = vld [vmem:[#allocation2 + $0xb68] sm:$0xff]
      %v3904 = vld [vmem:[#allocation2 + $0xb70] sm:$0xff]
      %v3905 = vld [vmem:[#allocation2 + $0xb78] sm:$0xff]
      %v3906 = vld [vmem:[#allocation2 + $0xb80] sm:$0xff]
      %v3907 = vld [vmem:[#allocation2 + $0xb88] sm:$0xff]
      %v3908 = vld [vmem:[#allocation2 + $0xb90] sm:$0xff]
      %v3909 = vld [vmem:[#allocation2 + $0xb98] sm:$0xff]
      %v3910 = vld [vmem:[#allocation2 + $0xba0] sm:$0xff]
      %v3911 = vld [vmem:[#allocation2 + $0xba8] sm:$0xff]
      %v3912 = vld [vmem:[#allocation2 + $0xbb0] sm:$0xff]
      %v3913 = vld [vmem:[#allocation2 + $0xbb8] sm:$0xff]
      %v3914 = vld [vmem:[#allocation2 + $0xbc0] sm:$0xff]
      %v3915 = vld [vmem:[#allocation2 + $0xbc8] sm:$0xff]
      %v3916 = vld [vmem:[#allocation2 + $0xbd0] sm:$0xff]
      %v3917 = vld [vmem:[#allocation2 + $0xbd8] sm:$0xff]
      %v3918 = vld [vmem:[#allocation2 + $0xbe0] sm:$0xff]
      %v3919 = vld [vmem:[#allocation2 + $0xbe8] sm:$0xff]
      %v3920 = vld [vmem:[#allocation2 + $0xbf0] sm:$0xff]
      %v3921 = vld [vmem:[#allocation2 + $0xbf8] sm:$0xff]
      %v3922 = vld [vmem:[#allocation2 + $0xc00] sm:$0xf]
      %v3923 = vld [vmem:[#allocation2 + $0xc08] sm:$0xf]
      %v3924 = vld [vmem:[#allocation2 + $0xc10] sm:$0xf]
      %v3925 = vld [vmem:[#allocation2 + $0xc18] sm:$0xf]
      %v3926 = vld [vmem:[#allocation2 + $0xc20] sm:$0xf]
      %v3927 = vld [vmem:[#allocation2 + $0xc28] sm:$0xf]
      %v3928 = vld [vmem:[#allocation2 + $0xc30] sm:$0xf]
      %v3929 = vld [vmem:[#allocation2 + $0xc38] sm:$0xf]
      %v3930 = vld [vmem:[#allocation2 + $0xc40] sm:$0xf]
      %v3931 = vld [vmem:[#allocation2 + $0xc48] sm:$0xf]
      %v3932 = vld [vmem:[#allocation2 + $0xc50] sm:$0xf]
      %v3933 = vld [vmem:[#allocation2 + $0xc58] sm:$0xf]
      %v3934 = vld [vmem:[#allocation2 + $0xc60] sm:$0xf]
      %v3935 = vld [vmem:[#allocation2 + $0xc68] sm:$0xf]
      %v3936 = vld [vmem:[#allocation2 + $0xc70] sm:$0xf]
      %v3937 = vld [vmem:[#allocation2 + $0xc78] sm:$0xf]
      %v3938 = vld [vmem:[%s2] sm:$0xff]
      %v3939 = vld [vmem:[%s2 + $0x8] sm:$0xff]
      %v3942 = vlaneseq
      %v3943 = vshrl.u32 %v3942, 7
      %v3944 = vsub.s32 0, %v3943
      %v3945 = vrot.slane %v3938, %v3944
      %v3946 = vlaneseq
      %v3947 = vshrl.u32 %v3946, 7
      %v3948 = vsub.s32 1, %v3947
      %v3949 = vrot.slane %v3938, %v3948
      %v3950 = vlaneseq
      %v3951 = vshrl.u32 %v3950, 7
      %v3952 = vsub.s32 2, %v3951
      %v3953 = vrot.slane %v3938, %v3952
      %v3954 = vlaneseq
      %v3955 = vshrl.u32 %v3954, 7
      %v3956 = vsub.s32 3, %v3955
      %v3957 = vrot.slane %v3938, %v3956
      %v3958 = vlaneseq
      %v3959 = vshrl.u32 %v3958, 7
      %v3960 = vsub.s32 4, %v3959
      %v3961 = vrot.slane %v3938, %v3960
      %v3962 = vlaneseq
      %v3963 = vshrl.u32 %v3962, 7
      %v3964 = vsub.s32 5, %v3963
      %v3965 = vrot.slane %v3938, %v3964
      %v3966 = vlaneseq
      %v3967 = vshrl.u32 %v3966, 7
      %v3968 = vsub.s32 6, %v3967
      %v3969 = vrot.slane %v3938, %v3968
      %v3970 = vlaneseq
      %v3971 = vshrl.u32 %v3970, 7
      %v3972 = vsub.s32 7, %v3971
      %v3973 = vrot.slane %v3938, %v3972
      %v3974 = vlaneseq
      %v3975 = vshrl.u32 %v3974, 7
      %v3976 = vsub.s32 0, %v3975
      %v3977 = vrot.slane %v3939, %v3976
      %v3978 = vlaneseq
      %v3979 = vshrl.u32 %v3978, 7
      %v3980 = vsub.s32 1, %v3979
      %v3981 = vrot.slane %v3939, %v3980
      %v3982 = vlaneseq
      %v3983 = vshrl.u32 %v3982, 7
      %v3984 = vsub.s32 2, %v3983
      %v3985 = vrot.slane %v3939, %v3984
      %v3986 = vlaneseq
      %v3987 = vshrl.u32 %v3986, 7
      %v3988 = vsub.s32 3, %v3987
      %v3989 = vrot.slane %v3939, %v3988
      %v3990 = vlaneseq
      %v3991 = vshrl.u32 %v3990, 7
      %v3992 = vsub.s32 4, %v3991
      %v3993 = vrot.slane %v3939, %v3992
      %v3994 = vlaneseq
      %v3995 = vshrl.u32 %v3994, 7
      %v3996 = vsub.s32 5, %v3995
      %v3997 = vrot.slane %v3939, %v3996
      %v3998 = vlaneseq
      %v3999 = vshrl.u32 %v3998, 7
      %v4000 = vsub.s32 6, %v3999
      %v4001 = vrot.slane %v3939, %v4000
      %v4002 = vlaneseq
      %v4003 = vshrl.u32 %v4002, 7
      %v4004 = vsub.s32 7, %v4003
      %v4005 = vrot.slane %v3939, %v4004
      %v4022 = vadd.f32 %v3538, %v3945
      %v4023 = vadd.f32 %v3539, %v3949
      %v4024 = vadd.f32 %v3540, %v3953
      %v4025 = vadd.f32 %v3541, %v3957
      %v4026 = vadd.f32 %v3542, %v3961
      %v4027 = vadd.f32 %v3543, %v3965
      %v4028 = vadd.f32 %v3544, %v3969
      %v4029 = vadd.f32 %v3545, %v3973
      %v4030 = vadd.f32 %v3546, %v3977
      %v4031 = vadd.f32 %v3547, %v3981
      %v4032 = vadd.f32 %v3548, %v3985
      %v4033 = vadd.f32 %v3549, %v3989
      %v4034 = vadd.f32 %v3550, %v3993
      %v4035 = vadd.f32 %v3551, %v3997
      %v4036 = vadd.f32 %v3552, %v4001
      %v4037 = vadd.f32 %v3553, %v4005
      %v4038 = vadd.f32 %v3554, %v3945
      %v4039 = vadd.f32 %v3555, %v3949
      %v4040 = vadd.f32 %v3556, %v3953
      %v4041 = vadd.f32 %v3557, %v3957
      %v4042 = vadd.f32 %v3558, %v3961
      %v4043 = vadd.f32 %v3559, %v3965
      %v4044 = vadd.f32 %v3560, %v3969
      %v4045 = vadd.f32 %v3561, %v3973
      %v4046 = vadd.f32 %v3562, %v3977
      %v4047 = vadd.f32 %v3563, %v3981
      %v4048 = vadd.f32 %v3564, %v3985
      %v4049 = vadd.f32 %v3565, %v3989
      %v4050 = vadd.f32 %v3566, %v3993
      %v4051 = vadd.f32 %v3567, %v3997
      %v4052 = vadd.f32 %v3568, %v4001
      %v4053 = vadd.f32 %v3569, %v4005
      %v4054 = vadd.f32 %v3570, %v3945
      %v4055 = vadd.f32 %v3571, %v3949
      %v4056 = vadd.f32 %v3572, %v3953
      %v4057 = vadd.f32 %v3573, %v3957
      %v4058 = vadd.f32 %v3574, %v3961
      %v4059 = vadd.f32 %v3575, %v3965
      %v4060 = vadd.f32 %v3576, %v3969
      %v4061 = vadd.f32 %v3577, %v3973
      %v4062 = vadd.f32 %v3578, %v3977
      %v4063 = vadd.f32 %v3579, %v3981
      %v4064 = vadd.f32 %v3580, %v3985
      %v4065 = vadd.f32 %v3581, %v3989
      %v4066 = vadd.f32 %v3582, %v3993
      %v4067 = vadd.f32 %v3583, %v3997
      %v4068 = vadd.f32 %v3584, %v4001
      %v4069 = vadd.f32 %v3585, %v4005
      %v4070 = vadd.f32 %v3586, %v3945
      %v4071 = vadd.f32 %v3587, %v3949
      %v4072 = vadd.f32 %v3588, %v3953
      %v4073 = vadd.f32 %v3589, %v3957
      %v4074 = vadd.f32 %v3590, %v3961
      %v4075 = vadd.f32 %v3591, %v3965
      %v4076 = vadd.f32 %v3592, %v3969
      %v4077 = vadd.f32 %v3593, %v3973
      %v4078 = vadd.f32 %v3594, %v3977
      %v4079 = vadd.f32 %v3595, %v3981
      %v4080 = vadd.f32 %v3596, %v3985
      %v4081 = vadd.f32 %v3597, %v3989
      %v4082 = vadd.f32 %v3598, %v3993
      %v4083 = vadd.f32 %v3599, %v3997
      %v4084 = vadd.f32 %v3600, %v4001
      %v4085 = vadd.f32 %v3601, %v4005
      %v4086 = vadd.f32 %v3602, %v3945
      %v4087 = vadd.f32 %v3603, %v3949
      %v4088 = vadd.f32 %v3604, %v3953
      %v4089 = vadd.f32 %v3605, %v3957
      %v4090 = vadd.f32 %v3606, %v3961
      %v4091 = vadd.f32 %v3607, %v3965
      %v4092 = vadd.f32 %v3608, %v3969
      %v4093 = vadd.f32 %v3609, %v3973
      %v4094 = vadd.f32 %v3610, %v3977
      %v4095 = vadd.f32 %v3611, %v3981
      %v4096 = vadd.f32 %v3612, %v3985
      %v4097 = vadd.f32 %v3613, %v3989
      %v4098 = vadd.f32 %v3614, %v3993
      %v4099 = vadd.f32 %v3615, %v3997
      %v4100 = vadd.f32 %v3616, %v4001
      %v4101 = vadd.f32 %v3617, %v4005
      %v4102 = vadd.f32 %v3618, %v3945
      %v4103 = vadd.f32 %v3619, %v3949
      %v4104 = vadd.f32 %v3620, %v3953
      %v4105 = vadd.f32 %v3621, %v3957
      %v4106 = vadd.f32 %v3622, %v3961
      %v4107 = vadd.f32 %v3623, %v3965
      %v4108 = vadd.f32 %v3624, %v3969
      %v4109 = vadd.f32 %v3625, %v3973
      %v4110 = vadd.f32 %v3626, %v3977
      %v4111 = vadd.f32 %v3627, %v3981
      %v4112 = vadd.f32 %v3628, %v3985
      %v4113 = vadd.f32 %v3629, %v3989
      %v4114 = vadd.f32 %v3630, %v3993
      %v4115 = vadd.f32 %v3631, %v3997
      %v4116 = vadd.f32 %v3632, %v4001
      %v4117 = vadd.f32 %v3633, %v4005
      %v4118 = vadd.f32 %v3634, %v3945
      %v4119 = vadd.f32 %v3635, %v3949
      %v4120 = vadd.f32 %v3636, %v3953
      %v4121 = vadd.f32 %v3637, %v3957
      %v4122 = vadd.f32 %v3638, %v3961
      %v4123 = vadd.f32 %v3639, %v3965
      %v4124 = vadd.f32 %v3640, %v3969
      %v4125 = vadd.f32 %v3641, %v3973
      %v4126 = vadd.f32 %v3642, %v3977
      %v4127 = vadd.f32 %v3643, %v3981
      %v4128 = vadd.f32 %v3644, %v3985
      %v4129 = vadd.f32 %v3645, %v3989
      %v4130 = vadd.f32 %v3646, %v3993
      %v4131 = vadd.f32 %v3647, %v3997
      %v4132 = vadd.f32 %v3648, %v4001
      %v4133 = vadd.f32 %v3649, %v4005
      %v4134 = vadd.f32 %v3650, %v3945
      %v4135 = vadd.f32 %v3651, %v3949
      %v4136 = vadd.f32 %v3652, %v3953
      %v4137 = vadd.f32 %v3653, %v3957
      %v4138 = vadd.f32 %v3654, %v3961
      %v4139 = vadd.f32 %v3655, %v3965
      %v4140 = vadd.f32 %v3656, %v3969
      %v4141 = vadd.f32 %v3657, %v3973
      %v4142 = vadd.f32 %v3658, %v3977
      %v4143 = vadd.f32 %v3659, %v3981
      %v4144 = vadd.f32 %v3660, %v3985
      %v4145 = vadd.f32 %v3661, %v3989
      %v4146 = vadd.f32 %v3662, %v3993
      %v4147 = vadd.f32 %v3663, %v3997
      %v4148 = vadd.f32 %v3664, %v4001
      %v4149 = vadd.f32 %v3665, %v4005
      %v4150 = vadd.f32 %v3666, %v3945
      %v4151 = vadd.f32 %v3667, %v3949
      %v4152 = vadd.f32 %v3668, %v3953
      %v4153 = vadd.f32 %v3669, %v3957
      %v4154 = vadd.f32 %v3670, %v3961
      %v4155 = vadd.f32 %v3671, %v3965
      %v4156 = vadd.f32 %v3672, %v3969
      %v4157 = vadd.f32 %v3673, %v3973
      %v4158 = vadd.f32 %v3674, %v3977
      %v4159 = vadd.f32 %v3675, %v3981
      %v4160 = vadd.f32 %v3676, %v3985
      %v4161 = vadd.f32 %v3677, %v3989
      %v4162 = vadd.f32 %v3678, %v3993
      %v4163 = vadd.f32 %v3679, %v3997
      %v4164 = vadd.f32 %v3680, %v4001
      %v4165 = vadd.f32 %v3681, %v4005
      %v4166 = vadd.f32 %v3682, %v3945
      %v4167 = vadd.f32 %v3683, %v3949
      %v4168 = vadd.f32 %v3684, %v3953
      %v4169 = vadd.f32 %v3685, %v3957
      %v4170 = vadd.f32 %v3686, %v3961
      %v4171 = vadd.f32 %v3687, %v3965
      %v4172 = vadd.f32 %v3688, %v3969
      %v4173 = vadd.f32 %v3689, %v3973
      %v4174 = vadd.f32 %v3690, %v3977
      %v4175 = vadd.f32 %v3691, %v3981
      %v4176 = vadd.f32 %v3692, %v3985
      %v4177 = vadd.f32 %v3693, %v3989
      %v4178 = vadd.f32 %v3694, %v3993
      %v4179 = vadd.f32 %v3695, %v3997
      %v4180 = vadd.f32 %v3696, %v4001
      %v4181 = vadd.f32 %v3697, %v4005
      %v4182 = vadd.f32 %v3698, %v3945
      %v4183 = vadd.f32 %v3699, %v3949
      %v4184 = vadd.f32 %v3700, %v3953
      %v4185 = vadd.f32 %v3701, %v3957
      %v4186 = vadd.f32 %v3702, %v3961
      %v4187 = vadd.f32 %v3703, %v3965
      %v4188 = vadd.f32 %v3704, %v3969
      %v4189 = vadd.f32 %v3705, %v3973
      %v4190 = vadd.f32 %v3706, %v3977
      %v4191 = vadd.f32 %v3707, %v3981
      %v4192 = vadd.f32 %v3708, %v3985
      %v4193 = vadd.f32 %v3709, %v3989
      %v4194 = vadd.f32 %v3710, %v3993
      %v4195 = vadd.f32 %v3711, %v3997
      %v4196 = vadd.f32 %v3712, %v4001
      %v4197 = vadd.f32 %v3713, %v4005
      %v4198 = vadd.f32 %v3714, %v3945
      %v4199 = vadd.f32 %v3715, %v3949
      %v4200 = vadd.f32 %v3716, %v3953
      %v4201 = vadd.f32 %v3717, %v3957
      %v4202 = vadd.f32 %v3718, %v3961
      %v4203 = vadd.f32 %v3719, %v3965
      %v4204 = vadd.f32 %v3720, %v3969
      %v4205 = vadd.f32 %v3721, %v3973
      %v4206 = vadd.f32 %v3722, %v3977
      %v4207 = vadd.f32 %v3723, %v3981
      %v4208 = vadd.f32 %v3724, %v3985
      %v4209 = vadd.f32 %v3725, %v3989
      %v4210 = vadd.f32 %v3726, %v3993
      %v4211 = vadd.f32 %v3727, %v3997
      %v4212 = vadd.f32 %v3728, %v4001
      %v4213 = vadd.f32 %v3729, %v4005
      %v4214 = vadd.f32 %v3730, %v3945
      %v4215 = vadd.f32 %v3731, %v3949
      %v4216 = vadd.f32 %v3732, %v3953
      %v4217 = vadd.f32 %v3733, %v3957
      %v4218 = vadd.f32 %v3734, %v3961
      %v4219 = vadd.f32 %v3735, %v3965
      %v4220 = vadd.f32 %v3736, %v3969
      %v4221 = vadd.f32 %v3737, %v3973
      %v4222 = vadd.f32 %v3738, %v3977
      %v4223 = vadd.f32 %v3739, %v3981
      %v4224 = vadd.f32 %v3740, %v3985
      %v4225 = vadd.f32 %v3741, %v3989
      %v4226 = vadd.f32 %v3742, %v3993
      %v4227 = vadd.f32 %v3743, %v3997
      %v4228 = vadd.f32 %v3744, %v4001
      %v4229 = vadd.f32 %v3745, %v4005
      %v4230 = vadd.f32 %v3746, %v3945
      %v4231 = vadd.f32 %v3747, %v3949
      %v4232 = vadd.f32 %v3748, %v3953
      %v4233 = vadd.f32 %v3749, %v3957
      %v4234 = vadd.f32 %v3750, %v3961
      %v4235 = vadd.f32 %v3751, %v3965
      %v4236 = vadd.f32 %v3752, %v3969
      %v4237 = vadd.f32 %v3753, %v3973
      %v4238 = vadd.f32 %v3754, %v3977
      %v4239 = vadd.f32 %v3755, %v3981
      %v4240 = vadd.f32 %v3756, %v3985
      %v4241 = vadd.f32 %v3757, %v3989
      %v4242 = vadd.f32 %v3758, %v3993
      %v4243 = vadd.f32 %v3759, %v3997
      %v4244 = vadd.f32 %v3760, %v4001
      %v4245 = vadd.f32 %v3761, %v4005
      %v4246 = vadd.f32 %v3762, %v3945
      %v4247 = vadd.f32 %v3763, %v3949
      %v4248 = vadd.f32 %v3764, %v3953
      %v4249 = vadd.f32 %v3765, %v3957
      %v4250 = vadd.f32 %v3766, %v3961
      %v4251 = vadd.f32 %v3767, %v3965
      %v4252 = vadd.f32 %v3768, %v3969
      %v4253 = vadd.f32 %v3769, %v3973
      %v4254 = vadd.f32 %v3770, %v3977
      %v4255 = vadd.f32 %v3771, %v3981
      %v4256 = vadd.f32 %v3772, %v3985
      %v4257 = vadd.f32 %v3773, %v3989
      %v4258 = vadd.f32 %v3774, %v3993
      %v4259 = vadd.f32 %v3775, %v3997
      %v4260 = vadd.f32 %v3776, %v4001
      %v4261 = vadd.f32 %v3777, %v4005
      %v4262 = vadd.f32 %v3778, %v3945
      %v4263 = vadd.f32 %v3779, %v3949
      %v4264 = vadd.f32 %v3780, %v3953
      %v4265 = vadd.f32 %v3781, %v3957
      %v4266 = vadd.f32 %v3782, %v3961
      %v4267 = vadd.f32 %v3783, %v3965
      %v4268 = vadd.f32 %v3784, %v3969
      %v4269 = vadd.f32 %v3785, %v3973
      %v4270 = vadd.f32 %v3786, %v3977
      %v4271 = vadd.f32 %v3787, %v3981
      %v4272 = vadd.f32 %v3788, %v3985
      %v4273 = vadd.f32 %v3789, %v3989
      %v4274 = vadd.f32 %v3790, %v3993
      %v4275 = vadd.f32 %v3791, %v3997
      %v4276 = vadd.f32 %v3792, %v4001
      %v4277 = vadd.f32 %v3793, %v4005
      %v4278 = vadd.f32 %v3794, %v3945
      %v4279 = vadd.f32 %v3795, %v3949
      %v4280 = vadd.f32 %v3796, %v3953
      %v4281 = vadd.f32 %v3797, %v3957
      %v4282 = vadd.f32 %v3798, %v3961
      %v4283 = vadd.f32 %v3799, %v3965
      %v4284 = vadd.f32 %v3800, %v3969
      %v4285 = vadd.f32 %v3801, %v3973
      %v4286 = vadd.f32 %v3802, %v3977
      %v4287 = vadd.f32 %v3803, %v3981
      %v4288 = vadd.f32 %v3804, %v3985
      %v4289 = vadd.f32 %v3805, %v3989
      %v4290 = vadd.f32 %v3806, %v3993
      %v4291 = vadd.f32 %v3807, %v3997
      %v4292 = vadd.f32 %v3808, %v4001
      %v4293 = vadd.f32 %v3809, %v4005
      %v4294 = vadd.f32 %v3810, %v3945
      %v4295 = vadd.f32 %v3811, %v3949
      %v4296 = vadd.f32 %v3812, %v3953
      %v4297 = vadd.f32 %v3813, %v3957
      %v4298 = vadd.f32 %v3814, %v3961
      %v4299 = vadd.f32 %v3815, %v3965
      %v4300 = vadd.f32 %v3816, %v3969
      %v4301 = vadd.f32 %v3817, %v3973
      %v4302 = vadd.f32 %v3818, %v3977
      %v4303 = vadd.f32 %v3819, %v3981
      %v4304 = vadd.f32 %v3820, %v3985
      %v4305 = vadd.f32 %v3821, %v3989
      %v4306 = vadd.f32 %v3822, %v3993
      %v4307 = vadd.f32 %v3823, %v3997
      %v4308 = vadd.f32 %v3824, %v4001
      %v4309 = vadd.f32 %v3825, %v4005
      %v4310 = vadd.f32 %v3826, %v3945
      %v4311 = vadd.f32 %v3827, %v3949
      %v4312 = vadd.f32 %v3828, %v3953
      %v4313 = vadd.f32 %v3829, %v3957
      %v4314 = vadd.f32 %v3830, %v3961
      %v4315 = vadd.f32 %v3831, %v3965
      %v4316 = vadd.f32 %v3832, %v3969
      %v4317 = vadd.f32 %v3833, %v3973
      %v4318 = vadd.f32 %v3834, %v3977
      %v4319 = vadd.f32 %v3835, %v3981
      %v4320 = vadd.f32 %v3836, %v3985
      %v4321 = vadd.f32 %v3837, %v3989
      %v4322 = vadd.f32 %v3838, %v3993
      %v4323 = vadd.f32 %v3839, %v3997
      %v4324 = vadd.f32 %v3840, %v4001
      %v4325 = vadd.f32 %v3841, %v4005
      %v4326 = vadd.f32 %v3842, %v3945
      %v4327 = vadd.f32 %v3843, %v3949
      %v4328 = vadd.f32 %v3844, %v3953
      %v4329 = vadd.f32 %v3845, %v3957
      %v4330 = vadd.f32 %v3846, %v3961
      %v4331 = vadd.f32 %v3847, %v3965
      %v4332 = vadd.f32 %v3848, %v3969
      %v4333 = vadd.f32 %v3849, %v3973
      %v4334 = vadd.f32 %v3850, %v3977
      %v4335 = vadd.f32 %v3851, %v3981
      %v4336 = vadd.f32 %v3852, %v3985
      %v4337 = vadd.f32 %v3853, %v3989
      %v4338 = vadd.f32 %v3854, %v3993
      %v4339 = vadd.f32 %v3855, %v3997
      %v4340 = vadd.f32 %v3856, %v4001
      %v4341 = vadd.f32 %v3857, %v4005
      %v4342 = vadd.f32 %v3858, %v3945
      %v4343 = vadd.f32 %v3859, %v3949
      %v4344 = vadd.f32 %v3860, %v3953
      %v4345 = vadd.f32 %v3861, %v3957
      %v4346 = vadd.f32 %v3862, %v3961
      %v4347 = vadd.f32 %v3863, %v3965
      %v4348 = vadd.f32 %v3864, %v3969
      %v4349 = vadd.f32 %v3865, %v3973
      %v4350 = vadd.f32 %v3866, %v3977
      %v4351 = vadd.f32 %v3867, %v3981
      %v4352 = vadd.f32 %v3868, %v3985
      %v4353 = vadd.f32 %v3869, %v3989
      %v4354 = vadd.f32 %v3870, %v3993
      %v4355 = vadd.f32 %v3871, %v3997
      %v4356 = vadd.f32 %v3872, %v4001
      %v4357 = vadd.f32 %v3873, %v4005
      %v4358 = vadd.f32 %v3874, %v3945
      %v4359 = vadd.f32 %v3875, %v3949
      %v4360 = vadd.f32 %v3876, %v3953
      %v4361 = vadd.f32 %v3877, %v3957
      %v4362 = vadd.f32 %v3878, %v3961
      %v4363 = vadd.f32 %v3879, %v3965
      %v4364 = vadd.f32 %v3880, %v3969
      %v4365 = vadd.f32 %v3881, %v3973
      %v4366 = vadd.f32 %v3882, %v3977
      %v4367 = vadd.f32 %v3883, %v3981
      %v4368 = vadd.f32 %v3884, %v3985
      %v4369 = vadd.f32 %v3885, %v3989
      %v4370 = vadd.f32 %v3886, %v3993
      %v4371 = vadd.f32 %v3887, %v3997
      %v4372 = vadd.f32 %v3888, %v4001
      %v4373 = vadd.f32 %v3889, %v4005
      %v4374 = vadd.f32 %v3890, %v3945
      %v4375 = vadd.f32 %v3891, %v3949
      %v4376 = vadd.f32 %v3892, %v3953
      %v4377 = vadd.f32 %v3893, %v3957
      %v4378 = vadd.f32 %v3894, %v3961
      %v4379 = vadd.f32 %v3895, %v3965
      %v4380 = vadd.f32 %v3896, %v3969
      %v4381 = vadd.f32 %v3897, %v3973
      %v4382 = vadd.f32 %v3898, %v3977
      %v4383 = vadd.f32 %v3899, %v3981
      %v4384 = vadd.f32 %v3900, %v3985
      %v4385 = vadd.f32 %v3901, %v3989
      %v4386 = vadd.f32 %v3902, %v3993
      %v4387 = vadd.f32 %v3903, %v3997
      %v4388 = vadd.f32 %v3904, %v4001
      %v4389 = vadd.f32 %v3905, %v4005
      %v4390 = vadd.f32 %v3906, %v3945
      %v4391 = vadd.f32 %v3907, %v3949
      %v4392 = vadd.f32 %v3908, %v3953
      %v4393 = vadd.f32 %v3909, %v3957
      %v4394 = vadd.f32 %v3910, %v3961
      %v4395 = vadd.f32 %v3911, %v3965
      %v4396 = vadd.f32 %v3912, %v3969
      %v4397 = vadd.f32 %v3913, %v3973
      %v4398 = vadd.f32 %v3914, %v3977
      %v4399 = vadd.f32 %v3915, %v3981
      %v4400 = vadd.f32 %v3916, %v3985
      %v4401 = vadd.f32 %v3917, %v3989
      %v4402 = vadd.f32 %v3918, %v3993
      %v4403 = vadd.f32 %v3919, %v3997
      %v4404 = vadd.f32 %v3920, %v4001
      %v4405 = vadd.f32 %v3921, %v4005
      %v4406 = vadd.f32 %v3922, %v3945
      %v4407 = vadd.f32 %v3923, %v3949
      %v4408 = vadd.f32 %v3924, %v3953
      %v4409 = vadd.f32 %v3925, %v3957
      %v4410 = vadd.f32 %v3926, %v3961
      %v4411 = vadd.f32 %v3927, %v3965
      %v4412 = vadd.f32 %v3928, %v3969
      %v4413 = vadd.f32 %v3929, %v3973
      %v4414 = vadd.f32 %v3930, %v3977
      %v4415 = vadd.f32 %v3931, %v3981
      %v4416 = vadd.f32 %v3932, %v3985
      %v4417 = vadd.f32 %v3933, %v3989
      %v4418 = vadd.f32 %v3934, %v3993
      %v4419 = vadd.f32 %v3935, %v3997
      %v4420 = vadd.f32 %v3936, %v4001
      %v4421 = vadd.f32 %v3937, %v4005
      %v4422 = vmax.f32 %v4022, 0.0
      %v4423 = vmax.f32 %v4023, 0.0
      %v4424 = vmax.f32 %v4024, 0.0
      %v4425 = vmax.f32 %v4025, 0.0
      %v4426 = vmax.f32 %v4026, 0.0
      %v4427 = vmax.f32 %v4027, 0.0
      %v4428 = vmax.f32 %v4028, 0.0
      %v4429 = vmax.f32 %v4029, 0.0
      %v4430 = vmax.f32 %v4030, 0.0
      %v4431 = vmax.f32 %v4031, 0.0
      %v4432 = vmax.f32 %v4032, 0.0
      %v4433 = vmax.f32 %v4033, 0.0
      %v4434 = vmax.f32 %v4034, 0.0
      %v4435 = vmax.f32 %v4035, 0.0
      %v4436 = vmax.f32 %v4036, 0.0
      %v4437 = vmax.f32 %v4037, 0.0
      %v4438 = vmax.f32 %v4038, 0.0
      %v4439 = vmax.f32 %v4039, 0.0
      %v4440 = vmax.f32 %v4040, 0.0
      %v4441 = vmax.f32 %v4041, 0.0
      %v4442 = vmax.f32 %v4042, 0.0
      %v4443 = vmax.f32 %v4043, 0.0
      %v4444 = vmax.f32 %v4044, 0.0
      %v4445 = vmax.f32 %v4045, 0.0
      %v4446 = vmax.f32 %v4046, 0.0
      %v4447 = vmax.f32 %v4047, 0.0
      %v4448 = vmax.f32 %v4048, 0.0
      %v4449 = vmax.f32 %v4049, 0.0
      %v4450 = vmax.f32 %v4050, 0.0
      %v4451 = vmax.f32 %v4051, 0.0
      %v4452 = vmax.f32 %v4052, 0.0
      %v4453 = vmax.f32 %v4053, 0.0
      %v4454 = vmax.f32 %v4054, 0.0
      %v4455 = vmax.f32 %v4055, 0.0
      %v4456 = vmax.f32 %v4056, 0.0
      %v4457 = vmax.f32 %v4057, 0.0
      %v4458 = vmax.f32 %v4058, 0.0
      %v4459 = vmax.f32 %v4059, 0.0
      %v4460 = vmax.f32 %v4060, 0.0
      %v4461 = vmax.f32 %v4061, 0.0
      %v4462 = vmax.f32 %v4062, 0.0
      %v4463 = vmax.f32 %v4063, 0.0
      %v4464 = vmax.f32 %v4064, 0.0
      %v4465 = vmax.f32 %v4065, 0.0
      %v4466 = vmax.f32 %v4066, 0.0
      %v4467 = vmax.f32 %v4067, 0.0
      %v4468 = vmax.f32 %v4068, 0.0
      %v4469 = vmax.f32 %v4069, 0.0
      %v4470 = vmax.f32 %v4070, 0.0
      %v4471 = vmax.f32 %v4071, 0.0
      %v4472 = vmax.f32 %v4072, 0.0
      %v4473 = vmax.f32 %v4073, 0.0
      %v4474 = vmax.f32 %v4074, 0.0
      %v4475 = vmax.f32 %v4075, 0.0
      %v4476 = vmax.f32 %v4076, 0.0
      %v4477 = vmax.f32 %v4077, 0.0
      %v4478 = vmax.f32 %v4078, 0.0
      %v4479 = vmax.f32 %v4079, 0.0
      %v4480 = vmax.f32 %v4080, 0.0
      %v4481 = vmax.f32 %v4081, 0.0
      %v4482 = vmax.f32 %v4082, 0.0
      %v4483 = vmax.f32 %v4083, 0.0
      %v4484 = vmax.f32 %v4084, 0.0
      %v4485 = vmax.f32 %v4085, 0.0
      %v4486 = vmax.f32 %v4086, 0.0
      %v4487 = vmax.f32 %v4087, 0.0
      %v4488 = vmax.f32 %v4088, 0.0
      %v4489 = vmax.f32 %v4089, 0.0
      %v4490 = vmax.f32 %v4090, 0.0
      %v4491 = vmax.f32 %v4091, 0.0
      %v4492 = vmax.f32 %v4092, 0.0
      %v4493 = vmax.f32 %v4093, 0.0
      %v4494 = vmax.f32 %v4094, 0.0
      %v4495 = vmax.f32 %v4095, 0.0
      %v4496 = vmax.f32 %v4096, 0.0
      %v4497 = vmax.f32 %v4097, 0.0
      %v4498 = vmax.f32 %v4098, 0.0
      %v4499 = vmax.f32 %v4099, 0.0
      %v4500 = vmax.f32 %v4100, 0.0
      %v4501 = vmax.f32 %v4101, 0.0
      %v4502 = vmax.f32 %v4102, 0.0
      %v4503 = vmax.f32 %v4103, 0.0
      %v4504 = vmax.f32 %v4104, 0.0
      %v4505 = vmax.f32 %v4105, 0.0
      %v4506 = vmax.f32 %v4106, 0.0
      %v4507 = vmax.f32 %v4107, 0.0
      %v4508 = vmax.f32 %v4108, 0.0
      %v4509 = vmax.f32 %v4109, 0.0
      %v4510 = vmax.f32 %v4110, 0.0
      %v4511 = vmax.f32 %v4111, 0.0
      %v4512 = vmax.f32 %v4112, 0.0
      %v4513 = vmax.f32 %v4113, 0.0
      %v4514 = vmax.f32 %v4114, 0.0
      %v4515 = vmax.f32 %v4115, 0.0
      %v4516 = vmax.f32 %v4116, 0.0
      %v4517 = vmax.f32 %v4117, 0.0
      %v4518 = vmax.f32 %v4118, 0.0
      %v4519 = vmax.f32 %v4119, 0.0
      %v4520 = vmax.f32 %v4120, 0.0
      %v4521 = vmax.f32 %v4121, 0.0
      %v4522 = vmax.f32 %v4122, 0.0
      %v4523 = vmax.f32 %v4123, 0.0
      %v4524 = vmax.f32 %v4124, 0.0
      %v4525 = vmax.f32 %v4125, 0.0
      %v4526 = vmax.f32 %v4126, 0.0
      %v4527 = vmax.f32 %v4127, 0.0
      %v4528 = vmax.f32 %v4128, 0.0
      %v4529 = vmax.f32 %v4129, 0.0
      %v4530 = vmax.f32 %v4130, 0.0
      %v4531 = vmax.f32 %v4131, 0.0
      %v4532 = vmax.f32 %v4132, 0.0
      %v4533 = vmax.f32 %v4133, 0.0
      %v4534 = vmax.f32 %v4134, 0.0
      %v4535 = vmax.f32 %v4135, 0.0
      %v4536 = vmax.f32 %v4136, 0.0
      %v4537 = vmax.f32 %v4137, 0.0
      %v4538 = vmax.f32 %v4138, 0.0
      %v4539 = vmax.f32 %v4139, 0.0
      %v4540 = vmax.f32 %v4140, 0.0
      %v4541 = vmax.f32 %v4141, 0.0
      %v4542 = vmax.f32 %v4142, 0.0
      %v4543 = vmax.f32 %v4143, 0.0
      %v4544 = vmax.f32 %v4144, 0.0
      %v4545 = vmax.f32 %v4145, 0.0
      %v4546 = vmax.f32 %v4146, 0.0
      %v4547 = vmax.f32 %v4147, 0.0
      %v4548 = vmax.f32 %v4148, 0.0
      %v4549 = vmax.f32 %v4149, 0.0
      %v4550 = vmax.f32 %v4150, 0.0
      %v4551 = vmax.f32 %v4151, 0.0
      %v4552 = vmax.f32 %v4152, 0.0
      %v4553 = vmax.f32 %v4153, 0.0
      %v4554 = vmax.f32 %v4154, 0.0
      %v4555 = vmax.f32 %v4155, 0.0
      %v4556 = vmax.f32 %v4156, 0.0
      %v4557 = vmax.f32 %v4157, 0.0
      %v4558 = vmax.f32 %v4158, 0.0
      %v4559 = vmax.f32 %v4159, 0.0
      %v4560 = vmax.f32 %v4160, 0.0
      %v4561 = vmax.f32 %v4161, 0.0
      %v4562 = vmax.f32 %v4162, 0.0
      %v4563 = vmax.f32 %v4163, 0.0
      %v4564 = vmax.f32 %v4164, 0.0
      %v4565 = vmax.f32 %v4165, 0.0
      %v4566 = vmax.f32 %v4166, 0.0
      %v4567 = vmax.f32 %v4167, 0.0
      %v4568 = vmax.f32 %v4168, 0.0
      %v4569 = vmax.f32 %v4169, 0.0
      %v4570 = vmax.f32 %v4170, 0.0
      %v4571 = vmax.f32 %v4171, 0.0
      %v4572 = vmax.f32 %v4172, 0.0
      %v4573 = vmax.f32 %v4173, 0.0
      %v4574 = vmax.f32 %v4174, 0.0
      %v4575 = vmax.f32 %v4175, 0.0
      %v4576 = vmax.f32 %v4176, 0.0
      %v4577 = vmax.f32 %v4177, 0.0
      %v4578 = vmax.f32 %v4178, 0.0
      %v4579 = vmax.f32 %v4179, 0.0
      %v4580 = vmax.f32 %v4180, 0.0
      %v4581 = vmax.f32 %v4181, 0.0
      %v4582 = vmax.f32 %v4182, 0.0
      %v4583 = vmax.f32 %v4183, 0.0
      %v4584 = vmax.f32 %v4184, 0.0
      %v4585 = vmax.f32 %v4185, 0.0
      %v4586 = vmax.f32 %v4186, 0.0
      %v4587 = vmax.f32 %v4187, 0.0
      %v4588 = vmax.f32 %v4188, 0.0
      %v4589 = vmax.f32 %v4189, 0.0
      %v4590 = vmax.f32 %v4190, 0.0
      %v4591 = vmax.f32 %v4191, 0.0
      %v4592 = vmax.f32 %v4192, 0.0
      %v4593 = vmax.f32 %v4193, 0.0
      %v4594 = vmax.f32 %v4194, 0.0
      %v4595 = vmax.f32 %v4195, 0.0
      %v4596 = vmax.f32 %v4196, 0.0
      %v4597 = vmax.f32 %v4197, 0.0
      %v4598 = vmax.f32 %v4198, 0.0
      %v4599 = vmax.f32 %v4199, 0.0
      %v4600 = vmax.f32 %v4200, 0.0
      %v4601 = vmax.f32 %v4201, 0.0
      %v4602 = vmax.f32 %v4202, 0.0
      %v4603 = vmax.f32 %v4203, 0.0
      %v4604 = vmax.f32 %v4204, 0.0
      %v4605 = vmax.f32 %v4205, 0.0
      %v4606 = vmax.f32 %v4206, 0.0
      %v4607 = vmax.f32 %v4207, 0.0
      %v4608 = vmax.f32 %v4208, 0.0
      %v4609 = vmax.f32 %v4209, 0.0
      %v4610 = vmax.f32 %v4210, 0.0
      %v4611 = vmax.f32 %v4211, 0.0
      %v4612 = vmax.f32 %v4212, 0.0
      %v4613 = vmax.f32 %v4213, 0.0
      %v4614 = vmax.f32 %v4214, 0.0
      %v4615 = vmax.f32 %v4215, 0.0
      %v4616 = vmax.f32 %v4216, 0.0
      %v4617 = vmax.f32 %v4217, 0.0
      %v4618 = vmax.f32 %v4218, 0.0
      %v4619 = vmax.f32 %v4219, 0.0
      %v4620 = vmax.f32 %v4220, 0.0
      %v4621 = vmax.f32 %v4221, 0.0
      %v4622 = vmax.f32 %v4222, 0.0
      %v4623 = vmax.f32 %v4223, 0.0
      %v4624 = vmax.f32 %v4224, 0.0
      %v4625 = vmax.f32 %v4225, 0.0
      %v4626 = vmax.f32 %v4226, 0.0
      %v4627 = vmax.f32 %v4227, 0.0
      %v4628 = vmax.f32 %v4228, 0.0
      %v4629 = vmax.f32 %v4229, 0.0
      %v4630 = vmax.f32 %v4230, 0.0
      %v4631 = vmax.f32 %v4231, 0.0
      %v4632 = vmax.f32 %v4232, 0.0
      %v4633 = vmax.f32 %v4233, 0.0
      %v4634 = vmax.f32 %v4234, 0.0
      %v4635 = vmax.f32 %v4235, 0.0
      %v4636 = vmax.f32 %v4236, 0.0
      %v4637 = vmax.f32 %v4237, 0.0
      %v4638 = vmax.f32 %v4238, 0.0
      %v4639 = vmax.f32 %v4239, 0.0
      %v4640 = vmax.f32 %v4240, 0.0
      %v4641 = vmax.f32 %v4241, 0.0
      %v4642 = vmax.f32 %v4242, 0.0
      %v4643 = vmax.f32 %v4243, 0.0
      %v4644 = vmax.f32 %v4244, 0.0
      %v4645 = vmax.f32 %v4245, 0.0
      %v4646 = vmax.f32 %v4246, 0.0
      %v4647 = vmax.f32 %v4247, 0.0
      %v4648 = vmax.f32 %v4248, 0.0
      %v4649 = vmax.f32 %v4249, 0.0
      %v4650 = vmax.f32 %v4250, 0.0
      %v4651 = vmax.f32 %v4251, 0.0
      %v4652 = vmax.f32 %v4252, 0.0
      %v4653 = vmax.f32 %v4253, 0.0
      %v4654 = vmax.f32 %v4254, 0.0
      %v4655 = vmax.f32 %v4255, 0.0
      %v4656 = vmax.f32 %v4256, 0.0
      %v4657 = vmax.f32 %v4257, 0.0
      %v4658 = vmax.f32 %v4258, 0.0
      %v4659 = vmax.f32 %v4259, 0.0
      %v4660 = vmax.f32 %v4260, 0.0
      %v4661 = vmax.f32 %v4261, 0.0
      %v4662 = vmax.f32 %v4262, 0.0
      %v4663 = vmax.f32 %v4263, 0.0
      %v4664 = vmax.f32 %v4264, 0.0
      %v4665 = vmax.f32 %v4265, 0.0
      %v4666 = vmax.f32 %v4266, 0.0
      %v4667 = vmax.f32 %v4267, 0.0
      %v4668 = vmax.f32 %v4268, 0.0
      %v4669 = vmax.f32 %v4269, 0.0
      %v4670 = vmax.f32 %v4270, 0.0
      %v4671 = vmax.f32 %v4271, 0.0
      %v4672 = vmax.f32 %v4272, 0.0
      %v4673 = vmax.f32 %v4273, 0.0
      %v4674 = vmax.f32 %v4274, 0.0
      %v4675 = vmax.f32 %v4275, 0.0
      %v4676 = vmax.f32 %v4276, 0.0
      %v4677 = vmax.f32 %v4277, 0.0
      %v4678 = vmax.f32 %v4278, 0.0
      %v4679 = vmax.f32 %v4279, 0.0
      %v4680 = vmax.f32 %v4280, 0.0
      %v4681 = vmax.f32 %v4281, 0.0
      %v4682 = vmax.f32 %v4282, 0.0
      %v4683 = vmax.f32 %v4283, 0.0
      %v4684 = vmax.f32 %v4284, 0.0
      %v4685 = vmax.f32 %v4285, 0.0
      %v4686 = vmax.f32 %v4286, 0.0
      %v4687 = vmax.f32 %v4287, 0.0
      %v4688 = vmax.f32 %v4288, 0.0
      %v4689 = vmax.f32 %v4289, 0.0
      %v4690 = vmax.f32 %v4290, 0.0
      %v4691 = vmax.f32 %v4291, 0.0
      %v4692 = vmax.f32 %v4292, 0.0
      %v4693 = vmax.f32 %v4293, 0.0
      %v4694 = vmax.f32 %v4294, 0.0
      %v4695 = vmax.f32 %v4295, 0.0
      %v4696 = vmax.f32 %v4296, 0.0
      %v4697 = vmax.f32 %v4297, 0.0
      %v4698 = vmax.f32 %v4298, 0.0
      %v4699 = vmax.f32 %v4299, 0.0
      %v4700 = vmax.f32 %v4300, 0.0
      %v4701 = vmax.f32 %v4301, 0.0
      %v4702 = vmax.f32 %v4302, 0.0
      %v4703 = vmax.f32 %v4303, 0.0
      %v4704 = vmax.f32 %v4304, 0.0
      %v4705 = vmax.f32 %v4305, 0.0
      %v4706 = vmax.f32 %v4306, 0.0
      %v4707 = vmax.f32 %v4307, 0.0
      %v4708 = vmax.f32 %v4308, 0.0
      %v4709 = vmax.f32 %v4309, 0.0
      %v4710 = vmax.f32 %v4310, 0.0
      %v4711 = vmax.f32 %v4311, 0.0
      %v4712 = vmax.f32 %v4312, 0.0
      %v4713 = vmax.f32 %v4313, 0.0
      %v4714 = vmax.f32 %v4314, 0.0
      %v4715 = vmax.f32 %v4315, 0.0
      %v4716 = vmax.f32 %v4316, 0.0
      %v4717 = vmax.f32 %v4317, 0.0
      %v4718 = vmax.f32 %v4318, 0.0
      %v4719 = vmax.f32 %v4319, 0.0
      %v4720 = vmax.f32 %v4320, 0.0
      %v4721 = vmax.f32 %v4321, 0.0
      %v4722 = vmax.f32 %v4322, 0.0
      %v4723 = vmax.f32 %v4323, 0.0
      %v4724 = vmax.f32 %v4324, 0.0
      %v4725 = vmax.f32 %v4325, 0.0
      %v4726 = vmax.f32 %v4326, 0.0
      %v4727 = vmax.f32 %v4327, 0.0
      %v4728 = vmax.f32 %v4328, 0.0
      %v4729 = vmax.f32 %v4329, 0.0
      %v4730 = vmax.f32 %v4330, 0.0
      %v4731 = vmax.f32 %v4331, 0.0
      %v4732 = vmax.f32 %v4332, 0.0
      %v4733 = vmax.f32 %v4333, 0.0
      %v4734 = vmax.f32 %v4334, 0.0
      %v4735 = vmax.f32 %v4335, 0.0
      %v4736 = vmax.f32 %v4336, 0.0
      %v4737 = vmax.f32 %v4337, 0.0
      %v4738 = vmax.f32 %v4338, 0.0
      %v4739 = vmax.f32 %v4339, 0.0
      %v4740 = vmax.f32 %v4340, 0.0
      %v4741 = vmax.f32 %v4341, 0.0
      %v4742 = vmax.f32 %v4342, 0.0
      %v4743 = vmax.f32 %v4343, 0.0
      %v4744 = vmax.f32 %v4344, 0.0
      %v4745 = vmax.f32 %v4345, 0.0
      %v4746 = vmax.f32 %v4346, 0.0
      %v4747 = vmax.f32 %v4347, 0.0
      %v4748 = vmax.f32 %v4348, 0.0
      %v4749 = vmax.f32 %v4349, 0.0
      %v4750 = vmax.f32 %v4350, 0.0
      %v4751 = vmax.f32 %v4351, 0.0
      %v4752 = vmax.f32 %v4352, 0.0
      %v4753 = vmax.f32 %v4353, 0.0
      %v4754 = vmax.f32 %v4354, 0.0
      %v4755 = vmax.f32 %v4355, 0.0
      %v4756 = vmax.f32 %v4356, 0.0
      %v4757 = vmax.f32 %v4357, 0.0
      %v4758 = vmax.f32 %v4358, 0.0
      %v4759 = vmax.f32 %v4359, 0.0
      %v4760 = vmax.f32 %v4360, 0.0
      %v4761 = vmax.f32 %v4361, 0.0
      %v4762 = vmax.f32 %v4362, 0.0
      %v4763 = vmax.f32 %v4363, 0.0
      %v4764 = vmax.f32 %v4364, 0.0
      %v4765 = vmax.f32 %v4365, 0.0
      %v4766 = vmax.f32 %v4366, 0.0
      %v4767 = vmax.f32 %v4367, 0.0
      %v4768 = vmax.f32 %v4368, 0.0
      %v4769 = vmax.f32 %v4369, 0.0
      %v4770 = vmax.f32 %v4370, 0.0
      %v4771 = vmax.f32 %v4371, 0.0
      %v4772 = vmax.f32 %v4372, 0.0
      %v4773 = vmax.f32 %v4373, 0.0
      %v4774 = vmax.f32 %v4374, 0.0
      %v4775 = vmax.f32 %v4375, 0.0
      %v4776 = vmax.f32 %v4376, 0.0
      %v4777 = vmax.f32 %v4377, 0.0
      %v4778 = vmax.f32 %v4378, 0.0
      %v4779 = vmax.f32 %v4379, 0.0
      %v4780 = vmax.f32 %v4380, 0.0
      %v4781 = vmax.f32 %v4381, 0.0
      %v4782 = vmax.f32 %v4382, 0.0
      %v4783 = vmax.f32 %v4383, 0.0
      %v4784 = vmax.f32 %v4384, 0.0
      %v4785 = vmax.f32 %v4385, 0.0
      %v4786 = vmax.f32 %v4386, 0.0
      %v4787 = vmax.f32 %v4387, 0.0
      %v4788 = vmax.f32 %v4388, 0.0
      %v4789 = vmax.f32 %v4389, 0.0
      %v4790 = vmax.f32 %v4390, 0.0
      %v4791 = vmax.f32 %v4391, 0.0
      %v4792 = vmax.f32 %v4392, 0.0
      %v4793 = vmax.f32 %v4393, 0.0
      %v4794 = vmax.f32 %v4394, 0.0
      %v4795 = vmax.f32 %v4395, 0.0
      %v4796 = vmax.f32 %v4396, 0.0
      %v4797 = vmax.f32 %v4397, 0.0
      %v4798 = vmax.f32 %v4398, 0.0
      %v4799 = vmax.f32 %v4399, 0.0
      %v4800 = vmax.f32 %v4400, 0.0
      %v4801 = vmax.f32 %v4401, 0.0
      %v4802 = vmax.f32 %v4402, 0.0
      %v4803 = vmax.f32 %v4403, 0.0
      %v4804 = vmax.f32 %v4404, 0.0
      %v4805 = vmax.f32 %v4405, 0.0
      %v4806 = vmax.f32 %v4406, 0.0
      %v4807 = vmax.f32 %v4407, 0.0
      %v4808 = vmax.f32 %v4408, 0.0
      %v4809 = vmax.f32 %v4409, 0.0
      %v4810 = vmax.f32 %v4410, 0.0
      %v4811 = vmax.f32 %v4411, 0.0
      %v4812 = vmax.f32 %v4412, 0.0
      %v4813 = vmax.f32 %v4413, 0.0
      %v4814 = vmax.f32 %v4414, 0.0
      %v4815 = vmax.f32 %v4415, 0.0
      %v4816 = vmax.f32 %v4416, 0.0
      %v4817 = vmax.f32 %v4417, 0.0
      %v4818 = vmax.f32 %v4418, 0.0
      %v4819 = vmax.f32 %v4419, 0.0
      %v4820 = vmax.f32 %v4420, 0.0
      %v4821 = vmax.f32 %v4421, 0.0
      %v4822 = vpack.c.bf16 %v4438, %v4422
      %v4823 = vpack.c.bf16 %v4439, %v4423
      %v4824 = vpack.c.bf16 %v4440, %v4424
      %v4825 = vpack.c.bf16 %v4441, %v4425
      %v4826 = vpack.c.bf16 %v4442, %v4426
      %v4827 = vpack.c.bf16 %v4443, %v4427
      %v4828 = vpack.c.bf16 %v4444, %v4428
      %v4829 = vpack.c.bf16 %v4445, %v4429
      %v4830 = vpack.c.bf16 %v4446, %v4430
      %v4831 = vpack.c.bf16 %v4447, %v4431
      %v4832 = vpack.c.bf16 %v4448, %v4432
      %v4833 = vpack.c.bf16 %v4449, %v4433
      %v4834 = vpack.c.bf16 %v4450, %v4434
      %v4835 = vpack.c.bf16 %v4451, %v4435
      %v4836 = vpack.c.bf16 %v4452, %v4436
      %v4837 = vpack.c.bf16 %v4453, %v4437
      %v4838 = vpack.c.bf16 %v4470, %v4454
      %v4839 = vpack.c.bf16 %v4471, %v4455
      %v4840 = vpack.c.bf16 %v4472, %v4456
      %v4841 = vpack.c.bf16 %v4473, %v4457
      %v4842 = vpack.c.bf16 %v4474, %v4458
      %v4843 = vpack.c.bf16 %v4475, %v4459
      %v4844 = vpack.c.bf16 %v4476, %v4460
      %v4845 = vpack.c.bf16 %v4477, %v4461
      %v4846 = vpack.c.bf16 %v4478, %v4462
      %v4847 = vpack.c.bf16 %v4479, %v4463
      %v4848 = vpack.c.bf16 %v4480, %v4464
      %v4849 = vpack.c.bf16 %v4481, %v4465
      %v4850 = vpack.c.bf16 %v4482, %v4466
      %v4851 = vpack.c.bf16 %v4483, %v4467
      %v4852 = vpack.c.bf16 %v4484, %v4468
      %v4853 = vpack.c.bf16 %v4485, %v4469
      %v4854 = vpack.c.bf16 %v4502, %v4486
      %v4855 = vpack.c.bf16 %v4503, %v4487
      %v4856 = vpack.c.bf16 %v4504, %v4488
      %v4857 = vpack.c.bf16 %v4505, %v4489
      %v4858 = vpack.c.bf16 %v4506, %v4490
      %v4859 = vpack.c.bf16 %v4507, %v4491
      %v4860 = vpack.c.bf16 %v4508, %v4492
      %v4861 = vpack.c.bf16 %v4509, %v4493
      %v4862 = vpack.c.bf16 %v4510, %v4494
      %v4863 = vpack.c.bf16 %v4511, %v4495
      %v4864 = vpack.c.bf16 %v4512, %v4496
      %v4865 = vpack.c.bf16 %v4513, %v4497
      %v4866 = vpack.c.bf16 %v4514, %v4498
      %v4867 = vpack.c.bf16 %v4515, %v4499
      %v4868 = vpack.c.bf16 %v4516, %v4500
      %v4869 = vpack.c.bf16 %v4517, %v4501
      %v4870 = vpack.c.bf16 %v4534, %v4518
      %v4871 = vpack.c.bf16 %v4535, %v4519
      %v4872 = vpack.c.bf16 %v4536, %v4520
      %v4873 = vpack.c.bf16 %v4537, %v4521
      %v4874 = vpack.c.bf16 %v4538, %v4522
      %v4875 = vpack.c.bf16 %v4539, %v4523
      %v4876 = vpack.c.bf16 %v4540, %v4524
      %v4877 = vpack.c.bf16 %v4541, %v4525
      %v4878 = vpack.c.bf16 %v4542, %v4526
      %v4879 = vpack.c.bf16 %v4543, %v4527
      %v4880 = vpack.c.bf16 %v4544, %v4528
      %v4881 = vpack.c.bf16 %v4545, %v4529
      %v4882 = vpack.c.bf16 %v4546, %v4530
      %v4883 = vpack.c.bf16 %v4547, %v4531
      %v4884 = vpack.c.bf16 %v4548, %v4532
      %v4885 = vpack.c.bf16 %v4549, %v4533
      %v4886 = vpack.c.bf16 %v4566, %v4550
      %v4887 = vpack.c.bf16 %v4567, %v4551
      %v4888 = vpack.c.bf16 %v4568, %v4552
      %v4889 = vpack.c.bf16 %v4569, %v4553
      %v4890 = vpack.c.bf16 %v4570, %v4554
      %v4891 = vpack.c.bf16 %v4571, %v4555
      %v4892 = vpack.c.bf16 %v4572, %v4556
      %v4893 = vpack.c.bf16 %v4573, %v4557
      %v4894 = vpack.c.bf16 %v4574, %v4558
      %v4895 = vpack.c.bf16 %v4575, %v4559
      %v4896 = vpack.c.bf16 %v4576, %v4560
      %v4897 = vpack.c.bf16 %v4577, %v4561
      %v4898 = vpack.c.bf16 %v4578, %v4562
      %v4899 = vpack.c.bf16 %v4579, %v4563
      %v4900 = vpack.c.bf16 %v4580, %v4564
      %v4901 = vpack.c.bf16 %v4581, %v4565
      %v4902 = vpack.c.bf16 %v4598, %v4582
      %v4903 = vpack.c.bf16 %v4599, %v4583
      %v4904 = vpack.c.bf16 %v4600, %v4584
      %v4905 = vpack.c.bf16 %v4601, %v4585
      %v4906 = vpack.c.bf16 %v4602, %v4586
      %v4907 = vpack.c.bf16 %v4603, %v4587
      %v4908 = vpack.c.bf16 %v4604, %v4588
      %v4909 = vpack.c.bf16 %v4605, %v4589
      %v4910 = vpack.c.bf16 %v4606, %v4590
      %v4911 = vpack.c.bf16 %v4607, %v4591
      %v4912 = vpack.c.bf16 %v4608, %v4592
      %v4913 = vpack.c.bf16 %v4609, %v4593
      %v4914 = vpack.c.bf16 %v4610, %v4594
      %v4915 = vpack.c.bf16 %v4611, %v4595
      %v4916 = vpack.c.bf16 %v4612, %v4596
      %v4917 = vpack.c.bf16 %v4613, %v4597
      %v4918 = vpack.c.bf16 %v4630, %v4614
      %v4919 = vpack.c.bf16 %v4631, %v4615
      %v4920 = vpack.c.bf16 %v4632, %v4616
      %v4921 = vpack.c.bf16 %v4633, %v4617
      %v4922 = vpack.c.bf16 %v4634, %v4618
      %v4923 = vpack.c.bf16 %v4635, %v4619
      %v4924 = vpack.c.bf16 %v4636, %v4620
      %v4925 = vpack.c.bf16 %v4637, %v4621
      %v4926 = vpack.c.bf16 %v4638, %v4622
      %v4927 = vpack.c.bf16 %v4639, %v4623
      %v4928 = vpack.c.bf16 %v4640, %v4624
      %v4929 = vpack.c.bf16 %v4641, %v4625
      %v4930 = vpack.c.bf16 %v4642, %v4626
      %v4931 = vpack.c.bf16 %v4643, %v4627
      %v4932 = vpack.c.bf16 %v4644, %v4628
      %v4933 = vpack.c.bf16 %v4645, %v4629
      %v4934 = vpack.c.bf16 %v4662, %v4646
      %v4935 = vpack.c.bf16 %v4663, %v4647
      %v4936 = vpack.c.bf16 %v4664, %v4648
      %v4937 = vpack.c.bf16 %v4665, %v4649
      %v4938 = vpack.c.bf16 %v4666, %v4650
      %v4939 = vpack.c.bf16 %v4667, %v4651
      %v4940 = vpack.c.bf16 %v4668, %v4652
      %v4941 = vpack.c.bf16 %v4669, %v4653
      %v4942 = vpack.c.bf16 %v4670, %v4654
      %v4943 = vpack.c.bf16 %v4671, %v4655
      %v4944 = vpack.c.bf16 %v4672, %v4656
      %v4945 = vpack.c.bf16 %v4673, %v4657
      %v4946 = vpack.c.bf16 %v4674, %v4658
      %v4947 = vpack.c.bf16 %v4675, %v4659
      %v4948 = vpack.c.bf16 %v4676, %v4660
      %v4949 = vpack.c.bf16 %v4677, %v4661
      %v4950 = vpack.c.bf16 %v4694, %v4678
      %v4951 = vpack.c.bf16 %v4695, %v4679
      %v4952 = vpack.c.bf16 %v4696, %v4680
      %v4953 = vpack.c.bf16 %v4697, %v4681
      %v4954 = vpack.c.bf16 %v4698, %v4682
      %v4955 = vpack.c.bf16 %v4699, %v4683
      %v4956 = vpack.c.bf16 %v4700, %v4684
      %v4957 = vpack.c.bf16 %v4701, %v4685
      %v4958 = vpack.c.bf16 %v4702, %v4686
      %v4959 = vpack.c.bf16 %v4703, %v4687
      %v4960 = vpack.c.bf16 %v4704, %v4688
      %v4961 = vpack.c.bf16 %v4705, %v4689
      %v4962 = vpack.c.bf16 %v4706, %v4690
      %v4963 = vpack.c.bf16 %v4707, %v4691
      %v4964 = vpack.c.bf16 %v4708, %v4692
      %v4965 = vpack.c.bf16 %v4709, %v4693
      %v4966 = vpack.c.bf16 %v4726, %v4710
      %v4967 = vpack.c.bf16 %v4727, %v4711
      %v4968 = vpack.c.bf16 %v4728, %v4712
      %v4969 = vpack.c.bf16 %v4729, %v4713
      %v4970 = vpack.c.bf16 %v4730, %v4714
      %v4971 = vpack.c.bf16 %v4731, %v4715
      %v4972 = vpack.c.bf16 %v4732, %v4716
      %v4973 = vpack.c.bf16 %v4733, %v4717
      %v4974 = vpack.c.bf16 %v4734, %v4718
      %v4975 = vpack.c.bf16 %v4735, %v4719
      %v4976 = vpack.c.bf16 %v4736, %v4720
      %v4977 = vpack.c.bf16 %v4737, %v4721
      %v4978 = vpack.c.bf16 %v4738, %v4722
      %v4979 = vpack.c.bf16 %v4739, %v4723
      %v4980 = vpack.c.bf16 %v4740, %v4724
      %v4981 = vpack.c.bf16 %v4741, %v4725
      %v4982 = vpack.c.bf16 %v4758, %v4742
      %v4983 = vpack.c.bf16 %v4759, %v4743
      %v4984 = vpack.c.bf16 %v4760, %v4744
      %v4985 = vpack.c.bf16 %v4761, %v4745
      %v4986 = vpack.c.bf16 %v4762, %v4746
      %v4987 = vpack.c.bf16 %v4763, %v4747
      %v4988 = vpack.c.bf16 %v4764, %v4748
      %v4989 = vpack.c.bf16 %v4765, %v4749
      %v4990 = vpack.c.bf16 %v4766, %v4750
      %v4991 = vpack.c.bf16 %v4767, %v4751
      %v4992 = vpack.c.bf16 %v4768, %v4752
      %v4993 = vpack.c.bf16 %v4769, %v4753
      %v4994 = vpack.c.bf16 %v4770, %v4754
      %v4995 = vpack.c.bf16 %v4771, %v4755
      %v4996 = vpack.c.bf16 %v4772, %v4756
      %v4997 = vpack.c.bf16 %v4773, %v4757
      %v4998 = vpack.c.bf16 %v4790, %v4774
      %v4999 = vpack.c.bf16 %v4791, %v4775
      %v5000 = vpack.c.bf16 %v4792, %v4776
      %v5001 = vpack.c.bf16 %v4793, %v4777
      %v5002 = vpack.c.bf16 %v4794, %v4778
      %v5003 = vpack.c.bf16 %v4795, %v4779
      %v5004 = vpack.c.bf16 %v4796, %v4780
      %v5005 = vpack.c.bf16 %v4797, %v4781
      %v5006 = vpack.c.bf16 %v4798, %v4782
      %v5007 = vpack.c.bf16 %v4799, %v4783
      %v5008 = vpack.c.bf16 %v4800, %v4784
      %v5009 = vpack.c.bf16 %v4801, %v4785
      %v5010 = vpack.c.bf16 %v4802, %v4786
      %v5011 = vpack.c.bf16 %v4803, %v4787
      %v5012 = vpack.c.bf16 %v4804, %v4788
      %v5013 = vpack.c.bf16 %v4805, %v4789
      %v5014 = vpack.c.bf16 %v4806, %v4806
      %v5015 = vpack.c.bf16 %v4807, %v4807
      %v5016 = vpack.c.bf16 %v4808, %v4808
      %v5017 = vpack.c.bf16 %v4809, %v4809
      %v5018 = vpack.c.bf16 %v4810, %v4810
      %v5019 = vpack.c.bf16 %v4811, %v4811
      %v5020 = vpack.c.bf16 %v4812, %v4812
      %v5021 = vpack.c.bf16 %v4813, %v4813
      %v5022 = vpack.c.bf16 %v4814, %v4814
      %v5023 = vpack.c.bf16 %v4815, %v4815
      %v5024 = vpack.c.bf16 %v4816, %v4816
      %v5025 = vpack.c.bf16 %v4817, %v4817
      %v5026 = vpack.c.bf16 %v4818, %v4818
      %v5027 = vpack.c.bf16 %v4819, %v4819
      %v5028 = vpack.c.bf16 %v4820, %v4820
      %v5029 = vpack.c.bf16 %v4821, %v4821
      %v5238 = vunpack.c.l.b16 %v4822
      %v5239 = vunpack.c.l.b16 %v4823
      %v5240 = vunpack.c.l.b16 %v4824
      %v5241 = vunpack.c.l.b16 %v4825
      %v5242 = vunpack.c.l.b16 %v4826
      %v5243 = vunpack.c.l.b16 %v4827
      %v5244 = vunpack.c.l.b16 %v4828
      %v5245 = vunpack.c.l.b16 %v4829
      %v5246 = vunpack.c.l.b16 %v4830
      %v5247 = vunpack.c.l.b16 %v4831
      %v5248 = vunpack.c.l.b16 %v4832
      %v5249 = vunpack.c.l.b16 %v4833
      %v5250 = vunpack.c.l.b16 %v4834
      %v5251 = vunpack.c.l.b16 %v4835
      %v5252 = vunpack.c.l.b16 %v4836
      %v5253 = vunpack.c.l.b16 %v4837
      %v5254 = vunpack.c.h.b16 %v4822
      %v5255 = vunpack.c.h.b16 %v4823
      %v5256 = vunpack.c.h.b16 %v4824
      %v5257 = vunpack.c.h.b16 %v4825
      %v5258 = vunpack.c.h.b16 %v4826
      %v5259 = vunpack.c.h.b16 %v4827
      %v5260 = vunpack.c.h.b16 %v4828
      %v5261 = vunpack.c.h.b16 %v4829
      %v5262 = vunpack.c.h.b16 %v4830
      %v5263 = vunpack.c.h.b16 %v4831
      %v5264 = vunpack.c.h.b16 %v4832
      %v5265 = vunpack.c.h.b16 %v4833
      %v5266 = vunpack.c.h.b16 %v4834
      %v5267 = vunpack.c.h.b16 %v4835
      %v5268 = vunpack.c.h.b16 %v4836
      %v5269 = vunpack.c.h.b16 %v4837
      %v5270 = vunpack.c.l.b16 %v4838
      %v5271 = vunpack.c.l.b16 %v4839
      %v5272 = vunpack.c.l.b16 %v4840
      %v5273 = vunpack.c.l.b16 %v4841
      %v5274 = vunpack.c.l.b16 %v4842
      %v5275 = vunpack.c.l.b16 %v4843
      %v5276 = vunpack.c.l.b16 %v4844
      %v5277 = vunpack.c.l.b16 %v4845
      %v5278 = vunpack.c.l.b16 %v4846
      %v5279 = vunpack.c.l.b16 %v4847
      %v5280 = vunpack.c.l.b16 %v4848
      %v5281 = vunpack.c.l.b16 %v4849
      %v5282 = vunpack.c.l.b16 %v4850
      %v5283 = vunpack.c.l.b16 %v4851
      %v5284 = vunpack.c.l.b16 %v4852
      %v5285 = vunpack.c.l.b16 %v4853
      %v5286 = vunpack.c.h.b16 %v4838
      %v5287 = vunpack.c.h.b16 %v4839
      %v5288 = vunpack.c.h.b16 %v4840
      %v5289 = vunpack.c.h.b16 %v4841
      %v5290 = vunpack.c.h.b16 %v4842
      %v5291 = vunpack.c.h.b16 %v4843
      %v5292 = vunpack.c.h.b16 %v4844
      %v5293 = vunpack.c.h.b16 %v4845
      %v5294 = vunpack.c.h.b16 %v4846
      %v5295 = vunpack.c.h.b16 %v4847
      %v5296 = vunpack.c.h.b16 %v4848
      %v5297 = vunpack.c.h.b16 %v4849
      %v5298 = vunpack.c.h.b16 %v4850
      %v5299 = vunpack.c.h.b16 %v4851
      %v5300 = vunpack.c.h.b16 %v4852
      %v5301 = vunpack.c.h.b16 %v4853
      %v5302 = vunpack.c.l.b16 %v4854
      %v5303 = vunpack.c.l.b16 %v4855
      %v5304 = vunpack.c.l.b16 %v4856
      %v5305 = vunpack.c.l.b16 %v4857
      %v5306 = vunpack.c.l.b16 %v4858
      %v5307 = vunpack.c.l.b16 %v4859
      %v5308 = vunpack.c.l.b16 %v4860
      %v5309 = vunpack.c.l.b16 %v4861
      %v5310 = vunpack.c.l.b16 %v4862
      %v5311 = vunpack.c.l.b16 %v4863
      %v5312 = vunpack.c.l.b16 %v4864
      %v5313 = vunpack.c.l.b16 %v4865
      %v5314 = vunpack.c.l.b16 %v4866
      %v5315 = vunpack.c.l.b16 %v4867
      %v5316 = vunpack.c.l.b16 %v4868
      %v5317 = vunpack.c.l.b16 %v4869
      %v5318 = vunpack.c.h.b16 %v4854
      %v5319 = vunpack.c.h.b16 %v4855
      %v5320 = vunpack.c.h.b16 %v4856
      %v5321 = vunpack.c.h.b16 %v4857
      %v5322 = vunpack.c.h.b16 %v4858
      %v5323 = vunpack.c.h.b16 %v4859
      %v5324 = vunpack.c.h.b16 %v4860
      %v5325 = vunpack.c.h.b16 %v4861
      %v5326 = vunpack.c.h.b16 %v4862
      %v5327 = vunpack.c.h.b16 %v4863
      %v5328 = vunpack.c.h.b16 %v4864
      %v5329 = vunpack.c.h.b16 %v4865
      %v5330 = vunpack.c.h.b16 %v4866
      %v5331 = vunpack.c.h.b16 %v4867
      %v5332 = vunpack.c.h.b16 %v4868
      %v5333 = vunpack.c.h.b16 %v4869
      %v5334 = vunpack.c.l.b16 %v4870
      %v5335 = vunpack.c.l.b16 %v4871
      %v5336 = vunpack.c.l.b16 %v4872
      %v5337 = vunpack.c.l.b16 %v4873
      %v5338 = vunpack.c.l.b16 %v4874
      %v5339 = vunpack.c.l.b16 %v4875
      %v5340 = vunpack.c.l.b16 %v4876
      %v5341 = vunpack.c.l.b16 %v4877
      %v5342 = vunpack.c.l.b16 %v4878
      %v5343 = vunpack.c.l.b16 %v4879
      %v5344 = vunpack.c.l.b16 %v4880
      %v5345 = vunpack.c.l.b16 %v4881
      %v5346 = vunpack.c.l.b16 %v4882
      %v5347 = vunpack.c.l.b16 %v4883
      %v5348 = vunpack.c.l.b16 %v4884
      %v5349 = vunpack.c.l.b16 %v4885
      %v5350 = vunpack.c.h.b16 %v4870
      %v5351 = vunpack.c.h.b16 %v4871
      %v5352 = vunpack.c.h.b16 %v4872
      %v5353 = vunpack.c.h.b16 %v4873
      %v5354 = vunpack.c.h.b16 %v4874
      %v5355 = vunpack.c.h.b16 %v4875
      %v5356 = vunpack.c.h.b16 %v4876
      %v5357 = vunpack.c.h.b16 %v4877
      %v5358 = vunpack.c.h.b16 %v4878
      %v5359 = vunpack.c.h.b16 %v4879
      %v5360 = vunpack.c.h.b16 %v4880
      %v5361 = vunpack.c.h.b16 %v4881
      %v5362 = vunpack.c.h.b16 %v4882
      %v5363 = vunpack.c.h.b16 %v4883
      %v5364 = vunpack.c.h.b16 %v4884
      %v5365 = vunpack.c.h.b16 %v4885
      %v5366 = vunpack.c.l.b16 %v4886
      %v5367 = vunpack.c.l.b16 %v4887
      %v5368 = vunpack.c.l.b16 %v4888
      %v5369 = vunpack.c.l.b16 %v4889
      %v5370 = vunpack.c.l.b16 %v4890
      %v5371 = vunpack.c.l.b16 %v4891
      %v5372 = vunpack.c.l.b16 %v4892
      %v5373 = vunpack.c.l.b16 %v4893
      %v5374 = vunpack.c.l.b16 %v4894
      %v5375 = vunpack.c.l.b16 %v4895
      %v5376 = vunpack.c.l.b16 %v4896
      %v5377 = vunpack.c.l.b16 %v4897
      %v5378 = vunpack.c.l.b16 %v4898
      %v5379 = vunpack.c.l.b16 %v4899
      %v5380 = vunpack.c.l.b16 %v4900
      %v5381 = vunpack.c.l.b16 %v4901
      %v5382 = vunpack.c.h.b16 %v4886
      %v5383 = vunpack.c.h.b16 %v4887
      %v5384 = vunpack.c.h.b16 %v4888
      %v5385 = vunpack.c.h.b16 %v4889
      %v5386 = vunpack.c.h.b16 %v4890
      %v5387 = vunpack.c.h.b16 %v4891
      %v5388 = vunpack.c.h.b16 %v4892
      %v5389 = vunpack.c.h.b16 %v4893
      %v5390 = vunpack.c.h.b16 %v4894
      %v5391 = vunpack.c.h.b16 %v4895
      %v5392 = vunpack.c.h.b16 %v4896
      %v5393 = vunpack.c.h.b16 %v4897
      %v5394 = vunpack.c.h.b16 %v4898
      %v5395 = vunpack.c.h.b16 %v4899
      %v5396 = vunpack.c.h.b16 %v4900
      %v5397 = vunpack.c.h.b16 %v4901
      %v5398 = vunpack.c.l.b16 %v4902
      %v5399 = vunpack.c.l.b16 %v4903
      %v5400 = vunpack.c.l.b16 %v4904
      %v5401 = vunpack.c.l.b16 %v4905
      %v5402 = vunpack.c.l.b16 %v4906
      %v5403 = vunpack.c.l.b16 %v4907
      %v5404 = vunpack.c.l.b16 %v4908
      %v5405 = vunpack.c.l.b16 %v4909
      %v5406 = vunpack.c.l.b16 %v4910
      %v5407 = vunpack.c.l.b16 %v4911
      %v5408 = vunpack.c.l.b16 %v4912
      %v5409 = vunpack.c.l.b16 %v4913
      %v5410 = vunpack.c.l.b16 %v4914
      %v5411 = vunpack.c.l.b16 %v4915
      %v5412 = vunpack.c.l.b16 %v4916
      %v5413 = vunpack.c.l.b16 %v4917
      %v5414 = vunpack.c.h.b16 %v4902
      %v5415 = vunpack.c.h.b16 %v4903
      %v5416 = vunpack.c.h.b16 %v4904
      %v5417 = vunpack.c.h.b16 %v4905
      %v5418 = vunpack.c.h.b16 %v4906
      %v5419 = vunpack.c.h.b16 %v4907
      %v5420 = vunpack.c.h.b16 %v4908
      %v5421 = vunpack.c.h.b16 %v4909
      %v5422 = vunpack.c.h.b16 %v4910
      %v5423 = vunpack.c.h.b16 %v4911
      %v5424 = vunpack.c.h.b16 %v4912
      %v5425 = vunpack.c.h.b16 %v4913
      %v5426 = vunpack.c.h.b16 %v4914
      %v5427 = vunpack.c.h.b16 %v4915
      %v5428 = vunpack.c.h.b16 %v4916
      %v5429 = vunpack.c.h.b16 %v4917
      %v5430 = vunpack.c.l.b16 %v4918
      %v5431 = vunpack.c.l.b16 %v4919
      %v5432 = vunpack.c.l.b16 %v4920
      %v5433 = vunpack.c.l.b16 %v4921
      %v5434 = vunpack.c.l.b16 %v4922
      %v5435 = vunpack.c.l.b16 %v4923
      %v5436 = vunpack.c.l.b16 %v4924
      %v5437 = vunpack.c.l.b16 %v4925
      %v5438 = vunpack.c.l.b16 %v4926
      %v5439 = vunpack.c.l.b16 %v4927
      %v5440 = vunpack.c.l.b16 %v4928
      %v5441 = vunpack.c.l.b16 %v4929
      %v5442 = vunpack.c.l.b16 %v4930
      %v5443 = vunpack.c.l.b16 %v4931
      %v5444 = vunpack.c.l.b16 %v4932
      %v5445 = vunpack.c.l.b16 %v4933
      %v5446 = vunpack.c.h.b16 %v4918
      %v5447 = vunpack.c.h.b16 %v4919
      %v5448 = vunpack.c.h.b16 %v4920
      %v5449 = vunpack.c.h.b16 %v4921
      %v5450 = vunpack.c.h.b16 %v4922
      %v5451 = vunpack.c.h.b16 %v4923
      %v5452 = vunpack.c.h.b16 %v4924
      %v5453 = vunpack.c.h.b16 %v4925
      %v5454 = vunpack.c.h.b16 %v4926
      %v5455 = vunpack.c.h.b16 %v4927
      %v5456 = vunpack.c.h.b16 %v4928
      %v5457 = vunpack.c.h.b16 %v4929
      %v5458 = vunpack.c.h.b16 %v4930
      %v5459 = vunpack.c.h.b16 %v4931
      %v5460 = vunpack.c.h.b16 %v4932
      %v5461 = vunpack.c.h.b16 %v4933
      %v5462 = vunpack.c.l.b16 %v4934
      %v5463 = vunpack.c.l.b16 %v4935
      %v5464 = vunpack.c.l.b16 %v4936
      %v5465 = vunpack.c.l.b16 %v4937
      %v5466 = vunpack.c.l.b16 %v4938
      %v5467 = vunpack.c.l.b16 %v4939
      %v5468 = vunpack.c.l.b16 %v4940
      %v5469 = vunpack.c.l.b16 %v4941
      %v5470 = vunpack.c.l.b16 %v4942
      %v5471 = vunpack.c.l.b16 %v4943
      %v5472 = vunpack.c.l.b16 %v4944
      %v5473 = vunpack.c.l.b16 %v4945
      %v5474 = vunpack.c.l.b16 %v4946
      %v5475 = vunpack.c.l.b16 %v4947
      %v5476 = vunpack.c.l.b16 %v4948
      %v5477 = vunpack.c.l.b16 %v4949
      %v5478 = vunpack.c.h.b16 %v4934
      %v5479 = vunpack.c.h.b16 %v4935
      %v5480 = vunpack.c.h.b16 %v4936
      %v5481 = vunpack.c.h.b16 %v4937
      %v5482 = vunpack.c.h.b16 %v4938
      %v5483 = vunpack.c.h.b16 %v4939
      %v5484 = vunpack.c.h.b16 %v4940
      %v5485 = vunpack.c.h.b16 %v4941
      %v5486 = vunpack.c.h.b16 %v4942
      %v5487 = vunpack.c.h.b16 %v4943
      %v5488 = vunpack.c.h.b16 %v4944
      %v5489 = vunpack.c.h.b16 %v4945
      %v5490 = vunpack.c.h.b16 %v4946
      %v5491 = vunpack.c.h.b16 %v4947
      %v5492 = vunpack.c.h.b16 %v4948
      %v5493 = vunpack.c.h.b16 %v4949
      %v5494 = vunpack.c.l.b16 %v4950
      %v5495 = vunpack.c.l.b16 %v4951
      %v5496 = vunpack.c.l.b16 %v4952
      %v5497 = vunpack.c.l.b16 %v4953
      %v5498 = vunpack.c.l.b16 %v4954
      %v5499 = vunpack.c.l.b16 %v4955
      %v5500 = vunpack.c.l.b16 %v4956
      %v5501 = vunpack.c.l.b16 %v4957
      %v5502 = vunpack.c.l.b16 %v4958
      %v5503 = vunpack.c.l.b16 %v4959
      %v5504 = vunpack.c.l.b16 %v4960
      %v5505 = vunpack.c.l.b16 %v4961
      %v5506 = vunpack.c.l.b16 %v4962
      %v5507 = vunpack.c.l.b16 %v4963
      %v5508 = vunpack.c.l.b16 %v4964
      %v5509 = vunpack.c.l.b16 %v4965
      %v5510 = vunpack.c.h.b16 %v4950
      %v5511 = vunpack.c.h.b16 %v4951
      %v5512 = vunpack.c.h.b16 %v4952
      %v5513 = vunpack.c.h.b16 %v4953
      %v5514 = vunpack.c.h.b16 %v4954
      %v5515 = vunpack.c.h.b16 %v4955
      %v5516 = vunpack.c.h.b16 %v4956
      %v5517 = vunpack.c.h.b16 %v4957
      %v5518 = vunpack.c.h.b16 %v4958
      %v5519 = vunpack.c.h.b16 %v4959
      %v5520 = vunpack.c.h.b16 %v4960
      %v5521 = vunpack.c.h.b16 %v4961
      %v5522 = vunpack.c.h.b16 %v4962
      %v5523 = vunpack.c.h.b16 %v4963
      %v5524 = vunpack.c.h.b16 %v4964
      %v5525 = vunpack.c.h.b16 %v4965
      %v5526 = vunpack.c.l.b16 %v4966
      %v5527 = vunpack.c.l.b16 %v4967
      %v5528 = vunpack.c.l.b16 %v4968
      %v5529 = vunpack.c.l.b16 %v4969
      %v5530 = vunpack.c.l.b16 %v4970
      %v5531 = vunpack.c.l.b16 %v4971
      %v5532 = vunpack.c.l.b16 %v4972
      %v5533 = vunpack.c.l.b16 %v4973
      %v5534 = vunpack.c.l.b16 %v4974
      %v5535 = vunpack.c.l.b16 %v4975
      %v5536 = vunpack.c.l.b16 %v4976
      %v5537 = vunpack.c.l.b16 %v4977
      %v5538 = vunpack.c.l.b16 %v4978
      %v5539 = vunpack.c.l.b16 %v4979
      %v5540 = vunpack.c.l.b16 %v4980
      %v5541 = vunpack.c.l.b16 %v4981
      %v5542 = vunpack.c.h.b16 %v4966
      %v5543 = vunpack.c.h.b16 %v4967
      %v5544 = vunpack.c.h.b16 %v4968
      %v5545 = vunpack.c.h.b16 %v4969
      %v5546 = vunpack.c.h.b16 %v4970
      %v5547 = vunpack.c.h.b16 %v4971
      %v5548 = vunpack.c.h.b16 %v4972
      %v5549 = vunpack.c.h.b16 %v4973
      %v5550 = vunpack.c.h.b16 %v4974
      %v5551 = vunpack.c.h.b16 %v4975
      %v5552 = vunpack.c.h.b16 %v4976
      %v5553 = vunpack.c.h.b16 %v4977
      %v5554 = vunpack.c.h.b16 %v4978
      %v5555 = vunpack.c.h.b16 %v4979
      %v5556 = vunpack.c.h.b16 %v4980
      %v5557 = vunpack.c.h.b16 %v4981
      %v5558 = vunpack.c.l.b16 %v4982
      %v5559 = vunpack.c.l.b16 %v4983
      %v5560 = vunpack.c.l.b16 %v4984
      %v5561 = vunpack.c.l.b16 %v4985
      %v5562 = vunpack.c.l.b16 %v4986
      %v5563 = vunpack.c.l.b16 %v4987
      %v5564 = vunpack.c.l.b16 %v4988
      %v5565 = vunpack.c.l.b16 %v4989
      %v5566 = vunpack.c.l.b16 %v4990
      %v5567 = vunpack.c.l.b16 %v4991
      %v5568 = vunpack.c.l.b16 %v4992
      %v5569 = vunpack.c.l.b16 %v4993
      %v5570 = vunpack.c.l.b16 %v4994
      %v5571 = vunpack.c.l.b16 %v4995
      %v5572 = vunpack.c.l.b16 %v4996
      %v5573 = vunpack.c.l.b16 %v4997
      %v5574 = vunpack.c.h.b16 %v4982
      %v5575 = vunpack.c.h.b16 %v4983
      %v5576 = vunpack.c.h.b16 %v4984
      %v5577 = vunpack.c.h.b16 %v4985
      %v5578 = vunpack.c.h.b16 %v4986
      %v5579 = vunpack.c.h.b16 %v4987
      %v5580 = vunpack.c.h.b16 %v4988
      %v5581 = vunpack.c.h.b16 %v4989
      %v5582 = vunpack.c.h.b16 %v4990
      %v5583 = vunpack.c.h.b16 %v4991
      %v5584 = vunpack.c.h.b16 %v4992
      %v5585 = vunpack.c.h.b16 %v4993
      %v5586 = vunpack.c.h.b16 %v4994
      %v5587 = vunpack.c.h.b16 %v4995
      %v5588 = vunpack.c.h.b16 %v4996
      %v5589 = vunpack.c.h.b16 %v4997
      %v5590 = vunpack.c.l.b16 %v4998
      %v5591 = vunpack.c.l.b16 %v4999
      %v5592 = vunpack.c.l.b16 %v5000
      %v5593 = vunpack.c.l.b16 %v5001
      %v5594 = vunpack.c.l.b16 %v5002
      %v5595 = vunpack.c.l.b16 %v5003
      %v5596 = vunpack.c.l.b16 %v5004
      %v5597 = vunpack.c.l.b16 %v5005
      %v5598 = vunpack.c.l.b16 %v5006
      %v5599 = vunpack.c.l.b16 %v5007
      %v5600 = vunpack.c.l.b16 %v5008
      %v5601 = vunpack.c.l.b16 %v5009
      %v5602 = vunpack.c.l.b16 %v5010
      %v5603 = vunpack.c.l.b16 %v5011
      %v5604 = vunpack.c.l.b16 %v5012
      %v5605 = vunpack.c.l.b16 %v5013
      %v5606 = vunpack.c.h.b16 %v4998
      %v5607 = vunpack.c.h.b16 %v4999
      %v5608 = vunpack.c.h.b16 %v5000
      %v5609 = vunpack.c.h.b16 %v5001
      %v5610 = vunpack.c.h.b16 %v5002
      %v5611 = vunpack.c.h.b16 %v5003
      %v5612 = vunpack.c.h.b16 %v5004
      %v5613 = vunpack.c.h.b16 %v5005
      %v5614 = vunpack.c.h.b16 %v5006
      %v5615 = vunpack.c.h.b16 %v5007
      %v5616 = vunpack.c.h.b16 %v5008
      %v5617 = vunpack.c.h.b16 %v5009
      %v5618 = vunpack.c.h.b16 %v5010
      %v5619 = vunpack.c.h.b16 %v5011
      %v5620 = vunpack.c.h.b16 %v5012
      %v5621 = vunpack.c.h.b16 %v5013
      %v5622 = vunpack.c.l.b16 %v5014
      %v5623 = vunpack.c.l.b16 %v5015
      %v5624 = vunpack.c.l.b16 %v5016
      %v5625 = vunpack.c.l.b16 %v5017
      %v5626 = vunpack.c.l.b16 %v5018
      %v5627 = vunpack.c.l.b16 %v5019
      %v5628 = vunpack.c.l.b16 %v5020
      %v5629 = vunpack.c.l.b16 %v5021
      %v5630 = vunpack.c.l.b16 %v5022
      %v5631 = vunpack.c.l.b16 %v5023
      %v5632 = vunpack.c.l.b16 %v5024
      %v5633 = vunpack.c.l.b16 %v5025
      %v5634 = vunpack.c.l.b16 %v5026
      %v5635 = vunpack.c.l.b16 %v5027
      %v5636 = vunpack.c.l.b16 %v5028
      %v5637 = vunpack.c.l.b16 %v5029
      %v5638 = vpack.c.b16 %v5239, %v5238
      %v5639 = vpack.c.b16 %v5241, %v5240
      %v5640 = vpack.c.b16 %v5243, %v5242
      %v5641 = vpack.c.b16 %v5245, %v5244
      %v5642 = vpack.c.b16 %v5247, %v5246
      %v5643 = vpack.c.b16 %v5249, %v5248
      %v5644 = vpack.c.b16 %v5251, %v5250
      %v5645 = vpack.c.b16 %v5253, %v5252
      %v5646 = vpack.c.b16 %v5255, %v5254
      %v5647 = vpack.c.b16 %v5257, %v5256
      %v5648 = vpack.c.b16 %v5259, %v5258
      %v5649 = vpack.c.b16 %v5261, %v5260
      %v5650 = vpack.c.b16 %v5263, %v5262
      %v5651 = vpack.c.b16 %v5265, %v5264
      %v5652 = vpack.c.b16 %v5267, %v5266
      %v5653 = vpack.c.b16 %v5269, %v5268
      %v5654 = vpack.c.b16 %v5271, %v5270
      %v5655 = vpack.c.b16 %v5273, %v5272
      %v5656 = vpack.c.b16 %v5275, %v5274
      %v5657 = vpack.c.b16 %v5277, %v5276
      %v5658 = vpack.c.b16 %v5279, %v5278
      %v5659 = vpack.c.b16 %v5281, %v5280
      %v5660 = vpack.c.b16 %v5283, %v5282
      %v5661 = vpack.c.b16 %v5285, %v5284
      %v5662 = vpack.c.b16 %v5287, %v5286
      %v5663 = vpack.c.b16 %v5289, %v5288
      %v5664 = vpack.c.b16 %v5291, %v5290
      %v5665 = vpack.c.b16 %v5293, %v5292
      %v5666 = vpack.c.b16 %v5295, %v5294
      %v5667 = vpack.c.b16 %v5297, %v5296
      %v5668 = vpack.c.b16 %v5299, %v5298
      %v5669 = vpack.c.b16 %v5301, %v5300
      %v5670 = vpack.c.b16 %v5303, %v5302
      %v5671 = vpack.c.b16 %v5305, %v5304
      %v5672 = vpack.c.b16 %v5307, %v5306
      %v5673 = vpack.c.b16 %v5309, %v5308
      %v5674 = vpack.c.b16 %v5311, %v5310
      %v5675 = vpack.c.b16 %v5313, %v5312
      %v5676 = vpack.c.b16 %v5315, %v5314
      %v5677 = vpack.c.b16 %v5317, %v5316
      %v5678 = vpack.c.b16 %v5319, %v5318
      %v5679 = vpack.c.b16 %v5321, %v5320
      %v5680 = vpack.c.b16 %v5323, %v5322
      %v5681 = vpack.c.b16 %v5325, %v5324
      %v5682 = vpack.c.b16 %v5327, %v5326
      %v5683 = vpack.c.b16 %v5329, %v5328
      %v5684 = vpack.c.b16 %v5331, %v5330
      %v5685 = vpack.c.b16 %v5333, %v5332
      %v5686 = vpack.c.b16 %v5335, %v5334
      %v5687 = vpack.c.b16 %v5337, %v5336
      %v5688 = vpack.c.b16 %v5339, %v5338
      %v5689 = vpack.c.b16 %v5341, %v5340
      %v5690 = vpack.c.b16 %v5343, %v5342
      %v5691 = vpack.c.b16 %v5345, %v5344
      %v5692 = vpack.c.b16 %v5347, %v5346
      %v5693 = vpack.c.b16 %v5349, %v5348
      %v5694 = vpack.c.b16 %v5351, %v5350
      %v5695 = vpack.c.b16 %v5353, %v5352
      %v5696 = vpack.c.b16 %v5355, %v5354
      %v5697 = vpack.c.b16 %v5357, %v5356
      %v5698 = vpack.c.b16 %v5359, %v5358
      %v5699 = vpack.c.b16 %v5361, %v5360
      %v5700 = vpack.c.b16 %v5363, %v5362
      %v5701 = vpack.c.b16 %v5365, %v5364
      %v5702 = vpack.c.b16 %v5367, %v5366
      %v5703 = vpack.c.b16 %v5369, %v5368
      %v5704 = vpack.c.b16 %v5371, %v5370
      %v5705 = vpack.c.b16 %v5373, %v5372
      %v5706 = vpack.c.b16 %v5375, %v5374
      %v5707 = vpack.c.b16 %v5377, %v5376
      %v5708 = vpack.c.b16 %v5379, %v5378
      %v5709 = vpack.c.b16 %v5381, %v5380
      %v5710 = vpack.c.b16 %v5383, %v5382
      %v5711 = vpack.c.b16 %v5385, %v5384
      %v5712 = vpack.c.b16 %v5387, %v5386
      %v5713 = vpack.c.b16 %v5389, %v5388
      %v5714 = vpack.c.b16 %v5391, %v5390
      %v5715 = vpack.c.b16 %v5393, %v5392
      %v5716 = vpack.c.b16 %v5395, %v5394
      %v5717 = vpack.c.b16 %v5397, %v5396
      %v5718 = vpack.c.b16 %v5399, %v5398
      %v5719 = vpack.c.b16 %v5401, %v5400
      %v5720 = vpack.c.b16 %v5403, %v5402
      %v5721 = vpack.c.b16 %v5405, %v5404
      %v5722 = vpack.c.b16 %v5407, %v5406
      %v5723 = vpack.c.b16 %v5409, %v5408
      %v5724 = vpack.c.b16 %v5411, %v5410
      %v5725 = vpack.c.b16 %v5413, %v5412
      %v5726 = vpack.c.b16 %v5415, %v5414
      %v5727 = vpack.c.b16 %v5417, %v5416
      %v5728 = vpack.c.b16 %v5419, %v5418
      %v5729 = vpack.c.b16 %v5421, %v5420
      %v5730 = vpack.c.b16 %v5423, %v5422
      %v5731 = vpack.c.b16 %v5425, %v5424
      %v5732 = vpack.c.b16 %v5427, %v5426
      %v5733 = vpack.c.b16 %v5429, %v5428
      %v5734 = vpack.c.b16 %v5431, %v5430
      %v5735 = vpack.c.b16 %v5433, %v5432
      %v5736 = vpack.c.b16 %v5435, %v5434
      %v5737 = vpack.c.b16 %v5437, %v5436
      %v5738 = vpack.c.b16 %v5439, %v5438
      %v5739 = vpack.c.b16 %v5441, %v5440
      %v5740 = vpack.c.b16 %v5443, %v5442
      %v5741 = vpack.c.b16 %v5445, %v5444
      %v5742 = vpack.c.b16 %v5447, %v5446
      %v5743 = vpack.c.b16 %v5449, %v5448
      %v5744 = vpack.c.b16 %v5451, %v5450
      %v5745 = vpack.c.b16 %v5453, %v5452
      %v5746 = vpack.c.b16 %v5455, %v5454
      %v5747 = vpack.c.b16 %v5457, %v5456
      %v5748 = vpack.c.b16 %v5459, %v5458
      %v5749 = vpack.c.b16 %v5461, %v5460
      %v5750 = vpack.c.b16 %v5463, %v5462
      %v5751 = vpack.c.b16 %v5465, %v5464
      %v5752 = vpack.c.b16 %v5467, %v5466
      %v5753 = vpack.c.b16 %v5469, %v5468
      %v5754 = vpack.c.b16 %v5471, %v5470
      %v5755 = vpack.c.b16 %v5473, %v5472
      %v5756 = vpack.c.b16 %v5475, %v5474
      %v5757 = vpack.c.b16 %v5477, %v5476
      %v5758 = vpack.c.b16 %v5479, %v5478
      %v5759 = vpack.c.b16 %v5481, %v5480
      %v5760 = vpack.c.b16 %v5483, %v5482
      %v5761 = vpack.c.b16 %v5485, %v5484
      %v5762 = vpack.c.b16 %v5487, %v5486
      %v5763 = vpack.c.b16 %v5489, %v5488
      %v5764 = vpack.c.b16 %v5491, %v5490
      %v5765 = vpack.c.b16 %v5493, %v5492
      %v5766 = vpack.c.b16 %v5495, %v5494
      %v5767 = vpack.c.b16 %v5497, %v5496
      %v5768 = vpack.c.b16 %v5499, %v5498
      %v5769 = vpack.c.b16 %v5501, %v5500
      %v5770 = vpack.c.b16 %v5503, %v5502
      %v5771 = vpack.c.b16 %v5505, %v5504
      %v5772 = vpack.c.b16 %v5507, %v5506
      %v5773 = vpack.c.b16 %v5509, %v5508
      %v5774 = vpack.c.b16 %v5511, %v5510
      %v5775 = vpack.c.b16 %v5513, %v5512
      %v5776 = vpack.c.b16 %v5515, %v5514
      %v5777 = vpack.c.b16 %v5517, %v5516
      %v5778 = vpack.c.b16 %v5519, %v5518
      %v5779 = vpack.c.b16 %v5521, %v5520
      %v5780 = vpack.c.b16 %v5523, %v5522
      %v5781 = vpack.c.b16 %v5525, %v5524
      %v5782 = vpack.c.b16 %v5527, %v5526
      %v5783 = vpack.c.b16 %v5529, %v5528
      %v5784 = vpack.c.b16 %v5531, %v5530
      %v5785 = vpack.c.b16 %v5533, %v5532
      %v5786 = vpack.c.b16 %v5535, %v5534
      %v5787 = vpack.c.b16 %v5537, %v5536
      %v5788 = vpack.c.b16 %v5539, %v5538
      %v5789 = vpack.c.b16 %v5541, %v5540
      %v5790 = vpack.c.b16 %v5543, %v5542
      %v5791 = vpack.c.b16 %v5545, %v5544
      %v5792 = vpack.c.b16 %v5547, %v5546
      %v5793 = vpack.c.b16 %v5549, %v5548
      %v5794 = vpack.c.b16 %v5551, %v5550
      %v5795 = vpack.c.b16 %v5553, %v5552
      %v5796 = vpack.c.b16 %v5555, %v5554
      %v5797 = vpack.c.b16 %v5557, %v5556
      %v5798 = vpack.c.b16 %v5559, %v5558
      %v5799 = vpack.c.b16 %v5561, %v5560
      %v5800 = vpack.c.b16 %v5563, %v5562
      %v5801 = vpack.c.b16 %v5565, %v5564
      %v5802 = vpack.c.b16 %v5567, %v5566
      %v5803 = vpack.c.b16 %v5569, %v5568
      %v5804 = vpack.c.b16 %v5571, %v5570
      %v5805 = vpack.c.b16 %v5573, %v5572
      %v5806 = vpack.c.b16 %v5575, %v5574
      %v5807 = vpack.c.b16 %v5577, %v5576
      %v5808 = vpack.c.b16 %v5579, %v5578
      %v5809 = vpack.c.b16 %v5581, %v5580
      %v5810 = vpack.c.b16 %v5583, %v5582
      %v5811 = vpack.c.b16 %v5585, %v5584
      %v5812 = vpack.c.b16 %v5587, %v5586
      %v5813 = vpack.c.b16 %v5589, %v5588
      %v5814 = vpack.c.b16 %v5591, %v5590
      %v5815 = vpack.c.b16 %v5593, %v5592
      %v5816 = vpack.c.b16 %v5595, %v5594
      %v5817 = vpack.c.b16 %v5597, %v5596
      %v5818 = vpack.c.b16 %v5599, %v5598
      %v5819 = vpack.c.b16 %v5601, %v5600
      %v5820 = vpack.c.b16 %v5603, %v5602
      %v5821 = vpack.c.b16 %v5605, %v5604
      %v5822 = vpack.c.b16 %v5607, %v5606
      %v5823 = vpack.c.b16 %v5609, %v5608
      %v5824 = vpack.c.b16 %v5611, %v5610
      %v5825 = vpack.c.b16 %v5613, %v5612
      %v5826 = vpack.c.b16 %v5615, %v5614
      %v5827 = vpack.c.b16 %v5617, %v5616
      %v5828 = vpack.c.b16 %v5619, %v5618
      %v5829 = vpack.c.b16 %v5621, %v5620
      %v5830 = vpack.c.b16 %v5623, %v5622
      %v5831 = vpack.c.b16 %v5625, %v5624
      %v5832 = vpack.c.b16 %v5627, %v5626
      %v5833 = vpack.c.b16 %v5629, %v5628
      %v5834 = vpack.c.b16 %v5631, %v5630
      %v5835 = vpack.c.b16 %v5633, %v5632
      %v5836 = vpack.c.b16 %v5635, %v5634
      %v5837 = vpack.c.b16 %v5637, %v5636
      %6038 = vst [vmem:[#allocation6] sm:$0xff] %v5638
      %6039 = vst [vmem:[#allocation6 + $0x8] sm:$0xff] %v5639
      %6040 = vst [vmem:[#allocation6 + $0x10] sm:$0xff] %v5640
      %6041 = vst [vmem:[#allocation6 + $0x18] sm:$0xff] %v5641
      %6042 = vst [vmem:[#allocation6 + $0x20] sm:$0xff] %v5642
      %6043 = vst [vmem:[#allocation6 + $0x28] sm:$0xff] %v5643
      %6044 = vst [vmem:[#allocation6 + $0x30] sm:$0xff] %v5644
      %6045 = vst [vmem:[#allocation6 + $0x38] sm:$0xff] %v5645
      %6046 = vst [vmem:[#allocation6 + $0x40] sm:$0xff] %v5646
      %6047 = vst [vmem:[#allocation6 + $0x48] sm:$0xff] %v5647
      %6048 = vst [vmem:[#allocation6 + $0x50] sm:$0xff] %v5648
      %6049 = vst [vmem:[#allocation6 + $0x58] sm:$0xff] %v5649
      %6050 = vst [vmem:[#allocation6 + $0x60] sm:$0xff] %v5650
      %6051 = vst [vmem:[#allocation6 + $0x68] sm:$0xff] %v5651
      %6052 = vst [vmem:[#allocation6 + $0x70] sm:$0xff] %v5652
      %6053 = vst [vmem:[#allocation6 + $0x78] sm:$0xff] %v5653
      %6054 = vst [vmem:[#allocation6 + $0x80] sm:$0xff] %v5654
      %6055 = vst [vmem:[#allocation6 + $0x88] sm:$0xff] %v5655
      %6056 = vst [vmem:[#allocation6 + $0x90] sm:$0xff] %v5656
      %6057 = vst [vmem:[#allocation6 + $0x98] sm:$0xff] %v5657
      %6058 = vst [vmem:[#allocation6 + $0xa0] sm:$0xff] %v5658
      %6059 = vst [vmem:[#allocation6 + $0xa8] sm:$0xff] %v5659
      %6060 = vst [vmem:[#allocation6 + $0xb0] sm:$0xff] %v5660
      %6061 = vst [vmem:[#allocation6 + $0xb8] sm:$0xff] %v5661
      %6062 = vst [vmem:[#allocation6 + $0xc0] sm:$0xff] %v5662
      %6063 = vst [vmem:[#allocation6 + $0xc8] sm:$0xff] %v5663
      %6064 = vst [vmem:[#allocation6 + $0xd0] sm:$0xff] %v5664
      %6065 = vst [vmem:[#allocation6 + $0xd8] sm:$0xff] %v5665
      %6066 = vst [vmem:[#allocation6 + $0xe0] sm:$0xff] %v5666
      %6067 = vst [vmem:[#allocation6 + $0xe8] sm:$0xff] %v5667
      %6068 = vst [vmem:[#allocation6 + $0xf0] sm:$0xff] %v5668
      %6069 = vst [vmem:[#allocation6 + $0xf8] sm:$0xff] %v5669
      %6070 = vst [vmem:[#allocation6 + $0x100] sm:$0xff] %v5670
      %6071 = vst [vmem:[#allocation6 + $0x108] sm:$0xff] %v5671
      %6072 = vst [vmem:[#allocation6 + $0x110] sm:$0xff] %v5672
      %6073 = vst [vmem:[#allocation6 + $0x118] sm:$0xff] %v5673
      %6074 = vst [vmem:[#allocation6 + $0x120] sm:$0xff] %v5674
      %6075 = vst [vmem:[#allocation6 + $0x128] sm:$0xff] %v5675
      %6076 = vst [vmem:[#allocation6 + $0x130] sm:$0xff] %v5676
      %6077 = vst [vmem:[#allocation6 + $0x138] sm:$0xff] %v5677
      %6078 = vst [vmem:[#allocation6 + $0x140] sm:$0xff] %v5678
      %6079 = vst [vmem:[#allocation6 + $0x148] sm:$0xff] %v5679
      %6080 = vst [vmem:[#allocation6 + $0x150] sm:$0xff] %v5680
      %6081 = vst [vmem:[#allocation6 + $0x158] sm:$0xff] %v5681
      %6082 = vst [vmem:[#allocation6 + $0x160] sm:$0xff] %v5682
      %6083 = vst [vmem:[#allocation6 + $0x168] sm:$0xff] %v5683
      %6084 = vst [vmem:[#allocation6 + $0x170] sm:$0xff] %v5684
      %6085 = vst [vmem:[#allocation6 + $0x178] sm:$0xff] %v5685
      %6086 = vst [vmem:[#allocation6 + $0x180] sm:$0xff] %v5686
      %6087 = vst [vmem:[#allocation6 + $0x188] sm:$0xff] %v5687
      %6088 = vst [vmem:[#allocation6 + $0x190] sm:$0xff] %v5688
      %6089 = vst [vmem:[#allocation6 + $0x198] sm:$0xff] %v5689
      %6090 = vst [vmem:[#allocation6 + $0x1a0] sm:$0xff] %v5690
      %6091 = vst [vmem:[#allocation6 + $0x1a8] sm:$0xff] %v5691
      %6092 = vst [vmem:[#allocation6 + $0x1b0] sm:$0xff] %v5692
      %6093 = vst [vmem:[#allocation6 + $0x1b8] sm:$0xff] %v5693
      %6094 = vst [vmem:[#allocation6 + $0x1c0] sm:$0xff] %v5694
      %6095 = vst [vmem:[#allocation6 + $0x1c8] sm:$0xff] %v5695
      %6096 = vst [vmem:[#allocation6 + $0x1d0] sm:$0xff] %v5696
      %6097 = vst [vmem:[#allocation6 + $0x1d8] sm:$0xff] %v5697
      %6098 = vst [vmem:[#allocation6 + $0x1e0] sm:$0xff] %v5698
      %6099 = vst [vmem:[#allocation6 + $0x1e8] sm:$0xff] %v5699
      %6100 = vst [vmem:[#allocation6 + $0x1f0] sm:$0xff] %v5700
      %6101 = vst [vmem:[#allocation6 + $0x1f8] sm:$0xff] %v5701
      %6102 = vst [vmem:[#allocation6 + $0x200] sm:$0xff] %v5702
      %6103 = vst [vmem:[#allocation6 + $0x208] sm:$0xff] %v5703
      %6104 = vst [vmem:[#allocation6 + $0x210] sm:$0xff] %v5704
      %6105 = vst [vmem:[#allocation6 + $0x218] sm:$0xff] %v5705
      %6106 = vst [vmem:[#allocation6 + $0x220] sm:$0xff] %v5706
      %6107 = vst [vmem:[#allocation6 + $0x228] sm:$0xff] %v5707
      %6108 = vst [vmem:[#allocation6 + $0x230] sm:$0xff] %v5708
      %6109 = vst [vmem:[#allocation6 + $0x238] sm:$0xff] %v5709
      %6110 = vst [vmem:[#allocation6 + $0x240] sm:$0xff] %v5710
      %6111 = vst [vmem:[#allocation6 + $0x248] sm:$0xff] %v5711
      %6112 = vst [vmem:[#allocation6 + $0x250] sm:$0xff] %v5712
      %6113 = vst [vmem:[#allocation6 + $0x258] sm:$0xff] %v5713
      %6114 = vst [vmem:[#allocation6 + $0x260] sm:$0xff] %v5714
      %6115 = vst [vmem:[#allocation6 + $0x268] sm:$0xff] %v5715
      %6116 = vst [vmem:[#allocation6 + $0x270] sm:$0xff] %v5716
      %6117 = vst [vmem:[#allocation6 + $0x278] sm:$0xff] %v5717
      %6118 = vst [vmem:[#allocation6 + $0x280] sm:$0xff] %v5718
      %6119 = vst [vmem:[#allocation6 + $0x288] sm:$0xff] %v5719
      %6120 = vst [vmem:[#allocation6 + $0x290] sm:$0xff] %v5720
      %6121 = vst [vmem:[#allocation6 + $0x298] sm:$0xff] %v5721
      %6122 = vst [vmem:[#allocation6 + $0x2a0] sm:$0xff] %v5722
      %6123 = vst [vmem:[#allocation6 + $0x2a8] sm:$0xff] %v5723
      %6124 = vst [vmem:[#allocation6 + $0x2b0] sm:$0xff] %v5724
      %6125 = vst [vmem:[#allocation6 + $0x2b8] sm:$0xff] %v5725
      %6126 = vst [vmem:[#allocation6 + $0x2c0] sm:$0xff] %v5726
      %6127 = vst [vmem:[#allocation6 + $0x2c8] sm:$0xff] %v5727
      %6128 = vst [vmem:[#allocation6 + $0x2d0] sm:$0xff] %v5728
      %6129 = vst [vmem:[#allocation6 + $0x2d8] sm:$0xff] %v5729
      %6130 = vst [vmem:[#allocation6 + $0x2e0] sm:$0xff] %v5730
      %6131 = vst [vmem:[#allocation6 + $0x2e8] sm:$0xff] %v5731
      %6132 = vst [vmem:[#allocation6 + $0x2f0] sm:$0xff] %v5732
      %6133 = vst [vmem:[#allocation6 + $0x2f8] sm:$0xff] %v5733
      %6134 = vst [vmem:[#allocation6 + $0x300] sm:$0xff] %v5734
      %6135 = vst [vmem:[#allocation6 + $0x308] sm:$0xff] %v5735
      %6136 = vst [vmem:[#allocation6 + $0x310] sm:$0xff] %v5736
      %6137 = vst [vmem:[#allocation6 + $0x318] sm:$0xff] %v5737
      %6138 = vst [vmem:[#allocation6 + $0x320] sm:$0xff] %v5738
      %6139 = vst [vmem:[#allocation6 + $0x328] sm:$0xff] %v5739
      %6140 = vst [vmem:[#allocation6 + $0x330] sm:$0xff] %v5740
      %6141 = vst [vmem:[#allocation6 + $0x338] sm:$0xff] %v5741
      %6142 = vst [vmem:[#allocation6 + $0x340] sm:$0xff] %v5742
      %6143 = vst [vmem:[#allocation6 + $0x348] sm:$0xff] %v5743
      %6144 = vst [vmem:[#allocation6 + $0x350] sm:$0xff] %v5744
      %6145 = vst [vmem:[#allocation6 + $0x358] sm:$0xff] %v5745
      %6146 = vst [vmem:[#allocation6 + $0x360] sm:$0xff] %v5746
      %6147 = vst [vmem:[#allocation6 + $0x368] sm:$0xff] %v5747
      %6148 = vst [vmem:[#allocation6 + $0x370] sm:$0xff] %v5748
      %6149 = vst [vmem:[#allocation6 + $0x378] sm:$0xff] %v5749
      %6150 = vst [vmem:[#allocation6 + $0x380] sm:$0xff] %v5750
      %6151 = vst [vmem:[#allocation6 + $0x388] sm:$0xff] %v5751
      %6152 = vst [vmem:[#allocation6 + $0x390] sm:$0xff] %v5752
      %6153 = vst [vmem:[#allocation6 + $0x398] sm:$0xff] %v5753
      %6154 = vst [vmem:[#allocation6 + $0x3a0] sm:$0xff] %v5754
      %6155 = vst [vmem:[#allocation6 + $0x3a8] sm:$0xff] %v5755
      %6156 = vst [vmem:[#allocation6 + $0x3b0] sm:$0xff] %v5756
      %6157 = vst [vmem:[#allocation6 + $0x3b8] sm:$0xff] %v5757
      %6158 = vst [vmem:[#allocation6 + $0x3c0] sm:$0xff] %v5758
      %6159 = vst [vmem:[#allocation6 + $0x3c8] sm:$0xff] %v5759
      %6160 = vst [vmem:[#allocation6 + $0x3d0] sm:$0xff] %v5760
      %6161 = vst [vmem:[#allocation6 + $0x3d8] sm:$0xff] %v5761
      %6162 = vst [vmem:[#allocation6 + $0x3e0] sm:$0xff] %v5762
      %6163 = vst [vmem:[#allocation6 + $0x3e8] sm:$0xff] %v5763
      %6164 = vst [vmem:[#allocation6 + $0x3f0] sm:$0xff] %v5764
      %6165 = vst [vmem:[#allocation6 + $0x3f8] sm:$0xff] %v5765
      %6166 = vst [vmem:[#allocation6 + $0x400] sm:$0xff] %v5766
      %6167 = vst [vmem:[#allocation6 + $0x408] sm:$0xff] %v5767
      %6168 = vst [vmem:[#allocation6 + $0x410] sm:$0xff] %v5768
      %6169 = vst [vmem:[#allocation6 + $0x418] sm:$0xff] %v5769
      %6170 = vst [vmem:[#allocation6 + $0x420] sm:$0xff] %v5770
      %6171 = vst [vmem:[#allocation6 + $0x428] sm:$0xff] %v5771
      %6172 = vst [vmem:[#allocation6 + $0x430] sm:$0xff] %v5772
      %6173 = vst [vmem:[#allocation6 + $0x438] sm:$0xff] %v5773
      %6174 = vst [vmem:[#allocation6 + $0x440] sm:$0xff] %v5774
      %6175 = vst [vmem:[#allocation6 + $0x448] sm:$0xff] %v5775
      %6176 = vst [vmem:[#allocation6 + $0x450] sm:$0xff] %v5776
      %6177 = vst [vmem:[#allocation6 + $0x458] sm:$0xff] %v5777
      %6178 = vst [vmem:[#allocation6 + $0x460] sm:$0xff] %v5778
      %6179 = vst [vmem:[#allocation6 + $0x468] sm:$0xff] %v5779
      %6180 = vst [vmem:[#allocation6 + $0x470] sm:$0xff] %v5780
      %6181 = vst [vmem:[#allocation6 + $0x478] sm:$0xff] %v5781
      %6182 = vst [vmem:[#allocation6 + $0x480] sm:$0xff] %v5782
      %6183 = vst [vmem:[#allocation6 + $0x488] sm:$0xff] %v5783
      %6184 = vst [vmem:[#allocation6 + $0x490] sm:$0xff] %v5784
      %6185 = vst [vmem:[#allocation6 + $0x498] sm:$0xff] %v5785
      %6186 = vst [vmem:[#allocation6 + $0x4a0] sm:$0xff] %v5786
      %6187 = vst [vmem:[#allocation6 + $0x4a8] sm:$0xff] %v5787
      %6188 = vst [vmem:[#allocation6 + $0x4b0] sm:$0xff] %v5788
      %6189 = vst [vmem:[#allocation6 + $0x4b8] sm:$0xff] %v5789
      %6190 = vst [vmem:[#allocation6 + $0x4c0] sm:$0xff] %v5790
      %6191 = vst [vmem:[#allocation6 + $0x4c8] sm:$0xff] %v5791
      %6192 = vst [vmem:[#allocation6 + $0x4d0] sm:$0xff] %v5792
      %6193 = vst [vmem:[#allocation6 + $0x4d8] sm:$0xff] %v5793
      %6194 = vst [vmem:[#allocation6 + $0x4e0] sm:$0xff] %v5794
      %6195 = vst [vmem:[#allocation6 + $0x4e8] sm:$0xff] %v5795
      %6196 = vst [vmem:[#allocation6 + $0x4f0] sm:$0xff] %v5796
      %6197 = vst [vmem:[#allocation6 + $0x4f8] sm:$0xff] %v5797
      %6198 = vst [vmem:[#allocation6 + $0x500] sm:$0xff] %v5798
      %6199 = vst [vmem:[#allocation6 + $0x508] sm:$0xff] %v5799
      %6200 = vst [vmem:[#allocation6 + $0x510] sm:$0xff] %v5800
      %6201 = vst [vmem:[#allocation6 + $0x518] sm:$0xff] %v5801
      %6202 = vst [vmem:[#allocation6 + $0x520] sm:$0xff] %v5802
      %6203 = vst [vmem:[#allocation6 + $0x528] sm:$0xff] %v5803
      %6204 = vst [vmem:[#allocation6 + $0x530] sm:$0xff] %v5804
      %6205 = vst [vmem:[#allocation6 + $0x538] sm:$0xff] %v5805
      %6206 = vst [vmem:[#allocation6 + $0x540] sm:$0xff] %v5806
      %6207 = vst [vmem:[#allocation6 + $0x548] sm:$0xff] %v5807
      %6208 = vst [vmem:[#allocation6 + $0x550] sm:$0xff] %v5808
      %6209 = vst [vmem:[#allocation6 + $0x558] sm:$0xff] %v5809
      %6210 = vst [vmem:[#allocation6 + $0x560] sm:$0xff] %v5810
      %6211 = vst [vmem:[#allocation6 + $0x568] sm:$0xff] %v5811
      %6212 = vst [vmem:[#allocation6 + $0x570] sm:$0xff] %v5812
      %6213 = vst [vmem:[#allocation6 + $0x578] sm:$0xff] %v5813
      %6214 = vst [vmem:[#allocation6 + $0x580] sm:$0xff] %v5814
      %6215 = vst [vmem:[#allocation6 + $0x588] sm:$0xff] %v5815
      %6216 = vst [vmem:[#allocation6 + $0x590] sm:$0xff] %v5816
      %6217 = vst [vmem:[#allocation6 + $0x598] sm:$0xff] %v5817
      %6218 = vst [vmem:[#allocation6 + $0x5a0] sm:$0xff] %v5818
      %6219 = vst [vmem:[#allocation6 + $0x5a8] sm:$0xff] %v5819
      %6220 = vst [vmem:[#allocation6 + $0x5b0] sm:$0xff] %v5820
      %6221 = vst [vmem:[#allocation6 + $0x5b8] sm:$0xff] %v5821
      %6222 = vst [vmem:[#allocation6 + $0x5c0] sm:$0xff] %v5822
      %6223 = vst [vmem:[#allocation6 + $0x5c8] sm:$0xff] %v5823
      %6224 = vst [vmem:[#allocation6 + $0x5d0] sm:$0xff] %v5824
      %6225 = vst [vmem:[#allocation6 + $0x5d8] sm:$0xff] %v5825
      %6226 = vst [vmem:[#allocation6 + $0x5e0] sm:$0xff] %v5826
      %6227 = vst [vmem:[#allocation6 + $0x5e8] sm:$0xff] %v5827
      %6228 = vst [vmem:[#allocation6 + $0x5f0] sm:$0xff] %v5828
      %6229 = vst [vmem:[#allocation6 + $0x5f8] sm:$0xff] %v5829
      %6230 = vst [vmem:[#allocation6 + $0x600] sm:$0x33] %v5830
      %6231 = vst [vmem:[#allocation6 + $0x608] sm:$0x33] %v5831
      %6232 = vst [vmem:[#allocation6 + $0x610] sm:$0x33] %v5832
      %6233 = vst [vmem:[#allocation6 + $0x618] sm:$0x33] %v5833
      %6234 = vst [vmem:[#allocation6 + $0x620] sm:$0x33] %v5834
      %6235 = vst [vmem:[#allocation6 + $0x628] sm:$0x33] %v5835
      %6236 = vst [vmem:[#allocation6 + $0x630] sm:$0x33] %v5836
      %6237 = vst [vmem:[#allocation6 + $0x638] sm:$0x33] %v5837
    $region25: #{tpu_custom_call.1} parent=1 // pred_fallthru
      _
    // Predicated region
    $region26: #{tpu_custom_call.1} parent=1 // pred_check
      _
    $region27: #{tpu_custom_call.1} parent=1 // pred_check_branch
      %6239 = sbr.rel (0) target = $region29
    $region28: #{tpu_custom_call.1} parent=1 // pred_region
      %s6241 = ssub.s32 25600, 25600
      %6242 = vsyncadd [#allocation5], %s6241
      %s6243 = sshll.u32 [#allocation6], 4
      %s6244 = int_to_ptr.vmem [resolvable:$true] %s6243
      %6249 = dma.vmem_to_hbm [thread:$0]  %s6244, 25600, %s3, [#allocation5], 1024, 1024, 64
    $region29: #{tpu_custom_call.1} parent=1 // pred_fallthru
      _
    // Predicated region
    $region30: #{tpu_custom_call.1} parent=1 // pred_check
      _
    $region31: #{tpu_custom_call.1} parent=1 // pred_check_branch
      %6251 = sbr.rel (0) target = $region33
    $region32: #{tpu_custom_call.1} parent=1 // pred_region
      %6252 = dma.done [#allocation5], 25600
    $region33: #{tpu_custom_call.1} parent=1 // pred_fallthru
      _
    %6253 = vsyncpa [#allocation4], 1
    %6254 = vsyncpa [#allocation5], 1

</llo_original>
